<compile_context>
chip_gen: v7x
topology: tpu7x:2x2x1
jax: 0.10.0
libtpu: 0.0.40
codegen_flags: <defaults>
</compile_context>

<pallas_src>
import functools

import jax
import jax.numpy as jnp
from jax.experimental import pallas as pl
from jax.experimental.pallas import tpu as pltpu

NLAYERS = 15
INPUT_SIZE = 4
HIDDEN = 200          # real hidden size (PyTorch)
OUT_DIM = 4
HP = 256              # hidden padded to 2 lane-tiles (128-aligned gates)
BP = 8                # batch padded to one sublane group
K1, PAD1 = 9, 4       # conv1: kernel_size=9, padding=4
K2, PAD2 = 5, 2       # conv2: kernel_size=5, padding=2
FCP = 128             # padded width for the 100-d / 4-d fc dims


# ------------------------------ in-kernel helpers ------------------------------
def _relu_conv1d(y_scr, cpad_scr, w_ref, b_ref, K, pad, T):
    """relu + 'same' Conv1d over time, from resident VMEM buffers.

    y_scr: (T*BP, HP) f32 activation, rows ordered (t, b).
    cpad_scr: ((T + 2*PAD1)*BP, HP) f32 zero-padded staging buffer (reused for
              both convs; conv2 only touches its leading rows).
    w_ref: (K, HP, HP) bf16 tap-major weights W[k][cin, cout]; b_ref: (1, HP).
    """
    cpad_scr[...] = jnp.zeros_like(cpad_scr)
    cpad_scr[pl.ds(pad * BP, T * BP), :] = jnp.maximum(y_scr[...], 0.0)
    # Two independent partial accumulators so the K MXU results can pipeline.
    acc0 = jnp.zeros((T * BP, HP), jnp.float32)
    acc1 = jnp.zeros((T * BP, HP), jnp.float32)
    for k in range(K):                                      # static tap loop
        part = jnp.dot(
            cpad_scr[pl.ds(k * BP, T * BP), :].astype(jnp.bfloat16),
            w_ref[k], preferred_element_type=jnp.float32)
        if k % 2 == 0:
            acc0 = acc0 + part
        else:
            acc1 = acc1 + part
    return acc0 + acc1 + b_ref[...]


# ------------------------------- the fused kernel -------------------------------
def _large_lstm_kernel(x0_ref, wih_ref, whh_ref, b_ref,
                       c1w_ref, c1b_ref, c2w_ref, c2b_ref,
                       w1_ref, b1_ref, w2_ref, b2_ref, w3_ref, b3_ref,
                       out_ref,
                       y_scr, xp_scr, cpad_scr, h_scr, c_scr, *, T):
    l = pl.program_id(0)          # 0..2*NLAYERS-1: stack = l // 15, layer = l % 15

    @pl.when(l == 0)
    def _():
        y_scr[...] = x0_ref[...]                 # padded input stream (T*BP, HP)
        h_scr[...] = jnp.zeros_like(h_scr)       # zero initial states (stack 1)
        c_scr[...] = jnp.zeros_like(c_scr)
        out_ref[...] = jnp.zeros_like(out_ref)

    @pl.when(l == NLAYERS)
    def _():
        # Between the two stacks: relu + conv1 ('same', K=9), stays in VMEM.
        y_scr[...] = _relu_conv1d(y_scr, cpad_scr, c1w_ref, c1b_ref, K1, PAD1, T)

    # ---- one LSTM layer ----
    # Hoisted input projection for all T steps (+ fused b_ih + b_hh), staged in
    # VMEM scratch so the unrolled recurrence reads aligned 8-row slices.
    xp_scr[...] = (jnp.dot(y_scr[...].astype(jnp.bfloat16), wih_ref[0],
                           preferred_element_type=jnp.float32) + b_ref[0])

    lidx = jnp.where(l >= NLAYERS, l - NLAYERS, l)
    row0 = pl.multiple_of(lidx * BP, BP)
    h = h_scr[pl.ds(row0, BP), :]                # stack1: zeros; stack2: lstm1 finals
    c = c_scr[pl.ds(row0, BP), :]
    whh = whh_ref[0]                             # loop-invariant recurrent weight

    for t in range(T):                           # T == 8, fully unrolled
        g = (xp_scr[pl.ds(t * BP, BP), :]
             + jnp.dot(h.astype(jnp.bfloat16), whh,
                       preferred_element_type=jnp.float32))
        i_g = jax.nn.sigmoid(g[:, 0 * HP:1 * HP])      # 128-aligned gate blocks
        f_g = jax.nn.sigmoid(g[:, 1 * HP:2 * HP])
        g_g = jnp.tanh(g[:, 2 * HP:3 * HP])
        o_g = jax.nn.sigmoid(g[:, 3 * HP:4 * HP])
        c = f_g * c + i_g * g_g
        h = o_g * jnp.tanh(c)
        y_scr[pl.ds(t * BP, BP), :] = h

    # Stack-1 final states seed the matching stack-2 layer; the stack-2 write
    # to the same slot is harmless (never read again).
    h_scr[pl.ds(row0, BP), :] = h
    c_scr[pl.ds(row0, BP), :] = c

    @pl.when(l == 2 * NLAYERS - 1)
    def _():
        # relu -> conv2 -> relu -> fc1 -> relu -> fc2 -> relu -> fc3
        z = _relu_conv1d(y_scr, cpad_scr, c2w_ref, c2b_ref, K2, PAD2, T)
        z = jnp.maximum(z, 0.0)
        z = jnp.maximum(jnp.dot(z, w1_ref[...],
                                preferred_element_type=jnp.float32) + b1_ref[...], 0.0)
        z = jnp.maximum(jnp.dot(z, w2_ref[...],
                                preferred_element_type=jnp.float32) + b2_ref[...], 0.0)
        out_ref[...] = (jnp.dot(z, w3_ref[...],
                                preferred_element_type=jnp.float32) + b3_ref[...])


def _large_lstm_call(x0, p, *, T):
    grid_spec = pltpu.PrefetchScalarGridSpec(
        num_scalar_prefetch=0,
        grid=(2 * NLAYERS,),
        in_specs=[
            pl.BlockSpec((T * BP, HP), lambda l: (0, 0)),           # x0 (resident)
            pl.BlockSpec((1, HP, 4 * HP), lambda l: (l, 0, 0)),     # W_ih[l] (bf16, streamed)
            pl.BlockSpec((1, HP, 4 * HP), lambda l: (l, 0, 0)),     # W_hh[l] (bf16, streamed)
            pl.BlockSpec((1, 1, 4 * HP), lambda l: (l, 0, 0)),      # bias[l]
            pl.BlockSpec((K1, HP, HP), lambda l: (0, 0, 0)),        # conv1 W (resident)
            pl.BlockSpec((1, HP), lambda l: (0, 0)),                # conv1 b
            pl.BlockSpec((K2, HP, HP), lambda l: (0, 0, 0)),        # conv2 W
            pl.BlockSpec((1, HP), lambda l: (0, 0)),                # conv2 b
            pl.BlockSpec((HP, FCP), lambda l: (0, 0)),              # fc1 W
            pl.BlockSpec((1, FCP), lambda l: (0, 0)),               # fc1 b
            pl.BlockSpec((FCP, HP), lambda l: (0, 0)),              # fc2 W
            pl.BlockSpec((1, HP), lambda l: (0, 0)),                # fc2 b
            pl.BlockSpec((HP, FCP), lambda l: (0, 0)),              # fc3 W
            pl.BlockSpec((1, FCP), lambda l: (0, 0)),               # fc3 b
        ],
        out_specs=pl.BlockSpec((T * BP, FCP), lambda l: (0, 0)),    # head output
        scratch_shapes=[
            pltpu.VMEM((T * BP, HP), jnp.float32),                  # layer activation stream
            pltpu.VMEM((T * BP, 4 * HP), jnp.float32),              # staged x-projection
            pltpu.VMEM(((T + 2 * PAD1) * BP, HP), jnp.float32),     # conv padded buffer
            pltpu.VMEM((NLAYERS * BP, HP), jnp.float32),            # per-layer final h
            pltpu.VMEM((NLAYERS * BP, HP), jnp.float32),            # per-layer final c
        ],
    )
    return pl.pallas_call(
        functools.partial(_large_lstm_kernel, T=T),
        out_shape=jax.ShapeDtypeStruct((T * BP, FCP), jnp.float32),
        grid_spec=grid_spec,
        compiler_params=pltpu.CompilerParams(dimension_semantics=("arbitrary",)),
    )(x0, p["wih"], p["whh"], p["b"],
      p["conv1_w"], p["conv1_b"], p["conv2_w"], p["conv2_b"],
      p["fc1_w"], p["fc1_b"], p["fc2_w"], p["fc2_b"], p["fc3_w"], p["fc3_b"])


# --------------------------------- forward pass --------------------------------
def forward(x_btc, params):
    B, T, din = x_btc.shape
    # batch-first (B,T,C) -> time-major rows (t, b); pad batch to BP=8 rows and
    # channels to HP=256 lanes so every slice in the kernel is tile-aligned.
    x = jnp.transpose(x_btc, (1, 0, 2))                     # (T, B, din)
    x = jnp.pad(x, ((0, 0), (0, BP - B), (0, HP - din)))    # (T, BP, HP)
    x = x.reshape(T * BP, HP)

    out = _large_lstm_call(x, params, T=T)                  # (T*BP, FCP)
    out = out.reshape(T, BP, FCP)[:, :B, :OUT_DIM]
    return jnp.transpose(out, (1, 0, 2))                    # (B, T, 4)


# ------------------------------ deterministic init -----------------------------
def init_params(key):
    def u(k, shape, scale):
        return jax.random.uniform(k, shape, jnp.float32, -scale, scale)

    kstd = 1.0 / (HIDDEN ** 0.5)

    def pack_gate_mat(w, din):
        # w: (din, 4*HIDDEN), gates [i,f,g,o] contiguous at HIDDEN boundaries.
        # Re-pack so each gate owns a 256-wide, 128-aligned column block; padded
        # rows/cols are zero so padding never leaks into real lanes.
        out = jnp.zeros((HP, 4 * HP), jnp.float32)
        for gi in range(4):
            out = out.at[:din, gi * HP:gi * HP + HIDDEN].set(
                w[:, gi * HIDDEN:(gi + 1) * HIDDEN])
        return out

    def pack_gate_vec(b):
        out = jnp.zeros((1, 4 * HP), jnp.float32)
        for gi in range(4):
            out = out.at[:, gi * HP:gi * HP + HIDDEN].set(
                b[:, gi * HIDDEN:(gi + 1) * HIDDEN])
        return out

    def init_stack(key, first_in):
        wihs, whhs, bs = [], [], []
        for layer in range(NLAYERS):
            din = first_in if layer == 0 else HIDDEN
            key, k1, k2, k3, k4 = jax.random.split(key, 5)
            wihs.append(pack_gate_mat(u(k1, (din, 4 * HIDDEN), kstd), din))
            whhs.append(pack_gate_mat(u(k2, (HIDDEN, 4 * HIDDEN), kstd), HIDDEN))
            bs.append(pack_gate_vec(u(k3, (1, 4 * HIDDEN), kstd)
                                    + u(k4, (1, 4 * HIDDEN), kstd)))   # b_ih + b_hh
        return jnp.stack(wihs), jnp.stack(whhs), jnp.stack(bs), key

    wih1, whh1, bia1, key = init_stack(key, INPUT_SIZE)
    wih2, whh2, bia2, key = init_stack(key, HIDDEN)

    params = {
        # both stacks concatenated along the layer axis -> one streamed array
        "wih": jnp.concatenate([wih1, wih2]).astype(jnp.bfloat16),   # (30, HP, 4HP)
        "whh": jnp.concatenate([whh1, whh2]).astype(jnp.bfloat16),   # (30, HP, 4HP)
        "b": jnp.concatenate([bia1, bia2]),                          # (30, 1, 4HP) f32
    }

    key, k1, k2, k3, k4 = jax.random.split(key, 5)
    s1 = 1.0 / ((HIDDEN * K1) ** 0.5)
    params["conv1_w"] = (jnp.zeros((K1, HP, HP), jnp.float32)
                         .at[:, :HIDDEN, :HIDDEN]
                         .set(u(k1, (K1, HIDDEN, HIDDEN), s1))).astype(jnp.bfloat16)
    params["conv1_b"] = (jnp.zeros((1, HP), jnp.float32)
                         .at[:, :HIDDEN].set(u(k2, (1, HIDDEN), s1)))
    s2 = 1.0 / ((HIDDEN * K2) ** 0.5)
    params["conv2_w"] = (jnp.zeros((K2, HP, HP), jnp.float32)
                         .at[:, :HIDDEN, :HIDDEN]
                         .set(u(k3, (K2, HIDDEN, HIDDEN), s2))).astype(jnp.bfloat16)
    params["conv2_b"] = (jnp.zeros((1, HP), jnp.float32)
                         .at[:, :HIDDEN].set(u(k4, (1, HIDDEN), s2)))

    key, k1, k2, k3, k4, k5, k6 = jax.random.split(key, 7)
    sh = 1.0 / HIDDEN ** 0.5
    s100 = 1.0 / 100 ** 0.5
    params["fc1_w"] = (jnp.zeros((HP, FCP), jnp.float32)
                       .at[:HIDDEN, :100].set(u(k1, (HIDDEN, 100), sh)))
    params["fc1_b"] = (jnp.zeros((1, FCP), jnp.float32)
                       .at[:, :100].set(u(k2, (1, 100), sh)))
    params["fc2_w"] = (jnp.zeros((FCP, HP), jnp.float32)
                       .at[:100, :HIDDEN].set(u(k3, (100, HIDDEN), s100)))
    params["fc2_b"] = (jnp.zeros((1, HP), jnp.float32)
                       .at[:, :HIDDEN].set(u(k4, (1, HIDDEN), s100)))
    params["fc3_w"] = (jnp.zeros((HP, FCP), jnp.float32)
                       .at[:HIDDEN, :OUT_DIM].set(u(k5, (HIDDEN, OUT_DIM), sh)))
    params["fc3_b"] = (jnp.zeros((1, FCP), jnp.float32)
                       .at[:, :OUT_DIM].set(u(k6, (1, OUT_DIM), sh)))
    return params


if __name__ == "__main__":
    key = jax.random.PRNGKey(0)
    key, xkey = jax.random.split(key)
    B, T = 2, 8
    x = jax.random.normal(xkey, (B, T, INPUT_SIZE), jnp.float32)
    params = init_params(key)

    fwd = jax.jit(forward)
    out = fwd(x, params)
    jax.block_until_ready(out)

    assert out.shape == (B, T, OUT_DIM), out.shape
    assert bool(jnp.all(jnp.isfinite(out)))
    print("KERNEL_OK")
</pallas_src>

<mosaic_0001>
module attributes {stable_mosaic.version = 11 : i64} {
  func.func @_large_lstm_kernel(%arg0: i32, %arg1: memref<64x256xf32, #tpu.memory_space<vmem>>, %arg2: memref<1x256x1024xbf16, #tpu.memory_space<vmem>>, %arg3: memref<1x256x1024xbf16, #tpu.memory_space<vmem>>, %arg4: memref<1x1x1024xf32, #tpu.memory_space<vmem>>, %arg5: memref<9x256x256xbf16, #tpu.memory_space<vmem>>, %arg6: memref<1x256xf32, #tpu.memory_space<vmem>>, %arg7: memref<5x256x256xbf16, #tpu.memory_space<vmem>>, %arg8: memref<1x256xf32, #tpu.memory_space<vmem>>, %arg9: memref<256x128xf32, #tpu.memory_space<vmem>>, %arg10: memref<1x128xf32, #tpu.memory_space<vmem>>, %arg11: memref<128x256xf32, #tpu.memory_space<vmem>>, %arg12: memref<1x256xf32, #tpu.memory_space<vmem>>, %arg13: memref<256x128xf32, #tpu.memory_space<vmem>>, %arg14: memref<1x128xf32, #tpu.memory_space<vmem>>, %arg15: memref<64x128xf32, #tpu.memory_space<vmem>>, %arg16: memref<64x256xf32, #tpu.memory_space<vmem>>, %arg17: memref<64x1024xf32, #tpu.memory_space<vmem>>, %arg18: memref<128x256xf32, #tpu.memory_space<vmem>>, %arg19: memref<120x256xf32, #tpu.memory_space<vmem>>, %arg20: memref<120x256xf32, #tpu.memory_space<vmem>>) attributes {dimension_semantics = [#tpu.dimension_semantics<arbitrary>], iteration_bounds = array<i64: 30>, scalar_prefetch = 0 : i64, scratch_operands = 5 : i64, tpu.core_type = #tpu.core_type<tc>, window_params = [{pipeline_mode = #tpu.pipeline_mode<synchronous>, transform_indices = @transform_0, window_bounds = array<i64: 64, 256>}, {transform_indices = @transform_1, window_bounds = array<i64: 1, 256, 1024>}, {transform_indices = @transform_2, window_bounds = array<i64: 1, 256, 1024>}, {transform_indices = @transform_3, window_bounds = array<i64: 1, 1, 1024>}, {pipeline_mode = #tpu.pipeline_mode<synchronous>, transform_indices = @transform_4, window_bounds = array<i64: 9, 256, 256>}, {pipeline_mode = #tpu.pipeline_mode<synchronous>, transform_indices = @transform_5, window_bounds = array<i64: 1, 256>}, {pipeline_mode = #tpu.pipeline_mode<synchronous>, transform_indices = @transform_6, window_bounds = array<i64: 5, 256, 256>}, {pipeline_mode = #tpu.pipeline_mode<synchronous>, transform_indices = @transform_7, window_bounds = array<i64: 1, 256>}, {pipeline_mode = #tpu.pipeline_mode<synchronous>, transform_indices = @transform_8, window_bounds = array<i64: 256, 128>}, {pipeline_mode = #tpu.pipeline_mode<synchronous>, transform_indices = @transform_9, window_bounds = array<i64: 1, 128>}, {pipeline_mode = #tpu.pipeline_mode<synchronous>, transform_indices = @transform_10, window_bounds = array<i64: 128, 256>}, {pipeline_mode = #tpu.pipeline_mode<synchronous>, transform_indices = @transform_11, window_bounds = array<i64: 1, 256>}, {pipeline_mode = #tpu.pipeline_mode<synchronous>, transform_indices = @transform_12, window_bounds = array<i64: 256, 128>}, {pipeline_mode = #tpu.pipeline_mode<synchronous>, transform_indices = @transform_13, window_bounds = array<i64: 1, 128>}, {pipeline_mode = #tpu.pipeline_mode<synchronous>, transform_indices = @transform_14, window_bounds = array<i64: 64, 128>}]} {
    %c0_i32 = arith.constant 0 : i32
    %0 = arith.cmpi eq, %arg0, %c0_i32 : i32
    %1 = arith.extui %0 : i1 to i32
    %c0_i32_0 = arith.constant 0 : i32
    %2 = arith.cmpi ne, %1, %c0_i32_0 : i32
    scf.if %2 {
      %c0_78 = arith.constant 0 : index
      %c0_79 = arith.constant 0 : index
      %274 = vector.load %arg1[%c0_78, %c0_79] : memref<64x256xf32, #tpu.memory_space<vmem>>, vector<64x256xf32>
      %c0_80 = arith.constant 0 : index
      %c0_81 = arith.constant 0 : index
      %275 = vector.load %arg16[%c0_80, %c0_81] : memref<64x256xf32, #tpu.memory_space<vmem>>, vector<64x256xf32>
      tpu.vector_store %arg16[%c0_80, %c0_81], %274 {strides = array<i32>} : memref<64x256xf32, #tpu.memory_space<vmem>>, vector<64x256xf32>,
      %cst_82 = arith.constant 0.000000e+00 : f32
      %276 = vector.broadcast %cst_82 : f32 to vector<120x256xf32>
      %c0_83 = arith.constant 0 : index
      %c0_84 = arith.constant 0 : index
      %277 = vector.load %arg19[%c0_83, %c0_84] : memref<120x256xf32, #tpu.memory_space<vmem>>, vector<120x256xf32>
      tpu.vector_store %arg19[%c0_83, %c0_84], %276 {strides = array<i32>} : memref<120x256xf32, #tpu.memory_space<vmem>>, vector<120x256xf32>,
      %cst_85 = arith.constant 0.000000e+00 : f32
      %278 = vector.broadcast %cst_85 : f32 to vector<120x256xf32>
      %c0_86 = arith.constant 0 : index
      %c0_87 = arith.constant 0 : index
      %279 = vector.load %arg20[%c0_86, %c0_87] : memref<120x256xf32, #tpu.memory_space<vmem>>, vector<120x256xf32>
      tpu.vector_store %arg20[%c0_86, %c0_87], %278 {strides = array<i32>} : memref<120x256xf32, #tpu.memory_space<vmem>>, vector<120x256xf32>,
      %cst_88 = arith.constant 0.000000e+00 : f32
      %280 = vector.broadcast %cst_88 : f32 to vector<64x128xf32>
      %c0_89 = arith.constant 0 : index
      %c0_90 = arith.constant 0 : index
      %281 = vector.load %arg15[%c0_89, %c0_90] : memref<64x128xf32, #tpu.memory_space<vmem>>, vector<64x128xf32>
      tpu.vector_store %arg15[%c0_89, %c0_90], %280 {strides = array<i32>} : memref<64x128xf32, #tpu.memory_space<vmem>>, vector<64x128xf32>,
    } else {
    }
    %c15_i32 = arith.constant 15 : i32
    %3 = arith.cmpi eq, %arg0, %c15_i32 : i32
    %4 = arith.extui %3 : i1 to i32
    %c0_i32_1 = arith.constant 0 : i32
    %5 = arith.cmpi ne, %4, %c0_i32_1 : i32
    scf.if %5 {
      %cst_78 = arith.constant 0.000000e+00 : f32
      %274 = vector.broadcast %cst_78 : f32 to vector<128x256xf32>
      %c0_79 = arith.constant 0 : index
      %c0_80 = arith.constant 0 : index
      %275 = vector.load %arg18[%c0_79, %c0_80] : memref<128x256xf32, #tpu.memory_space<vmem>>, vector<128x256xf32>
      tpu.vector_store %arg18[%c0_79, %c0_80], %274 {strides = array<i32>} : memref<128x256xf32, #tpu.memory_space<vmem>>, vector<128x256xf32>,
      %c0_81 = arith.constant 0 : index
      %c0_82 = arith.constant 0 : index
      %276 = vector.load %arg16[%c0_81, %c0_82] : memref<64x256xf32, #tpu.memory_space<vmem>>, vector<64x256xf32>
      %cst_83 = arith.constant 0.000000e+00 : f32
      %277 = vector.broadcast %cst_83 : f32 to vector<64x256xf32>
      %278 = arith.maximumf %276, %277 : vector<64x256xf32>
      %c32_84 = arith.constant 32 : index
      %c0_85 = arith.constant 0 : index
      %279 = vector.load %arg18[%c32_84, %c0_85] : memref<128x256xf32, #tpu.memory_space<vmem>>, vector<64x256xf32>
      tpu.vector_store %arg18[%c32_84, %c0_85], %278 {strides = array<i32>} : memref<128x256xf32, #tpu.memory_space<vmem>>, vector<64x256xf32>,
      %cst_86 = arith.constant 0.000000e+00 : f32
      %280 = vector.broadcast %cst_86 : f32 to vector<64x256xf32>
      %cst_87 = arith.constant 0.000000e+00 : f32
      %281 = vector.broadcast %cst_87 : f32 to vector<64x256xf32>
      %c0_88 = arith.constant 0 : index
      %c0_89 = arith.constant 0 : index
      %282 = vector.load %arg18[%c0_88, %c0_89] : memref<128x256xf32, #tpu.memory_space<vmem>>, vector<64x256xf32>
      %283 = arith.truncf %282 : vector<64x256xf32> to vector<64x256xbf16>
      %c0_90 = arith.constant 0 : index
      %c0_91 = arith.constant 0 : index
      %c0_92 = arith.constant 0 : index
      %284 = vector.load %arg5[%c0_90, %c0_91, %c0_92] : memref<9x256x256xbf16, #tpu.memory_space<vmem>>, vector<1x256x256xbf16>
      %285 = vector.shape_cast %284 : vector<1x256x256xbf16> to vector<256x256xbf16>
      %cst_93 = arith.constant dense<0.000000e+00> : vector<64x256xf32>
      %286 = tpu.matmul %283, %285, %cst_93 {dimension_numbers = #tpu.dot_dimension_numbers<[1], [0], [0], [1], [0, 0, 1, 1], [], []>} : vector<64x256xbf16>, vector<256x256xbf16>, vector<64x256xf32> -> vector<64x256xf32>
      %287 = arith.addf %280, %286 : vector<64x256xf32>
      %c8_94 = arith.constant 8 : index
      %c0_95 = arith.constant 0 : index
      %288 = vector.load %arg18[%c8_94, %c0_95] : memref<128x256xf32, #tpu.memory_space<vmem>>, vector<64x256xf32>
      %289 = arith.truncf %288 : vector<64x256xf32> to vector<64x256xbf16>
      %c1 = arith.constant 1 : index
      %c0_96 = arith.constant 0 : index
      %c0_97 = arith.constant 0 : index
      %290 = vector.load %arg5[%c1, %c0_96, %c0_97] : memref<9x256x256xbf16, #tpu.memory_space<vmem>>, vector<1x256x256xbf16>
      %291 = vector.shape_cast %290 : vector<1x256x256xbf16> to vector<256x256xbf16>
      %cst_98 = arith.constant dense<0.000000e+00> : vector<64x256xf32>
      %292 = tpu.matmul %289, %291, %cst_98 {dimension_numbers = #tpu.dot_dimension_numbers<[1], [0], [0], [1], [0, 0, 1, 1], [], []>} : vector<64x256xbf16>, vector<256x256xbf16>, vector<64x256xf32> -> vector<64x256xf32>
      %293 = arith.addf %281, %292 : vector<64x256xf32>
      %c16_99 = arith.constant 16 : index
      %c0_100 = arith.constant 0 : index
      %294 = vector.load %arg18[%c16_99, %c0_100] : memref<128x256xf32, #tpu.memory_space<vmem>>, vector<64x256xf32>
      %295 = arith.truncf %294 : vector<64x256xf32> to vector<64x256xbf16>
      %c2 = arith.constant 2 : index
      %c0_101 = arith.constant 0 : index
      %c0_102 = arith.constant 0 : index
      %296 = vector.load %arg5[%c2, %c0_101, %c0_102] : memref<9x256x256xbf16, #tpu.memory_space<vmem>>, vector<1x256x256xbf16>
      %297 = vector.shape_cast %296 : vector<1x256x256xbf16> to vector<256x256xbf16>
      %cst_103 = arith.constant dense<0.000000e+00> : vector<64x256xf32>
      %298 = tpu.matmul %295, %297, %cst_103 {dimension_numbers = #tpu.dot_dimension_numbers<[1], [0], [0], [1], [0, 0, 1, 1], [], []>} : vector<64x256xbf16>, vector<256x256xbf16>, vector<64x256xf32> -> vector<64x256xf32>
      %299 = arith.addf %287, %298 : vector<64x256xf32>
      %c24_104 = arith.constant 24 : index
      %c0_105 = arith.constant 0 : index
      %300 = vector.load %arg18[%c24_104, %c0_105] : memref<128x256xf32, #tpu.memory_space<vmem>>, vector<64x256xf32>
      %301 = arith.truncf %300 : vector<64x256xf32> to vector<64x256xbf16>
      %c3 = arith.constant 3 : index
      %c0_106 = arith.constant 0 : index
      %c0_107 = arith.constant 0 : index
      %302 = vector.load %arg5[%c3, %c0_106, %c0_107] : memref<9x256x256xbf16, #tpu.memory_space<vmem>>, vector<1x256x256xbf16>
      %303 = vector.shape_cast %302 : vector<1x256x256xbf16> to vector<256x256xbf16>
      %cst_108 = arith.constant dense<0.000000e+00> : vector<64x256xf32>
      %304 = tpu.matmul %301, %303, %cst_108 {dimension_numbers = #tpu.dot_dimension_numbers<[1], [0], [0], [1], [0, 0, 1, 1], [], []>} : vector<64x256xbf16>, vector<256x256xbf16>, vector<64x256xf32> -> vector<64x256xf32>
      %305 = arith.addf %293, %304 : vector<64x256xf32>
      %c32_109 = arith.constant 32 : index
      %c0_110 = arith.constant 0 : index
      %306 = vector.load %arg18[%c32_109, %c0_110] : memref<128x256xf32, #tpu.memory_space<vmem>>, vector<64x256xf32>
      %307 = arith.truncf %306 : vector<64x256xf32> to vector<64x256xbf16>
      %c4 = arith.constant 4 : index
      %c0_111 = arith.constant 0 : index
      %c0_112 = arith.constant 0 : index
      %308 = vector.load %arg5[%c4, %c0_111, %c0_112] : memref<9x256x256xbf16, #tpu.memory_space<vmem>>, vector<1x256x256xbf16>
      %309 = vector.shape_cast %308 : vector<1x256x256xbf16> to vector<256x256xbf16>
      %cst_113 = arith.constant dense<0.000000e+00> : vector<64x256xf32>
      %310 = tpu.matmul %307, %309, %cst_113 {dimension_numbers = #tpu.dot_dimension_numbers<[1], [0], [0], [1], [0, 0, 1, 1], [], []>} : vector<64x256xbf16>, vector<256x256xbf16>, vector<64x256xf32> -> vector<64x256xf32>
      %311 = arith.addf %299, %310 : vector<64x256xf32>
      %c40_114 = arith.constant 40 : index
      %c0_115 = arith.constant 0 : index
      %312 = vector.load %arg18[%c40_114, %c0_115] : memref<128x256xf32, #tpu.memory_space<vmem>>, vector<64x256xf32>
      %313 = arith.truncf %312 : vector<64x256xf32> to vector<64x256xbf16>
      %c5 = arith.constant 5 : index
      %c0_116 = arith.constant 0 : index
      %c0_117 = arith.constant 0 : index
      %314 = vector.load %arg5[%c5, %c0_116, %c0_117] : memref<9x256x256xbf16, #tpu.memory_space<vmem>>, vector<1x256x256xbf16>
      %315 = vector.shape_cast %314 : vector<1x256x256xbf16> to vector<256x256xbf16>
      %cst_118 = arith.constant dense<0.000000e+00> : vector<64x256xf32>
      %316 = tpu.matmul %313, %315, %cst_118 {dimension_numbers = #tpu.dot_dimension_numbers<[1], [0], [0], [1], [0, 0, 1, 1], [], []>} : vector<64x256xbf16>, vector<256x256xbf16>, vector<64x256xf32> -> vector<64x256xf32>
      %317 = arith.addf %305, %316 : vector<64x256xf32>
      %c48_119 = arith.constant 48 : index
      %c0_120 = arith.constant 0 : index
      %318 = vector.load %arg18[%c48_119, %c0_120] : memref<128x256xf32, #tpu.memory_space<vmem>>, vector<64x256xf32>
      %319 = arith.truncf %318 : vector<64x256xf32> to vector<64x256xbf16>
      %c6 = arith.constant 6 : index
      %c0_121 = arith.constant 0 : index
      %c0_122 = arith.constant 0 : index
      %320 = vector.load %arg5[%c6, %c0_121, %c0_122] : memref<9x256x256xbf16, #tpu.memory_space<vmem>>, vector<1x256x256xbf16>
      %321 = vector.shape_cast %320 : vector<1x256x256xbf16> to vector<256x256xbf16>
      %cst_123 = arith.constant dense<0.000000e+00> : vector<64x256xf32>
      %322 = tpu.matmul %319, %321, %cst_123 {dimension_numbers = #tpu.dot_dimension_numbers<[1], [0], [0], [1], [0, 0, 1, 1], [], []>} : vector<64x256xbf16>, vector<256x256xbf16>, vector<64x256xf32> -> vector<64x256xf32>
      %323 = arith.addf %311, %322 : vector<64x256xf32>
      %c56_124 = arith.constant 56 : index
      %c0_125 = arith.constant 0 : index
      %324 = vector.load %arg18[%c56_124, %c0_125] : memref<128x256xf32, #tpu.memory_space<vmem>>, vector<64x256xf32>
      %325 = arith.truncf %324 : vector<64x256xf32> to vector<64x256xbf16>
      %c7 = arith.constant 7 : index
      %c0_126 = arith.constant 0 : index
      %c0_127 = arith.constant 0 : index
      %326 = vector.load %arg5[%c7, %c0_126, %c0_127] : memref<9x256x256xbf16, #tpu.memory_space<vmem>>, vector<1x256x256xbf16>
      %327 = vector.shape_cast %326 : vector<1x256x256xbf16> to vector<256x256xbf16>
      %cst_128 = arith.constant dense<0.000000e+00> : vector<64x256xf32>
      %328 = tpu.matmul %325, %327, %cst_128 {dimension_numbers = #tpu.dot_dimension_numbers<[1], [0], [0], [1], [0, 0, 1, 1], [], []>} : vector<64x256xbf16>, vector<256x256xbf16>, vector<64x256xf32> -> vector<64x256xf32>
      %329 = arith.addf %317, %328 : vector<64x256xf32>
      %c64 = arith.constant 64 : index
      %c0_129 = arith.constant 0 : index
      %330 = vector.load %arg18[%c64, %c0_129] : memref<128x256xf32, #tpu.memory_space<vmem>>, vector<64x256xf32>
      %331 = arith.truncf %330 : vector<64x256xf32> to vector<64x256xbf16>
      %c8_130 = arith.constant 8 : index
      %c0_131 = arith.constant 0 : index
      %c0_132 = arith.constant 0 : index
      %332 = vector.load %arg5[%c8_130, %c0_131, %c0_132] : memref<9x256x256xbf16, #tpu.memory_space<vmem>>, vector<1x256x256xbf16>
      %333 = vector.shape_cast %332 : vector<1x256x256xbf16> to vector<256x256xbf16>
      %cst_133 = arith.constant dense<0.000000e+00> : vector<64x256xf32>
      %334 = tpu.matmul %331, %333, %cst_133 {dimension_numbers = #tpu.dot_dimension_numbers<[1], [0], [0], [1], [0, 0, 1, 1], [], []>} : vector<64x256xbf16>, vector<256x256xbf16>, vector<64x256xf32> -> vector<64x256xf32>
      %335 = arith.addf %323, %334 : vector<64x256xf32>
      %336 = arith.addf %335, %329 : vector<64x256xf32>
      %c0_134 = arith.constant 0 : index
      %c0_135 = arith.constant 0 : index
      %337 = vector.load %arg6[%c0_134, %c0_135] : memref<1x256xf32, #tpu.memory_space<vmem>>, vector<1x256xf32>
      %338 = vector.broadcast %337 : vector<1x256xf32> to vector<64x256xf32>
      %339 = arith.addf %336, %338 : vector<64x256xf32>
      %c0_136 = arith.constant 0 : index
      %c0_137 = arith.constant 0 : index
      %340 = vector.load %arg16[%c0_136, %c0_137] : memref<64x256xf32, #tpu.memory_space<vmem>>, vector<64x256xf32>
      tpu.vector_store %arg16[%c0_136, %c0_137], %339 {strides = array<i32>} : memref<64x256xf32, #tpu.memory_space<vmem>>, vector<64x256xf32>,
    } else {
    }
    %c0 = arith.constant 0 : index
    %c0_2 = arith.constant 0 : index
    %6 = vector.load %arg16[%c0, %c0_2] : memref<64x256xf32, #tpu.memory_space<vmem>>, vector<64x256xf32>
    %7 = arith.truncf %6 : vector<64x256xf32> to vector<64x256xbf16>
    %c0_3 = arith.constant 0 : index
    %c0_4 = arith.constant 0 : index
    %c0_5 = arith.constant 0 : index
    %8 = vector.load %arg2[%c0_3, %c0_4, %c0_5] : memref<1x256x1024xbf16, #tpu.memory_space<vmem>>, vector<1x256x1024xbf16>
    %9 = vector.shape_cast %8 : vector<1x256x1024xbf16> to vector<256x1024xbf16>
    %cst = arith.constant dense<0.000000e+00> : vector<64x1024xf32>
    %10 = tpu.matmul %7, %9, %cst {dimension_numbers = #tpu.dot_dimension_numbers<[1], [0], [0], [1], [0, 0, 1, 1], [], []>} : vector<64x256xbf16>, vector<256x1024xbf16>, vector<64x1024xf32> -> vector<64x1024xf32>
    %c0_6 = arith.constant 0 : index
    %c0_7 = arith.constant 0 : index
    %c0_8 = arith.constant 0 : index
    %11 = vector.load %arg4[%c0_6, %c0_7, %c0_8] : memref<1x1x1024xf32, #tpu.memory_space<vmem>>, vector<1x1x1024xf32>
    %12 = vector.shape_cast %11 : vector<1x1x1024xf32> to vector<1x1024xf32>
    %13 = vector.broadcast %12 : vector<1x1024xf32> to vector<64x1024xf32>
    %14 = arith.addf %10, %13 : vector<64x1024xf32>
    %c0_9 = arith.constant 0 : index
    %c0_10 = arith.constant 0 : index
    %15 = vector.load %arg17[%c0_9, %c0_10] : memref<64x1024xf32, #tpu.memory_space<vmem>>, vector<64x1024xf32>
    tpu.vector_store %arg17[%c0_9, %c0_10], %14 {strides = array<i32>} : memref<64x1024xf32, #tpu.memory_space<vmem>>, vector<64x1024xf32>,
    %c15_i32_11 = arith.constant 15 : i32
    %16 = arith.cmpi sge, %arg0, %c15_i32_11 : i32
    %c15_i32_12 = arith.constant 15 : i32
    %17 = arith.subi %arg0, %c15_i32_12 : i32
    %18 = arith.select %16, %17, %arg0 : i32
    %c8_i32 = arith.constant 8 : i32
    %19 = arith.muli %18, %c8_i32 : i32
    %20 = tpu.assume_multiple %19, 8 : i32
    %21 = arith.index_cast %20 : i32 to index
    %c0_13 = arith.constant 0 : index
    %22 = vector.load %arg19[%21, %c0_13] : memref<120x256xf32, #tpu.memory_space<vmem>>, vector<8x256xf32>
    %23 = arith.index_cast %20 : i32 to index
    %c0_14 = arith.constant 0 : index
    %24 = vector.load %arg20[%23, %c0_14] : memref<120x256xf32, #tpu.memory_space<vmem>>, vector<8x256xf32>
    %c0_15 = arith.constant 0 : index
    %c0_16 = arith.constant 0 : index
    %c0_17 = arith.constant 0 : index
    %25 = vector.load %arg3[%c0_15, %c0_16, %c0_17] : memref<1x256x1024xbf16, #tpu.memory_space<vmem>>, vector<1x256x1024xbf16>
    %26 = vector.shape_cast %25 : vector<1x256x1024xbf16> to vector<256x1024xbf16>
    %c0_18 = arith.constant 0 : index
    %c0_19 = arith.constant 0 : index
    %27 = vector.load %arg17[%c0_18, %c0_19] : memref<64x1024xf32, #tpu.memory_space<vmem>>, vector<8x1024xf32>
    %28 = arith.truncf %22 : vector<8x256xf32> to vector<8x256xbf16>
    %cst_20 = arith.constant dense<0.000000e+00> : vector<8x1024xf32>
    %29 = tpu.matmul %28, %26, %cst_20 {dimension_numbers = #tpu.dot_dimension_numbers<[1], [0], [0], [1], [0, 0, 1, 1], [], []>} : vector<8x256xbf16>, vector<256x1024xbf16>, vector<8x1024xf32> -> vector<8x1024xf32>
    %30 = arith.addf %27, %29 : vector<8x1024xf32>
    %31 = vector.extract_strided_slice %30 {offsets = [0, 0], sizes = [8, 256], strides = [1, 1]} : vector<8x1024xf32> to vector<8x256xf32>
    %32 = arith.negf %31 : vector<8x256xf32>
    %33 = math.exp %32 : vector<8x256xf32>
    %cst_21 = arith.constant 1.000000e+00 : f32
    %34 = vector.broadcast %cst_21 : f32 to vector<8x256xf32>
    %35 = arith.addf %34, %33 : vector<8x256xf32>
    %36 = arith.divf %34, %35 : vector<8x256xf32>
    %37 = vector.extract_strided_slice %30 {offsets = [0, 256], sizes = [8, 256], strides = [1, 1]} : vector<8x1024xf32> to vector<8x256xf32>
    %38 = arith.negf %37 : vector<8x256xf32>
    %39 = math.exp %38 : vector<8x256xf32>
    %cst_22 = arith.constant 1.000000e+00 : f32
    %40 = vector.broadcast %cst_22 : f32 to vector<8x256xf32>
    %41 = arith.addf %40, %39 : vector<8x256xf32>
    %42 = arith.divf %40, %41 : vector<8x256xf32>
    %43 = vector.extract_strided_slice %30 {offsets = [0, 512], sizes = [8, 256], strides = [1, 1]} : vector<8x1024xf32> to vector<8x256xf32>
    %44 = math.tanh %43 : vector<8x256xf32>
    %45 = vector.extract_strided_slice %30 {offsets = [0, 768], sizes = [8, 256], strides = [1, 1]} : vector<8x1024xf32> to vector<8x256xf32>
    %46 = arith.negf %45 : vector<8x256xf32>
    %47 = math.exp %46 : vector<8x256xf32>
    %cst_23 = arith.constant 1.000000e+00 : f32
    %48 = vector.broadcast %cst_23 : f32 to vector<8x256xf32>
    %49 = arith.addf %48, %47 : vector<8x256xf32>
    %50 = arith.divf %48, %49 : vector<8x256xf32>
    %51 = arith.mulf %42, %24 : vector<8x256xf32>
    %52 = arith.mulf %36, %44 : vector<8x256xf32>
    %53 = arith.addf %51, %52 : vector<8x256xf32>
    %54 = math.tanh %53 : vector<8x256xf32>
    %55 = arith.mulf %50, %54 : vector<8x256xf32>
    %c0_24 = arith.constant 0 : index
    %c0_25 = arith.constant 0 : index
    %56 = vector.load %arg16[%c0_24, %c0_25] : memref<64x256xf32, #tpu.memory_space<vmem>>, vector<8x256xf32>
    tpu.vector_store %arg16[%c0_24, %c0_25], %55 {strides = array<i32>} : memref<64x256xf32, #tpu.memory_space<vmem>>, vector<8x256xf32>,
    %c8 = arith.constant 8 : index
    %c0_26 = arith.constant 0 : index
    %57 = vector.load %arg17[%c8, %c0_26] : memref<64x1024xf32, #tpu.memory_space<vmem>>, vector<8x1024xf32>
    %58 = arith.truncf %55 : vector<8x256xf32> to vector<8x256xbf16>
    %cst_27 = arith.constant dense<0.000000e+00> : vector<8x1024xf32>
    %59 = tpu.matmul %58, %26, %cst_27 {dimension_numbers = #tpu.dot_dimension_numbers<[1], [0], [0], [1], [0, 0, 1, 1], [], []>} : vector<8x256xbf16>, vector<256x1024xbf16>, vector<8x1024xf32> -> vector<8x1024xf32>
    %60 = arith.addf %57, %59 : vector<8x1024xf32>
    %61 = vector.extract_strided_slice %60 {offsets = [0, 0], sizes = [8, 256], strides = [1, 1]} : vector<8x1024xf32> to vector<8x256xf32>
    %62 = arith.negf %61 : vector<8x256xf32>
    %63 = math.exp %62 : vector<8x256xf32>
    %cst_28 = arith.constant 1.000000e+00 : f32
    %64 = vector.broadcast %cst_28 : f32 to vector<8x256xf32>
    %65 = arith.addf %64, %63 : vector<8x256xf32>
    %66 = arith.divf %64, %65 : vector<8x256xf32>
    %67 = vector.extract_strided_slice %60 {offsets = [0, 256], sizes = [8, 256], strides = [1, 1]} : vector<8x1024xf32> to vector<8x256xf32>
    %68 = arith.negf %67 : vector<8x256xf32>
    %69 = math.exp %68 : vector<8x256xf32>
    %cst_29 = arith.constant 1.000000e+00 : f32
    %70 = vector.broadcast %cst_29 : f32 to vector<8x256xf32>
    %71 = arith.addf %70, %69 : vector<8x256xf32>
    %72 = arith.divf %70, %71 : vector<8x256xf32>
    %73 = vector.extract_strided_slice %60 {offsets = [0, 512], sizes = [8, 256], strides = [1, 1]} : vector<8x1024xf32> to vector<8x256xf32>
    %74 = math.tanh %73 : vector<8x256xf32>
    %75 = vector.extract_strided_slice %60 {offsets = [0, 768], sizes = [8, 256], strides = [1, 1]} : vector<8x1024xf32> to vector<8x256xf32>
    %76 = arith.negf %75 : vector<8x256xf32>
    %77 = math.exp %76 : vector<8x256xf32>
    %cst_30 = arith.constant 1.000000e+00 : f32
    %78 = vector.broadcast %cst_30 : f32 to vector<8x256xf32>
    %79 = arith.addf %78, %77 : vector<8x256xf32>
    %80 = arith.divf %78, %79 : vector<8x256xf32>
    %81 = arith.mulf %72, %53 : vector<8x256xf32>
    %82 = arith.mulf %66, %74 : vector<8x256xf32>
    %83 = arith.addf %81, %82 : vector<8x256xf32>
    %84 = math.tanh %83 : vector<8x256xf32>
    %85 = arith.mulf %80, %84 : vector<8x256xf32>
    %c8_31 = arith.constant 8 : index
    %c0_32 = arith.constant 0 : index
    %86 = vector.load %arg16[%c8_31, %c0_32] : memref<64x256xf32, #tpu.memory_space<vmem>>, vector<8x256xf32>
    tpu.vector_store %arg16[%c8_31, %c0_32], %85 {strides = array<i32>} : memref<64x256xf32, #tpu.memory_space<vmem>>, vector<8x256xf32>,
    %c16 = arith.constant 16 : index
    %c0_33 = arith.constant 0 : index
    %87 = vector.load %arg17[%c16, %c0_33] : memref<64x1024xf32, #tpu.memory_space<vmem>>, vector<8x1024xf32>
    %88 = arith.truncf %85 : vector<8x256xf32> to vector<8x256xbf16>
    %cst_34 = arith.constant dense<0.000000e+00> : vector<8x1024xf32>
    %89 = tpu.matmul %88, %26, %cst_34 {dimension_numbers = #tpu.dot_dimension_numbers<[1], [0], [0], [1], [0, 0, 1, 1], [], []>} : vector<8x256xbf16>, vector<256x1024xbf16>, vector<8x1024xf32> -> vector<8x1024xf32>
    %90 = arith.addf %87, %89 : vector<8x1024xf32>
    %91 = vector.extract_strided_slice %90 {offsets = [0, 0], sizes = [8, 256], strides = [1, 1]} : vector<8x1024xf32> to vector<8x256xf32>
    %92 = arith.negf %91 : vector<8x256xf32>
    %93 = math.exp %92 : vector<8x256xf32>
    %cst_35 = arith.constant 1.000000e+00 : f32
    %94 = vector.broadcast %cst_35 : f32 to vector<8x256xf32>
    %95 = arith.addf %94, %93 : vector<8x256xf32>
    %96 = arith.divf %94, %95 : vector<8x256xf32>
    %97 = vector.extract_strided_slice %90 {offsets = [0, 256], sizes = [8, 256], strides = [1, 1]} : vector<8x1024xf32> to vector<8x256xf32>
    %98 = arith.negf %97 : vector<8x256xf32>
    %99 = math.exp %98 : vector<8x256xf32>
    %cst_36 = arith.constant 1.000000e+00 : f32
    %100 = vector.broadcast %cst_36 : f32 to vector<8x256xf32>
    %101 = arith.addf %100, %99 : vector<8x256xf32>
    %102 = arith.divf %100, %101 : vector<8x256xf32>
    %103 = vector.extract_strided_slice %90 {offsets = [0, 512], sizes = [8, 256], strides = [1, 1]} : vector<8x1024xf32> to vector<8x256xf32>
    %104 = math.tanh %103 : vector<8x256xf32>
    %105 = vector.extract_strided_slice %90 {offsets = [0, 768], sizes = [8, 256], strides = [1, 1]} : vector<8x1024xf32> to vector<8x256xf32>
    %106 = arith.negf %105 : vector<8x256xf32>
    %107 = math.exp %106 : vector<8x256xf32>
    %cst_37 = arith.constant 1.000000e+00 : f32
    %108 = vector.broadcast %cst_37 : f32 to vector<8x256xf32>
    %109 = arith.addf %108, %107 : vector<8x256xf32>
    %110 = arith.divf %108, %109 : vector<8x256xf32>
    %111 = arith.mulf %102, %83 : vector<8x256xf32>
    %112 = arith.mulf %96, %104 : vector<8x256xf32>
    %113 = arith.addf %111, %112 : vector<8x256xf32>
    %114 = math.tanh %113 : vector<8x256xf32>
    %115 = arith.mulf %110, %114 : vector<8x256xf32>
    %c16_38 = arith.constant 16 : index
    %c0_39 = arith.constant 0 : index
    %116 = vector.load %arg16[%c16_38, %c0_39] : memref<64x256xf32, #tpu.memory_space<vmem>>, vector<8x256xf32>
    tpu.vector_store %arg16[%c16_38, %c0_39], %115 {strides = array<i32>} : memref<64x256xf32, #tpu.memory_space<vmem>>, vector<8x256xf32>,
    %c24 = arith.constant 24 : index
    %c0_40 = arith.constant 0 : index
    %117 = vector.load %arg17[%c24, %c0_40] : memref<64x1024xf32, #tpu.memory_space<vmem>>, vector<8x1024xf32>
    %118 = arith.truncf %115 : vector<8x256xf32> to vector<8x256xbf16>
    %cst_41 = arith.constant dense<0.000000e+00> : vector<8x1024xf32>
    %119 = tpu.matmul %118, %26, %cst_41 {dimension_numbers = #tpu.dot_dimension_numbers<[1], [0], [0], [1], [0, 0, 1, 1], [], []>} : vector<8x256xbf16>, vector<256x1024xbf16>, vector<8x1024xf32> -> vector<8x1024xf32>
    %120 = arith.addf %117, %119 : vector<8x1024xf32>
    %121 = vector.extract_strided_slice %120 {offsets = [0, 0], sizes = [8, 256], strides = [1, 1]} : vector<8x1024xf32> to vector<8x256xf32>
    %122 = arith.negf %121 : vector<8x256xf32>
    %123 = math.exp %122 : vector<8x256xf32>
    %cst_42 = arith.constant 1.000000e+00 : f32
    %124 = vector.broadcast %cst_42 : f32 to vector<8x256xf32>
    %125 = arith.addf %124, %123 : vector<8x256xf32>
    %126 = arith.divf %124, %125 : vector<8x256xf32>
    %127 = vector.extract_strided_slice %120 {offsets = [0, 256], sizes = [8, 256], strides = [1, 1]} : vector<8x1024xf32> to vector<8x256xf32>
    %128 = arith.negf %127 : vector<8x256xf32>
    %129 = math.exp %128 : vector<8x256xf32>
    %cst_43 = arith.constant 1.000000e+00 : f32
    %130 = vector.broadcast %cst_43 : f32 to vector<8x256xf32>
    %131 = arith.addf %130, %129 : vector<8x256xf32>
    %132 = arith.divf %130, %131 : vector<8x256xf32>
    %133 = vector.extract_strided_slice %120 {offsets = [0, 512], sizes = [8, 256], strides = [1, 1]} : vector<8x1024xf32> to vector<8x256xf32>
    %134 = math.tanh %133 : vector<8x256xf32>
    %135 = vector.extract_strided_slice %120 {offsets = [0, 768], sizes = [8, 256], strides = [1, 1]} : vector<8x1024xf32> to vector<8x256xf32>
    %136 = arith.negf %135 : vector<8x256xf32>
    %137 = math.exp %136 : vector<8x256xf32>
    %cst_44 = arith.constant 1.000000e+00 : f32
    %138 = vector.broadcast %cst_44 : f32 to vector<8x256xf32>
    %139 = arith.addf %138, %137 : vector<8x256xf32>
    %140 = arith.divf %138, %139 : vector<8x256xf32>
    %141 = arith.mulf %132, %113 : vector<8x256xf32>
    %142 = arith.mulf %126, %134 : vector<8x256xf32>
    %143 = arith.addf %141, %142 : vector<8x256xf32>
    %144 = math.tanh %143 : vector<8x256xf32>
    %145 = arith.mulf %140, %144 : vector<8x256xf32>
    %c24_45 = arith.constant 24 : index
    %c0_46 = arith.constant 0 : index
    %146 = vector.load %arg16[%c24_45, %c0_46] : memref<64x256xf32, #tpu.memory_space<vmem>>, vector<8x256xf32>
    tpu.vector_store %arg16[%c24_45, %c0_46], %145 {strides = array<i32>} : memref<64x256xf32, #tpu.memory_space<vmem>>, vector<8x256xf32>,
    %c32 = arith.constant 32 : index
    %c0_47 = arith.constant 0 : index
    %147 = vector.load %arg17[%c32, %c0_47] : memref<64x1024xf32, #tpu.memory_space<vmem>>, vector<8x1024xf32>
    %148 = arith.truncf %145 : vector<8x256xf32> to vector<8x256xbf16>
    %cst_48 = arith.constant dense<0.000000e+00> : vector<8x1024xf32>
    %149 = tpu.matmul %148, %26, %cst_48 {dimension_numbers = #tpu.dot_dimension_numbers<[1], [0], [0], [1], [0, 0, 1, 1], [], []>} : vector<8x256xbf16>, vector<256x1024xbf16>, vector<8x1024xf32> -> vector<8x1024xf32>
    %150 = arith.addf %147, %149 : vector<8x1024xf32>
    %151 = vector.extract_strided_slice %150 {offsets = [0, 0], sizes = [8, 256], strides = [1, 1]} : vector<8x1024xf32> to vector<8x256xf32>
    %152 = arith.negf %151 : vector<8x256xf32>
    %153 = math.exp %152 : vector<8x256xf32>
    %cst_49 = arith.constant 1.000000e+00 : f32
    %154 = vector.broadcast %cst_49 : f32 to vector<8x256xf32>
    %155 = arith.addf %154, %153 : vector<8x256xf32>
    %156 = arith.divf %154, %155 : vector<8x256xf32>
    %157 = vector.extract_strided_slice %150 {offsets = [0, 256], sizes = [8, 256], strides = [1, 1]} : vector<8x1024xf32> to vector<8x256xf32>
    %158 = arith.negf %157 : vector<8x256xf32>
    %159 = math.exp %158 : vector<8x256xf32>
    %cst_50 = arith.constant 1.000000e+00 : f32
    %160 = vector.broadcast %cst_50 : f32 to vector<8x256xf32>
    %161 = arith.addf %160, %159 : vector<8x256xf32>
    %162 = arith.divf %160, %161 : vector<8x256xf32>
    %163 = vector.extract_strided_slice %150 {offsets = [0, 512], sizes = [8, 256], strides = [1, 1]} : vector<8x1024xf32> to vector<8x256xf32>
    %164 = math.tanh %163 : vector<8x256xf32>
    %165 = vector.extract_strided_slice %150 {offsets = [0, 768], sizes = [8, 256], strides = [1, 1]} : vector<8x1024xf32> to vector<8x256xf32>
    %166 = arith.negf %165 : vector<8x256xf32>
    %167 = math.exp %166 : vector<8x256xf32>
    %cst_51 = arith.constant 1.000000e+00 : f32
    %168 = vector.broadcast %cst_51 : f32 to vector<8x256xf32>
    %169 = arith.addf %168, %167 : vector<8x256xf32>
    %170 = arith.divf %168, %169 : vector<8x256xf32>
    %171 = arith.mulf %162, %143 : vector<8x256xf32>
    %172 = arith.mulf %156, %164 : vector<8x256xf32>
    %173 = arith.addf %171, %172 : vector<8x256xf32>
    %174 = math.tanh %173 : vector<8x256xf32>
    %175 = arith.mulf %170, %174 : vector<8x256xf32>
    %c32_52 = arith.constant 32 : index
    %c0_53 = arith.constant 0 : index
    %176 = vector.load %arg16[%c32_52, %c0_53] : memref<64x256xf32, #tpu.memory_space<vmem>>, vector<8x256xf32>
    tpu.vector_store %arg16[%c32_52, %c0_53], %175 {strides = array<i32>} : memref<64x256xf32, #tpu.memory_space<vmem>>, vector<8x256xf32>,
    %c40 = arith.constant 40 : index
    %c0_54 = arith.constant 0 : index
    %177 = vector.load %arg17[%c40, %c0_54] : memref<64x1024xf32, #tpu.memory_space<vmem>>, vector<8x1024xf32>
    %178 = arith.truncf %175 : vector<8x256xf32> to vector<8x256xbf16>
    %cst_55 = arith.constant dense<0.000000e+00> : vector<8x1024xf32>
    %179 = tpu.matmul %178, %26, %cst_55 {dimension_numbers = #tpu.dot_dimension_numbers<[1], [0], [0], [1], [0, 0, 1, 1], [], []>} : vector<8x256xbf16>, vector<256x1024xbf16>, vector<8x1024xf32> -> vector<8x1024xf32>
    %180 = arith.addf %177, %179 : vector<8x1024xf32>
    %181 = vector.extract_strided_slice %180 {offsets = [0, 0], sizes = [8, 256], strides = [1, 1]} : vector<8x1024xf32> to vector<8x256xf32>
    %182 = arith.negf %181 : vector<8x256xf32>
    %183 = math.exp %182 : vector<8x256xf32>
    %cst_56 = arith.constant 1.000000e+00 : f32
    %184 = vector.broadcast %cst_56 : f32 to vector<8x256xf32>
    %185 = arith.addf %184, %183 : vector<8x256xf32>
    %186 = arith.divf %184, %185 : vector<8x256xf32>
    %187 = vector.extract_strided_slice %180 {offsets = [0, 256], sizes = [8, 256], strides = [1, 1]} : vector<8x1024xf32> to vector<8x256xf32>
    %188 = arith.negf %187 : vector<8x256xf32>
    %189 = math.exp %188 : vector<8x256xf32>
    %cst_57 = arith.constant 1.000000e+00 : f32
    %190 = vector.broadcast %cst_57 : f32 to vector<8x256xf32>
    %191 = arith.addf %190, %189 : vector<8x256xf32>
    %192 = arith.divf %190, %191 : vector<8x256xf32>
    %193 = vector.extract_strided_slice %180 {offsets = [0, 512], sizes = [8, 256], strides = [1, 1]} : vector<8x1024xf32> to vector<8x256xf32>
    %194 = math.tanh %193 : vector<8x256xf32>
    %195 = vector.extract_strided_slice %180 {offsets = [0, 768], sizes = [8, 256], strides = [1, 1]} : vector<8x1024xf32> to vector<8x256xf32>
    %196 = arith.negf %195 : vector<8x256xf32>
    %197 = math.exp %196 : vector<8x256xf32>
    %cst_58 = arith.constant 1.000000e+00 : f32
    %198 = vector.broadcast %cst_58 : f32 to vector<8x256xf32>
    %199 = arith.addf %198, %197 : vector<8x256xf32>
    %200 = arith.divf %198, %199 : vector<8x256xf32>
    %201 = arith.mulf %192, %173 : vector<8x256xf32>
    %202 = arith.mulf %186, %194 : vector<8x256xf32>
    %203 = arith.addf %201, %202 : vector<8x256xf32>
    %204 = math.tanh %203 : vector<8x256xf32>
    %205 = arith.mulf %200, %204 : vector<8x256xf32>
    %c40_59 = arith.constant 40 : index
    %c0_60 = arith.constant 0 : index
    %206 = vector.load %arg16[%c40_59, %c0_60] : memref<64x256xf32, #tpu.memory_space<vmem>>, vector<8x256xf32>
    tpu.vector_store %arg16[%c40_59, %c0_60], %205 {strides = array<i32>} : memref<64x256xf32, #tpu.memory_space<vmem>>, vector<8x256xf32>,
    %c48 = arith.constant 48 : index
    %c0_61 = arith.constant 0 : index
    %207 = vector.load %arg17[%c48, %c0_61] : memref<64x1024xf32, #tpu.memory_space<vmem>>, vector<8x1024xf32>
    %208 = arith.truncf %205 : vector<8x256xf32> to vector<8x256xbf16>
    %cst_62 = arith.constant dense<0.000000e+00> : vector<8x1024xf32>
    %209 = tpu.matmul %208, %26, %cst_62 {dimension_numbers = #tpu.dot_dimension_numbers<[1], [0], [0], [1], [0, 0, 1, 1], [], []>} : vector<8x256xbf16>, vector<256x1024xbf16>, vector<8x1024xf32> -> vector<8x1024xf32>
    %210 = arith.addf %207, %209 : vector<8x1024xf32>
    %211 = vector.extract_strided_slice %210 {offsets = [0, 0], sizes = [8, 256], strides = [1, 1]} : vector<8x1024xf32> to vector<8x256xf32>
    %212 = arith.negf %211 : vector<8x256xf32>
    %213 = math.exp %212 : vector<8x256xf32>
    %cst_63 = arith.constant 1.000000e+00 : f32
    %214 = vector.broadcast %cst_63 : f32 to vector<8x256xf32>
    %215 = arith.addf %214, %213 : vector<8x256xf32>
    %216 = arith.divf %214, %215 : vector<8x256xf32>
    %217 = vector.extract_strided_slice %210 {offsets = [0, 256], sizes = [8, 256], strides = [1, 1]} : vector<8x1024xf32> to vector<8x256xf32>
    %218 = arith.negf %217 : vector<8x256xf32>
    %219 = math.exp %218 : vector<8x256xf32>
    %cst_64 = arith.constant 1.000000e+00 : f32
    %220 = vector.broadcast %cst_64 : f32 to vector<8x256xf32>
    %221 = arith.addf %220, %219 : vector<8x256xf32>
    %222 = arith.divf %220, %221 : vector<8x256xf32>
    %223 = vector.extract_strided_slice %210 {offsets = [0, 512], sizes = [8, 256], strides = [1, 1]} : vector<8x1024xf32> to vector<8x256xf32>
    %224 = math.tanh %223 : vector<8x256xf32>
    %225 = vector.extract_strided_slice %210 {offsets = [0, 768], sizes = [8, 256], strides = [1, 1]} : vector<8x1024xf32> to vector<8x256xf32>
    %226 = arith.negf %225 : vector<8x256xf32>
    %227 = math.exp %226 : vector<8x256xf32>
    %cst_65 = arith.constant 1.000000e+00 : f32
    %228 = vector.broadcast %cst_65 : f32 to vector<8x256xf32>
    %229 = arith.addf %228, %227 : vector<8x256xf32>
    %230 = arith.divf %228, %229 : vector<8x256xf32>
    %231 = arith.mulf %222, %203 : vector<8x256xf32>
    %232 = arith.mulf %216, %224 : vector<8x256xf32>
    %233 = arith.addf %231, %232 : vector<8x256xf32>
    %234 = math.tanh %233 : vector<8x256xf32>
    %235 = arith.mulf %230, %234 : vector<8x256xf32>
    %c48_66 = arith.constant 48 : index
    %c0_67 = arith.constant 0 : index
    %236 = vector.load %arg16[%c48_66, %c0_67] : memref<64x256xf32, #tpu.memory_space<vmem>>, vector<8x256xf32>
    tpu.vector_store %arg16[%c48_66, %c0_67], %235 {strides = array<i32>} : memref<64x256xf32, #tpu.memory_space<vmem>>, vector<8x256xf32>,
    %c56 = arith.constant 56 : index
    %c0_68 = arith.constant 0 : index
    %237 = vector.load %arg17[%c56, %c0_68] : memref<64x1024xf32, #tpu.memory_space<vmem>>, vector<8x1024xf32>
    %238 = arith.truncf %235 : vector<8x256xf32> to vector<8x256xbf16>
    %cst_69 = arith.constant dense<0.000000e+00> : vector<8x1024xf32>
    %239 = tpu.matmul %238, %26, %cst_69 {dimension_numbers = #tpu.dot_dimension_numbers<[1], [0], [0], [1], [0, 0, 1, 1], [], []>} : vector<8x256xbf16>, vector<256x1024xbf16>, vector<8x1024xf32> -> vector<8x1024xf32>
    %240 = arith.addf %237, %239 : vector<8x1024xf32>
    %241 = vector.extract_strided_slice %240 {offsets = [0, 0], sizes = [8, 256], strides = [1, 1]} : vector<8x1024xf32> to vector<8x256xf32>
    %242 = arith.negf %241 : vector<8x256xf32>
    %243 = math.exp %242 : vector<8x256xf32>
    %cst_70 = arith.constant 1.000000e+00 : f32
    %244 = vector.broadcast %cst_70 : f32 to vector<8x256xf32>
    %245 = arith.addf %244, %243 : vector<8x256xf32>
    %246 = arith.divf %244, %245 : vector<8x256xf32>
    %247 = vector.extract_strided_slice %240 {offsets = [0, 256], sizes = [8, 256], strides = [1, 1]} : vector<8x1024xf32> to vector<8x256xf32>
    %248 = arith.negf %247 : vector<8x256xf32>
    %249 = math.exp %248 : vector<8x256xf32>
    %cst_71 = arith.constant 1.000000e+00 : f32
    %250 = vector.broadcast %cst_71 : f32 to vector<8x256xf32>
    %251 = arith.addf %250, %249 : vector<8x256xf32>
    %252 = arith.divf %250, %251 : vector<8x256xf32>
    %253 = vector.extract_strided_slice %240 {offsets = [0, 512], sizes = [8, 256], strides = [1, 1]} : vector<8x1024xf32> to vector<8x256xf32>
    %254 = math.tanh %253 : vector<8x256xf32>
    %255 = vector.extract_strided_slice %240 {offsets = [0, 768], sizes = [8, 256], strides = [1, 1]} : vector<8x1024xf32> to vector<8x256xf32>
    %256 = arith.negf %255 : vector<8x256xf32>
    %257 = math.exp %256 : vector<8x256xf32>
    %cst_72 = arith.constant 1.000000e+00 : f32
    %258 = vector.broadcast %cst_72 : f32 to vector<8x256xf32>
    %259 = arith.addf %258, %257 : vector<8x256xf32>
    %260 = arith.divf %258, %259 : vector<8x256xf32>
    %261 = arith.mulf %252, %233 : vector<8x256xf32>
    %262 = arith.mulf %246, %254 : vector<8x256xf32>
    %263 = arith.addf %261, %262 : vector<8x256xf32>
    %264 = math.tanh %263 : vector<8x256xf32>
    %265 = arith.mulf %260, %264 : vector<8x256xf32>
    %c56_73 = arith.constant 56 : index
    %c0_74 = arith.constant 0 : index
    %266 = vector.load %arg16[%c56_73, %c0_74] : memref<64x256xf32, #tpu.memory_space<vmem>>, vector<8x256xf32>
    tpu.vector_store %arg16[%c56_73, %c0_74], %265 {strides = array<i32>} : memref<64x256xf32, #tpu.memory_space<vmem>>, vector<8x256xf32>,
    %267 = arith.index_cast %20 : i32 to index
    %c0_75 = arith.constant 0 : index
    %268 = vector.load %arg19[%267, %c0_75] : memref<120x256xf32, #tpu.memory_space<vmem>>, vector<8x256xf32>
    tpu.vector_store %arg19[%267, %c0_75], %265 {strides = array<i32>} : memref<120x256xf32, #tpu.memory_space<vmem>>, vector<8x256xf32>,
    %269 = arith.index_cast %20 : i32 to index
    %c0_76 = arith.constant 0 : index
    %270 = vector.load %arg20[%269, %c0_76] : memref<120x256xf32, #tpu.memory_space<vmem>>, vector<8x256xf32>
    tpu.vector_store %arg20[%269, %c0_76], %263 {strides = array<i32>} : memref<120x256xf32, #tpu.memory_space<vmem>>, vector<8x256xf32>,
    %c29_i32 = arith.constant 29 : i32
    %271 = arith.cmpi eq, %arg0, %c29_i32 : i32
    %272 = arith.extui %271 : i1 to i32
    %c0_i32_77 = arith.constant 0 : i32
    %273 = arith.cmpi ne, %272, %c0_i32_77 : i32
    scf.if %273 {
      %cst_78 = arith.constant 0.000000e+00 : f32
      %274 = vector.broadcast %cst_78 : f32 to vector<128x256xf32>
      %c0_79 = arith.constant 0 : index
      %c0_80 = arith.constant 0 : index
      %275 = vector.load %arg18[%c0_79, %c0_80] : memref<128x256xf32, #tpu.memory_space<vmem>>, vector<128x256xf32>
      tpu.vector_store %arg18[%c0_79, %c0_80], %274 {strides = array<i32>} : memref<128x256xf32, #tpu.memory_space<vmem>>, vector<128x256xf32>,
      %c0_81 = arith.constant 0 : index
      %c0_82 = arith.constant 0 : index
      %276 = vector.load %arg16[%c0_81, %c0_82] : memref<64x256xf32, #tpu.memory_space<vmem>>, vector<64x256xf32>
      %cst_83 = arith.constant 0.000000e+00 : f32
      %277 = vector.broadcast %cst_83 : f32 to vector<64x256xf32>
      %278 = arith.maximumf %276, %277 : vector<64x256xf32>
      %c16_84 = arith.constant 16 : index
      %c0_85 = arith.constant 0 : index
      %279 = vector.load %arg18[%c16_84, %c0_85] : memref<128x256xf32, #tpu.memory_space<vmem>>, vector<64x256xf32>
      tpu.vector_store %arg18[%c16_84, %c0_85], %278 {strides = array<i32>} : memref<128x256xf32, #tpu.memory_space<vmem>>, vector<64x256xf32>,
      %cst_86 = arith.constant 0.000000e+00 : f32
      %280 = vector.broadcast %cst_86 : f32 to vector<64x256xf32>
      %cst_87 = arith.constant 0.000000e+00 : f32
      %281 = vector.broadcast %cst_87 : f32 to vector<64x256xf32>
      %c0_88 = arith.constant 0 : index
      %c0_89 = arith.constant 0 : index
      %282 = vector.load %arg18[%c0_88, %c0_89] : memref<128x256xf32, #tpu.memory_space<vmem>>, vector<64x256xf32>
      %283 = arith.truncf %282 : vector<64x256xf32> to vector<64x256xbf16>
      %c0_90 = arith.constant 0 : index
      %c0_91 = arith.constant 0 : index
      %c0_92 = arith.constant 0 : index
      %284 = vector.load %arg7[%c0_90, %c0_91, %c0_92] : memref<5x256x256xbf16, #tpu.memory_space<vmem>>, vector<1x256x256xbf16>
      %285 = vector.shape_cast %284 : vector<1x256x256xbf16> to vector<256x256xbf16>
      %cst_93 = arith.constant dense<0.000000e+00> : vector<64x256xf32>
      %286 = tpu.matmul %283, %285, %cst_93 {dimension_numbers = #tpu.dot_dimension_numbers<[1], [0], [0], [1], [0, 0, 1, 1], [], []>} : vector<64x256xbf16>, vector<256x256xbf16>, vector<64x256xf32> -> vector<64x256xf32>
      %287 = arith.addf %280, %286 : vector<64x256xf32>
      %c8_94 = arith.constant 8 : index
      %c0_95 = arith.constant 0 : index
      %288 = vector.load %arg18[%c8_94, %c0_95] : memref<128x256xf32, #tpu.memory_space<vmem>>, vector<64x256xf32>
      %289 = arith.truncf %288 : vector<64x256xf32> to vector<64x256xbf16>
      %c1 = arith.constant 1 : index
      %c0_96 = arith.constant 0 : index
      %c0_97 = arith.constant 0 : index
      %290 = vector.load %arg7[%c1, %c0_96, %c0_97] : memref<5x256x256xbf16, #tpu.memory_space<vmem>>, vector<1x256x256xbf16>
      %291 = vector.shape_cast %290 : vector<1x256x256xbf16> to vector<256x256xbf16>
      %cst_98 = arith.constant dense<0.000000e+00> : vector<64x256xf32>
      %292 = tpu.matmul %289, %291, %cst_98 {dimension_numbers = #tpu.dot_dimension_numbers<[1], [0], [0], [1], [0, 0, 1, 1], [], []>} : vector<64x256xbf16>, vector<256x256xbf16>, vector<64x256xf32> -> vector<64x256xf32>
      %293 = arith.addf %281, %292 : vector<64x256xf32>
      %c16_99 = arith.constant 16 : index
      %c0_100 = arith.constant 0 : index
      %294 = vector.load %arg18[%c16_99, %c0_100] : memref<128x256xf32, #tpu.memory_space<vmem>>, vector<64x256xf32>
      %295 = arith.truncf %294 : vector<64x256xf32> to vector<64x256xbf16>
      %c2 = arith.constant 2 : index
      %c0_101 = arith.constant 0 : index
      %c0_102 = arith.constant 0 : index
      %296 = vector.load %arg7[%c2, %c0_101, %c0_102] : memref<5x256x256xbf16, #tpu.memory_space<vmem>>, vector<1x256x256xbf16>
      %297 = vector.shape_cast %296 : vector<1x256x256xbf16> to vector<256x256xbf16>
      %cst_103 = arith.constant dense<0.000000e+00> : vector<64x256xf32>
      %298 = tpu.matmul %295, %297, %cst_103 {dimension_numbers = #tpu.dot_dimension_numbers<[1], [0], [0], [1], [0, 0, 1, 1], [], []>} : vector<64x256xbf16>, vector<256x256xbf16>, vector<64x256xf32> -> vector<64x256xf32>
      %299 = arith.addf %287, %298 : vector<64x256xf32>
      %c24_104 = arith.constant 24 : index
      %c0_105 = arith.constant 0 : index
      %300 = vector.load %arg18[%c24_104, %c0_105] : memref<128x256xf32, #tpu.memory_space<vmem>>, vector<64x256xf32>
      %301 = arith.truncf %300 : vector<64x256xf32> to vector<64x256xbf16>
      %c3 = arith.constant 3 : index
      %c0_106 = arith.constant 0 : index
      %c0_107 = arith.constant 0 : index
      %302 = vector.load %arg7[%c3, %c0_106, %c0_107] : memref<5x256x256xbf16, #tpu.memory_space<vmem>>, vector<1x256x256xbf16>
      %303 = vector.shape_cast %302 : vector<1x256x256xbf16> to vector<256x256xbf16>
      %cst_108 = arith.constant dense<0.000000e+00> : vector<64x256xf32>
      %304 = tpu.matmul %301, %303, %cst_108 {dimension_numbers = #tpu.dot_dimension_numbers<[1], [0], [0], [1], [0, 0, 1, 1], [], []>} : vector<64x256xbf16>, vector<256x256xbf16>, vector<64x256xf32> -> vector<64x256xf32>
      %305 = arith.addf %293, %304 : vector<64x256xf32>
      %c32_109 = arith.constant 32 : index
      %c0_110 = arith.constant 0 : index
      %306 = vector.load %arg18[%c32_109, %c0_110] : memref<128x256xf32, #tpu.memory_space<vmem>>, vector<64x256xf32>
      %307 = arith.truncf %306 : vector<64x256xf32> to vector<64x256xbf16>
      %c4 = arith.constant 4 : index
      %c0_111 = arith.constant 0 : index
      %c0_112 = arith.constant 0 : index
      %308 = vector.load %arg7[%c4, %c0_111, %c0_112] : memref<5x256x256xbf16, #tpu.memory_space<vmem>>, vector<1x256x256xbf16>
      %309 = vector.shape_cast %308 : vector<1x256x256xbf16> to vector<256x256xbf16>
      %cst_113 = arith.constant dense<0.000000e+00> : vector<64x256xf32>
      %310 = tpu.matmul %307, %309, %cst_113 {dimension_numbers = #tpu.dot_dimension_numbers<[1], [0], [0], [1], [0, 0, 1, 1], [], []>} : vector<64x256xbf16>, vector<256x256xbf16>, vector<64x256xf32> -> vector<64x256xf32>
      %311 = arith.addf %299, %310 : vector<64x256xf32>
      %312 = arith.addf %311, %305 : vector<64x256xf32>
      %c0_114 = arith.constant 0 : index
      %c0_115 = arith.constant 0 : index
      %313 = vector.load %arg8[%c0_114, %c0_115] : memref<1x256xf32, #tpu.memory_space<vmem>>, vector<1x256xf32>
      %314 = vector.broadcast %313 : vector<1x256xf32> to vector<64x256xf32>
      %315 = arith.addf %312, %314 : vector<64x256xf32>
      %cst_116 = arith.constant 0.000000e+00 : f32
      %316 = vector.broadcast %cst_116 : f32 to vector<64x256xf32>
      %317 = arith.maximumf %315, %316 : vector<64x256xf32>
      %c0_117 = arith.constant 0 : index
      %c0_118 = arith.constant 0 : index
      %318 = vector.load %arg9[%c0_117, %c0_118] : memref<256x128xf32, #tpu.memory_space<vmem>>, vector<256x128xf32>
      %cst_119 = arith.constant dense<0.000000e+00> : vector<64x128xf32>
      %319 = tpu.matmul %317, %318, %cst_119 {dimension_numbers = #tpu.dot_dimension_numbers<[1], [0], [0], [1], [0, 0, 1, 1], [], []>} : vector<64x256xf32>, vector<256x128xf32>, vector<64x128xf32> -> vector<64x128xf32>
      %c0_120 = arith.constant 0 : index
      %c0_121 = arith.constant 0 : index
      %320 = vector.load %arg10[%c0_120, %c0_121] : memref<1x128xf32, #tpu.memory_space<vmem>>, vector<1x128xf32>
      %321 = vector.broadcast %320 : vector<1x128xf32> to vector<64x128xf32>
      %322 = arith.addf %319, %321 : vector<64x128xf32>
      %cst_122 = arith.constant 0.000000e+00 : f32
      %323 = vector.broadcast %cst_122 : f32 to vector<64x128xf32>
      %324 = arith.maximumf %322, %323 : vector<64x128xf32>
      %c0_123 = arith.constant 0 : index
      %c0_124 = arith.constant 0 : index
      %325 = vector.load %arg11[%c0_123, %c0_124] : memref<128x256xf32, #tpu.memory_space<vmem>>, vector<128x256xf32>
      %cst_125 = arith.constant dense<0.000000e+00> : vector<64x256xf32>
      %326 = tpu.matmul %324, %325, %cst_125 {dimension_numbers = #tpu.dot_dimension_numbers<[1], [0], [0], [1], [0, 0, 1, 1], [], []>} : vector<64x128xf32>, vector<128x256xf32>, vector<64x256xf32> -> vector<64x256xf32>
      %c0_126 = arith.constant 0 : index
      %c0_127 = arith.constant 0 : index
      %327 = vector.load %arg12[%c0_126, %c0_127] : memref<1x256xf32, #tpu.memory_space<vmem>>, vector<1x256xf32>
      %328 = vector.broadcast %327 : vector<1x256xf32> to vector<64x256xf32>
      %329 = arith.addf %326, %328 : vector<64x256xf32>
      %cst_128 = arith.constant 0.000000e+00 : f32
      %330 = vector.broadcast %cst_128 : f32 to vector<64x256xf32>
      %331 = arith.maximumf %329, %330 : vector<64x256xf32>
      %c0_129 = arith.constant 0 : index
      %c0_130 = arith.constant 0 : index
      %332 = vector.load %arg13[%c0_129, %c0_130] : memref<256x128xf32, #tpu.memory_space<vmem>>, vector<256x128xf32>
      %cst_131 = arith.constant dense<0.000000e+00> : vector<64x128xf32>
      %333 = tpu.matmul %331, %332, %cst_131 {dimension_numbers = #tpu.dot_dimension_numbers<[1], [0], [0], [1], [0, 0, 1, 1], [], []>} : vector<64x256xf32>, vector<256x128xf32>, vector<64x128xf32> -> vector<64x128xf32>
      %c0_132 = arith.constant 0 : index
      %c0_133 = arith.constant 0 : index
      %334 = vector.load %arg14[%c0_132, %c0_133] : memref<1x128xf32, #tpu.memory_space<vmem>>, vector<1x128xf32>
      %335 = vector.broadcast %334 : vector<1x128xf32> to vector<64x128xf32>
      %336 = arith.addf %333, %335 : vector<64x128xf32>
      %c0_134 = arith.constant 0 : index
      %c0_135 = arith.constant 0 : index
      %337 = vector.load %arg15[%c0_134, %c0_135] : memref<64x128xf32, #tpu.memory_space<vmem>>, vector<64x128xf32>
      tpu.vector_store %arg15[%c0_134, %c0_135], %336 {strides = array<i32>} : memref<64x128xf32, #tpu.memory_space<vmem>>, vector<64x128xf32>,
    } else {
    }
    return
  }
  func.func @transform_0(%arg0: i32) -> (i32, i32) {
    %c0_i32 = arith.constant 0 : i32
    %c0_i32_0 = arith.constant 0 : i32
    %c0_i32_1 = arith.constant 0 : i32
    return %c0_i32, %c0_i32_0 : i32, i32
  }
  func.func @transform_1(%arg0: i32) -> (i32, i32, i32) {
    %c0_i32 = arith.constant 0 : i32
    %c0_i32_0 = arith.constant 0 : i32
    %c0_i32_1 = arith.constant 0 : i32
    return %arg0, %c0_i32, %c0_i32_0 : i32, i32, i32
  }
  func.func @transform_2(%arg0: i32) -> (i32, i32, i32) {
    %c0_i32 = arith.constant 0 : i32
    %c0_i32_0 = arith.constant 0 : i32
    %c0_i32_1 = arith.constant 0 : i32
    return %arg0, %c0_i32, %c0_i32_0 : i32, i32, i32
  }
  func.func @transform_3(%arg0: i32) -> (i32, i32, i32) {
    %c0_i32 = arith.constant 0 : i32
    %c0_i32_0 = arith.constant 0 : i32
    %c0_i32_1 = arith.constant 0 : i32
    return %arg0, %c0_i32, %c0_i32_0 : i32, i32, i32
  }
  func.func @transform_4(%arg0: i32) -> (i32, i32, i32) {
    %c0_i32 = arith.constant 0 : i32
    %c0_i32_0 = arith.constant 0 : i32
    %c0_i32_1 = arith.constant 0 : i32
    %c0_i32_2 = arith.constant 0 : i32
    return %c0_i32, %c0_i32_0, %c0_i32_1 : i32, i32, i32
  }
  func.func @transform_5(%arg0: i32) -> (i32, i32) {
    %c0_i32 = arith.constant 0 : i32
    %c0_i32_0 = arith.constant 0 : i32
    %c0_i32_1 = arith.constant 0 : i32
    return %c0_i32, %c0_i32_0 : i32, i32
  }
  func.func @transform_6(%arg0: i32) -> (i32, i32, i32) {
    %c0_i32 = arith.constant 0 : i32
    %c0_i32_0 = arith.constant 0 : i32
    %c0_i32_1 = arith.constant 0 : i32
    %c0_i32_2 = arith.constant 0 : i32
    return %c0_i32, %c0_i32_0, %c0_i32_1 : i32, i32, i32
  }
  func.func @transform_7(%arg0: i32) -> (i32, i32) {
    %c0_i32 = arith.constant 0 : i32
    %c0_i32_0 = arith.constant 0 : i32
    %c0_i32_1 = arith.constant 0 : i32
    return %c0_i32, %c0_i32_0 : i32, i32
  }
  func.func @transform_8(%arg0: i32) -> (i32, i32) {
    %c0_i32 = arith.constant 0 : i32
    %c0_i32_0 = arith.constant 0 : i32
    %c0_i32_1 = arith.constant 0 : i32
    return %c0_i32, %c0_i32_0 : i32, i32
  }
  func.func @transform_9(%arg0: i32) -> (i32, i32) {
    %c0_i32 = arith.constant 0 : i32
    %c0_i32_0 = arith.constant 0 : i32
    %c0_i32_1 = arith.constant 0 : i32
    return %c0_i32, %c0_i32_0 : i32, i32
  }
  func.func @transform_10(%arg0: i32) -> (i32, i32) {
    %c0_i32 = arith.constant 0 : i32
    %c0_i32_0 = arith.constant 0 : i32
    %c0_i32_1 = arith.constant 0 : i32
    return %c0_i32, %c0_i32_0 : i32, i32
  }
  func.func @transform_11(%arg0: i32) -> (i32, i32) {
    %c0_i32 = arith.constant 0 : i32
    %c0_i32_0 = arith.constant 0 : i32
    %c0_i32_1 = arith.constant 0 : i32
    return %c0_i32, %c0_i32_0 : i32, i32
  }
  func.func @transform_12(%arg0: i32) -> (i32, i32) {
    %c0_i32 = arith.constant 0 : i32
    %c0_i32_0 = arith.constant 0 : i32
    %c0_i32_1 = arith.constant 0 : i32
    return %c0_i32, %c0_i32_0 : i32, i32
  }
  func.func @transform_13(%arg0: i32) -> (i32, i32) {
    %c0_i32 = arith.constant 0 : i32
    %c0_i32_0 = arith.constant 0 : i32
    %c0_i32_1 = arith.constant 0 : i32
    return %c0_i32, %c0_i32_0 : i32, i32
  }
  func.func @transform_14(%arg0: i32) -> (i32, i32) {
    %c0_i32 = arith.constant 0 : i32
    %c0_i32_0 = arith.constant 0 : i32
    %c0_i32_1 = arith.constant 0 : i32
    return %c0_i32, %c0_i32_0 : i32, i32
  }
}

</mosaic_0001>

<llo_original>
// kernel: forward.1
$region0: #{forward.1}
  #allocation0 [shape = 'u32[]', space=smem, size = 0x4, offset = 0x4, fixed_abs, tag = 'smem constant byte address 0x4 - core index']
  #allocation1 [shape = 'u32[144,128]{1,0:T(1,128)}', space=vmem, size = 0x12000, scoped, tag = 'internal scratch']
  #allocation2 [shape = 'f32[64,256]{1,0:T(8,128)}', space=vmem, size = 0x10000, scoped, tag = 'scratch operand']
  #allocation3 [shape = 'f32[64,1024]{1,0:T(8,128)}', space=vmem, size = 0x40000, scoped, tag = 'scratch operand']
  #allocation4 [shape = 'f32[128,256]{1,0:T(8,128)}', space=vmem, size = 0x20000, scoped, tag = 'scratch operand']
  #allocation5 [shape = 'f32[120,256]{1,0:T(8,128)}', space=vmem, size = 0x1e000, scoped, tag = 'scratch operand']
  #allocation6 [shape = 'f32[120,256]{1,0:T(8,128)}', space=vmem, size = 0x1e000, scoped, tag = 'scratch operand']
  %s0 = inlined_call_operand.vmem [shape: f32[64,256], index: 0, kind: input, shape index: {}]
  %s1 = inlined_call_operand.hbm [shape: bf16[30,256,1024], index: 1, kind: input, shape index: {}]
  %s2 = inlined_call_operand.hbm [shape: bf16[30,256,1024], index: 2, kind: input, shape index: {}]
  %s3 = inlined_call_operand.hbm [shape: f32[30,1,1024], index: 3, kind: input, shape index: {}]
  %s4 = inlined_call_operand.hbm [shape: bf16[9,256,256], index: 4, kind: input, shape index: {}]
  %s5 = inlined_call_operand.hbm [shape: f32[1,256], index: 5, kind: input, shape index: {}]
  %s6 = inlined_call_operand.hbm [shape: bf16[5,256,256], index: 6, kind: input, shape index: {}]
  %s7 = inlined_call_operand.hbm [shape: f32[1,256], index: 7, kind: input, shape index: {}]
  %s8 = inlined_call_operand.hbm [shape: f32[256,128], index: 8, kind: input, shape index: {}]
  %s9 = inlined_call_operand.hbm [shape: f32[1,128], index: 9, kind: input, shape index: {}]
  %s10 = inlined_call_operand.hbm [shape: f32[128,256], index: 10, kind: input, shape index: {}]
  %s11 = inlined_call_operand.hbm [shape: f32[1,256], index: 11, kind: input, shape index: {}]
  %s12 = inlined_call_operand.hbm [shape: f32[256,128], index: 12, kind: input, shape index: {}]
  %s13 = inlined_call_operand.hbm [shape: f32[1,128], index: 13, kind: input, shape index: {}]
  %s14 = inlined_call_operand.vmem [shape: f32[64,128], index: 14, kind: output, shape index: {}]
  %s15 = sld [smem:[#allocation0]]
  $region153: #{forward.1} parent=0
    _
  %s17 = ssub.s32 1, %s15
  %s18 = scalar_select 0, %s17, %s15
  $region1: #{forward.1} parent=0
    #allocation7 [shape = 'u8[1048576]{0}', space=vmem, size = 0x100000, scoped, tag = 'input window, operand 1']
    #allocation8 [shape = 's32[2]{0}', space=sflag, size = 0x8, scoped, tag = 'scoped memory for forward.1']
    #allocation9 [shape = 'u8[1048576]{0}', space=vmem, size = 0x100000, scoped, tag = 'input window, operand 2']
    #allocation10 [shape = 's32[2]{0}', space=sflag, size = 0x8, scoped, tag = 'scoped memory for forward.1']
    #allocation11 [shape = 'u8[8192]{0}', space=vmem, size = 0x2000, scoped, tag = 'input window, operand 3']
    #allocation12 [shape = 'u8[1179648]{0}', space=vmem, size = 0x120000, scoped, tag = 'input window, operand 4, single buffered']
    #allocation13 [shape = 's32[1]{0}', space=sflag, size = 0x4, scoped, tag = 'scoped memory for forward.1']
    #allocation14 [shape = 'u8[1024]{0}', space=vmem, size = 0x400, scoped, tag = 'input window, operand 5, single buffered']
    #allocation15 [shape = 'u8[655360]{0}', space=vmem, size = 0xa0000, scoped, tag = 'input window, operand 6, single buffered']
    #allocation16 [shape = 's32[1]{0}', space=sflag, size = 0x4, scoped, tag = 'scoped memory for forward.1']
    #allocation17 [shape = 'u8[1024]{0}', space=vmem, size = 0x400, scoped, tag = 'input window, operand 7, single buffered']
    #allocation18 [shape = 'u8[131072]{0}', space=vmem, size = 0x20000, scoped, tag = 'input window, operand 8, single buffered']
    #allocation19 [shape = 's32[1]{0}', space=sflag, size = 0x4, scoped, tag = 'scoped memory for forward.1']
    #allocation20 [shape = 'u8[512]{0}', space=vmem, size = 0x400, scoped, tag = 'input window, operand 9, single buffered']
    #allocation21 [shape = 'u8[131072]{0}', space=vmem, size = 0x20000, scoped, tag = 'input window, operand 10, single buffered']
    #allocation22 [shape = 's32[1]{0}', space=sflag, size = 0x4, scoped, tag = 'scoped memory for forward.1']
    #allocation23 [shape = 'u8[1024]{0}', space=vmem, size = 0x400, scoped, tag = 'input window, operand 11, single buffered']
    #allocation24 [shape = 'u8[131072]{0}', space=vmem, size = 0x20000, scoped, tag = 'input window, operand 12, single buffered']
    #allocation25 [shape = 's32[1]{0}', space=sflag, size = 0x4, scoped, tag = 'scoped memory for forward.1']
    #allocation26 [shape = 'u8[512]{0}', space=vmem, size = 0x400, scoped, tag = 'input window, operand 13, single buffered']
    %19 = vsyncpa [#allocation8], 0
    %s20 = scalar_lea.sflag [#allocation8], 1
    %21 = vsyncpa %s20, 0
    %22 = vsyncpa [#allocation10], 0
    %s23 = scalar_lea.sflag [#allocation10], 1
    %24 = vsyncpa %s23, 0
    %25 = vsyncpa [#allocation13], 0
    %26 = vsyncpa [#allocation16], 0
    %27 = vsyncpa [#allocation19], 0
    %28 = vsyncpa [#allocation22], 0
    %29 = vsyncpa [#allocation25], 0
    loop: start=0, step=1, limit=32
    $region2: #{forward.1} parent=1 // loop_pre_header
      _
    $region3: #{forward.1} parent=1 // loop_header
      %s31 = sphi 0, %s35
      %p32 = scmp.ge.s32.totalorder %s31, 32
      %s39 = sphi 0, %s39
      %s41 = sphi 0, %s39
      %s42 = sphi 0, %s41
      %s56 = sphi 0, %s42
      %s62 = sphi 0, %s64
      %s65 = sphi 0, %s62
      %s66 = sphi 0, %s65
      %s82 = sphi 0, %s66
      %s88 = sphi 0, %s90
      %s91 = sphi 0, %s88
      %s92 = sphi 0, %s91
      %s108 = sphi 0, %s92
      %s114 = sphi 0, %s116
      %s117 = sphi 0, %s114
      %s118 = sphi 0, %s117
      %s134 = sphi 0, %s118
      %s138 = sphi 0, %s138
      %s140 = sphi 0, %s138
      %s141 = sphi 0, %s140
      %s155 = sphi 0, %s141
      %s159 = sphi 0, %s159
      %s161 = sphi 0, %s159
      %s162 = sphi 0, %s161
      %s176 = sphi 0, %s162
      %s180 = sphi 0, %s180
      %s182 = sphi 0, %s180
      %s183 = sphi 0, %s182
      %s197 = sphi 0, %s183
      %s201 = sphi 0, %s201
      %s203 = sphi 0, %s201
      %s204 = sphi 0, %s203
      %s218 = sphi 0, %s204
      %s222 = sphi 0, %s222
      %s224 = sphi 0, %s222
      %s225 = sphi 0, %s224
      %s239 = sphi 0, %s225
      %s243 = sphi 0, %s243
      %s245 = sphi 0, %s243
      %s246 = sphi 0, %s245
      %s260 = sphi 0, %s246
      %s264 = sphi 0, %s264
      %s266 = sphi 0, %s264
      %s267 = sphi 0, %s266
      %s281 = sphi 0, %s267
      %s285 = sphi 0, %s285
      %s287 = sphi 0, %s285
      %s288 = sphi 0, %s287
      %s302 = sphi 0, %s288
      %s306 = sphi 0, %s306
      %s308 = sphi 0, %s306
      %s309 = sphi 0, %s308
      %s323 = sphi 0, %s309
      %s327 = sphi 0, %s327
      %s329 = sphi 0, %s327
      %s330 = sphi 0, %s329
      %s344 = sphi 0, %s330
      %s348 = sphi 0, %s348
      %s350 = sphi 0, %s348
      %s351 = sphi 0, %s350
      %s365 = sphi 0, %s351
    $region4: #{forward.1} parent=1 // loop_header_branch
      %34 = sbr.rel (%p32) target = $region8
    $region5: #{forward.1} parent=1 // loop_body
      %s36 = ssub.s32 %s31, 1
      %s37 = ssub.s32 %s31, 2
      %s38 = sadd.s32 %s31, 1
      %s40 = sadd.s32 %s39, 1
      %p43 = scmp.eq.s32.totalorder %s31, 29
      %p44 = scmp.ne.s32.totalorder %s39, %s41
      %p45 = scmp.eq.s32.totalorder %s31, 0
      %p46 = por %p44, %p45
      %p47 = scmp.ne.s32.totalorder %s39, %s41
      %p48 = scmp.eq.s32.totalorder %s36, 29
      %p49 = por %p47, %p48
      %p50 = scmp.ne.s32.totalorder %s41, %s42
      %p51 = scmp.eq.s32.totalorder %s36, 0
      %p52 = por %p50, %p51
      %p53 = scmp.ne.s32.totalorder %s41, %s42
      %p54 = scmp.eq.s32.totalorder %s37, 29
      %p55 = por %p53, %p54
      %p57 = scmp.ne.s32.totalorder %s42, %s56
      %p58 = scmp.eq.s32.totalorder %s37, 0
      %p59 = por %p57, %p58
      %s60 = ssub.s32 %s31, %s38
      %p61 = scmp.eq.s32.totalorder %s60, 0
      %s63 = sadd.s32 %s62, 1
      %s64 = scalar_select %p61, %s62, %s63
      %p67 = pneg %p61
      %p68 = scmp.eq.s32.totalorder %s31, 29
      %p69 = por %p67, %p68
      %p70 = scmp.ne.s32.totalorder %s62, %s65
      %p71 = scmp.eq.s32.totalorder %s31, 0
      %p72 = por %p70, %p71
      %p73 = scmp.ne.s32.totalorder %s62, %s65
      %p74 = scmp.eq.s32.totalorder %s36, 29
      %p75 = por %p73, %p74
      %p76 = scmp.ne.s32.totalorder %s65, %s66
      %p77 = scmp.eq.s32.totalorder %s36, 0
      %p78 = por %p76, %p77
      %p79 = scmp.ne.s32.totalorder %s65, %s66
      %p80 = scmp.eq.s32.totalorder %s37, 29
      %p81 = por %p79, %p80
      %p83 = scmp.ne.s32.totalorder %s66, %s82
      %p84 = scmp.eq.s32.totalorder %s37, 0
      %p85 = por %p83, %p84
      %s86 = ssub.s32 %s31, %s38
      %p87 = scmp.eq.s32.totalorder %s86, 0
      %s89 = sadd.s32 %s88, 1
      %s90 = scalar_select %p87, %s88, %s89
      %p93 = pneg %p87
      %p94 = scmp.eq.s32.totalorder %s31, 29
      %p95 = por %p93, %p94
      %p96 = scmp.ne.s32.totalorder %s88, %s91
      %p97 = scmp.eq.s32.totalorder %s31, 0
      %p98 = por %p96, %p97
      %p99 = scmp.ne.s32.totalorder %s88, %s91
      %p100 = scmp.eq.s32.totalorder %s36, 29
      %p101 = por %p99, %p100
      %p102 = scmp.ne.s32.totalorder %s91, %s92
      %p103 = scmp.eq.s32.totalorder %s36, 0
      %p104 = por %p102, %p103
      %p105 = scmp.ne.s32.totalorder %s91, %s92
      %p106 = scmp.eq.s32.totalorder %s37, 29
      %p107 = por %p105, %p106
      %p109 = scmp.ne.s32.totalorder %s92, %s108
      %p110 = scmp.eq.s32.totalorder %s37, 0
      %p111 = por %p109, %p110
      %s112 = ssub.s32 %s31, %s38
      %p113 = scmp.eq.s32.totalorder %s112, 0
      %s115 = sadd.s32 %s114, 1
      %s116 = scalar_select %p113, %s114, %s115
      %p119 = pneg %p113
      %p120 = scmp.eq.s32.totalorder %s31, 29
      %p121 = por %p119, %p120
      %p122 = scmp.ne.s32.totalorder %s114, %s117
      %p123 = scmp.eq.s32.totalorder %s31, 0
      %p124 = por %p122, %p123
      %p125 = scmp.ne.s32.totalorder %s114, %s117
      %p126 = scmp.eq.s32.totalorder %s36, 29
      %p127 = por %p125, %p126
      %p128 = scmp.ne.s32.totalorder %s117, %s118
      %p129 = scmp.eq.s32.totalorder %s36, 0
      %p130 = por %p128, %p129
      %p131 = scmp.ne.s32.totalorder %s117, %s118
      %p132 = scmp.eq.s32.totalorder %s37, 29
      %p133 = por %p131, %p132
      %p135 = scmp.ne.s32.totalorder %s118, %s134
      %p136 = scmp.eq.s32.totalorder %s37, 0
      %p137 = por %p135, %p136
      %s139 = sadd.s32 %s138, 1
      %p142 = scmp.eq.s32.totalorder %s31, 29
      %p143 = scmp.ne.s32.totalorder %s138, %s140
      %p144 = scmp.eq.s32.totalorder %s31, 0
      %p145 = por %p143, %p144
      %p146 = scmp.ne.s32.totalorder %s138, %s140
      %p147 = scmp.eq.s32.totalorder %s36, 29
      %p148 = por %p146, %p147
      %p149 = scmp.ne.s32.totalorder %s140, %s141
      %p150 = scmp.eq.s32.totalorder %s36, 0
      %p151 = por %p149, %p150
      %p152 = scmp.ne.s32.totalorder %s140, %s141
      %p153 = scmp.eq.s32.totalorder %s37, 29
      %p154 = por %p152, %p153
      %p156 = scmp.ne.s32.totalorder %s141, %s155
      %p157 = scmp.eq.s32.totalorder %s37, 0
      %p158 = por %p156, %p157
      %s160 = sadd.s32 %s159, 1
      %p163 = scmp.eq.s32.totalorder %s31, 29
      %p164 = scmp.ne.s32.totalorder %s159, %s161
      %p165 = scmp.eq.s32.totalorder %s31, 0
      %p166 = por %p164, %p165
      %p167 = scmp.ne.s32.totalorder %s159, %s161
      %p168 = scmp.eq.s32.totalorder %s36, 29
      %p169 = por %p167, %p168
      %p170 = scmp.ne.s32.totalorder %s161, %s162
      %p171 = scmp.eq.s32.totalorder %s36, 0
      %p172 = por %p170, %p171
      %p173 = scmp.ne.s32.totalorder %s161, %s162
      %p174 = scmp.eq.s32.totalorder %s37, 29
      %p175 = por %p173, %p174
      %p177 = scmp.ne.s32.totalorder %s162, %s176
      %p178 = scmp.eq.s32.totalorder %s37, 0
      %p179 = por %p177, %p178
      %s181 = sadd.s32 %s180, 1
      %p184 = scmp.eq.s32.totalorder %s31, 29
      %p185 = scmp.ne.s32.totalorder %s180, %s182
      %p186 = scmp.eq.s32.totalorder %s31, 0
      %p187 = por %p185, %p186
      %p188 = scmp.ne.s32.totalorder %s180, %s182
      %p189 = scmp.eq.s32.totalorder %s36, 29
      %p190 = por %p188, %p189
      %p191 = scmp.ne.s32.totalorder %s182, %s183
      %p192 = scmp.eq.s32.totalorder %s36, 0
      %p193 = por %p191, %p192
      %p194 = scmp.ne.s32.totalorder %s182, %s183
      %p195 = scmp.eq.s32.totalorder %s37, 29
      %p196 = por %p194, %p195
      %p198 = scmp.ne.s32.totalorder %s183, %s197
      %p199 = scmp.eq.s32.totalorder %s37, 0
      %p200 = por %p198, %p199
      %s202 = sadd.s32 %s201, 1
      %p205 = scmp.eq.s32.totalorder %s31, 29
      %p206 = scmp.ne.s32.totalorder %s201, %s203
      %p207 = scmp.eq.s32.totalorder %s31, 0
      %p208 = por %p206, %p207
      %p209 = scmp.ne.s32.totalorder %s201, %s203
      %p210 = scmp.eq.s32.totalorder %s36, 29
      %p211 = por %p209, %p210
      %p212 = scmp.ne.s32.totalorder %s203, %s204
      %p213 = scmp.eq.s32.totalorder %s36, 0
      %p214 = por %p212, %p213
      %p215 = scmp.ne.s32.totalorder %s203, %s204
      %p216 = scmp.eq.s32.totalorder %s37, 29
      %p217 = por %p215, %p216
      %p219 = scmp.ne.s32.totalorder %s204, %s218
      %p220 = scmp.eq.s32.totalorder %s37, 0
      %p221 = por %p219, %p220
      %s223 = sadd.s32 %s222, 1
      %p226 = scmp.eq.s32.totalorder %s31, 29
      %p227 = scmp.ne.s32.totalorder %s222, %s224
      %p228 = scmp.eq.s32.totalorder %s31, 0
      %p229 = por %p227, %p228
      %p230 = scmp.ne.s32.totalorder %s222, %s224
      %p231 = scmp.eq.s32.totalorder %s36, 29
      %p232 = por %p230, %p231
      %p233 = scmp.ne.s32.totalorder %s224, %s225
      %p234 = scmp.eq.s32.totalorder %s36, 0
      %p235 = por %p233, %p234
      %p236 = scmp.ne.s32.totalorder %s224, %s225
      %p237 = scmp.eq.s32.totalorder %s37, 29
      %p238 = por %p236, %p237
      %p240 = scmp.ne.s32.totalorder %s225, %s239
      %p241 = scmp.eq.s32.totalorder %s37, 0
      %p242 = por %p240, %p241
      %s244 = sadd.s32 %s243, 1
      %p247 = scmp.eq.s32.totalorder %s31, 29
      %p248 = scmp.ne.s32.totalorder %s243, %s245
      %p249 = scmp.eq.s32.totalorder %s31, 0
      %p250 = por %p248, %p249
      %p251 = scmp.ne.s32.totalorder %s243, %s245
      %p252 = scmp.eq.s32.totalorder %s36, 29
      %p253 = por %p251, %p252
      %p254 = scmp.ne.s32.totalorder %s245, %s246
      %p255 = scmp.eq.s32.totalorder %s36, 0
      %p256 = por %p254, %p255
      %p257 = scmp.ne.s32.totalorder %s245, %s246
      %p258 = scmp.eq.s32.totalorder %s37, 29
      %p259 = por %p257, %p258
      %p261 = scmp.ne.s32.totalorder %s246, %s260
      %p262 = scmp.eq.s32.totalorder %s37, 0
      %p263 = por %p261, %p262
      %s265 = sadd.s32 %s264, 1
      %p268 = scmp.eq.s32.totalorder %s31, 29
      %p269 = scmp.ne.s32.totalorder %s264, %s266
      %p270 = scmp.eq.s32.totalorder %s31, 0
      %p271 = por %p269, %p270
      %p272 = scmp.ne.s32.totalorder %s264, %s266
      %p273 = scmp.eq.s32.totalorder %s36, 29
      %p274 = por %p272, %p273
      %p275 = scmp.ne.s32.totalorder %s266, %s267
      %p276 = scmp.eq.s32.totalorder %s36, 0
      %p277 = por %p275, %p276
      %p278 = scmp.ne.s32.totalorder %s266, %s267
      %p279 = scmp.eq.s32.totalorder %s37, 29
      %p280 = por %p278, %p279
      %p282 = scmp.ne.s32.totalorder %s267, %s281
      %p283 = scmp.eq.s32.totalorder %s37, 0
      %p284 = por %p282, %p283
      %s286 = sadd.s32 %s285, 1
      %p289 = scmp.eq.s32.totalorder %s31, 29
      %p290 = scmp.ne.s32.totalorder %s285, %s287
      %p291 = scmp.eq.s32.totalorder %s31, 0
      %p292 = por %p290, %p291
      %p293 = scmp.ne.s32.totalorder %s285, %s287
      %p294 = scmp.eq.s32.totalorder %s36, 29
      %p295 = por %p293, %p294
      %p296 = scmp.ne.s32.totalorder %s287, %s288
      %p297 = scmp.eq.s32.totalorder %s36, 0
      %p298 = por %p296, %p297
      %p299 = scmp.ne.s32.totalorder %s287, %s288
      %p300 = scmp.eq.s32.totalorder %s37, 29
      %p301 = por %p299, %p300
      %p303 = scmp.ne.s32.totalorder %s288, %s302
      %p304 = scmp.eq.s32.totalorder %s37, 0
      %p305 = por %p303, %p304
      %s307 = sadd.s32 %s306, 1
      %p310 = scmp.eq.s32.totalorder %s31, 29
      %p311 = scmp.ne.s32.totalorder %s306, %s308
      %p312 = scmp.eq.s32.totalorder %s31, 0
      %p313 = por %p311, %p312
      %p314 = scmp.ne.s32.totalorder %s306, %s308
      %p315 = scmp.eq.s32.totalorder %s36, 29
      %p316 = por %p314, %p315
      %p317 = scmp.ne.s32.totalorder %s308, %s309
      %p318 = scmp.eq.s32.totalorder %s36, 0
      %p319 = por %p317, %p318
      %p320 = scmp.ne.s32.totalorder %s308, %s309
      %p321 = scmp.eq.s32.totalorder %s37, 29
      %p322 = por %p320, %p321
      %p324 = scmp.ne.s32.totalorder %s309, %s323
      %p325 = scmp.eq.s32.totalorder %s37, 0
      %p326 = por %p324, %p325
      %s328 = sadd.s32 %s327, 1
      %p331 = scmp.eq.s32.totalorder %s31, 29
      %p332 = scmp.ne.s32.totalorder %s327, %s329
      %p333 = scmp.eq.s32.totalorder %s31, 0
      %p334 = por %p332, %p333
      %p335 = scmp.ne.s32.totalorder %s327, %s329
      %p336 = scmp.eq.s32.totalorder %s36, 29
      %p337 = por %p335, %p336
      %p338 = scmp.ne.s32.totalorder %s329, %s330
      %p339 = scmp.eq.s32.totalorder %s36, 0
      %p340 = por %p338, %p339
      %p341 = scmp.ne.s32.totalorder %s329, %s330
      %p342 = scmp.eq.s32.totalorder %s37, 29
      %p343 = por %p341, %p342
      %p345 = scmp.ne.s32.totalorder %s330, %s344
      %p346 = scmp.eq.s32.totalorder %s37, 0
      %p347 = por %p345, %p346
      %s349 = sadd.s32 %s348, 1
      %p352 = scmp.eq.s32.totalorder %s31, 29
      %p353 = scmp.ne.s32.totalorder %s348, %s350
      %p354 = scmp.eq.s32.totalorder %s31, 0
      %p355 = por %p353, %p354
      %p356 = scmp.ne.s32.totalorder %s348, %s350
      %p357 = scmp.eq.s32.totalorder %s36, 29
      %p358 = por %p356, %p357
      %p359 = scmp.ne.s32.totalorder %s350, %s351
      %p360 = scmp.eq.s32.totalorder %s36, 0
      %p361 = por %p359, %p360
      %p362 = scmp.ne.s32.totalorder %s350, %s351
      %p363 = scmp.eq.s32.totalorder %s37, 29
      %p364 = por %p362, %p363
      %p366 = scmp.ne.s32.totalorder %s351, %s365
      %p367 = scmp.eq.s32.totalorder %s37, 0
      %p368 = por %p366, %p367
      %p369 = scmp.le.s32.totalorder 1, %s31
      %p370 = scmp.lt.s32.totalorder %s31, 31
      %p371 = pnand %p369, %p370
      %p372 = pneg %p371
      // Predicated region
      $region9: #{forward.1} parent=5 // pred_check
        _
      $region10: #{forward.1} parent=5 // pred_check_branch
        %374 = sbr.rel (%p371) target = $region12
      $region11: #{forward.1} parent=5 // pred_region
        %s375 = ssub.s32 %s31, 1
        // Predicated region
        $region13: #{forward.1} parent=11 // pred_check
          %p376 = pneg %p52
        $region14: #{forward.1} parent=11 // pred_check_branch
          %378 = sbr.rel (%p376) target = $region16
        $region15: #{forward.1} parent=11 // pred_region
          _
        $region16: #{forward.1} parent=11 // pred_fallthru
          _
        // Predicated region
        $region17: #{forward.1} parent=11 // pred_check
          %p379 = pneg %p151
        $region18: #{forward.1} parent=11 // pred_check_branch
          %381 = sbr.rel (%p379) target = $region20
        $region19: #{forward.1} parent=11 // pred_region
          %s383 = ssub.s32 36864, 36864
          %384 = vsyncadd [#allocation13], %s383
          %s385 = sshll.u32 [#allocation12], 4
          %s386 = int_to_ptr.vmem [resolvable:$true] %s385
          %391 = dma.hbm_to_vmem [thread:$0]  %s4, 36864, %s386, [#allocation13], 128, 128, 8
        $region20: #{forward.1} parent=11 // pred_fallthru
          _
        // Predicated region
        $region21: #{forward.1} parent=11 // pred_check
          %p392 = pneg %p172
        $region22: #{forward.1} parent=11 // pred_check_branch
          %394 = sbr.rel (%p392) target = $region24
        $region23: #{forward.1} parent=11 // pred_region
          %s396 = ssub.s32 32, 32
          %397 = vsyncadd [#allocation13], %s396
          %s399 = sshll.u32 [#allocation14], 4
          %s400 = int_to_ptr.vmem [resolvable:$true] %s399
          %402 = dma.hbm_to_vmem [thread:$0]  %s5, 32, %s400, [#allocation13]
        $region24: #{forward.1} parent=11 // pred_fallthru
          _
        // Predicated region
        $region25: #{forward.1} parent=11 // pred_check
          %p403 = pneg %p193
        $region26: #{forward.1} parent=11 // pred_check_branch
          %405 = sbr.rel (%p403) target = $region28
        $region27: #{forward.1} parent=11 // pred_region
          %s407 = ssub.s32 20480, 20480
          %408 = vsyncadd [#allocation16], %s407
          %s409 = sshll.u32 [#allocation15], 4
          %s410 = int_to_ptr.vmem [resolvable:$true] %s409
          %415 = dma.hbm_to_vmem [thread:$0]  %s6, 20480, %s410, [#allocation16], 128, 128, 8
        $region28: #{forward.1} parent=11 // pred_fallthru
          _
        // Predicated region
        $region29: #{forward.1} parent=11 // pred_check
          %p416 = pneg %p214
        $region30: #{forward.1} parent=11 // pred_check_branch
          %418 = sbr.rel (%p416) target = $region32
        $region31: #{forward.1} parent=11 // pred_region
          %s420 = ssub.s32 32, 32
          %421 = vsyncadd [#allocation16], %s420
          %s423 = sshll.u32 [#allocation17], 4
          %s424 = int_to_ptr.vmem [resolvable:$true] %s423
          %426 = dma.hbm_to_vmem [thread:$0]  %s7, 32, %s424, [#allocation16]
        $region32: #{forward.1} parent=11 // pred_fallthru
          _
        // Predicated region
        $region33: #{forward.1} parent=11 // pred_check
          %p427 = pneg %p235
        $region34: #{forward.1} parent=11 // pred_check_branch
          %429 = sbr.rel (%p427) target = $region36
        $region35: #{forward.1} parent=11 // pred_region
          %s431 = ssub.s32 4096, 4096
          %432 = vsyncadd [#allocation19], %s431
          %s433 = sshll.u32 [#allocation18], 4
          %s434 = int_to_ptr.vmem [resolvable:$true] %s433
          %439 = dma.hbm_to_vmem [thread:$0]  %s8, 4096, %s434, [#allocation19], 128, 128, 8
        $region36: #{forward.1} parent=11 // pred_fallthru
          _
        // Predicated region
        $region37: #{forward.1} parent=11 // pred_check
          %p440 = pneg %p256
        $region38: #{forward.1} parent=11 // pred_check_branch
          %442 = sbr.rel (%p440) target = $region40
        $region39: #{forward.1} parent=11 // pred_region
          %s444 = ssub.s32 16, 16
          %445 = vsyncadd [#allocation19], %s444
          %s447 = sshll.u32 [#allocation20], 4
          %s448 = int_to_ptr.vmem [resolvable:$true] %s447
          %450 = dma.hbm_to_vmem [thread:$0]  %s9, 16, %s448, [#allocation19]
        $region40: #{forward.1} parent=11 // pred_fallthru
          _
        // Predicated region
        $region41: #{forward.1} parent=11 // pred_check
          %p451 = pneg %p277
        $region42: #{forward.1} parent=11 // pred_check_branch
          %453 = sbr.rel (%p451) target = $region44
        $region43: #{forward.1} parent=11 // pred_region
          %s455 = ssub.s32 4096, 4096
          %456 = vsyncadd [#allocation22], %s455
          %s457 = sshll.u32 [#allocation21], 4
          %s458 = int_to_ptr.vmem [resolvable:$true] %s457
          %463 = dma.hbm_to_vmem [thread:$0]  %s10, 4096, %s458, [#allocation22], 256, 256, 16
        $region44: #{forward.1} parent=11 // pred_fallthru
          _
        // Predicated region
        $region45: #{forward.1} parent=11 // pred_check
          %p464 = pneg %p298
        $region46: #{forward.1} parent=11 // pred_check_branch
          %466 = sbr.rel (%p464) target = $region48
        $region47: #{forward.1} parent=11 // pred_region
          %s468 = ssub.s32 32, 32
          %469 = vsyncadd [#allocation22], %s468
          %s471 = sshll.u32 [#allocation23], 4
          %s472 = int_to_ptr.vmem [resolvable:$true] %s471
          %474 = dma.hbm_to_vmem [thread:$0]  %s11, 32, %s472, [#allocation22]
        $region48: #{forward.1} parent=11 // pred_fallthru
          _
        // Predicated region
        $region49: #{forward.1} parent=11 // pred_check
          %p475 = pneg %p319
        $region50: #{forward.1} parent=11 // pred_check_branch
          %477 = sbr.rel (%p475) target = $region52
        $region51: #{forward.1} parent=11 // pred_region
          %s479 = ssub.s32 4096, 4096
          %480 = vsyncadd [#allocation25], %s479
          %s481 = sshll.u32 [#allocation24], 4
          %s482 = int_to_ptr.vmem [resolvable:$true] %s481
          %487 = dma.hbm_to_vmem [thread:$0]  %s12, 4096, %s482, [#allocation25], 128, 128, 8
        $region52: #{forward.1} parent=11 // pred_fallthru
          _
        // Predicated region
        $region53: #{forward.1} parent=11 // pred_check
          %p488 = pneg %p340
        $region54: #{forward.1} parent=11 // pred_check_branch
          %490 = sbr.rel (%p488) target = $region56
        $region55: #{forward.1} parent=11 // pred_region
          %s492 = ssub.s32 16, 16
          %493 = vsyncadd [#allocation25], %s492
          %s495 = sshll.u32 [#allocation26], 4
          %s496 = int_to_ptr.vmem [resolvable:$true] %s495
          %498 = dma.hbm_to_vmem [thread:$0]  %s13, 16, %s496, [#allocation25]
        $region56: #{forward.1} parent=11 // pred_fallthru
          _
      $region12: #{forward.1} parent=5 // pred_fallthru
        _
      %p499 = scmp.lt.s32.totalorder %s31, 30
      // Predicated region
      $region57: #{forward.1} parent=5 // pred_check
        %p500 = pneg %p499
      $region58: #{forward.1} parent=5 // pred_check_branch
        %502 = sbr.rel (%p500) target = $region60
      $region59: #{forward.1} parent=5 // pred_region
        // Predicated region
        $region61: #{forward.1} parent=59 // pred_check
          %p503 = pneg %p72
        $region62: #{forward.1} parent=59 // pred_check_branch
          %505 = sbr.rel (%p503) target = $region64
        $region63: #{forward.1} parent=59 // pred_region
          %s506 = sand.u32 %s62, 1
          %s507 = scalar_lea.sflag [#allocation8], %s506
          %s508 = sand.u32 %s62, 1
          %s509 = smul.addr %s508, 1024
          %s510 = scalar_lea.vmem [#allocation7], %s509
          %s512 = ssub.s32 16384, 16384
          %513 = vsyncadd %s507, %s512
          %s514 = smul.addr %s31, 256
          %s515 = smul.addr %s514, 64
          %s516 = scalar_lea.hbm %s1, %s515
          %s517 = sshll.u32 %s510, 4
          %s518 = int_to_ptr.vmem [resolvable:$true] %s517
          %523 = dma.hbm_to_vmem [thread:$0]  %s516, 16384, %s518, %s507, 512, 512, 32
        $region64: #{forward.1} parent=59 // pred_fallthru
          _
        // Predicated region
        $region65: #{forward.1} parent=59 // pred_check
          %p524 = pneg %p98
        $region66: #{forward.1} parent=59 // pred_check_branch
          %526 = sbr.rel (%p524) target = $region68
        $region67: #{forward.1} parent=59 // pred_region
          %s527 = sand.u32 %s31, 1
          %s528 = scalar_lea.sflag [#allocation10], %s527
          %s529 = sand.u32 %s88, 1
          %s530 = smul.addr %s529, 1024
          %s531 = scalar_lea.vmem [#allocation9], %s530
          %s533 = ssub.s32 16384, 16384
          %534 = vsyncadd %s528, %s533
          %s535 = smul.addr %s31, 256
          %s536 = smul.addr %s535, 64
          %s537 = scalar_lea.hbm %s2, %s536
          %s538 = sshll.u32 %s531, 4
          %s539 = int_to_ptr.vmem [resolvable:$true] %s538
          %544 = dma.hbm_to_vmem [thread:$0]  %s537, 16384, %s539, %s528, 512, 512, 32
        $region68: #{forward.1} parent=59 // pred_fallthru
          _
        // Predicated region
        $region69: #{forward.1} parent=59 // pred_check
          %p545 = pneg %p124
        $region70: #{forward.1} parent=59 // pred_check_branch
          %547 = sbr.rel (%p545) target = $region72
        $region71: #{forward.1} parent=59 // pred_region
          %s548 = sand.u32 %s31, 1
          %s549 = scalar_lea.sflag [#allocation10], %s548
          %s550 = sand.u32 %s114, 1
          %s551 = smul.addr %s550, 8
          %s552 = scalar_lea.vmem [#allocation11], %s551
          %s554 = ssub.s32 128, 128
          %555 = vsyncadd %s549, %s554
          %s556 = smul.addr %s31, 8
          %s557 = smul.addr %s556, 16
          %s558 = scalar_lea.hbm %s3, %s557
          %s560 = sshll.u32 %s552, 4
          %s561 = int_to_ptr.vmem [resolvable:$true] %s560
          %563 = dma.hbm_to_vmem [thread:$0]  %s558, 128, %s561, %s549
        $region72: #{forward.1} parent=59 // pred_fallthru
          _
      $region60: #{forward.1} parent=5 // pred_fallthru
        _
      %p564 = scmp.le.s32.totalorder 1, %s31
      %p565 = scmp.lt.s32.totalorder %s31, 31
      %p566 = pnand %p564, %p565
      %p567 = pneg %p566
      // Predicated region
      $region73: #{forward.1} parent=5 // pred_check
        _
      $region74: #{forward.1} parent=5 // pred_check_branch
        %569 = sbr.rel (%p566) target = $region76
      $region75: #{forward.1} parent=5 // pred_region
        %s570 = ssub.s32 %s31, 1
        %s571 = sand.u32 %s65, 1
        %s572 = scalar_lea.sflag [#allocation8], %s571
        %s573 = sand.u32 %s65, 1
        %s574 = smul.addr %s573, 1024
        %s575 = scalar_lea.vmem [#allocation7], %s574
        // Predicated region
        $region77: #{forward.1} parent=75 // pred_check
          %p576 = pneg %p78
        $region78: #{forward.1} parent=75 // pred_check_branch
          %578 = sbr.rel (%p576) target = $region80
        $region79: #{forward.1} parent=75 // pred_region
          %579 = dma.done %s572, 16384
        $region80: #{forward.1} parent=75 // pred_fallthru
          _
        %s580 = sand.u32 %s36, 1
        %s581 = scalar_lea.sflag [#allocation10], %s580
        %s582 = sand.u32 %s91, 1
        %s583 = smul.addr %s582, 1024
        %s584 = scalar_lea.vmem [#allocation9], %s583
        // Predicated region
        $region81: #{forward.1} parent=75 // pred_check
          %p585 = pneg %p104
        $region82: #{forward.1} parent=75 // pred_check_branch
          %587 = sbr.rel (%p585) target = $region84
        $region83: #{forward.1} parent=75 // pred_region
          %588 = dma.done %s581, 16384
        $region84: #{forward.1} parent=75 // pred_fallthru
          _
        %s589 = sand.u32 %s36, 1
        %s590 = scalar_lea.sflag [#allocation10], %s589
        %s591 = sand.u32 %s117, 1
        %s592 = smul.addr %s591, 8
        %s593 = scalar_lea.vmem [#allocation11], %s592
        // Predicated region
        $region85: #{forward.1} parent=75 // pred_check
          %p594 = pneg %p130
        $region86: #{forward.1} parent=75 // pred_check_branch
          %596 = sbr.rel (%p594) target = $region88
        $region87: #{forward.1} parent=75 // pred_region
          %597 = dma.done %s590, 128
        $region88: #{forward.1} parent=75 // pred_fallthru
          _
        // Predicated region
        $region89: #{forward.1} parent=75 // pred_check
          %p598 = pneg %p151
        $region90: #{forward.1} parent=75 // pred_check_branch
          %600 = sbr.rel (%p598) target = $region92
        $region91: #{forward.1} parent=75 // pred_region
          %601 = dma.done [#allocation13], 36864
        $region92: #{forward.1} parent=75 // pred_fallthru
          _
        // Predicated region
        $region93: #{forward.1} parent=75 // pred_check
          %p602 = pneg %p172
        $region94: #{forward.1} parent=75 // pred_check_branch
          %604 = sbr.rel (%p602) target = $region96
        $region95: #{forward.1} parent=75 // pred_region
          %605 = dma.done [#allocation13], 32
        $region96: #{forward.1} parent=75 // pred_fallthru
          _
        // Predicated region
        $region97: #{forward.1} parent=75 // pred_check
          %p606 = pneg %p193
        $region98: #{forward.1} parent=75 // pred_check_branch
          %608 = sbr.rel (%p606) target = $region100
        $region99: #{forward.1} parent=75 // pred_region
          %609 = dma.done [#allocation16], 20480
        $region100: #{forward.1} parent=75 // pred_fallthru
          _
        // Predicated region
        $region101: #{forward.1} parent=75 // pred_check
          %p610 = pneg %p214
        $region102: #{forward.1} parent=75 // pred_check_branch
          %612 = sbr.rel (%p610) target = $region104
        $region103: #{forward.1} parent=75 // pred_region
          %613 = dma.done [#allocation16], 32
        $region104: #{forward.1} parent=75 // pred_fallthru
          _
        // Predicated region
        $region105: #{forward.1} parent=75 // pred_check
          %p614 = pneg %p235
        $region106: #{forward.1} parent=75 // pred_check_branch
          %616 = sbr.rel (%p614) target = $region108
        $region107: #{forward.1} parent=75 // pred_region
          %617 = dma.done [#allocation19], 4096
        $region108: #{forward.1} parent=75 // pred_fallthru
          _
        // Predicated region
        $region109: #{forward.1} parent=75 // pred_check
          %p618 = pneg %p256
        $region110: #{forward.1} parent=75 // pred_check_branch
          %620 = sbr.rel (%p618) target = $region112
        $region111: #{forward.1} parent=75 // pred_region
          %621 = dma.done [#allocation19], 16
        $region112: #{forward.1} parent=75 // pred_fallthru
          _
        // Predicated region
        $region113: #{forward.1} parent=75 // pred_check
          %p622 = pneg %p277
        $region114: #{forward.1} parent=75 // pred_check_branch
          %624 = sbr.rel (%p622) target = $region116
        $region115: #{forward.1} parent=75 // pred_region
          %625 = dma.done [#allocation22], 4096
        $region116: #{forward.1} parent=75 // pred_fallthru
          _
        // Predicated region
        $region117: #{forward.1} parent=75 // pred_check
          %p626 = pneg %p298
        $region118: #{forward.1} parent=75 // pred_check_branch
          %628 = sbr.rel (%p626) target = $region120
        $region119: #{forward.1} parent=75 // pred_region
          %629 = dma.done [#allocation22], 32
        $region120: #{forward.1} parent=75 // pred_fallthru
          _
        // Predicated region
        $region121: #{forward.1} parent=75 // pred_check
          %p630 = pneg %p319
        $region122: #{forward.1} parent=75 // pred_check_branch
          %632 = sbr.rel (%p630) target = $region124
        $region123: #{forward.1} parent=75 // pred_region
          %633 = dma.done [#allocation25], 4096
        $region124: #{forward.1} parent=75 // pred_fallthru
          _
        // Predicated region
        $region125: #{forward.1} parent=75 // pred_check
          %p634 = pneg %p340
        $region126: #{forward.1} parent=75 // pred_check_branch
          %636 = sbr.rel (%p634) target = $region128
        $region127: #{forward.1} parent=75 // pred_region
          %637 = dma.done [#allocation25], 16
        $region128: #{forward.1} parent=75 // pred_fallthru
          _
        %p638 = pneg %p52
        %p639 = pneg %p49
        %s640 = sand.u32 %s65, 1
        %s641 = scalar_lea.sflag [#allocation8], %s640
        %s642 = sand.u32 %s65, 1
        %s643 = smul.addr %s642, 1024
        %s644 = scalar_lea.vmem [#allocation7], %s643
        %p645 = pneg %p78
        %p646 = pneg %p75
        %s647 = sand.u32 %s36, 1
        %s648 = scalar_lea.sflag [#allocation10], %s647
        %s649 = sand.u32 %s91, 1
        %s650 = smul.addr %s649, 1024
        %s651 = scalar_lea.vmem [#allocation9], %s650
        %p652 = pneg %p104
        %p653 = pneg %p101
        %s654 = sand.u32 %s36, 1
        %s655 = scalar_lea.sflag [#allocation10], %s654
        %s656 = sand.u32 %s117, 1
        %s657 = smul.addr %s656, 8
        %s658 = scalar_lea.vmem [#allocation11], %s657
        %p659 = pneg %p130
        %p660 = pneg %p127
        %p661 = pneg %p151
        %p662 = pneg %p148
        %p663 = pneg %p172
        %p664 = pneg %p169
        %p665 = pneg %p193
        %p666 = pneg %p190
        %p667 = pneg %p214
        %p668 = pneg %p211
        %p669 = pneg %p235
        %p670 = pneg %p232
        %p671 = pneg %p256
        %p672 = pneg %p253
        %p673 = pneg %p277
        %p674 = pneg %p274
        %p675 = pneg %p298
        %p676 = pneg %p295
        %p677 = pneg %p319
        %p678 = pneg %p316
        %p679 = pneg %p340
        %p680 = pneg %p337
        %p681 = pneg %p361
        %p682 = pneg %p358
        %p683 = scmp.eq.s32.totalorder %s36, 0
        // Predicated region
        $region129: #{forward.1} parent=75 // pred_check
          %p684 = pneg %p683
        $region130: #{forward.1} parent=75 // pred_check_branch
          %686 = sbr.rel (%p684) target = $region132
        $region131: #{forward.1} parent=75 // pred_region
          %v687 = vld [vmem:[%s0] sm:$0xff]
          %v688 = vld [vmem:[%s0 + $0x8] sm:$0xff]
          %v689 = vld [vmem:[%s0 + $0x10] sm:$0xff]
          %v690 = vld [vmem:[%s0 + $0x18] sm:$0xff]
          %v691 = vld [vmem:[%s0 + $0x20] sm:$0xff]
          %v692 = vld [vmem:[%s0 + $0x28] sm:$0xff]
          %v693 = vld [vmem:[%s0 + $0x30] sm:$0xff]
          %v694 = vld [vmem:[%s0 + $0x38] sm:$0xff]
          %v695 = vld [vmem:[%s0 + $0x40] sm:$0xff]
          %v696 = vld [vmem:[%s0 + $0x48] sm:$0xff]
          %v697 = vld [vmem:[%s0 + $0x50] sm:$0xff]
          %v698 = vld [vmem:[%s0 + $0x58] sm:$0xff]
          %v699 = vld [vmem:[%s0 + $0x60] sm:$0xff]
          %v700 = vld [vmem:[%s0 + $0x68] sm:$0xff]
          %v701 = vld [vmem:[%s0 + $0x70] sm:$0xff]
          %v702 = vld [vmem:[%s0 + $0x78] sm:$0xff]
          %703 = vst [vmem:[#allocation2] sm:$0xff] %v687
          %704 = vst [vmem:[#allocation2 + $0x8] sm:$0xff] %v688
          %705 = vst [vmem:[#allocation2 + $0x10] sm:$0xff] %v689
          %706 = vst [vmem:[#allocation2 + $0x18] sm:$0xff] %v690
          %707 = vst [vmem:[#allocation2 + $0x20] sm:$0xff] %v691
          %708 = vst [vmem:[#allocation2 + $0x28] sm:$0xff] %v692
          %709 = vst [vmem:[#allocation2 + $0x30] sm:$0xff] %v693
          %710 = vst [vmem:[#allocation2 + $0x38] sm:$0xff] %v694
          %711 = vst [vmem:[#allocation2 + $0x40] sm:$0xff] %v695
          %712 = vst [vmem:[#allocation2 + $0x48] sm:$0xff] %v696
          %713 = vst [vmem:[#allocation2 + $0x50] sm:$0xff] %v697
          %714 = vst [vmem:[#allocation2 + $0x58] sm:$0xff] %v698
          %715 = vst [vmem:[#allocation2 + $0x60] sm:$0xff] %v699
          %716 = vst [vmem:[#allocation2 + $0x68] sm:$0xff] %v700
          %717 = vst [vmem:[#allocation2 + $0x70] sm:$0xff] %v701
          %718 = vst [vmem:[#allocation2 + $0x78] sm:$0xff] %v702
          %719 = vst [vmem:[#allocation5] sm:$0xff] 0.0
          %720 = vst [vmem:[#allocation5 + $0x8] sm:$0xff] 0.0
          %721 = vst [vmem:[#allocation5 + $0x10] sm:$0xff] 0.0
          %722 = vst [vmem:[#allocation5 + $0x18] sm:$0xff] 0.0
          %723 = vst [vmem:[#allocation5 + $0x20] sm:$0xff] 0.0
          %724 = vst [vmem:[#allocation5 + $0x28] sm:$0xff] 0.0
          %725 = vst [vmem:[#allocation5 + $0x30] sm:$0xff] 0.0
          %726 = vst [vmem:[#allocation5 + $0x38] sm:$0xff] 0.0
          %727 = vst [vmem:[#allocation5 + $0x40] sm:$0xff] 0.0
          %728 = vst [vmem:[#allocation5 + $0x48] sm:$0xff] 0.0
          %729 = vst [vmem:[#allocation5 + $0x50] sm:$0xff] 0.0
          %730 = vst [vmem:[#allocation5 + $0x58] sm:$0xff] 0.0
          %731 = vst [vmem:[#allocation5 + $0x60] sm:$0xff] 0.0
          %732 = vst [vmem:[#allocation5 + $0x68] sm:$0xff] 0.0
          %733 = vst [vmem:[#allocation5 + $0x70] sm:$0xff] 0.0
          %734 = vst [vmem:[#allocation5 + $0x78] sm:$0xff] 0.0
          %735 = vst [vmem:[#allocation5 + $0x80] sm:$0xff] 0.0
          %736 = vst [vmem:[#allocation5 + $0x88] sm:$0xff] 0.0
          %737 = vst [vmem:[#allocation5 + $0x90] sm:$0xff] 0.0
          %738 = vst [vmem:[#allocation5 + $0x98] sm:$0xff] 0.0
          %739 = vst [vmem:[#allocation5 + $0xa0] sm:$0xff] 0.0
          %740 = vst [vmem:[#allocation5 + $0xa8] sm:$0xff] 0.0
          %741 = vst [vmem:[#allocation5 + $0xb0] sm:$0xff] 0.0
          %742 = vst [vmem:[#allocation5 + $0xb8] sm:$0xff] 0.0
          %743 = vst [vmem:[#allocation5 + $0xc0] sm:$0xff] 0.0
          %744 = vst [vmem:[#allocation5 + $0xc8] sm:$0xff] 0.0
          %745 = vst [vmem:[#allocation5 + $0xd0] sm:$0xff] 0.0
          %746 = vst [vmem:[#allocation5 + $0xd8] sm:$0xff] 0.0
          %747 = vst [vmem:[#allocation5 + $0xe0] sm:$0xff] 0.0
          %748 = vst [vmem:[#allocation5 + $0xe8] sm:$0xff] 0.0
          %749 = vst [vmem:[#allocation6] sm:$0xff] 0.0
          %750 = vst [vmem:[#allocation6 + $0x8] sm:$0xff] 0.0
          %751 = vst [vmem:[#allocation6 + $0x10] sm:$0xff] 0.0
          %752 = vst [vmem:[#allocation6 + $0x18] sm:$0xff] 0.0
          %753 = vst [vmem:[#allocation6 + $0x20] sm:$0xff] 0.0
          %754 = vst [vmem:[#allocation6 + $0x28] sm:$0xff] 0.0
          %755 = vst [vmem:[#allocation6 + $0x30] sm:$0xff] 0.0
          %756 = vst [vmem:[#allocation6 + $0x38] sm:$0xff] 0.0
          %757 = vst [vmem:[#allocation6 + $0x40] sm:$0xff] 0.0
          %758 = vst [vmem:[#allocation6 + $0x48] sm:$0xff] 0.0
          %759 = vst [vmem:[#allocation6 + $0x50] sm:$0xff] 0.0
          %760 = vst [vmem:[#allocation6 + $0x58] sm:$0xff] 0.0
          %761 = vst [vmem:[#allocation6 + $0x60] sm:$0xff] 0.0
          %762 = vst [vmem:[#allocation6 + $0x68] sm:$0xff] 0.0
          %763 = vst [vmem:[#allocation6 + $0x70] sm:$0xff] 0.0
          %764 = vst [vmem:[#allocation6 + $0x78] sm:$0xff] 0.0
          %765 = vst [vmem:[#allocation6 + $0x80] sm:$0xff] 0.0
          %766 = vst [vmem:[#allocation6 + $0x88] sm:$0xff] 0.0
          %767 = vst [vmem:[#allocation6 + $0x90] sm:$0xff] 0.0
          %768 = vst [vmem:[#allocation6 + $0x98] sm:$0xff] 0.0
          %769 = vst [vmem:[#allocation6 + $0xa0] sm:$0xff] 0.0
          %770 = vst [vmem:[#allocation6 + $0xa8] sm:$0xff] 0.0
          %771 = vst [vmem:[#allocation6 + $0xb0] sm:$0xff] 0.0
          %772 = vst [vmem:[#allocation6 + $0xb8] sm:$0xff] 0.0
          %773 = vst [vmem:[#allocation6 + $0xc0] sm:$0xff] 0.0
          %774 = vst [vmem:[#allocation6 + $0xc8] sm:$0xff] 0.0
          %775 = vst [vmem:[#allocation6 + $0xd0] sm:$0xff] 0.0
          %776 = vst [vmem:[#allocation6 + $0xd8] sm:$0xff] 0.0
          %777 = vst [vmem:[#allocation6 + $0xe0] sm:$0xff] 0.0
          %778 = vst [vmem:[#allocation6 + $0xe8] sm:$0xff] 0.0
          %779 = vst [vmem:[%s14] sm:$0xff] 0.0
          %780 = vst [vmem:[%s14 + $0x8] sm:$0xff] 0.0
          %781 = vst [vmem:[%s14 + $0x10] sm:$0xff] 0.0
          %782 = vst [vmem:[%s14 + $0x18] sm:$0xff] 0.0
          %783 = vst [vmem:[%s14 + $0x20] sm:$0xff] 0.0
          %784 = vst [vmem:[%s14 + $0x28] sm:$0xff] 0.0
          %785 = vst [vmem:[%s14 + $0x30] sm:$0xff] 0.0
          %786 = vst [vmem:[%s14 + $0x38] sm:$0xff] 0.0
        $region132: #{forward.1} parent=75 // pred_fallthru
          _
        %p787 = scmp.eq.s32.totalorder %s36, 15
        // Predicated region
        $region133: #{forward.1} parent=75 // pred_check
          %p788 = pneg %p787
        $region134: #{forward.1} parent=75 // pred_check_branch
          %790 = sbr.rel (%p788) target = $region136
        $region135: #{forward.1} parent=75 // pred_region
          %791 = vst [vmem:[#allocation4] sm:$0xff] 0.0
          %792 = vst [vmem:[#allocation4 + $0x8] sm:$0xff] 0.0
          %793 = vst [vmem:[#allocation4 + $0x10] sm:$0xff] 0.0
          %794 = vst [vmem:[#allocation4 + $0x18] sm:$0xff] 0.0
          %795 = vst [vmem:[#allocation4 + $0x20] sm:$0xff] 0.0
          %796 = vst [vmem:[#allocation4 + $0x28] sm:$0xff] 0.0
          %797 = vst [vmem:[#allocation4 + $0x30] sm:$0xff] 0.0
          %798 = vst [vmem:[#allocation4 + $0x38] sm:$0xff] 0.0
          %799 = vst [vmem:[#allocation4 + $0x40] sm:$0xff] 0.0
          %800 = vst [vmem:[#allocation4 + $0x48] sm:$0xff] 0.0
          %801 = vst [vmem:[#allocation4 + $0x50] sm:$0xff] 0.0
          %802 = vst [vmem:[#allocation4 + $0x58] sm:$0xff] 0.0
          %803 = vst [vmem:[#allocation4 + $0x60] sm:$0xff] 0.0
          %804 = vst [vmem:[#allocation4 + $0x68] sm:$0xff] 0.0
          %805 = vst [vmem:[#allocation4 + $0x70] sm:$0xff] 0.0
          %806 = vst [vmem:[#allocation4 + $0x78] sm:$0xff] 0.0
          %807 = vst [vmem:[#allocation4 + $0x80] sm:$0xff] 0.0
          %808 = vst [vmem:[#allocation4 + $0x88] sm:$0xff] 0.0
          %809 = vst [vmem:[#allocation4 + $0x90] sm:$0xff] 0.0
          %810 = vst [vmem:[#allocation4 + $0x98] sm:$0xff] 0.0
          %811 = vst [vmem:[#allocation4 + $0xa0] sm:$0xff] 0.0
          %812 = vst [vmem:[#allocation4 + $0xa8] sm:$0xff] 0.0
          %813 = vst [vmem:[#allocation4 + $0xb0] sm:$0xff] 0.0
          %814 = vst [vmem:[#allocation4 + $0xb8] sm:$0xff] 0.0
          %815 = vst [vmem:[#allocation4 + $0xc0] sm:$0xff] 0.0
          %816 = vst [vmem:[#allocation4 + $0xc8] sm:$0xff] 0.0
          %817 = vst [vmem:[#allocation4 + $0xd0] sm:$0xff] 0.0
          %818 = vst [vmem:[#allocation4 + $0xd8] sm:$0xff] 0.0
          %819 = vst [vmem:[#allocation4 + $0xe0] sm:$0xff] 0.0
          %820 = vst [vmem:[#allocation4 + $0xe8] sm:$0xff] 0.0
          %821 = vst [vmem:[#allocation4 + $0xf0] sm:$0xff] 0.0
          %822 = vst [vmem:[#allocation4 + $0xf8] sm:$0xff] 0.0
          %v823 = vld [vmem:[#allocation2] sm:$0xff]
          %v824 = vld [vmem:[#allocation2 + $0x8] sm:$0xff]
          %v825 = vld [vmem:[#allocation2 + $0x10] sm:$0xff]
          %v826 = vld [vmem:[#allocation2 + $0x18] sm:$0xff]
          %v827 = vld [vmem:[#allocation2 + $0x20] sm:$0xff]
          %v828 = vld [vmem:[#allocation2 + $0x28] sm:$0xff]
          %v829 = vld [vmem:[#allocation2 + $0x30] sm:$0xff]
          %v830 = vld [vmem:[#allocation2 + $0x38] sm:$0xff]
          %v831 = vld [vmem:[#allocation2 + $0x40] sm:$0xff]
          %v832 = vld [vmem:[#allocation2 + $0x48] sm:$0xff]
          %v833 = vld [vmem:[#allocation2 + $0x50] sm:$0xff]
          %v834 = vld [vmem:[#allocation2 + $0x58] sm:$0xff]
          %v835 = vld [vmem:[#allocation2 + $0x60] sm:$0xff]
          %v836 = vld [vmem:[#allocation2 + $0x68] sm:$0xff]
          %v837 = vld [vmem:[#allocation2 + $0x70] sm:$0xff]
          %v838 = vld [vmem:[#allocation2 + $0x78] sm:$0xff]
          %v839 = vmax.f32 %v823, 0.0
          %v840 = vmax.f32 %v824, 0.0
          %v841 = vmax.f32 %v825, 0.0
          %v842 = vmax.f32 %v826, 0.0
          %v843 = vmax.f32 %v827, 0.0
          %v844 = vmax.f32 %v828, 0.0
          %v845 = vmax.f32 %v829, 0.0
          %v846 = vmax.f32 %v830, 0.0
          %v847 = vmax.f32 %v831, 0.0
          %v848 = vmax.f32 %v832, 0.0
          %v849 = vmax.f32 %v833, 0.0
          %v850 = vmax.f32 %v834, 0.0
          %v851 = vmax.f32 %v835, 0.0
          %v852 = vmax.f32 %v836, 0.0
          %v853 = vmax.f32 %v837, 0.0
          %v854 = vmax.f32 %v838, 0.0
          %855 = vst [vmem:[#allocation4 + $0x40] sm:$0xff] %v839
          %856 = vst [vmem:[#allocation4 + $0x48] sm:$0xff] %v840
          %857 = vst [vmem:[#allocation4 + $0x50] sm:$0xff] %v841
          %858 = vst [vmem:[#allocation4 + $0x58] sm:$0xff] %v842
          %859 = vst [vmem:[#allocation4 + $0x60] sm:$0xff] %v843
          %860 = vst [vmem:[#allocation4 + $0x68] sm:$0xff] %v844
          %861 = vst [vmem:[#allocation4 + $0x70] sm:$0xff] %v845
          %862 = vst [vmem:[#allocation4 + $0x78] sm:$0xff] %v846
          %863 = vst [vmem:[#allocation4 + $0x80] sm:$0xff] %v847
          %864 = vst [vmem:[#allocation4 + $0x88] sm:$0xff] %v848
          %865 = vst [vmem:[#allocation4 + $0x90] sm:$0xff] %v849
          %866 = vst [vmem:[#allocation4 + $0x98] sm:$0xff] %v850
          %867 = vst [vmem:[#allocation4 + $0xa0] sm:$0xff] %v851
          %868 = vst [vmem:[#allocation4 + $0xa8] sm:$0xff] %v852
          %869 = vst [vmem:[#allocation4 + $0xb0] sm:$0xff] %v853
          %870 = vst [vmem:[#allocation4 + $0xb8] sm:$0xff] %v854
          %v871 = vld [vmem:[#allocation4] sm:$0xff]
          %v872 = vld [vmem:[#allocation4 + $0x8] sm:$0xff]
          %v873 = vld [vmem:[#allocation4 + $0x10] sm:$0xff]
          %v874 = vld [vmem:[#allocation4 + $0x18] sm:$0xff]
          %v875 = vld [vmem:[#allocation4 + $0x20] sm:$0xff]
          %v876 = vld [vmem:[#allocation4 + $0x28] sm:$0xff]
          %v877 = vld [vmem:[#allocation4 + $0x30] sm:$0xff]
          %v878 = vld [vmem:[#allocation4 + $0x38] sm:$0xff]
          %v879 = vld [vmem:[#allocation4 + $0x40] sm:$0xff]
          %v880 = vld [vmem:[#allocation4 + $0x48] sm:$0xff]
          %v881 = vld [vmem:[#allocation4 + $0x50] sm:$0xff]
          %v882 = vld [vmem:[#allocation4 + $0x58] sm:$0xff]
          %v883 = vld [vmem:[#allocation4 + $0x60] sm:$0xff]
          %v884 = vld [vmem:[#allocation4 + $0x68] sm:$0xff]
          %v885 = vld [vmem:[#allocation4 + $0x70] sm:$0xff]
          %v886 = vld [vmem:[#allocation4 + $0x78] sm:$0xff]
          %v887 = vpack.c.bf16 %v873, %v871
          %v888 = vpack.c.bf16 %v874, %v872
          %v889 = vpack.c.bf16 %v877, %v875
          %v890 = vpack.c.bf16 %v878, %v876
          %v891 = vpack.c.bf16 %v881, %v879
          %v892 = vpack.c.bf16 %v882, %v880
          %v893 = vpack.c.bf16 %v885, %v883
          %v894 = vpack.c.bf16 %v886, %v884
          %v895 = vld [vmem:[#allocation12] sm:$0xff]
          %v896 = vld [vmem:[#allocation12 + $0x8] sm:$0xff]
          %v897 = vld [vmem:[#allocation12 + $0x10] sm:$0xff]
          %v898 = vld [vmem:[#allocation12 + $0x18] sm:$0xff]
          %v899 = vld [vmem:[#allocation12 + $0x20] sm:$0xff]
          %v900 = vld [vmem:[#allocation12 + $0x28] sm:$0xff]
          %v901 = vld [vmem:[#allocation12 + $0x30] sm:$0xff]
          %v902 = vld [vmem:[#allocation12 + $0x38] sm:$0xff]
          %v903 = vld [vmem:[#allocation12 + $0x40] sm:$0xff]
          %v904 = vld [vmem:[#allocation12 + $0x48] sm:$0xff]
          %v905 = vld [vmem:[#allocation12 + $0x50] sm:$0xff]
          %v906 = vld [vmem:[#allocation12 + $0x58] sm:$0xff]
          %v907 = vld [vmem:[#allocation12 + $0x60] sm:$0xff]
          %v908 = vld [vmem:[#allocation12 + $0x68] sm:$0xff]
          %v909 = vld [vmem:[#allocation12 + $0x70] sm:$0xff]
          %v910 = vld [vmem:[#allocation12 + $0x78] sm:$0xff]
          %v911 = vld [vmem:[#allocation12 + $0x80] sm:$0xff]
          %v912 = vld [vmem:[#allocation12 + $0x88] sm:$0xff]
          %v913 = vld [vmem:[#allocation12 + $0x90] sm:$0xff]
          %v914 = vld [vmem:[#allocation12 + $0x98] sm:$0xff]
          %v915 = vld [vmem:[#allocation12 + $0xa0] sm:$0xff]
          %v916 = vld [vmem:[#allocation12 + $0xa8] sm:$0xff]
          %v917 = vld [vmem:[#allocation12 + $0xb0] sm:$0xff]
          %v918 = vld [vmem:[#allocation12 + $0xb8] sm:$0xff]
          %v919 = vld [vmem:[#allocation12 + $0xc0] sm:$0xff]
          %v920 = vld [vmem:[#allocation12 + $0xc8] sm:$0xff]
          %v921 = vld [vmem:[#allocation12 + $0xd0] sm:$0xff]
          %v922 = vld [vmem:[#allocation12 + $0xd8] sm:$0xff]
          %v923 = vld [vmem:[#allocation12 + $0xe0] sm:$0xff]
          %v924 = vld [vmem:[#allocation12 + $0xe8] sm:$0xff]
          %v925 = vld [vmem:[#allocation12 + $0xf0] sm:$0xff]
          %v926 = vld [vmem:[#allocation12 + $0xf8] sm:$0xff]
          %v927 = vld [vmem:[#allocation4 + $0x80] sm:$0xff]
          %v928 = vld [vmem:[#allocation4 + $0x88] sm:$0xff]
          %v929 = vpack.c.bf16 %v875, %v873
          %v930 = vpack.c.bf16 %v876, %v874
          %v931 = vpack.c.bf16 %v879, %v877
          %v932 = vpack.c.bf16 %v880, %v878
          %v933 = vpack.c.bf16 %v883, %v881
          %v934 = vpack.c.bf16 %v884, %v882
          %v935 = vpack.c.bf16 %v927, %v885
          %v936 = vpack.c.bf16 %v928, %v886
          %s937 = scalar_lea.vmem [#allocation12], 256
          %v938 = vld [vmem:[%s937] sm:$0xff]
          %v939 = vld [vmem:[%s937 + $0x8] sm:$0xff]
          %v940 = vld [vmem:[%s937 + $0x10] sm:$0xff]
          %v941 = vld [vmem:[%s937 + $0x18] sm:$0xff]
          %v942 = vld [vmem:[%s937 + $0x20] sm:$0xff]
          %v943 = vld [vmem:[%s937 + $0x28] sm:$0xff]
          %v944 = vld [vmem:[%s937 + $0x30] sm:$0xff]
          %v945 = vld [vmem:[%s937 + $0x38] sm:$0xff]
          %v946 = vld [vmem:[%s937 + $0x40] sm:$0xff]
          %v947 = vld [vmem:[%s937 + $0x48] sm:$0xff]
          %v948 = vld [vmem:[%s937 + $0x50] sm:$0xff]
          %v949 = vld [vmem:[%s937 + $0x58] sm:$0xff]
          %v950 = vld [vmem:[%s937 + $0x60] sm:$0xff]
          %v951 = vld [vmem:[%s937 + $0x68] sm:$0xff]
          %v952 = vld [vmem:[%s937 + $0x70] sm:$0xff]
          %v953 = vld [vmem:[%s937 + $0x78] sm:$0xff]
          %v954 = vld [vmem:[%s937 + $0x80] sm:$0xff]
          %v955 = vld [vmem:[%s937 + $0x88] sm:$0xff]
          %v956 = vld [vmem:[%s937 + $0x90] sm:$0xff]
          %v957 = vld [vmem:[%s937 + $0x98] sm:$0xff]
          %v958 = vld [vmem:[%s937 + $0xa0] sm:$0xff]
          %v959 = vld [vmem:[%s937 + $0xa8] sm:$0xff]
          %v960 = vld [vmem:[%s937 + $0xb0] sm:$0xff]
          %v961 = vld [vmem:[%s937 + $0xb8] sm:$0xff]
          %v962 = vld [vmem:[%s937 + $0xc0] sm:$0xff]
          %v963 = vld [vmem:[%s937 + $0xc8] sm:$0xff]
          %v964 = vld [vmem:[%s937 + $0xd0] sm:$0xff]
          %v965 = vld [vmem:[%s937 + $0xd8] sm:$0xff]
          %v966 = vld [vmem:[%s937 + $0xe0] sm:$0xff]
          %v967 = vld [vmem:[%s937 + $0xe8] sm:$0xff]
          %v968 = vld [vmem:[%s937 + $0xf0] sm:$0xff]
          %v969 = vld [vmem:[%s937 + $0xf8] sm:$0xff]
          %v970 = vld [vmem:[#allocation4 + $0x90] sm:$0xff]
          %v971 = vld [vmem:[#allocation4 + $0x98] sm:$0xff]
          %v972 = vpack.c.bf16 %v970, %v927
          %v973 = vpack.c.bf16 %v971, %v928
          %s974 = scalar_lea.vmem [#allocation12], 512
          %v975 = vld [vmem:[%s974] sm:$0xff]
          %v976 = vld [vmem:[%s974 + $0x8] sm:$0xff]
          %v977 = vld [vmem:[%s974 + $0x10] sm:$0xff]
          %v978 = vld [vmem:[%s974 + $0x18] sm:$0xff]
          %v979 = vld [vmem:[%s974 + $0x20] sm:$0xff]
          %v980 = vld [vmem:[%s974 + $0x28] sm:$0xff]
          %v981 = vld [vmem:[%s974 + $0x30] sm:$0xff]
          %v982 = vld [vmem:[%s974 + $0x38] sm:$0xff]
          %v983 = vld [vmem:[%s974 + $0x40] sm:$0xff]
          %v984 = vld [vmem:[%s974 + $0x48] sm:$0xff]
          %v985 = vld [vmem:[%s974 + $0x50] sm:$0xff]
          %v986 = vld [vmem:[%s974 + $0x58] sm:$0xff]
          %v987 = vld [vmem:[%s974 + $0x60] sm:$0xff]
          %v988 = vld [vmem:[%s974 + $0x68] sm:$0xff]
          %v989 = vld [vmem:[%s974 + $0x70] sm:$0xff]
          %v990 = vld [vmem:[%s974 + $0x78] sm:$0xff]
          %v991 = vld [vmem:[%s974 + $0x80] sm:$0xff]
          %v992 = vld [vmem:[%s974 + $0x88] sm:$0xff]
          %v993 = vld [vmem:[%s974 + $0x90] sm:$0xff]
          %v994 = vld [vmem:[%s974 + $0x98] sm:$0xff]
          %v995 = vld [vmem:[%s974 + $0xa0] sm:$0xff]
          %v996 = vld [vmem:[%s974 + $0xa8] sm:$0xff]
          %v997 = vld [vmem:[%s974 + $0xb0] sm:$0xff]
          %v998 = vld [vmem:[%s974 + $0xb8] sm:$0xff]
          %v999 = vld [vmem:[%s974 + $0xc0] sm:$0xff]
          %v1000 = vld [vmem:[%s974 + $0xc8] sm:$0xff]
          %v1001 = vld [vmem:[%s974 + $0xd0] sm:$0xff]
          %v1002 = vld [vmem:[%s974 + $0xd8] sm:$0xff]
          %v1003 = vld [vmem:[%s974 + $0xe0] sm:$0xff]
          %v1004 = vld [vmem:[%s974 + $0xe8] sm:$0xff]
          %v1005 = vld [vmem:[%s974 + $0xf0] sm:$0xff]
          %v1006 = vld [vmem:[%s974 + $0xf8] sm:$0xff]
          %v1039 = vunpack.c.l.b16 %v975
          %v1040 = vunpack.c.h.b16 %v975
          %v1041 = vunpack.c.l.b16 %v976
          %v1042 = vunpack.c.h.b16 %v976
          %v1043 = vunpack.c.l.b16 %v977
          %v1044 = vunpack.c.h.b16 %v977
          %v1045 = vunpack.c.l.b16 %v978
          %v1046 = vunpack.c.h.b16 %v978
          %v1047 = vunpack.c.l.b16 %v979
          %v1048 = vunpack.c.h.b16 %v979
          %v1049 = vunpack.c.l.b16 %v980
          %v1050 = vunpack.c.h.b16 %v980
          %v1051 = vunpack.c.l.b16 %v981
          %v1052 = vunpack.c.h.b16 %v981
          %v1053 = vunpack.c.l.b16 %v982
          %v1054 = vunpack.c.h.b16 %v982
          %v1055 = vunpack.c.l.b16 %v983
          %v1056 = vunpack.c.h.b16 %v983
          %v1057 = vunpack.c.l.b16 %v984
          %v1058 = vunpack.c.h.b16 %v984
          %v1059 = vunpack.c.l.b16 %v985
          %v1060 = vunpack.c.h.b16 %v985
          %v1061 = vunpack.c.l.b16 %v986
          %v1062 = vunpack.c.h.b16 %v986
          %v1063 = vunpack.c.l.b16 %v987
          %v1064 = vunpack.c.h.b16 %v987
          %v1065 = vunpack.c.l.b16 %v988
          %v1066 = vunpack.c.h.b16 %v988
          %v1067 = vunpack.c.l.b16 %v989
          %v1068 = vunpack.c.h.b16 %v989
          %v1069 = vunpack.c.l.b16 %v990
          %v1070 = vunpack.c.h.b16 %v990
          %v1071 = vunpack.c.l.b16 %v991
          %v1072 = vunpack.c.h.b16 %v991
          %v1073 = vunpack.c.l.b16 %v992
          %v1074 = vunpack.c.h.b16 %v992
          %v1075 = vunpack.c.l.b16 %v993
          %v1076 = vunpack.c.h.b16 %v993
          %v1077 = vunpack.c.l.b16 %v994
          %v1078 = vunpack.c.h.b16 %v994
          %v1079 = vunpack.c.l.b16 %v995
          %v1080 = vunpack.c.h.b16 %v995
          %v1081 = vunpack.c.l.b16 %v996
          %v1082 = vunpack.c.h.b16 %v996
          %v1083 = vunpack.c.l.b16 %v997
          %v1084 = vunpack.c.h.b16 %v997
          %v1085 = vunpack.c.l.b16 %v998
          %v1086 = vunpack.c.h.b16 %v998
          %v1087 = vunpack.c.l.b16 %v999
          %v1088 = vunpack.c.h.b16 %v999
          %v1089 = vunpack.c.l.b16 %v1000
          %v1090 = vunpack.c.h.b16 %v1000
          %v1091 = vunpack.c.l.b16 %v1001
          %v1092 = vunpack.c.h.b16 %v1001
          %v1093 = vunpack.c.l.b16 %v1002
          %v1094 = vunpack.c.h.b16 %v1002
          %v1095 = vunpack.c.l.b16 %v1003
          %v1096 = vunpack.c.h.b16 %v1003
          %v1097 = vunpack.c.l.b16 %v1004
          %v1098 = vunpack.c.h.b16 %v1004
          %v1099 = vunpack.c.l.b16 %v1005
          %v1100 = vunpack.c.h.b16 %v1005
          %v1101 = vunpack.c.l.b16 %v1006
          %v1102 = vunpack.c.h.b16 %v1006
          %v1103 = vpack.c.b16 %v1041, %v1039
          %v1104 = vpack.c.b16 %v1042, %v1040
          %v1105 = vpack.c.b16 %v1045, %v1043
          %v1106 = vpack.c.b16 %v1046, %v1044
          %v1107 = vpack.c.b16 %v1049, %v1047
          %v1108 = vpack.c.b16 %v1050, %v1048
          %v1109 = vpack.c.b16 %v1053, %v1051
          %v1110 = vpack.c.b16 %v1054, %v1052
          %v1111 = vpack.c.b16 %v1057, %v1055
          %v1112 = vpack.c.b16 %v1058, %v1056
          %v1113 = vpack.c.b16 %v1061, %v1059
          %v1114 = vpack.c.b16 %v1062, %v1060
          %v1115 = vpack.c.b16 %v1065, %v1063
          %v1116 = vpack.c.b16 %v1066, %v1064
          %v1117 = vpack.c.b16 %v1069, %v1067
          %v1118 = vpack.c.b16 %v1070, %v1068
          %v1119 = vpack.c.b16 %v1073, %v1071
          %v1120 = vpack.c.b16 %v1074, %v1072
          %v1121 = vpack.c.b16 %v1077, %v1075
          %v1122 = vpack.c.b16 %v1078, %v1076
          %v1123 = vpack.c.b16 %v1081, %v1079
          %v1124 = vpack.c.b16 %v1082, %v1080
          %v1125 = vpack.c.b16 %v1085, %v1083
          %v1126 = vpack.c.b16 %v1086, %v1084
          %v1127 = vpack.c.b16 %v1089, %v1087
          %v1128 = vpack.c.b16 %v1090, %v1088
          %v1129 = vpack.c.b16 %v1093, %v1091
          %v1130 = vpack.c.b16 %v1094, %v1092
          %v1131 = vpack.c.b16 %v1097, %v1095
          %v1132 = vpack.c.b16 %v1098, %v1096
          %v1133 = vpack.c.b16 %v1101, %v1099
          %v1134 = vpack.c.b16 %v1102, %v1100
          %1167 = vmatprep.subr.bf16.mxu0 %v1104
          %1168 = vmatpush1.bf16.msra.mxu0 %v1103
          %1169 = vmatprep.subr.bf16.mxu0 %v1106
          %1170 = vmatpush1.bf16.msra.mxu0 %v1105
          %1171 = vmatprep.subr.bf16.mxu0 %v1108
          %1172 = vmatpush1.bf16.msra.mxu0 %v1107
          %1173 = vmatprep.subr.bf16.mxu0 %v1110
          %1174 = vmatpush1.bf16.msra.mxu0 %v1109
          %1175 = vmatprep.subr.bf16.mxu0 %v1112
          %1176 = vmatpush1.bf16.msra.mxu0 %v1111
          %1177 = vmatprep.subr.bf16.mxu0 %v1114
          %1178 = vmatpush1.bf16.msra.mxu0 %v1113
          %1179 = vmatprep.subr.bf16.mxu0 %v1116
          %1180 = vmatpush1.bf16.msra.mxu0 %v1115
          %1181 = vmatprep.subr.bf16.mxu0 %v1118
          %1182 = vmatpush1.bf16.msra.mxu0 %v1117
          %1183 = vmatprep.subr.bf16.mxu0 %v1120
          %1184 = vmatpush1.bf16.msra.mxu0 %v1119
          %1185 = vmatprep.subr.bf16.mxu0 %v1122
          %1186 = vmatpush1.bf16.msra.mxu0 %v1121
          %1187 = vmatprep.subr.bf16.mxu0 %v1124
          %1188 = vmatpush1.bf16.msra.mxu0 %v1123
          %1189 = vmatprep.subr.bf16.mxu0 %v1126
          %1190 = vmatpush1.bf16.msra.mxu0 %v1125
          %1191 = vmatprep.subr.bf16.mxu0 %v1128
          %1192 = vmatpush1.bf16.msra.mxu0 %v1127
          %1193 = vmatprep.subr.bf16.mxu0 %v1130
          %1194 = vmatpush1.bf16.msra.mxu0 %v1129
          %1195 = vmatprep.subr.bf16.mxu0 %v1132
          %1196 = vmatpush1.bf16.msra.mxu0 %v1131
          %1197 = vmatprep.subr.bf16.mxu0 %v1134
          %1198 = vmatpush1.bf16.msra.mxu0 %v1133
          %1199 = vmatprep.mubr.bf16.mxu0 %v890
          %1200 = vmatmul.mubr.bf16.gmra.mrb[0].mxu0 %v889
          %v1201 = vpop.f32.mrb[0].mxu0
          %v1202 = vadd.f32 0.0, %v1201
          %v1203 = vpop.f32.mrb[0].mxu0
          %v1204 = vadd.f32 0.0, %v1203
          %v1205 = vpop.f32.mrb[0].mxu0
          %v1206 = vadd.f32 0.0, %v1205
          %v1207 = vpop.f32.mrb[0].mxu0
          %v1208 = vadd.f32 0.0, %v1207
          %1209 = vmatprep.mubr.bf16.mxu0 %v892
          %1210 = vmatmul.mubr.bf16.gmra.mrb[0].mxu0 %v891
          %v1211 = vpop.f32.mrb[0].mxu0
          %v1212 = vadd.f32 0.0, %v1211
          %v1213 = vpop.f32.mrb[0].mxu0
          %v1214 = vadd.f32 0.0, %v1213
          %v1215 = vpop.f32.mrb[0].mxu0
          %v1216 = vadd.f32 0.0, %v1215
          %v1217 = vpop.f32.mrb[0].mxu0
          %v1218 = vadd.f32 0.0, %v1217
          %1219 = vmatprep.mubr.bf16.mxu0 %v894
          %1220 = vmatmul.mubr.bf16.gmra.mrb[0].mxu0 %v893
          %v1221 = vpop.f32.mrb[0].mxu0
          %v1222 = vadd.f32 0.0, %v1221
          %v1223 = vpop.f32.mrb[0].mxu0
          %v1224 = vadd.f32 0.0, %v1223
          %v1225 = vpop.f32.mrb[0].mxu0
          %v1226 = vadd.f32 0.0, %v1225
          %v1227 = vpop.f32.mrb[0].mxu0
          %v1228 = vadd.f32 0.0, %v1227
          %1229 = vmatprep.mubr.bf16.mxu0 %v973
          %1230 = vmatmul.mubr.bf16.gmra.mrb[0].mxu0 %v972
          %v1231 = vpop.f32.mrb[0].mxu0
          %v1232 = vadd.f32 0.0, %v1231
          %v1233 = vpop.f32.mrb[0].mxu0
          %v1234 = vadd.f32 0.0, %v1233
          %v1235 = vpop.f32.mrb[0].mxu0
          %v1236 = vadd.f32 0.0, %v1235
          %v1237 = vpop.f32.mrb[0].mxu0
          %v1238 = vadd.f32 0.0, %v1237
          %1239 = vdwg.mxu0
          %v1272 = vunpack.c.l.b16 %v895
          %v1273 = vunpack.c.h.b16 %v895
          %v1274 = vunpack.c.l.b16 %v896
          %v1275 = vunpack.c.h.b16 %v896
          %v1276 = vunpack.c.l.b16 %v897
          %v1277 = vunpack.c.h.b16 %v897
          %v1278 = vunpack.c.l.b16 %v898
          %v1279 = vunpack.c.h.b16 %v898
          %v1280 = vunpack.c.l.b16 %v899
          %v1281 = vunpack.c.h.b16 %v899
          %v1282 = vunpack.c.l.b16 %v900
          %v1283 = vunpack.c.h.b16 %v900
          %v1284 = vunpack.c.l.b16 %v901
          %v1285 = vunpack.c.h.b16 %v901
          %v1286 = vunpack.c.l.b16 %v902
          %v1287 = vunpack.c.h.b16 %v902
          %v1288 = vunpack.c.l.b16 %v903
          %v1289 = vunpack.c.h.b16 %v903
          %v1290 = vunpack.c.l.b16 %v904
          %v1291 = vunpack.c.h.b16 %v904
          %v1292 = vunpack.c.l.b16 %v905
          %v1293 = vunpack.c.h.b16 %v905
          %v1294 = vunpack.c.l.b16 %v906
          %v1295 = vunpack.c.h.b16 %v906
          %v1296 = vunpack.c.l.b16 %v907
          %v1297 = vunpack.c.h.b16 %v907
          %v1298 = vunpack.c.l.b16 %v908
          %v1299 = vunpack.c.h.b16 %v908
          %v1300 = vunpack.c.l.b16 %v909
          %v1301 = vunpack.c.h.b16 %v909
          %v1302 = vunpack.c.l.b16 %v910
          %v1303 = vunpack.c.h.b16 %v910
          %v1304 = vunpack.c.l.b16 %v911
          %v1305 = vunpack.c.h.b16 %v911
          %v1306 = vunpack.c.l.b16 %v912
          %v1307 = vunpack.c.h.b16 %v912
          %v1308 = vunpack.c.l.b16 %v913
          %v1309 = vunpack.c.h.b16 %v913
          %v1310 = vunpack.c.l.b16 %v914
          %v1311 = vunpack.c.h.b16 %v914
          %v1312 = vunpack.c.l.b16 %v915
          %v1313 = vunpack.c.h.b16 %v915
          %v1314 = vunpack.c.l.b16 %v916
          %v1315 = vunpack.c.h.b16 %v916
          %v1316 = vunpack.c.l.b16 %v917
          %v1317 = vunpack.c.h.b16 %v917
          %v1318 = vunpack.c.l.b16 %v918
          %v1319 = vunpack.c.h.b16 %v918
          %v1320 = vunpack.c.l.b16 %v919
          %v1321 = vunpack.c.h.b16 %v919
          %v1322 = vunpack.c.l.b16 %v920
          %v1323 = vunpack.c.h.b16 %v920
          %v1324 = vunpack.c.l.b16 %v921
          %v1325 = vunpack.c.h.b16 %v921
          %v1326 = vunpack.c.l.b16 %v922
          %v1327 = vunpack.c.h.b16 %v922
          %v1328 = vunpack.c.l.b16 %v923
          %v1329 = vunpack.c.h.b16 %v923
          %v1330 = vunpack.c.l.b16 %v924
          %v1331 = vunpack.c.h.b16 %v924
          %v1332 = vunpack.c.l.b16 %v925
          %v1333 = vunpack.c.h.b16 %v925
          %v1334 = vunpack.c.l.b16 %v926
          %v1335 = vunpack.c.h.b16 %v926
          %v1336 = vpack.c.b16 %v1274, %v1272
          %v1337 = vpack.c.b16 %v1275, %v1273
          %v1338 = vpack.c.b16 %v1278, %v1276
          %v1339 = vpack.c.b16 %v1279, %v1277
          %v1340 = vpack.c.b16 %v1282, %v1280
          %v1341 = vpack.c.b16 %v1283, %v1281
          %v1342 = vpack.c.b16 %v1286, %v1284
          %v1343 = vpack.c.b16 %v1287, %v1285
          %v1344 = vpack.c.b16 %v1290, %v1288
          %v1345 = vpack.c.b16 %v1291, %v1289
          %v1346 = vpack.c.b16 %v1294, %v1292
          %v1347 = vpack.c.b16 %v1295, %v1293
          %v1348 = vpack.c.b16 %v1298, %v1296
          %v1349 = vpack.c.b16 %v1299, %v1297
          %v1350 = vpack.c.b16 %v1302, %v1300
          %v1351 = vpack.c.b16 %v1303, %v1301
          %v1352 = vpack.c.b16 %v1306, %v1304
          %v1353 = vpack.c.b16 %v1307, %v1305
          %v1354 = vpack.c.b16 %v1310, %v1308
          %v1355 = vpack.c.b16 %v1311, %v1309
          %v1356 = vpack.c.b16 %v1314, %v1312
          %v1357 = vpack.c.b16 %v1315, %v1313
          %v1358 = vpack.c.b16 %v1318, %v1316
          %v1359 = vpack.c.b16 %v1319, %v1317
          %v1360 = vpack.c.b16 %v1322, %v1320
          %v1361 = vpack.c.b16 %v1323, %v1321
          %v1362 = vpack.c.b16 %v1326, %v1324
          %v1363 = vpack.c.b16 %v1327, %v1325
          %v1364 = vpack.c.b16 %v1330, %v1328
          %v1365 = vpack.c.b16 %v1331, %v1329
          %v1366 = vpack.c.b16 %v1334, %v1332
          %v1367 = vpack.c.b16 %v1335, %v1333
          %1400 = vmatprep.subr.bf16.mxu0 %v1337
          %1401 = vmatpush1.bf16.msra.mxu0 %v1336
          %1402 = vmatprep.subr.bf16.mxu0 %v1339
          %1403 = vmatpush1.bf16.msra.mxu0 %v1338
          %1404 = vmatprep.subr.bf16.mxu0 %v1341
          %1405 = vmatpush1.bf16.msra.mxu0 %v1340
          %1406 = vmatprep.subr.bf16.mxu0 %v1343
          %1407 = vmatpush1.bf16.msra.mxu0 %v1342
          %1408 = vmatprep.subr.bf16.mxu0 %v1345
          %1409 = vmatpush1.bf16.msra.mxu0 %v1344
          %1410 = vmatprep.subr.bf16.mxu0 %v1347
          %1411 = vmatpush1.bf16.msra.mxu0 %v1346
          %1412 = vmatprep.subr.bf16.mxu0 %v1349
          %1413 = vmatpush1.bf16.msra.mxu0 %v1348
          %1414 = vmatprep.subr.bf16.mxu0 %v1351
          %1415 = vmatpush1.bf16.msra.mxu0 %v1350
          %1416 = vmatprep.subr.bf16.mxu0 %v1353
          %1417 = vmatpush1.bf16.msra.mxu0 %v1352
          %1418 = vmatprep.subr.bf16.mxu0 %v1355
          %1419 = vmatpush1.bf16.msra.mxu0 %v1354
          %1420 = vmatprep.subr.bf16.mxu0 %v1357
          %1421 = vmatpush1.bf16.msra.mxu0 %v1356
          %1422 = vmatprep.subr.bf16.mxu0 %v1359
          %1423 = vmatpush1.bf16.msra.mxu0 %v1358
          %1424 = vmatprep.subr.bf16.mxu0 %v1361
          %1425 = vmatpush1.bf16.msra.mxu0 %v1360
          %1426 = vmatprep.subr.bf16.mxu0 %v1363
          %1427 = vmatpush1.bf16.msra.mxu0 %v1362
          %1428 = vmatprep.subr.bf16.mxu0 %v1365
          %1429 = vmatpush1.bf16.msra.mxu0 %v1364
          %1430 = vmatprep.subr.bf16.mxu0 %v1367
          %1431 = vmatpush1.bf16.msra.mxu0 %v1366
          %1432 = vmatprep.mubr.bf16.mxu0 %v888
          %1433 = vmatmul.mubr.bf16.gmra.mrb[0].mxu0 %v887
          %v1434 = vpop.f32.mrb[0].mxu0
          %v1435 = vadd.f32 %v1202, %v1434
          %v1436 = vpop.f32.mrb[0].mxu0
          %v1437 = vadd.f32 %v1204, %v1436
          %v1438 = vpop.f32.mrb[0].mxu0
          %v1439 = vadd.f32 %v1206, %v1438
          %v1440 = vpop.f32.mrb[0].mxu0
          %v1441 = vadd.f32 %v1208, %v1440
          %1442 = vmatprep.mubr.bf16.mxu0 %v890
          %1443 = vmatmul.mubr.bf16.gmra.mrb[0].mxu0 %v889
          %v1444 = vpop.f32.mrb[0].mxu0
          %v1445 = vadd.f32 %v1212, %v1444
          %v1446 = vpop.f32.mrb[0].mxu0
          %v1447 = vadd.f32 %v1214, %v1446
          %v1448 = vpop.f32.mrb[0].mxu0
          %v1449 = vadd.f32 %v1216, %v1448
          %v1450 = vpop.f32.mrb[0].mxu0
          %v1451 = vadd.f32 %v1218, %v1450
          %1452 = vmatprep.mubr.bf16.mxu0 %v892
          %1453 = vmatmul.mubr.bf16.gmra.mrb[0].mxu0 %v891
          %v1454 = vpop.f32.mrb[0].mxu0
          %v1455 = vadd.f32 %v1222, %v1454
          %v1456 = vpop.f32.mrb[0].mxu0
          %v1457 = vadd.f32 %v1224, %v1456
          %v1458 = vpop.f32.mrb[0].mxu0
          %v1459 = vadd.f32 %v1226, %v1458
          %v1460 = vpop.f32.mrb[0].mxu0
          %v1461 = vadd.f32 %v1228, %v1460
          %1462 = vmatprep.mubr.bf16.mxu0 %v894
          %1463 = vmatmul.mubr.bf16.gmra.mrb[0].mxu0 %v893
          %v1464 = vpop.f32.mrb[0].mxu0
          %v1465 = vadd.f32 %v1232, %v1464
          %v1466 = vpop.f32.mrb[0].mxu0
          %v1467 = vadd.f32 %v1234, %v1466
          %v1468 = vpop.f32.mrb[0].mxu0
          %v1469 = vadd.f32 %v1236, %v1468
          %v1470 = vpop.f32.mrb[0].mxu0
          %v1471 = vadd.f32 %v1238, %v1470
          %1472 = vdwg.mxu0
          %v1473 = vld [vmem:[#allocation4 + $0x30] sm:$0xff]
          %v1474 = vld [vmem:[#allocation4 + $0x38] sm:$0xff]
          %v1475 = vld [vmem:[#allocation4 + $0x40] sm:$0xff]
          %v1476 = vld [vmem:[#allocation4 + $0x48] sm:$0xff]
          %v1477 = vld [vmem:[#allocation4 + $0x50] sm:$0xff]
          %v1478 = vld [vmem:[#allocation4 + $0x58] sm:$0xff]
          %v1479 = vld [vmem:[#allocation4 + $0x60] sm:$0xff]
          %v1480 = vld [vmem:[#allocation4 + $0x68] sm:$0xff]
          %v1481 = vld [vmem:[#allocation4 + $0x70] sm:$0xff]
          %v1482 = vld [vmem:[#allocation4 + $0x78] sm:$0xff]
          %v1483 = vld [vmem:[#allocation4 + $0x80] sm:$0xff]
          %v1484 = vld [vmem:[#allocation4 + $0x88] sm:$0xff]
          %v1485 = vld [vmem:[#allocation4 + $0x90] sm:$0xff]
          %v1486 = vld [vmem:[#allocation4 + $0x98] sm:$0xff]
          %v1487 = vld [vmem:[#allocation4 + $0xa0] sm:$0xff]
          %v1488 = vld [vmem:[#allocation4 + $0xa8] sm:$0xff]
          %v1489 = vpack.c.bf16 %v1475, %v1473
          %v1490 = vpack.c.bf16 %v1476, %v1474
          %v1491 = vpack.c.bf16 %v1479, %v1477
          %v1492 = vpack.c.bf16 %v1480, %v1478
          %v1493 = vpack.c.bf16 %v1483, %v1481
          %v1494 = vpack.c.bf16 %v1484, %v1482
          %v1495 = vpack.c.bf16 %v1487, %v1485
          %v1496 = vpack.c.bf16 %v1488, %v1486
          %s1497 = scalar_lea.vmem [#allocation12], 768
          %v1498 = vld [vmem:[%s1497] sm:$0xff]
          %v1499 = vld [vmem:[%s1497 + $0x8] sm:$0xff]
          %v1500 = vld [vmem:[%s1497 + $0x10] sm:$0xff]
          %v1501 = vld [vmem:[%s1497 + $0x18] sm:$0xff]
          %v1502 = vld [vmem:[%s1497 + $0x20] sm:$0xff]
          %v1503 = vld [vmem:[%s1497 + $0x28] sm:$0xff]
          %v1504 = vld [vmem:[%s1497 + $0x30] sm:$0xff]
          %v1505 = vld [vmem:[%s1497 + $0x38] sm:$0xff]
          %v1506 = vld [vmem:[%s1497 + $0x40] sm:$0xff]
          %v1507 = vld [vmem:[%s1497 + $0x48] sm:$0xff]
          %v1508 = vld [vmem:[%s1497 + $0x50] sm:$0xff]
          %v1509 = vld [vmem:[%s1497 + $0x58] sm:$0xff]
          %v1510 = vld [vmem:[%s1497 + $0x60] sm:$0xff]
          %v1511 = vld [vmem:[%s1497 + $0x68] sm:$0xff]
          %v1512 = vld [vmem:[%s1497 + $0x70] sm:$0xff]
          %v1513 = vld [vmem:[%s1497 + $0x78] sm:$0xff]
          %v1514 = vld [vmem:[%s1497 + $0x80] sm:$0xff]
          %v1515 = vld [vmem:[%s1497 + $0x88] sm:$0xff]
          %v1516 = vld [vmem:[%s1497 + $0x90] sm:$0xff]
          %v1517 = vld [vmem:[%s1497 + $0x98] sm:$0xff]
          %v1518 = vld [vmem:[%s1497 + $0xa0] sm:$0xff]
          %v1519 = vld [vmem:[%s1497 + $0xa8] sm:$0xff]
          %v1520 = vld [vmem:[%s1497 + $0xb0] sm:$0xff]
          %v1521 = vld [vmem:[%s1497 + $0xb8] sm:$0xff]
          %v1522 = vld [vmem:[%s1497 + $0xc0] sm:$0xff]
          %v1523 = vld [vmem:[%s1497 + $0xc8] sm:$0xff]
          %v1524 = vld [vmem:[%s1497 + $0xd0] sm:$0xff]
          %v1525 = vld [vmem:[%s1497 + $0xd8] sm:$0xff]
          %v1526 = vld [vmem:[%s1497 + $0xe0] sm:$0xff]
          %v1527 = vld [vmem:[%s1497 + $0xe8] sm:$0xff]
          %v1528 = vld [vmem:[%s1497 + $0xf0] sm:$0xff]
          %v1529 = vld [vmem:[%s1497 + $0xf8] sm:$0xff]
          %v1562 = vunpack.c.l.b16 %v1498
          %v1563 = vunpack.c.h.b16 %v1498
          %v1564 = vunpack.c.l.b16 %v1499
          %v1565 = vunpack.c.h.b16 %v1499
          %v1566 = vunpack.c.l.b16 %v1500
          %v1567 = vunpack.c.h.b16 %v1500
          %v1568 = vunpack.c.l.b16 %v1501
          %v1569 = vunpack.c.h.b16 %v1501
          %v1570 = vunpack.c.l.b16 %v1502
          %v1571 = vunpack.c.h.b16 %v1502
          %v1572 = vunpack.c.l.b16 %v1503
          %v1573 = vunpack.c.h.b16 %v1503
          %v1574 = vunpack.c.l.b16 %v1504
          %v1575 = vunpack.c.h.b16 %v1504
          %v1576 = vunpack.c.l.b16 %v1505
          %v1577 = vunpack.c.h.b16 %v1505
          %v1578 = vunpack.c.l.b16 %v1506
          %v1579 = vunpack.c.h.b16 %v1506
          %v1580 = vunpack.c.l.b16 %v1507
          %v1581 = vunpack.c.h.b16 %v1507
          %v1582 = vunpack.c.l.b16 %v1508
          %v1583 = vunpack.c.h.b16 %v1508
          %v1584 = vunpack.c.l.b16 %v1509
          %v1585 = vunpack.c.h.b16 %v1509
          %v1586 = vunpack.c.l.b16 %v1510
          %v1587 = vunpack.c.h.b16 %v1510
          %v1588 = vunpack.c.l.b16 %v1511
          %v1589 = vunpack.c.h.b16 %v1511
          %v1590 = vunpack.c.l.b16 %v1512
          %v1591 = vunpack.c.h.b16 %v1512
          %v1592 = vunpack.c.l.b16 %v1513
          %v1593 = vunpack.c.h.b16 %v1513
          %v1594 = vunpack.c.l.b16 %v1514
          %v1595 = vunpack.c.h.b16 %v1514
          %v1596 = vunpack.c.l.b16 %v1515
          %v1597 = vunpack.c.h.b16 %v1515
          %v1598 = vunpack.c.l.b16 %v1516
          %v1599 = vunpack.c.h.b16 %v1516
          %v1600 = vunpack.c.l.b16 %v1517
          %v1601 = vunpack.c.h.b16 %v1517
          %v1602 = vunpack.c.l.b16 %v1518
          %v1603 = vunpack.c.h.b16 %v1518
          %v1604 = vunpack.c.l.b16 %v1519
          %v1605 = vunpack.c.h.b16 %v1519
          %v1606 = vunpack.c.l.b16 %v1520
          %v1607 = vunpack.c.h.b16 %v1520
          %v1608 = vunpack.c.l.b16 %v1521
          %v1609 = vunpack.c.h.b16 %v1521
          %v1610 = vunpack.c.l.b16 %v1522
          %v1611 = vunpack.c.h.b16 %v1522
          %v1612 = vunpack.c.l.b16 %v1523
          %v1613 = vunpack.c.h.b16 %v1523
          %v1614 = vunpack.c.l.b16 %v1524
          %v1615 = vunpack.c.h.b16 %v1524
          %v1616 = vunpack.c.l.b16 %v1525
          %v1617 = vunpack.c.h.b16 %v1525
          %v1618 = vunpack.c.l.b16 %v1526
          %v1619 = vunpack.c.h.b16 %v1526
          %v1620 = vunpack.c.l.b16 %v1527
          %v1621 = vunpack.c.h.b16 %v1527
          %v1622 = vunpack.c.l.b16 %v1528
          %v1623 = vunpack.c.h.b16 %v1528
          %v1624 = vunpack.c.l.b16 %v1529
          %v1625 = vunpack.c.h.b16 %v1529
          %v1626 = vpack.c.b16 %v1564, %v1562
          %v1627 = vpack.c.b16 %v1565, %v1563
          %v1628 = vpack.c.b16 %v1568, %v1566
          %v1629 = vpack.c.b16 %v1569, %v1567
          %v1630 = vpack.c.b16 %v1572, %v1570
          %v1631 = vpack.c.b16 %v1573, %v1571
          %v1632 = vpack.c.b16 %v1576, %v1574
          %v1633 = vpack.c.b16 %v1577, %v1575
          %v1634 = vpack.c.b16 %v1580, %v1578
          %v1635 = vpack.c.b16 %v1581, %v1579
          %v1636 = vpack.c.b16 %v1584, %v1582
          %v1637 = vpack.c.b16 %v1585, %v1583
          %v1638 = vpack.c.b16 %v1588, %v1586
          %v1639 = vpack.c.b16 %v1589, %v1587
          %v1640 = vpack.c.b16 %v1592, %v1590
          %v1641 = vpack.c.b16 %v1593, %v1591
          %v1642 = vpack.c.b16 %v1596, %v1594
          %v1643 = vpack.c.b16 %v1597, %v1595
          %v1644 = vpack.c.b16 %v1600, %v1598
          %v1645 = vpack.c.b16 %v1601, %v1599
          %v1646 = vpack.c.b16 %v1604, %v1602
          %v1647 = vpack.c.b16 %v1605, %v1603
          %v1648 = vpack.c.b16 %v1608, %v1606
          %v1649 = vpack.c.b16 %v1609, %v1607
          %v1650 = vpack.c.b16 %v1612, %v1610
          %v1651 = vpack.c.b16 %v1613, %v1611
          %v1652 = vpack.c.b16 %v1616, %v1614
          %v1653 = vpack.c.b16 %v1617, %v1615
          %v1654 = vpack.c.b16 %v1620, %v1618
          %v1655 = vpack.c.b16 %v1621, %v1619
          %v1656 = vpack.c.b16 %v1624, %v1622
          %v1657 = vpack.c.b16 %v1625, %v1623
          %1690 = vmatprep.subr.bf16.mxu0 %v1627
          %1691 = vmatpush1.bf16.msra.mxu0 %v1626
          %1692 = vmatprep.subr.bf16.mxu0 %v1629
          %1693 = vmatpush1.bf16.msra.mxu0 %v1628
          %1694 = vmatprep.subr.bf16.mxu0 %v1631
          %1695 = vmatpush1.bf16.msra.mxu0 %v1630
          %1696 = vmatprep.subr.bf16.mxu0 %v1633
          %1697 = vmatpush1.bf16.msra.mxu0 %v1632
          %1698 = vmatprep.subr.bf16.mxu0 %v1635
          %1699 = vmatpush1.bf16.msra.mxu0 %v1634
          %1700 = vmatprep.subr.bf16.mxu0 %v1637
          %1701 = vmatpush1.bf16.msra.mxu0 %v1636
          %1702 = vmatprep.subr.bf16.mxu0 %v1639
          %1703 = vmatpush1.bf16.msra.mxu0 %v1638
          %1704 = vmatprep.subr.bf16.mxu0 %v1641
          %1705 = vmatpush1.bf16.msra.mxu0 %v1640
          %1706 = vmatprep.subr.bf16.mxu0 %v1643
          %1707 = vmatpush1.bf16.msra.mxu0 %v1642
          %1708 = vmatprep.subr.bf16.mxu0 %v1645
          %1709 = vmatpush1.bf16.msra.mxu0 %v1644
          %1710 = vmatprep.subr.bf16.mxu0 %v1647
          %1711 = vmatpush1.bf16.msra.mxu0 %v1646
          %1712 = vmatprep.subr.bf16.mxu0 %v1649
          %1713 = vmatpush1.bf16.msra.mxu0 %v1648
          %1714 = vmatprep.subr.bf16.mxu0 %v1651
          %1715 = vmatpush1.bf16.msra.mxu0 %v1650
          %1716 = vmatprep.subr.bf16.mxu0 %v1653
          %1717 = vmatpush1.bf16.msra.mxu0 %v1652
          %1718 = vmatprep.subr.bf16.mxu0 %v1655
          %1719 = vmatpush1.bf16.msra.mxu0 %v1654
          %1720 = vmatprep.subr.bf16.mxu0 %v1657
          %1721 = vmatpush1.bf16.msra.mxu0 %v1656
          %1722 = vmatprep.mubr.bf16.mxu0 %v1490
          %1723 = vmatmul.mubr.bf16.gmra.mrb[0].mxu0 %v1489
          %v1724 = vpop.f32.mrb[0].mxu0
          %v1725 = vadd.f32 0.0, %v1724
          %v1726 = vpop.f32.mrb[0].mxu0
          %v1727 = vadd.f32 0.0, %v1726
          %v1728 = vpop.f32.mrb[0].mxu0
          %v1729 = vadd.f32 0.0, %v1728
          %v1730 = vpop.f32.mrb[0].mxu0
          %v1731 = vadd.f32 0.0, %v1730
          %1732 = vmatprep.mubr.bf16.mxu0 %v1492
          %1733 = vmatmul.mubr.bf16.gmra.mrb[0].mxu0 %v1491
          %v1734 = vpop.f32.mrb[0].mxu0
          %v1735 = vadd.f32 0.0, %v1734
          %v1736 = vpop.f32.mrb[0].mxu0
          %v1737 = vadd.f32 0.0, %v1736
          %v1738 = vpop.f32.mrb[0].mxu0
          %v1739 = vadd.f32 0.0, %v1738
          %v1740 = vpop.f32.mrb[0].mxu0
          %v1741 = vadd.f32 0.0, %v1740
          %1742 = vmatprep.mubr.bf16.mxu0 %v1494
          %1743 = vmatmul.mubr.bf16.gmra.mrb[0].mxu0 %v1493
          %v1744 = vpop.f32.mrb[0].mxu0
          %v1745 = vadd.f32 0.0, %v1744
          %v1746 = vpop.f32.mrb[0].mxu0
          %v1747 = vadd.f32 0.0, %v1746
          %v1748 = vpop.f32.mrb[0].mxu0
          %v1749 = vadd.f32 0.0, %v1748
          %v1750 = vpop.f32.mrb[0].mxu0
          %v1751 = vadd.f32 0.0, %v1750
          %1752 = vmatprep.mubr.bf16.mxu0 %v1496
          %1753 = vmatmul.mubr.bf16.gmra.mrb[0].mxu0 %v1495
          %v1754 = vpop.f32.mrb[0].mxu0
          %v1755 = vadd.f32 0.0, %v1754
          %v1756 = vpop.f32.mrb[0].mxu0
          %v1757 = vadd.f32 0.0, %v1756
          %v1758 = vpop.f32.mrb[0].mxu0
          %v1759 = vadd.f32 0.0, %v1758
          %v1760 = vpop.f32.mrb[0].mxu0
          %v1761 = vadd.f32 0.0, %v1760
          %1762 = vdwg.mxu0
          %v1795 = vunpack.c.l.b16 %v938
          %v1796 = vunpack.c.h.b16 %v938
          %v1797 = vunpack.c.l.b16 %v939
          %v1798 = vunpack.c.h.b16 %v939
          %v1799 = vunpack.c.l.b16 %v940
          %v1800 = vunpack.c.h.b16 %v940
          %v1801 = vunpack.c.l.b16 %v941
          %v1802 = vunpack.c.h.b16 %v941
          %v1803 = vunpack.c.l.b16 %v942
          %v1804 = vunpack.c.h.b16 %v942
          %v1805 = vunpack.c.l.b16 %v943
          %v1806 = vunpack.c.h.b16 %v943
          %v1807 = vunpack.c.l.b16 %v944
          %v1808 = vunpack.c.h.b16 %v944
          %v1809 = vunpack.c.l.b16 %v945
          %v1810 = vunpack.c.h.b16 %v945
          %v1811 = vunpack.c.l.b16 %v946
          %v1812 = vunpack.c.h.b16 %v946
          %v1813 = vunpack.c.l.b16 %v947
          %v1814 = vunpack.c.h.b16 %v947
          %v1815 = vunpack.c.l.b16 %v948
          %v1816 = vunpack.c.h.b16 %v948
          %v1817 = vunpack.c.l.b16 %v949
          %v1818 = vunpack.c.h.b16 %v949
          %v1819 = vunpack.c.l.b16 %v950
          %v1820 = vunpack.c.h.b16 %v950
          %v1821 = vunpack.c.l.b16 %v951
          %v1822 = vunpack.c.h.b16 %v951
          %v1823 = vunpack.c.l.b16 %v952
          %v1824 = vunpack.c.h.b16 %v952
          %v1825 = vunpack.c.l.b16 %v953
          %v1826 = vunpack.c.h.b16 %v953
          %v1827 = vunpack.c.l.b16 %v954
          %v1828 = vunpack.c.h.b16 %v954
          %v1829 = vunpack.c.l.b16 %v955
          %v1830 = vunpack.c.h.b16 %v955
          %v1831 = vunpack.c.l.b16 %v956
          %v1832 = vunpack.c.h.b16 %v956
          %v1833 = vunpack.c.l.b16 %v957
          %v1834 = vunpack.c.h.b16 %v957
          %v1835 = vunpack.c.l.b16 %v958
          %v1836 = vunpack.c.h.b16 %v958
          %v1837 = vunpack.c.l.b16 %v959
          %v1838 = vunpack.c.h.b16 %v959
          %v1839 = vunpack.c.l.b16 %v960
          %v1840 = vunpack.c.h.b16 %v960
          %v1841 = vunpack.c.l.b16 %v961
          %v1842 = vunpack.c.h.b16 %v961
          %v1843 = vunpack.c.l.b16 %v962
          %v1844 = vunpack.c.h.b16 %v962
          %v1845 = vunpack.c.l.b16 %v963
          %v1846 = vunpack.c.h.b16 %v963
          %v1847 = vunpack.c.l.b16 %v964
          %v1848 = vunpack.c.h.b16 %v964
          %v1849 = vunpack.c.l.b16 %v965
          %v1850 = vunpack.c.h.b16 %v965
          %v1851 = vunpack.c.l.b16 %v966
          %v1852 = vunpack.c.h.b16 %v966
          %v1853 = vunpack.c.l.b16 %v967
          %v1854 = vunpack.c.h.b16 %v967
          %v1855 = vunpack.c.l.b16 %v968
          %v1856 = vunpack.c.h.b16 %v968
          %v1857 = vunpack.c.l.b16 %v969
          %v1858 = vunpack.c.h.b16 %v969
          %v1859 = vpack.c.b16 %v1797, %v1795
          %v1860 = vpack.c.b16 %v1798, %v1796
          %v1861 = vpack.c.b16 %v1801, %v1799
          %v1862 = vpack.c.b16 %v1802, %v1800
          %v1863 = vpack.c.b16 %v1805, %v1803
          %v1864 = vpack.c.b16 %v1806, %v1804
          %v1865 = vpack.c.b16 %v1809, %v1807
          %v1866 = vpack.c.b16 %v1810, %v1808
          %v1867 = vpack.c.b16 %v1813, %v1811
          %v1868 = vpack.c.b16 %v1814, %v1812
          %v1869 = vpack.c.b16 %v1817, %v1815
          %v1870 = vpack.c.b16 %v1818, %v1816
          %v1871 = vpack.c.b16 %v1821, %v1819
          %v1872 = vpack.c.b16 %v1822, %v1820
          %v1873 = vpack.c.b16 %v1825, %v1823
          %v1874 = vpack.c.b16 %v1826, %v1824
          %v1875 = vpack.c.b16 %v1829, %v1827
          %v1876 = vpack.c.b16 %v1830, %v1828
          %v1877 = vpack.c.b16 %v1833, %v1831
          %v1878 = vpack.c.b16 %v1834, %v1832
          %v1879 = vpack.c.b16 %v1837, %v1835
          %v1880 = vpack.c.b16 %v1838, %v1836
          %v1881 = vpack.c.b16 %v1841, %v1839
          %v1882 = vpack.c.b16 %v1842, %v1840
          %v1883 = vpack.c.b16 %v1845, %v1843
          %v1884 = vpack.c.b16 %v1846, %v1844
          %v1885 = vpack.c.b16 %v1849, %v1847
          %v1886 = vpack.c.b16 %v1850, %v1848
          %v1887 = vpack.c.b16 %v1853, %v1851
          %v1888 = vpack.c.b16 %v1854, %v1852
          %v1889 = vpack.c.b16 %v1857, %v1855
          %v1890 = vpack.c.b16 %v1858, %v1856
          %1923 = vmatprep.subr.bf16.mxu0 %v1860
          %1924 = vmatpush1.bf16.msra.mxu0 %v1859
          %1925 = vmatprep.subr.bf16.mxu0 %v1862
          %1926 = vmatpush1.bf16.msra.mxu0 %v1861
          %1927 = vmatprep.subr.bf16.mxu0 %v1864
          %1928 = vmatpush1.bf16.msra.mxu0 %v1863
          %1929 = vmatprep.subr.bf16.mxu0 %v1866
          %1930 = vmatpush1.bf16.msra.mxu0 %v1865
          %1931 = vmatprep.subr.bf16.mxu0 %v1868
          %1932 = vmatpush1.bf16.msra.mxu0 %v1867
          %1933 = vmatprep.subr.bf16.mxu0 %v1870
          %1934 = vmatpush1.bf16.msra.mxu0 %v1869
          %1935 = vmatprep.subr.bf16.mxu0 %v1872
          %1936 = vmatpush1.bf16.msra.mxu0 %v1871
          %1937 = vmatprep.subr.bf16.mxu0 %v1874
          %1938 = vmatpush1.bf16.msra.mxu0 %v1873
          %1939 = vmatprep.subr.bf16.mxu0 %v1876
          %1940 = vmatpush1.bf16.msra.mxu0 %v1875
          %1941 = vmatprep.subr.bf16.mxu0 %v1878
          %1942 = vmatpush1.bf16.msra.mxu0 %v1877
          %1943 = vmatprep.subr.bf16.mxu0 %v1880
          %1944 = vmatpush1.bf16.msra.mxu0 %v1879
          %1945 = vmatprep.subr.bf16.mxu0 %v1882
          %1946 = vmatpush1.bf16.msra.mxu0 %v1881
          %1947 = vmatprep.subr.bf16.mxu0 %v1884
          %1948 = vmatpush1.bf16.msra.mxu0 %v1883
          %1949 = vmatprep.subr.bf16.mxu0 %v1886
          %1950 = vmatpush1.bf16.msra.mxu0 %v1885
          %1951 = vmatprep.subr.bf16.mxu0 %v1888
          %1952 = vmatpush1.bf16.msra.mxu0 %v1887
          %1953 = vmatprep.subr.bf16.mxu0 %v1890
          %1954 = vmatpush1.bf16.msra.mxu0 %v1889
          %1955 = vmatprep.mubr.bf16.mxu0 %v930
          %1956 = vmatmul.mubr.bf16.gmra.mrb[0].mxu0 %v929
          %v1957 = vpop.f32.mrb[0].mxu0
          %v1958 = vadd.f32 %v1725, %v1957
          %v1959 = vpop.f32.mrb[0].mxu0
          %v1960 = vadd.f32 %v1727, %v1959
          %v1961 = vpop.f32.mrb[0].mxu0
          %v1962 = vadd.f32 %v1729, %v1961
          %v1963 = vpop.f32.mrb[0].mxu0
          %v1964 = vadd.f32 %v1731, %v1963
          %1965 = vmatprep.mubr.bf16.mxu0 %v932
          %1966 = vmatmul.mubr.bf16.gmra.mrb[0].mxu0 %v931
          %v1967 = vpop.f32.mrb[0].mxu0
          %v1968 = vadd.f32 %v1735, %v1967
          %v1969 = vpop.f32.mrb[0].mxu0
          %v1970 = vadd.f32 %v1737, %v1969
          %v1971 = vpop.f32.mrb[0].mxu0
          %v1972 = vadd.f32 %v1739, %v1971
          %v1973 = vpop.f32.mrb[0].mxu0
          %v1974 = vadd.f32 %v1741, %v1973
          %1975 = vmatprep.mubr.bf16.mxu0 %v934
          %1976 = vmatmul.mubr.bf16.gmra.mrb[0].mxu0 %v933
          %v1977 = vpop.f32.mrb[0].mxu0
          %v1978 = vadd.f32 %v1745, %v1977
          %v1979 = vpop.f32.mrb[0].mxu0
          %v1980 = vadd.f32 %v1747, %v1979
          %v1981 = vpop.f32.mrb[0].mxu0
          %v1982 = vadd.f32 %v1749, %v1981
          %v1983 = vpop.f32.mrb[0].mxu0
          %v1984 = vadd.f32 %v1751, %v1983
          %1985 = vmatprep.mubr.bf16.mxu0 %v936
          %1986 = vmatmul.mubr.bf16.gmra.mrb[0].mxu0 %v935
          %v1987 = vpop.f32.mrb[0].mxu0
          %v1988 = vadd.f32 %v1755, %v1987
          %v1989 = vpop.f32.mrb[0].mxu0
          %v1990 = vadd.f32 %v1757, %v1989
          %v1991 = vpop.f32.mrb[0].mxu0
          %v1992 = vadd.f32 %v1759, %v1991
          %v1993 = vpop.f32.mrb[0].mxu0
          %v1994 = vadd.f32 %v1761, %v1993
          %1995 = vdwg.mxu0
          %v1996 = vld [vmem:[#allocation4 + $0x40] sm:$0xff]
          %v1997 = vld [vmem:[#allocation4 + $0x48] sm:$0xff]
          %v1998 = vld [vmem:[#allocation4 + $0x50] sm:$0xff]
          %v1999 = vld [vmem:[#allocation4 + $0x58] sm:$0xff]
          %v2000 = vld [vmem:[#allocation4 + $0x60] sm:$0xff]
          %v2001 = vld [vmem:[#allocation4 + $0x68] sm:$0xff]
          %v2002 = vld [vmem:[#allocation4 + $0x70] sm:$0xff]
          %v2003 = vld [vmem:[#allocation4 + $0x78] sm:$0xff]
          %v2004 = vld [vmem:[#allocation4 + $0x80] sm:$0xff]
          %v2005 = vld [vmem:[#allocation4 + $0x88] sm:$0xff]
          %v2006 = vld [vmem:[#allocation4 + $0x90] sm:$0xff]
          %v2007 = vld [vmem:[#allocation4 + $0x98] sm:$0xff]
          %v2008 = vld [vmem:[#allocation4 + $0xa0] sm:$0xff]
          %v2009 = vld [vmem:[#allocation4 + $0xa8] sm:$0xff]
          %v2010 = vld [vmem:[#allocation4 + $0xb0] sm:$0xff]
          %v2011 = vld [vmem:[#allocation4 + $0xb8] sm:$0xff]
          %v2012 = vpack.c.bf16 %v1998, %v1996
          %v2013 = vpack.c.bf16 %v1999, %v1997
          %v2014 = vpack.c.bf16 %v2002, %v2000
          %v2015 = vpack.c.bf16 %v2003, %v2001
          %v2016 = vpack.c.bf16 %v2006, %v2004
          %v2017 = vpack.c.bf16 %v2007, %v2005
          %v2018 = vpack.c.bf16 %v2010, %v2008
          %v2019 = vpack.c.bf16 %v2011, %v2009
          %s2020 = scalar_lea.vmem [#allocation12], 1024
          %v2021 = vld [vmem:[%s2020] sm:$0xff]
          %v2022 = vld [vmem:[%s2020 + $0x8] sm:$0xff]
          %v2023 = vld [vmem:[%s2020 + $0x10] sm:$0xff]
          %v2024 = vld [vmem:[%s2020 + $0x18] sm:$0xff]
          %v2025 = vld [vmem:[%s2020 + $0x20] sm:$0xff]
          %v2026 = vld [vmem:[%s2020 + $0x28] sm:$0xff]
          %v2027 = vld [vmem:[%s2020 + $0x30] sm:$0xff]
          %v2028 = vld [vmem:[%s2020 + $0x38] sm:$0xff]
          %v2029 = vld [vmem:[%s2020 + $0x40] sm:$0xff]
          %v2030 = vld [vmem:[%s2020 + $0x48] sm:$0xff]
          %v2031 = vld [vmem:[%s2020 + $0x50] sm:$0xff]
          %v2032 = vld [vmem:[%s2020 + $0x58] sm:$0xff]
          %v2033 = vld [vmem:[%s2020 + $0x60] sm:$0xff]
          %v2034 = vld [vmem:[%s2020 + $0x68] sm:$0xff]
          %v2035 = vld [vmem:[%s2020 + $0x70] sm:$0xff]
          %v2036 = vld [vmem:[%s2020 + $0x78] sm:$0xff]
          %v2037 = vld [vmem:[%s2020 + $0x80] sm:$0xff]
          %v2038 = vld [vmem:[%s2020 + $0x88] sm:$0xff]
          %v2039 = vld [vmem:[%s2020 + $0x90] sm:$0xff]
          %v2040 = vld [vmem:[%s2020 + $0x98] sm:$0xff]
          %v2041 = vld [vmem:[%s2020 + $0xa0] sm:$0xff]
          %v2042 = vld [vmem:[%s2020 + $0xa8] sm:$0xff]
          %v2043 = vld [vmem:[%s2020 + $0xb0] sm:$0xff]
          %v2044 = vld [vmem:[%s2020 + $0xb8] sm:$0xff]
          %v2045 = vld [vmem:[%s2020 + $0xc0] sm:$0xff]
          %v2046 = vld [vmem:[%s2020 + $0xc8] sm:$0xff]
          %v2047 = vld [vmem:[%s2020 + $0xd0] sm:$0xff]
          %v2048 = vld [vmem:[%s2020 + $0xd8] sm:$0xff]
          %v2049 = vld [vmem:[%s2020 + $0xe0] sm:$0xff]
          %v2050 = vld [vmem:[%s2020 + $0xe8] sm:$0xff]
          %v2051 = vld [vmem:[%s2020 + $0xf0] sm:$0xff]
          %v2052 = vld [vmem:[%s2020 + $0xf8] sm:$0xff]
          %v2085 = vunpack.c.l.b16 %v2021
          %v2086 = vunpack.c.h.b16 %v2021
          %v2087 = vunpack.c.l.b16 %v2022
          %v2088 = vunpack.c.h.b16 %v2022
          %v2089 = vunpack.c.l.b16 %v2023
          %v2090 = vunpack.c.h.b16 %v2023
          %v2091 = vunpack.c.l.b16 %v2024
          %v2092 = vunpack.c.h.b16 %v2024
          %v2093 = vunpack.c.l.b16 %v2025
          %v2094 = vunpack.c.h.b16 %v2025
          %v2095 = vunpack.c.l.b16 %v2026
          %v2096 = vunpack.c.h.b16 %v2026
          %v2097 = vunpack.c.l.b16 %v2027
          %v2098 = vunpack.c.h.b16 %v2027
          %v2099 = vunpack.c.l.b16 %v2028
          %v2100 = vunpack.c.h.b16 %v2028
          %v2101 = vunpack.c.l.b16 %v2029
          %v2102 = vunpack.c.h.b16 %v2029
          %v2103 = vunpack.c.l.b16 %v2030
          %v2104 = vunpack.c.h.b16 %v2030
          %v2105 = vunpack.c.l.b16 %v2031
          %v2106 = vunpack.c.h.b16 %v2031
          %v2107 = vunpack.c.l.b16 %v2032
          %v2108 = vunpack.c.h.b16 %v2032
          %v2109 = vunpack.c.l.b16 %v2033
          %v2110 = vunpack.c.h.b16 %v2033
          %v2111 = vunpack.c.l.b16 %v2034
          %v2112 = vunpack.c.h.b16 %v2034
          %v2113 = vunpack.c.l.b16 %v2035
          %v2114 = vunpack.c.h.b16 %v2035
          %v2115 = vunpack.c.l.b16 %v2036
          %v2116 = vunpack.c.h.b16 %v2036
          %v2117 = vunpack.c.l.b16 %v2037
          %v2118 = vunpack.c.h.b16 %v2037
          %v2119 = vunpack.c.l.b16 %v2038
          %v2120 = vunpack.c.h.b16 %v2038
          %v2121 = vunpack.c.l.b16 %v2039
          %v2122 = vunpack.c.h.b16 %v2039
          %v2123 = vunpack.c.l.b16 %v2040
          %v2124 = vunpack.c.h.b16 %v2040
          %v2125 = vunpack.c.l.b16 %v2041
          %v2126 = vunpack.c.h.b16 %v2041
          %v2127 = vunpack.c.l.b16 %v2042
          %v2128 = vunpack.c.h.b16 %v2042
          %v2129 = vunpack.c.l.b16 %v2043
          %v2130 = vunpack.c.h.b16 %v2043
          %v2131 = vunpack.c.l.b16 %v2044
          %v2132 = vunpack.c.h.b16 %v2044
          %v2133 = vunpack.c.l.b16 %v2045
          %v2134 = vunpack.c.h.b16 %v2045
          %v2135 = vunpack.c.l.b16 %v2046
          %v2136 = vunpack.c.h.b16 %v2046
          %v2137 = vunpack.c.l.b16 %v2047
          %v2138 = vunpack.c.h.b16 %v2047
          %v2139 = vunpack.c.l.b16 %v2048
          %v2140 = vunpack.c.h.b16 %v2048
          %v2141 = vunpack.c.l.b16 %v2049
          %v2142 = vunpack.c.h.b16 %v2049
          %v2143 = vunpack.c.l.b16 %v2050
          %v2144 = vunpack.c.h.b16 %v2050
          %v2145 = vunpack.c.l.b16 %v2051
          %v2146 = vunpack.c.h.b16 %v2051
          %v2147 = vunpack.c.l.b16 %v2052
          %v2148 = vunpack.c.h.b16 %v2052
          %v2149 = vpack.c.b16 %v2087, %v2085
          %v2150 = vpack.c.b16 %v2088, %v2086
          %v2151 = vpack.c.b16 %v2091, %v2089
          %v2152 = vpack.c.b16 %v2092, %v2090
          %v2153 = vpack.c.b16 %v2095, %v2093
          %v2154 = vpack.c.b16 %v2096, %v2094
          %v2155 = vpack.c.b16 %v2099, %v2097
          %v2156 = vpack.c.b16 %v2100, %v2098
          %v2157 = vpack.c.b16 %v2103, %v2101
          %v2158 = vpack.c.b16 %v2104, %v2102
          %v2159 = vpack.c.b16 %v2107, %v2105
          %v2160 = vpack.c.b16 %v2108, %v2106
          %v2161 = vpack.c.b16 %v2111, %v2109
          %v2162 = vpack.c.b16 %v2112, %v2110
          %v2163 = vpack.c.b16 %v2115, %v2113
          %v2164 = vpack.c.b16 %v2116, %v2114
          %v2165 = vpack.c.b16 %v2119, %v2117
          %v2166 = vpack.c.b16 %v2120, %v2118
          %v2167 = vpack.c.b16 %v2123, %v2121
          %v2168 = vpack.c.b16 %v2124, %v2122
          %v2169 = vpack.c.b16 %v2127, %v2125
          %v2170 = vpack.c.b16 %v2128, %v2126
          %v2171 = vpack.c.b16 %v2131, %v2129
          %v2172 = vpack.c.b16 %v2132, %v2130
          %v2173 = vpack.c.b16 %v2135, %v2133
          %v2174 = vpack.c.b16 %v2136, %v2134
          %v2175 = vpack.c.b16 %v2139, %v2137
          %v2176 = vpack.c.b16 %v2140, %v2138
          %v2177 = vpack.c.b16 %v2143, %v2141
          %v2178 = vpack.c.b16 %v2144, %v2142
          %v2179 = vpack.c.b16 %v2147, %v2145
          %v2180 = vpack.c.b16 %v2148, %v2146
          %2213 = vmatprep.subr.bf16.mxu0 %v2150
          %2214 = vmatpush1.bf16.msra.mxu0 %v2149
          %2215 = vmatprep.subr.bf16.mxu0 %v2152
          %2216 = vmatpush1.bf16.msra.mxu0 %v2151
          %2217 = vmatprep.subr.bf16.mxu0 %v2154
          %2218 = vmatpush1.bf16.msra.mxu0 %v2153
          %2219 = vmatprep.subr.bf16.mxu0 %v2156
          %2220 = vmatpush1.bf16.msra.mxu0 %v2155
          %2221 = vmatprep.subr.bf16.mxu0 %v2158
          %2222 = vmatpush1.bf16.msra.mxu0 %v2157
          %2223 = vmatprep.subr.bf16.mxu0 %v2160
          %2224 = vmatpush1.bf16.msra.mxu0 %v2159
          %2225 = vmatprep.subr.bf16.mxu0 %v2162
          %2226 = vmatpush1.bf16.msra.mxu0 %v2161
          %2227 = vmatprep.subr.bf16.mxu0 %v2164
          %2228 = vmatpush1.bf16.msra.mxu0 %v2163
          %2229 = vmatprep.subr.bf16.mxu0 %v2166
          %2230 = vmatpush1.bf16.msra.mxu0 %v2165
          %2231 = vmatprep.subr.bf16.mxu0 %v2168
          %2232 = vmatpush1.bf16.msra.mxu0 %v2167
          %2233 = vmatprep.subr.bf16.mxu0 %v2170
          %2234 = vmatpush1.bf16.msra.mxu0 %v2169
          %2235 = vmatprep.subr.bf16.mxu0 %v2172
          %2236 = vmatpush1.bf16.msra.mxu0 %v2171
          %2237 = vmatprep.subr.bf16.mxu0 %v2174
          %2238 = vmatpush1.bf16.msra.mxu0 %v2173
          %2239 = vmatprep.subr.bf16.mxu0 %v2176
          %2240 = vmatpush1.bf16.msra.mxu0 %v2175
          %2241 = vmatprep.subr.bf16.mxu0 %v2178
          %2242 = vmatpush1.bf16.msra.mxu0 %v2177
          %2243 = vmatprep.subr.bf16.mxu0 %v2180
          %2244 = vmatpush1.bf16.msra.mxu0 %v2179
          %2245 = vmatprep.mubr.bf16.mxu0 %v2013
          %2246 = vmatmul.mubr.bf16.gmra.mrb[0].mxu0 %v2012
          %v2247 = vpop.f32.mrb[0].mxu0
          %v2248 = vadd.f32 0.0, %v2247
          %v2249 = vpop.f32.mrb[0].mxu0
          %v2250 = vadd.f32 0.0, %v2249
          %v2251 = vpop.f32.mrb[0].mxu0
          %v2252 = vadd.f32 0.0, %v2251
          %v2253 = vpop.f32.mrb[0].mxu0
          %v2254 = vadd.f32 0.0, %v2253
          %2255 = vmatprep.mubr.bf16.mxu0 %v2015
          %2256 = vmatmul.mubr.bf16.gmra.mrb[0].mxu0 %v2014
          %v2257 = vpop.f32.mrb[0].mxu0
          %v2258 = vadd.f32 0.0, %v2257
          %v2259 = vpop.f32.mrb[0].mxu0
          %v2260 = vadd.f32 0.0, %v2259
          %v2261 = vpop.f32.mrb[0].mxu0
          %v2262 = vadd.f32 0.0, %v2261
          %v2263 = vpop.f32.mrb[0].mxu0
          %v2264 = vadd.f32 0.0, %v2263
          %2265 = vmatprep.mubr.bf16.mxu0 %v2017
          %2266 = vmatmul.mubr.bf16.gmra.mrb[0].mxu0 %v2016
          %v2267 = vpop.f32.mrb[0].mxu0
          %v2268 = vadd.f32 0.0, %v2267
          %v2269 = vpop.f32.mrb[0].mxu0
          %v2270 = vadd.f32 0.0, %v2269
          %v2271 = vpop.f32.mrb[0].mxu0
          %v2272 = vadd.f32 0.0, %v2271
          %v2273 = vpop.f32.mrb[0].mxu0
          %v2274 = vadd.f32 0.0, %v2273
          %2275 = vmatprep.mubr.bf16.mxu0 %v2019
          %2276 = vmatmul.mubr.bf16.gmra.mrb[0].mxu0 %v2018
          %v2277 = vpop.f32.mrb[0].mxu0
          %v2278 = vadd.f32 0.0, %v2277
          %v2279 = vpop.f32.mrb[0].mxu0
          %v2280 = vadd.f32 0.0, %v2279
          %v2281 = vpop.f32.mrb[0].mxu0
          %v2282 = vadd.f32 0.0, %v2281
          %v2283 = vpop.f32.mrb[0].mxu0
          %v2284 = vadd.f32 0.0, %v2283
          %2285 = vdwg.mxu0
          %v2286 = vadd.f32 %v1435, %v2248
          %v2287 = vadd.f32 %v1437, %v2250
          %v2288 = vadd.f32 %v1439, %v2252
          %v2289 = vadd.f32 %v1441, %v2254
          %v2290 = vadd.f32 %v1445, %v2258
          %v2291 = vadd.f32 %v1447, %v2260
          %v2292 = vadd.f32 %v1449, %v2262
          %v2293 = vadd.f32 %v1451, %v2264
          %v2294 = vadd.f32 %v1455, %v2268
          %v2295 = vadd.f32 %v1457, %v2270
          %v2296 = vadd.f32 %v1459, %v2272
          %v2297 = vadd.f32 %v1461, %v2274
          %v2298 = vadd.f32 %v1465, %v2278
          %v2299 = vadd.f32 %v1467, %v2280
          %v2300 = vadd.f32 %v1469, %v2282
          %v2301 = vadd.f32 %v1471, %v2284
          %v2302 = vld [vmem:[#allocation4 + $0x50] sm:$0xff]
          %v2303 = vld [vmem:[#allocation4 + $0x58] sm:$0xff]
          %v2304 = vld [vmem:[#allocation4 + $0x60] sm:$0xff]
          %v2305 = vld [vmem:[#allocation4 + $0x68] sm:$0xff]
          %v2306 = vld [vmem:[#allocation4 + $0x70] sm:$0xff]
          %v2307 = vld [vmem:[#allocation4 + $0x78] sm:$0xff]
          %v2308 = vld [vmem:[#allocation4 + $0x80] sm:$0xff]
          %v2309 = vld [vmem:[#allocation4 + $0x88] sm:$0xff]
          %v2310 = vld [vmem:[#allocation4 + $0x90] sm:$0xff]
          %v2311 = vld [vmem:[#allocation4 + $0x98] sm:$0xff]
          %v2312 = vld [vmem:[#allocation4 + $0xa0] sm:$0xff]
          %v2313 = vld [vmem:[#allocation4 + $0xa8] sm:$0xff]
          %v2314 = vld [vmem:[#allocation4 + $0xb0] sm:$0xff]
          %v2315 = vld [vmem:[#allocation4 + $0xb8] sm:$0xff]
          %v2316 = vld [vmem:[#allocation4 + $0xc0] sm:$0xff]
          %v2317 = vld [vmem:[#allocation4 + $0xc8] sm:$0xff]
          %v2318 = vpack.c.bf16 %v2304, %v2302
          %v2319 = vpack.c.bf16 %v2305, %v2303
          %v2320 = vpack.c.bf16 %v2308, %v2306
          %v2321 = vpack.c.bf16 %v2309, %v2307
          %v2322 = vpack.c.bf16 %v2312, %v2310
          %v2323 = vpack.c.bf16 %v2313, %v2311
          %v2324 = vpack.c.bf16 %v2316, %v2314
          %v2325 = vpack.c.bf16 %v2317, %v2315
          %s2326 = scalar_lea.vmem [#allocation12], 1280
          %v2327 = vld [vmem:[%s2326] sm:$0xff]
          %v2328 = vld [vmem:[%s2326 + $0x8] sm:$0xff]
          %v2329 = vld [vmem:[%s2326 + $0x10] sm:$0xff]
          %v2330 = vld [vmem:[%s2326 + $0x18] sm:$0xff]
          %v2331 = vld [vmem:[%s2326 + $0x20] sm:$0xff]
          %v2332 = vld [vmem:[%s2326 + $0x28] sm:$0xff]
          %v2333 = vld [vmem:[%s2326 + $0x30] sm:$0xff]
          %v2334 = vld [vmem:[%s2326 + $0x38] sm:$0xff]
          %v2335 = vld [vmem:[%s2326 + $0x40] sm:$0xff]
          %v2336 = vld [vmem:[%s2326 + $0x48] sm:$0xff]
          %v2337 = vld [vmem:[%s2326 + $0x50] sm:$0xff]
          %v2338 = vld [vmem:[%s2326 + $0x58] sm:$0xff]
          %v2339 = vld [vmem:[%s2326 + $0x60] sm:$0xff]
          %v2340 = vld [vmem:[%s2326 + $0x68] sm:$0xff]
          %v2341 = vld [vmem:[%s2326 + $0x70] sm:$0xff]
          %v2342 = vld [vmem:[%s2326 + $0x78] sm:$0xff]
          %v2343 = vld [vmem:[%s2326 + $0x80] sm:$0xff]
          %v2344 = vld [vmem:[%s2326 + $0x88] sm:$0xff]
          %v2345 = vld [vmem:[%s2326 + $0x90] sm:$0xff]
          %v2346 = vld [vmem:[%s2326 + $0x98] sm:$0xff]
          %v2347 = vld [vmem:[%s2326 + $0xa0] sm:$0xff]
          %v2348 = vld [vmem:[%s2326 + $0xa8] sm:$0xff]
          %v2349 = vld [vmem:[%s2326 + $0xb0] sm:$0xff]
          %v2350 = vld [vmem:[%s2326 + $0xb8] sm:$0xff]
          %v2351 = vld [vmem:[%s2326 + $0xc0] sm:$0xff]
          %v2352 = vld [vmem:[%s2326 + $0xc8] sm:$0xff]
          %v2353 = vld [vmem:[%s2326 + $0xd0] sm:$0xff]
          %v2354 = vld [vmem:[%s2326 + $0xd8] sm:$0xff]
          %v2355 = vld [vmem:[%s2326 + $0xe0] sm:$0xff]
          %v2356 = vld [vmem:[%s2326 + $0xe8] sm:$0xff]
          %v2357 = vld [vmem:[%s2326 + $0xf0] sm:$0xff]
          %v2358 = vld [vmem:[%s2326 + $0xf8] sm:$0xff]
          %v2391 = vunpack.c.l.b16 %v2327
          %v2392 = vunpack.c.h.b16 %v2327
          %v2393 = vunpack.c.l.b16 %v2328
          %v2394 = vunpack.c.h.b16 %v2328
          %v2395 = vunpack.c.l.b16 %v2329
          %v2396 = vunpack.c.h.b16 %v2329
          %v2397 = vunpack.c.l.b16 %v2330
          %v2398 = vunpack.c.h.b16 %v2330
          %v2399 = vunpack.c.l.b16 %v2331
          %v2400 = vunpack.c.h.b16 %v2331
          %v2401 = vunpack.c.l.b16 %v2332
          %v2402 = vunpack.c.h.b16 %v2332
          %v2403 = vunpack.c.l.b16 %v2333
          %v2404 = vunpack.c.h.b16 %v2333
          %v2405 = vunpack.c.l.b16 %v2334
          %v2406 = vunpack.c.h.b16 %v2334
          %v2407 = vunpack.c.l.b16 %v2335
          %v2408 = vunpack.c.h.b16 %v2335
          %v2409 = vunpack.c.l.b16 %v2336
          %v2410 = vunpack.c.h.b16 %v2336
          %v2411 = vunpack.c.l.b16 %v2337
          %v2412 = vunpack.c.h.b16 %v2337
          %v2413 = vunpack.c.l.b16 %v2338
          %v2414 = vunpack.c.h.b16 %v2338
          %v2415 = vunpack.c.l.b16 %v2339
          %v2416 = vunpack.c.h.b16 %v2339
          %v2417 = vunpack.c.l.b16 %v2340
          %v2418 = vunpack.c.h.b16 %v2340
          %v2419 = vunpack.c.l.b16 %v2341
          %v2420 = vunpack.c.h.b16 %v2341
          %v2421 = vunpack.c.l.b16 %v2342
          %v2422 = vunpack.c.h.b16 %v2342
          %v2423 = vunpack.c.l.b16 %v2343
          %v2424 = vunpack.c.h.b16 %v2343
          %v2425 = vunpack.c.l.b16 %v2344
          %v2426 = vunpack.c.h.b16 %v2344
          %v2427 = vunpack.c.l.b16 %v2345
          %v2428 = vunpack.c.h.b16 %v2345
          %v2429 = vunpack.c.l.b16 %v2346
          %v2430 = vunpack.c.h.b16 %v2346
          %v2431 = vunpack.c.l.b16 %v2347
          %v2432 = vunpack.c.h.b16 %v2347
          %v2433 = vunpack.c.l.b16 %v2348
          %v2434 = vunpack.c.h.b16 %v2348
          %v2435 = vunpack.c.l.b16 %v2349
          %v2436 = vunpack.c.h.b16 %v2349
          %v2437 = vunpack.c.l.b16 %v2350
          %v2438 = vunpack.c.h.b16 %v2350
          %v2439 = vunpack.c.l.b16 %v2351
          %v2440 = vunpack.c.h.b16 %v2351
          %v2441 = vunpack.c.l.b16 %v2352
          %v2442 = vunpack.c.h.b16 %v2352
          %v2443 = vunpack.c.l.b16 %v2353
          %v2444 = vunpack.c.h.b16 %v2353
          %v2445 = vunpack.c.l.b16 %v2354
          %v2446 = vunpack.c.h.b16 %v2354
          %v2447 = vunpack.c.l.b16 %v2355
          %v2448 = vunpack.c.h.b16 %v2355
          %v2449 = vunpack.c.l.b16 %v2356
          %v2450 = vunpack.c.h.b16 %v2356
          %v2451 = vunpack.c.l.b16 %v2357
          %v2452 = vunpack.c.h.b16 %v2357
          %v2453 = vunpack.c.l.b16 %v2358
          %v2454 = vunpack.c.h.b16 %v2358
          %v2455 = vpack.c.b16 %v2393, %v2391
          %v2456 = vpack.c.b16 %v2394, %v2392
          %v2457 = vpack.c.b16 %v2397, %v2395
          %v2458 = vpack.c.b16 %v2398, %v2396
          %v2459 = vpack.c.b16 %v2401, %v2399
          %v2460 = vpack.c.b16 %v2402, %v2400
          %v2461 = vpack.c.b16 %v2405, %v2403
          %v2462 = vpack.c.b16 %v2406, %v2404
          %v2463 = vpack.c.b16 %v2409, %v2407
          %v2464 = vpack.c.b16 %v2410, %v2408
          %v2465 = vpack.c.b16 %v2413, %v2411
          %v2466 = vpack.c.b16 %v2414, %v2412
          %v2467 = vpack.c.b16 %v2417, %v2415
          %v2468 = vpack.c.b16 %v2418, %v2416
          %v2469 = vpack.c.b16 %v2421, %v2419
          %v2470 = vpack.c.b16 %v2422, %v2420
          %v2471 = vpack.c.b16 %v2425, %v2423
          %v2472 = vpack.c.b16 %v2426, %v2424
          %v2473 = vpack.c.b16 %v2429, %v2427
          %v2474 = vpack.c.b16 %v2430, %v2428
          %v2475 = vpack.c.b16 %v2433, %v2431
          %v2476 = vpack.c.b16 %v2434, %v2432
          %v2477 = vpack.c.b16 %v2437, %v2435
          %v2478 = vpack.c.b16 %v2438, %v2436
          %v2479 = vpack.c.b16 %v2441, %v2439
          %v2480 = vpack.c.b16 %v2442, %v2440
          %v2481 = vpack.c.b16 %v2445, %v2443
          %v2482 = vpack.c.b16 %v2446, %v2444
          %v2483 = vpack.c.b16 %v2449, %v2447
          %v2484 = vpack.c.b16 %v2450, %v2448
          %v2485 = vpack.c.b16 %v2453, %v2451
          %v2486 = vpack.c.b16 %v2454, %v2452
          %2519 = vmatprep.subr.bf16.mxu0 %v2456
          %2520 = vmatpush1.bf16.msra.mxu0 %v2455
          %2521 = vmatprep.subr.bf16.mxu0 %v2458
          %2522 = vmatpush1.bf16.msra.mxu0 %v2457
          %2523 = vmatprep.subr.bf16.mxu0 %v2460
          %2524 = vmatpush1.bf16.msra.mxu0 %v2459
          %2525 = vmatprep.subr.bf16.mxu0 %v2462
          %2526 = vmatpush1.bf16.msra.mxu0 %v2461
          %2527 = vmatprep.subr.bf16.mxu0 %v2464
          %2528 = vmatpush1.bf16.msra.mxu0 %v2463
          %2529 = vmatprep.subr.bf16.mxu0 %v2466
          %2530 = vmatpush1.bf16.msra.mxu0 %v2465
          %2531 = vmatprep.subr.bf16.mxu0 %v2468
          %2532 = vmatpush1.bf16.msra.mxu0 %v2467
          %2533 = vmatprep.subr.bf16.mxu0 %v2470
          %2534 = vmatpush1.bf16.msra.mxu0 %v2469
          %2535 = vmatprep.subr.bf16.mxu0 %v2472
          %2536 = vmatpush1.bf16.msra.mxu0 %v2471
          %2537 = vmatprep.subr.bf16.mxu0 %v2474
          %2538 = vmatpush1.bf16.msra.mxu0 %v2473
          %2539 = vmatprep.subr.bf16.mxu0 %v2476
          %2540 = vmatpush1.bf16.msra.mxu0 %v2475
          %2541 = vmatprep.subr.bf16.mxu0 %v2478
          %2542 = vmatpush1.bf16.msra.mxu0 %v2477
          %2543 = vmatprep.subr.bf16.mxu0 %v2480
          %2544 = vmatpush1.bf16.msra.mxu0 %v2479
          %2545 = vmatprep.subr.bf16.mxu0 %v2482
          %2546 = vmatpush1.bf16.msra.mxu0 %v2481
          %2547 = vmatprep.subr.bf16.mxu0 %v2484
          %2548 = vmatpush1.bf16.msra.mxu0 %v2483
          %2549 = vmatprep.subr.bf16.mxu0 %v2486
          %2550 = vmatpush1.bf16.msra.mxu0 %v2485
          %2551 = vmatprep.mubr.bf16.mxu0 %v2319
          %2552 = vmatmul.mubr.bf16.gmra.mrb[0].mxu0 %v2318
          %v2553 = vpop.f32.mrb[0].mxu0
          %v2554 = vadd.f32 0.0, %v2553
          %v2555 = vpop.f32.mrb[0].mxu0
          %v2556 = vadd.f32 0.0, %v2555
          %v2557 = vpop.f32.mrb[0].mxu0
          %v2558 = vadd.f32 0.0, %v2557
          %v2559 = vpop.f32.mrb[0].mxu0
          %v2560 = vadd.f32 0.0, %v2559
          %2561 = vmatprep.mubr.bf16.mxu0 %v2321
          %2562 = vmatmul.mubr.bf16.gmra.mrb[0].mxu0 %v2320
          %v2563 = vpop.f32.mrb[0].mxu0
          %v2564 = vadd.f32 0.0, %v2563
          %v2565 = vpop.f32.mrb[0].mxu0
          %v2566 = vadd.f32 0.0, %v2565
          %v2567 = vpop.f32.mrb[0].mxu0
          %v2568 = vadd.f32 0.0, %v2567
          %v2569 = vpop.f32.mrb[0].mxu0
          %v2570 = vadd.f32 0.0, %v2569
          %2571 = vmatprep.mubr.bf16.mxu0 %v2323
          %2572 = vmatmul.mubr.bf16.gmra.mrb[0].mxu0 %v2322
          %v2573 = vpop.f32.mrb[0].mxu0
          %v2574 = vadd.f32 0.0, %v2573
          %v2575 = vpop.f32.mrb[0].mxu0
          %v2576 = vadd.f32 0.0, %v2575
          %v2577 = vpop.f32.mrb[0].mxu0
          %v2578 = vadd.f32 0.0, %v2577
          %v2579 = vpop.f32.mrb[0].mxu0
          %v2580 = vadd.f32 0.0, %v2579
          %2581 = vmatprep.mubr.bf16.mxu0 %v2325
          %2582 = vmatmul.mubr.bf16.gmra.mrb[0].mxu0 %v2324
          %v2583 = vpop.f32.mrb[0].mxu0
          %v2584 = vadd.f32 0.0, %v2583
          %v2585 = vpop.f32.mrb[0].mxu0
          %v2586 = vadd.f32 0.0, %v2585
          %v2587 = vpop.f32.mrb[0].mxu0
          %v2588 = vadd.f32 0.0, %v2587
          %v2589 = vpop.f32.mrb[0].mxu0
          %v2590 = vadd.f32 0.0, %v2589
          %2591 = vdwg.mxu0
          %v2592 = vadd.f32 %v1958, %v2554
          %v2593 = vadd.f32 %v1960, %v2556
          %v2594 = vadd.f32 %v1962, %v2558
          %v2595 = vadd.f32 %v1964, %v2560
          %v2596 = vadd.f32 %v1968, %v2564
          %v2597 = vadd.f32 %v1970, %v2566
          %v2598 = vadd.f32 %v1972, %v2568
          %v2599 = vadd.f32 %v1974, %v2570
          %v2600 = vadd.f32 %v1978, %v2574
          %v2601 = vadd.f32 %v1980, %v2576
          %v2602 = vadd.f32 %v1982, %v2578
          %v2603 = vadd.f32 %v1984, %v2580
          %v2604 = vadd.f32 %v1988, %v2584
          %v2605 = vadd.f32 %v1990, %v2586
          %v2606 = vadd.f32 %v1992, %v2588
          %v2607 = vadd.f32 %v1994, %v2590
          %v2608 = vld [vmem:[#allocation4 + $0x60] sm:$0xff]
          %v2609 = vld [vmem:[#allocation4 + $0x68] sm:$0xff]
          %v2610 = vld [vmem:[#allocation4 + $0x70] sm:$0xff]
          %v2611 = vld [vmem:[#allocation4 + $0x78] sm:$0xff]
          %v2612 = vld [vmem:[#allocation4 + $0x80] sm:$0xff]
          %v2613 = vld [vmem:[#allocation4 + $0x88] sm:$0xff]
          %v2614 = vld [vmem:[#allocation4 + $0x90] sm:$0xff]
          %v2615 = vld [vmem:[#allocation4 + $0x98] sm:$0xff]
          %v2616 = vld [vmem:[#allocation4 + $0xa0] sm:$0xff]
          %v2617 = vld [vmem:[#allocation4 + $0xa8] sm:$0xff]
          %v2618 = vld [vmem:[#allocation4 + $0xb0] sm:$0xff]
          %v2619 = vld [vmem:[#allocation4 + $0xb8] sm:$0xff]
          %v2620 = vld [vmem:[#allocation4 + $0xc0] sm:$0xff]
          %v2621 = vld [vmem:[#allocation4 + $0xc8] sm:$0xff]
          %v2622 = vld [vmem:[#allocation4 + $0xd0] sm:$0xff]
          %v2623 = vld [vmem:[#allocation4 + $0xd8] sm:$0xff]
          %v2624 = vpack.c.bf16 %v2610, %v2608
          %v2625 = vpack.c.bf16 %v2611, %v2609
          %v2626 = vpack.c.bf16 %v2614, %v2612
          %v2627 = vpack.c.bf16 %v2615, %v2613
          %v2628 = vpack.c.bf16 %v2618, %v2616
          %v2629 = vpack.c.bf16 %v2619, %v2617
          %v2630 = vpack.c.bf16 %v2622, %v2620
          %v2631 = vpack.c.bf16 %v2623, %v2621
          %s2632 = scalar_lea.vmem [#allocation12], 1536
          %v2633 = vld [vmem:[%s2632] sm:$0xff]
          %v2634 = vld [vmem:[%s2632 + $0x8] sm:$0xff]
          %v2635 = vld [vmem:[%s2632 + $0x10] sm:$0xff]
          %v2636 = vld [vmem:[%s2632 + $0x18] sm:$0xff]
          %v2637 = vld [vmem:[%s2632 + $0x20] sm:$0xff]
          %v2638 = vld [vmem:[%s2632 + $0x28] sm:$0xff]
          %v2639 = vld [vmem:[%s2632 + $0x30] sm:$0xff]
          %v2640 = vld [vmem:[%s2632 + $0x38] sm:$0xff]
          %v2641 = vld [vmem:[%s2632 + $0x40] sm:$0xff]
          %v2642 = vld [vmem:[%s2632 + $0x48] sm:$0xff]
          %v2643 = vld [vmem:[%s2632 + $0x50] sm:$0xff]
          %v2644 = vld [vmem:[%s2632 + $0x58] sm:$0xff]
          %v2645 = vld [vmem:[%s2632 + $0x60] sm:$0xff]
          %v2646 = vld [vmem:[%s2632 + $0x68] sm:$0xff]
          %v2647 = vld [vmem:[%s2632 + $0x70] sm:$0xff]
          %v2648 = vld [vmem:[%s2632 + $0x78] sm:$0xff]
          %v2649 = vld [vmem:[%s2632 + $0x80] sm:$0xff]
          %v2650 = vld [vmem:[%s2632 + $0x88] sm:$0xff]
          %v2651 = vld [vmem:[%s2632 + $0x90] sm:$0xff]
          %v2652 = vld [vmem:[%s2632 + $0x98] sm:$0xff]
          %v2653 = vld [vmem:[%s2632 + $0xa0] sm:$0xff]
          %v2654 = vld [vmem:[%s2632 + $0xa8] sm:$0xff]
          %v2655 = vld [vmem:[%s2632 + $0xb0] sm:$0xff]
          %v2656 = vld [vmem:[%s2632 + $0xb8] sm:$0xff]
          %v2657 = vld [vmem:[%s2632 + $0xc0] sm:$0xff]
          %v2658 = vld [vmem:[%s2632 + $0xc8] sm:$0xff]
          %v2659 = vld [vmem:[%s2632 + $0xd0] sm:$0xff]
          %v2660 = vld [vmem:[%s2632 + $0xd8] sm:$0xff]
          %v2661 = vld [vmem:[%s2632 + $0xe0] sm:$0xff]
          %v2662 = vld [vmem:[%s2632 + $0xe8] sm:$0xff]
          %v2663 = vld [vmem:[%s2632 + $0xf0] sm:$0xff]
          %v2664 = vld [vmem:[%s2632 + $0xf8] sm:$0xff]
          %v2697 = vunpack.c.l.b16 %v2633
          %v2698 = vunpack.c.h.b16 %v2633
          %v2699 = vunpack.c.l.b16 %v2634
          %v2700 = vunpack.c.h.b16 %v2634
          %v2701 = vunpack.c.l.b16 %v2635
          %v2702 = vunpack.c.h.b16 %v2635
          %v2703 = vunpack.c.l.b16 %v2636
          %v2704 = vunpack.c.h.b16 %v2636
          %v2705 = vunpack.c.l.b16 %v2637
          %v2706 = vunpack.c.h.b16 %v2637
          %v2707 = vunpack.c.l.b16 %v2638
          %v2708 = vunpack.c.h.b16 %v2638
          %v2709 = vunpack.c.l.b16 %v2639
          %v2710 = vunpack.c.h.b16 %v2639
          %v2711 = vunpack.c.l.b16 %v2640
          %v2712 = vunpack.c.h.b16 %v2640
          %v2713 = vunpack.c.l.b16 %v2641
          %v2714 = vunpack.c.h.b16 %v2641
          %v2715 = vunpack.c.l.b16 %v2642
          %v2716 = vunpack.c.h.b16 %v2642
          %v2717 = vunpack.c.l.b16 %v2643
          %v2718 = vunpack.c.h.b16 %v2643
          %v2719 = vunpack.c.l.b16 %v2644
          %v2720 = vunpack.c.h.b16 %v2644
          %v2721 = vunpack.c.l.b16 %v2645
          %v2722 = vunpack.c.h.b16 %v2645
          %v2723 = vunpack.c.l.b16 %v2646
          %v2724 = vunpack.c.h.b16 %v2646
          %v2725 = vunpack.c.l.b16 %v2647
          %v2726 = vunpack.c.h.b16 %v2647
          %v2727 = vunpack.c.l.b16 %v2648
          %v2728 = vunpack.c.h.b16 %v2648
          %v2729 = vunpack.c.l.b16 %v2649
          %v2730 = vunpack.c.h.b16 %v2649
          %v2731 = vunpack.c.l.b16 %v2650
          %v2732 = vunpack.c.h.b16 %v2650
          %v2733 = vunpack.c.l.b16 %v2651
          %v2734 = vunpack.c.h.b16 %v2651
          %v2735 = vunpack.c.l.b16 %v2652
          %v2736 = vunpack.c.h.b16 %v2652
          %v2737 = vunpack.c.l.b16 %v2653
          %v2738 = vunpack.c.h.b16 %v2653
          %v2739 = vunpack.c.l.b16 %v2654
          %v2740 = vunpack.c.h.b16 %v2654
          %v2741 = vunpack.c.l.b16 %v2655
          %v2742 = vunpack.c.h.b16 %v2655
          %v2743 = vunpack.c.l.b16 %v2656
          %v2744 = vunpack.c.h.b16 %v2656
          %v2745 = vunpack.c.l.b16 %v2657
          %v2746 = vunpack.c.h.b16 %v2657
          %v2747 = vunpack.c.l.b16 %v2658
          %v2748 = vunpack.c.h.b16 %v2658
          %v2749 = vunpack.c.l.b16 %v2659
          %v2750 = vunpack.c.h.b16 %v2659
          %v2751 = vunpack.c.l.b16 %v2660
          %v2752 = vunpack.c.h.b16 %v2660
          %v2753 = vunpack.c.l.b16 %v2661
          %v2754 = vunpack.c.h.b16 %v2661
          %v2755 = vunpack.c.l.b16 %v2662
          %v2756 = vunpack.c.h.b16 %v2662
          %v2757 = vunpack.c.l.b16 %v2663
          %v2758 = vunpack.c.h.b16 %v2663
          %v2759 = vunpack.c.l.b16 %v2664
          %v2760 = vunpack.c.h.b16 %v2664
          %v2761 = vpack.c.b16 %v2699, %v2697
          %v2762 = vpack.c.b16 %v2700, %v2698
          %v2763 = vpack.c.b16 %v2703, %v2701
          %v2764 = vpack.c.b16 %v2704, %v2702
          %v2765 = vpack.c.b16 %v2707, %v2705
          %v2766 = vpack.c.b16 %v2708, %v2706
          %v2767 = vpack.c.b16 %v2711, %v2709
          %v2768 = vpack.c.b16 %v2712, %v2710
          %v2769 = vpack.c.b16 %v2715, %v2713
          %v2770 = vpack.c.b16 %v2716, %v2714
          %v2771 = vpack.c.b16 %v2719, %v2717
          %v2772 = vpack.c.b16 %v2720, %v2718
          %v2773 = vpack.c.b16 %v2723, %v2721
          %v2774 = vpack.c.b16 %v2724, %v2722
          %v2775 = vpack.c.b16 %v2727, %v2725
          %v2776 = vpack.c.b16 %v2728, %v2726
          %v2777 = vpack.c.b16 %v2731, %v2729
          %v2778 = vpack.c.b16 %v2732, %v2730
          %v2779 = vpack.c.b16 %v2735, %v2733
          %v2780 = vpack.c.b16 %v2736, %v2734
          %v2781 = vpack.c.b16 %v2739, %v2737
          %v2782 = vpack.c.b16 %v2740, %v2738
          %v2783 = vpack.c.b16 %v2743, %v2741
          %v2784 = vpack.c.b16 %v2744, %v2742
          %v2785 = vpack.c.b16 %v2747, %v2745
          %v2786 = vpack.c.b16 %v2748, %v2746
          %v2787 = vpack.c.b16 %v2751, %v2749
          %v2788 = vpack.c.b16 %v2752, %v2750
          %v2789 = vpack.c.b16 %v2755, %v2753
          %v2790 = vpack.c.b16 %v2756, %v2754
          %v2791 = vpack.c.b16 %v2759, %v2757
          %v2792 = vpack.c.b16 %v2760, %v2758
          %2825 = vmatprep.subr.bf16.mxu0 %v2762
          %2826 = vmatpush1.bf16.msra.mxu0 %v2761
          %2827 = vmatprep.subr.bf16.mxu0 %v2764
          %2828 = vmatpush1.bf16.msra.mxu0 %v2763
          %2829 = vmatprep.subr.bf16.mxu0 %v2766
          %2830 = vmatpush1.bf16.msra.mxu0 %v2765
          %2831 = vmatprep.subr.bf16.mxu0 %v2768
          %2832 = vmatpush1.bf16.msra.mxu0 %v2767
          %2833 = vmatprep.subr.bf16.mxu0 %v2770
          %2834 = vmatpush1.bf16.msra.mxu0 %v2769
          %2835 = vmatprep.subr.bf16.mxu0 %v2772
          %2836 = vmatpush1.bf16.msra.mxu0 %v2771
          %2837 = vmatprep.subr.bf16.mxu0 %v2774
          %2838 = vmatpush1.bf16.msra.mxu0 %v2773
          %2839 = vmatprep.subr.bf16.mxu0 %v2776
          %2840 = vmatpush1.bf16.msra.mxu0 %v2775
          %2841 = vmatprep.subr.bf16.mxu0 %v2778
          %2842 = vmatpush1.bf16.msra.mxu0 %v2777
          %2843 = vmatprep.subr.bf16.mxu0 %v2780
          %2844 = vmatpush1.bf16.msra.mxu0 %v2779
          %2845 = vmatprep.subr.bf16.mxu0 %v2782
          %2846 = vmatpush1.bf16.msra.mxu0 %v2781
          %2847 = vmatprep.subr.bf16.mxu0 %v2784
          %2848 = vmatpush1.bf16.msra.mxu0 %v2783
          %2849 = vmatprep.subr.bf16.mxu0 %v2786
          %2850 = vmatpush1.bf16.msra.mxu0 %v2785
          %2851 = vmatprep.subr.bf16.mxu0 %v2788
          %2852 = vmatpush1.bf16.msra.mxu0 %v2787
          %2853 = vmatprep.subr.bf16.mxu0 %v2790
          %2854 = vmatpush1.bf16.msra.mxu0 %v2789
          %2855 = vmatprep.subr.bf16.mxu0 %v2792
          %2856 = vmatpush1.bf16.msra.mxu0 %v2791
          %2857 = vmatprep.mubr.bf16.mxu0 %v2625
          %2858 = vmatmul.mubr.bf16.gmra.mrb[0].mxu0 %v2624
          %v2859 = vpop.f32.mrb[0].mxu0
          %v2860 = vadd.f32 0.0, %v2859
          %v2861 = vpop.f32.mrb[0].mxu0
          %v2862 = vadd.f32 0.0, %v2861
          %v2863 = vpop.f32.mrb[0].mxu0
          %v2864 = vadd.f32 0.0, %v2863
          %v2865 = vpop.f32.mrb[0].mxu0
          %v2866 = vadd.f32 0.0, %v2865
          %2867 = vmatprep.mubr.bf16.mxu0 %v2627
          %2868 = vmatmul.mubr.bf16.gmra.mrb[0].mxu0 %v2626
          %v2869 = vpop.f32.mrb[0].mxu0
          %v2870 = vadd.f32 0.0, %v2869
          %v2871 = vpop.f32.mrb[0].mxu0
          %v2872 = vadd.f32 0.0, %v2871
          %v2873 = vpop.f32.mrb[0].mxu0
          %v2874 = vadd.f32 0.0, %v2873
          %v2875 = vpop.f32.mrb[0].mxu0
          %v2876 = vadd.f32 0.0, %v2875
          %2877 = vmatprep.mubr.bf16.mxu0 %v2629
          %2878 = vmatmul.mubr.bf16.gmra.mrb[0].mxu0 %v2628
          %v2879 = vpop.f32.mrb[0].mxu0
          %v2880 = vadd.f32 0.0, %v2879
          %v2881 = vpop.f32.mrb[0].mxu0
          %v2882 = vadd.f32 0.0, %v2881
          %v2883 = vpop.f32.mrb[0].mxu0
          %v2884 = vadd.f32 0.0, %v2883
          %v2885 = vpop.f32.mrb[0].mxu0
          %v2886 = vadd.f32 0.0, %v2885
          %2887 = vmatprep.mubr.bf16.mxu0 %v2631
          %2888 = vmatmul.mubr.bf16.gmra.mrb[0].mxu0 %v2630
          %v2889 = vpop.f32.mrb[0].mxu0
          %v2890 = vadd.f32 0.0, %v2889
          %v2891 = vpop.f32.mrb[0].mxu0
          %v2892 = vadd.f32 0.0, %v2891
          %v2893 = vpop.f32.mrb[0].mxu0
          %v2894 = vadd.f32 0.0, %v2893
          %v2895 = vpop.f32.mrb[0].mxu0
          %v2896 = vadd.f32 0.0, %v2895
          %2897 = vdwg.mxu0
          %v2898 = vadd.f32 %v2286, %v2860
          %v2899 = vadd.f32 %v2287, %v2862
          %v2900 = vadd.f32 %v2288, %v2864
          %v2901 = vadd.f32 %v2289, %v2866
          %v2902 = vadd.f32 %v2290, %v2870
          %v2903 = vadd.f32 %v2291, %v2872
          %v2904 = vadd.f32 %v2292, %v2874
          %v2905 = vadd.f32 %v2293, %v2876
          %v2906 = vadd.f32 %v2294, %v2880
          %v2907 = vadd.f32 %v2295, %v2882
          %v2908 = vadd.f32 %v2296, %v2884
          %v2909 = vadd.f32 %v2297, %v2886
          %v2910 = vadd.f32 %v2298, %v2890
          %v2911 = vadd.f32 %v2299, %v2892
          %v2912 = vadd.f32 %v2300, %v2894
          %v2913 = vadd.f32 %v2301, %v2896
          %v2914 = vld [vmem:[#allocation4 + $0x70] sm:$0xff]
          %v2915 = vld [vmem:[#allocation4 + $0x78] sm:$0xff]
          %v2916 = vld [vmem:[#allocation4 + $0x80] sm:$0xff]
          %v2917 = vld [vmem:[#allocation4 + $0x88] sm:$0xff]
          %v2918 = vld [vmem:[#allocation4 + $0x90] sm:$0xff]
          %v2919 = vld [vmem:[#allocation4 + $0x98] sm:$0xff]
          %v2920 = vld [vmem:[#allocation4 + $0xa0] sm:$0xff]
          %v2921 = vld [vmem:[#allocation4 + $0xa8] sm:$0xff]
          %v2922 = vld [vmem:[#allocation4 + $0xb0] sm:$0xff]
          %v2923 = vld [vmem:[#allocation4 + $0xb8] sm:$0xff]
          %v2924 = vld [vmem:[#allocation4 + $0xc0] sm:$0xff]
          %v2925 = vld [vmem:[#allocation4 + $0xc8] sm:$0xff]
          %v2926 = vld [vmem:[#allocation4 + $0xd0] sm:$0xff]
          %v2927 = vld [vmem:[#allocation4 + $0xd8] sm:$0xff]
          %v2928 = vld [vmem:[#allocation4 + $0xe0] sm:$0xff]
          %v2929 = vld [vmem:[#allocation4 + $0xe8] sm:$0xff]
          %v2930 = vpack.c.bf16 %v2916, %v2914
          %v2931 = vpack.c.bf16 %v2917, %v2915
          %v2932 = vpack.c.bf16 %v2920, %v2918
          %v2933 = vpack.c.bf16 %v2921, %v2919
          %v2934 = vpack.c.bf16 %v2924, %v2922
          %v2935 = vpack.c.bf16 %v2925, %v2923
          %v2936 = vpack.c.bf16 %v2928, %v2926
          %v2937 = vpack.c.bf16 %v2929, %v2927
          %s2938 = scalar_lea.vmem [#allocation12], 1792
          %v2939 = vld [vmem:[%s2938] sm:$0xff]
          %v2940 = vld [vmem:[%s2938 + $0x8] sm:$0xff]
          %v2941 = vld [vmem:[%s2938 + $0x10] sm:$0xff]
          %v2942 = vld [vmem:[%s2938 + $0x18] sm:$0xff]
          %v2943 = vld [vmem:[%s2938 + $0x20] sm:$0xff]
          %v2944 = vld [vmem:[%s2938 + $0x28] sm:$0xff]
          %v2945 = vld [vmem:[%s2938 + $0x30] sm:$0xff]
          %v2946 = vld [vmem:[%s2938 + $0x38] sm:$0xff]
          %v2947 = vld [vmem:[%s2938 + $0x40] sm:$0xff]
          %v2948 = vld [vmem:[%s2938 + $0x48] sm:$0xff]
          %v2949 = vld [vmem:[%s2938 + $0x50] sm:$0xff]
          %v2950 = vld [vmem:[%s2938 + $0x58] sm:$0xff]
          %v2951 = vld [vmem:[%s2938 + $0x60] sm:$0xff]
          %v2952 = vld [vmem:[%s2938 + $0x68] sm:$0xff]
          %v2953 = vld [vmem:[%s2938 + $0x70] sm:$0xff]
          %v2954 = vld [vmem:[%s2938 + $0x78] sm:$0xff]
          %v2955 = vld [vmem:[%s2938 + $0x80] sm:$0xff]
          %v2956 = vld [vmem:[%s2938 + $0x88] sm:$0xff]
          %v2957 = vld [vmem:[%s2938 + $0x90] sm:$0xff]
          %v2958 = vld [vmem:[%s2938 + $0x98] sm:$0xff]
          %v2959 = vld [vmem:[%s2938 + $0xa0] sm:$0xff]
          %v2960 = vld [vmem:[%s2938 + $0xa8] sm:$0xff]
          %v2961 = vld [vmem:[%s2938 + $0xb0] sm:$0xff]
          %v2962 = vld [vmem:[%s2938 + $0xb8] sm:$0xff]
          %v2963 = vld [vmem:[%s2938 + $0xc0] sm:$0xff]
          %v2964 = vld [vmem:[%s2938 + $0xc8] sm:$0xff]
          %v2965 = vld [vmem:[%s2938 + $0xd0] sm:$0xff]
          %v2966 = vld [vmem:[%s2938 + $0xd8] sm:$0xff]
          %v2967 = vld [vmem:[%s2938 + $0xe0] sm:$0xff]
          %v2968 = vld [vmem:[%s2938 + $0xe8] sm:$0xff]
          %v2969 = vld [vmem:[%s2938 + $0xf0] sm:$0xff]
          %v2970 = vld [vmem:[%s2938 + $0xf8] sm:$0xff]
          %v3003 = vunpack.c.l.b16 %v2939
          %v3004 = vunpack.c.h.b16 %v2939
          %v3005 = vunpack.c.l.b16 %v2940
          %v3006 = vunpack.c.h.b16 %v2940
          %v3007 = vunpack.c.l.b16 %v2941
          %v3008 = vunpack.c.h.b16 %v2941
          %v3009 = vunpack.c.l.b16 %v2942
          %v3010 = vunpack.c.h.b16 %v2942
          %v3011 = vunpack.c.l.b16 %v2943
          %v3012 = vunpack.c.h.b16 %v2943
          %v3013 = vunpack.c.l.b16 %v2944
          %v3014 = vunpack.c.h.b16 %v2944
          %v3015 = vunpack.c.l.b16 %v2945
          %v3016 = vunpack.c.h.b16 %v2945
          %v3017 = vunpack.c.l.b16 %v2946
          %v3018 = vunpack.c.h.b16 %v2946
          %v3019 = vunpack.c.l.b16 %v2947
          %v3020 = vunpack.c.h.b16 %v2947
          %v3021 = vunpack.c.l.b16 %v2948
          %v3022 = vunpack.c.h.b16 %v2948
          %v3023 = vunpack.c.l.b16 %v2949
          %v3024 = vunpack.c.h.b16 %v2949
          %v3025 = vunpack.c.l.b16 %v2950
          %v3026 = vunpack.c.h.b16 %v2950
          %v3027 = vunpack.c.l.b16 %v2951
          %v3028 = vunpack.c.h.b16 %v2951
          %v3029 = vunpack.c.l.b16 %v2952
          %v3030 = vunpack.c.h.b16 %v2952
          %v3031 = vunpack.c.l.b16 %v2953
          %v3032 = vunpack.c.h.b16 %v2953
          %v3033 = vunpack.c.l.b16 %v2954
          %v3034 = vunpack.c.h.b16 %v2954
          %v3035 = vunpack.c.l.b16 %v2955
          %v3036 = vunpack.c.h.b16 %v2955
          %v3037 = vunpack.c.l.b16 %v2956
          %v3038 = vunpack.c.h.b16 %v2956
          %v3039 = vunpack.c.l.b16 %v2957
          %v3040 = vunpack.c.h.b16 %v2957
          %v3041 = vunpack.c.l.b16 %v2958
          %v3042 = vunpack.c.h.b16 %v2958
          %v3043 = vunpack.c.l.b16 %v2959
          %v3044 = vunpack.c.h.b16 %v2959
          %v3045 = vunpack.c.l.b16 %v2960
          %v3046 = vunpack.c.h.b16 %v2960
          %v3047 = vunpack.c.l.b16 %v2961
          %v3048 = vunpack.c.h.b16 %v2961
          %v3049 = vunpack.c.l.b16 %v2962
          %v3050 = vunpack.c.h.b16 %v2962
          %v3051 = vunpack.c.l.b16 %v2963
          %v3052 = vunpack.c.h.b16 %v2963
          %v3053 = vunpack.c.l.b16 %v2964
          %v3054 = vunpack.c.h.b16 %v2964
          %v3055 = vunpack.c.l.b16 %v2965
          %v3056 = vunpack.c.h.b16 %v2965
          %v3057 = vunpack.c.l.b16 %v2966
          %v3058 = vunpack.c.h.b16 %v2966
          %v3059 = vunpack.c.l.b16 %v2967
          %v3060 = vunpack.c.h.b16 %v2967
          %v3061 = vunpack.c.l.b16 %v2968
          %v3062 = vunpack.c.h.b16 %v2968
          %v3063 = vunpack.c.l.b16 %v2969
          %v3064 = vunpack.c.h.b16 %v2969
          %v3065 = vunpack.c.l.b16 %v2970
          %v3066 = vunpack.c.h.b16 %v2970
          %v3067 = vpack.c.b16 %v3005, %v3003
          %v3068 = vpack.c.b16 %v3006, %v3004
          %v3069 = vpack.c.b16 %v3009, %v3007
          %v3070 = vpack.c.b16 %v3010, %v3008
          %v3071 = vpack.c.b16 %v3013, %v3011
          %v3072 = vpack.c.b16 %v3014, %v3012
          %v3073 = vpack.c.b16 %v3017, %v3015
          %v3074 = vpack.c.b16 %v3018, %v3016
          %v3075 = vpack.c.b16 %v3021, %v3019
          %v3076 = vpack.c.b16 %v3022, %v3020
          %v3077 = vpack.c.b16 %v3025, %v3023
          %v3078 = vpack.c.b16 %v3026, %v3024
          %v3079 = vpack.c.b16 %v3029, %v3027
          %v3080 = vpack.c.b16 %v3030, %v3028
          %v3081 = vpack.c.b16 %v3033, %v3031
          %v3082 = vpack.c.b16 %v3034, %v3032
          %v3083 = vpack.c.b16 %v3037, %v3035
          %v3084 = vpack.c.b16 %v3038, %v3036
          %v3085 = vpack.c.b16 %v3041, %v3039
          %v3086 = vpack.c.b16 %v3042, %v3040
          %v3087 = vpack.c.b16 %v3045, %v3043
          %v3088 = vpack.c.b16 %v3046, %v3044
          %v3089 = vpack.c.b16 %v3049, %v3047
          %v3090 = vpack.c.b16 %v3050, %v3048
          %v3091 = vpack.c.b16 %v3053, %v3051
          %v3092 = vpack.c.b16 %v3054, %v3052
          %v3093 = vpack.c.b16 %v3057, %v3055
          %v3094 = vpack.c.b16 %v3058, %v3056
          %v3095 = vpack.c.b16 %v3061, %v3059
          %v3096 = vpack.c.b16 %v3062, %v3060
          %v3097 = vpack.c.b16 %v3065, %v3063
          %v3098 = vpack.c.b16 %v3066, %v3064
          %3131 = vmatprep.subr.bf16.mxu0 %v3068
          %3132 = vmatpush1.bf16.msra.mxu0 %v3067
          %3133 = vmatprep.subr.bf16.mxu0 %v3070
          %3134 = vmatpush1.bf16.msra.mxu0 %v3069
          %3135 = vmatprep.subr.bf16.mxu0 %v3072
          %3136 = vmatpush1.bf16.msra.mxu0 %v3071
          %3137 = vmatprep.subr.bf16.mxu0 %v3074
          %3138 = vmatpush1.bf16.msra.mxu0 %v3073
          %3139 = vmatprep.subr.bf16.mxu0 %v3076
          %3140 = vmatpush1.bf16.msra.mxu0 %v3075
          %3141 = vmatprep.subr.bf16.mxu0 %v3078
          %3142 = vmatpush1.bf16.msra.mxu0 %v3077
          %3143 = vmatprep.subr.bf16.mxu0 %v3080
          %3144 = vmatpush1.bf16.msra.mxu0 %v3079
          %3145 = vmatprep.subr.bf16.mxu0 %v3082
          %3146 = vmatpush1.bf16.msra.mxu0 %v3081
          %3147 = vmatprep.subr.bf16.mxu0 %v3084
          %3148 = vmatpush1.bf16.msra.mxu0 %v3083
          %3149 = vmatprep.subr.bf16.mxu0 %v3086
          %3150 = vmatpush1.bf16.msra.mxu0 %v3085
          %3151 = vmatprep.subr.bf16.mxu0 %v3088
          %3152 = vmatpush1.bf16.msra.mxu0 %v3087
          %3153 = vmatprep.subr.bf16.mxu0 %v3090
          %3154 = vmatpush1.bf16.msra.mxu0 %v3089
          %3155 = vmatprep.subr.bf16.mxu0 %v3092
          %3156 = vmatpush1.bf16.msra.mxu0 %v3091
          %3157 = vmatprep.subr.bf16.mxu0 %v3094
          %3158 = vmatpush1.bf16.msra.mxu0 %v3093
          %3159 = vmatprep.subr.bf16.mxu0 %v3096
          %3160 = vmatpush1.bf16.msra.mxu0 %v3095
          %3161 = vmatprep.subr.bf16.mxu0 %v3098
          %3162 = vmatpush1.bf16.msra.mxu0 %v3097
          %3163 = vmatprep.mubr.bf16.mxu0 %v2931
          %3164 = vmatmul.mubr.bf16.gmra.mrb[0].mxu0 %v2930
          %v3165 = vpop.f32.mrb[0].mxu0
          %v3166 = vadd.f32 0.0, %v3165
          %v3167 = vpop.f32.mrb[0].mxu0
          %v3168 = vadd.f32 0.0, %v3167
          %v3169 = vpop.f32.mrb[0].mxu0
          %v3170 = vadd.f32 0.0, %v3169
          %v3171 = vpop.f32.mrb[0].mxu0
          %v3172 = vadd.f32 0.0, %v3171
          %3173 = vmatprep.mubr.bf16.mxu0 %v2933
          %3174 = vmatmul.mubr.bf16.gmra.mrb[0].mxu0 %v2932
          %v3175 = vpop.f32.mrb[0].mxu0
          %v3176 = vadd.f32 0.0, %v3175
          %v3177 = vpop.f32.mrb[0].mxu0
          %v3178 = vadd.f32 0.0, %v3177
          %v3179 = vpop.f32.mrb[0].mxu0
          %v3180 = vadd.f32 0.0, %v3179
          %v3181 = vpop.f32.mrb[0].mxu0
          %v3182 = vadd.f32 0.0, %v3181
          %3183 = vmatprep.mubr.bf16.mxu0 %v2935
          %3184 = vmatmul.mubr.bf16.gmra.mrb[0].mxu0 %v2934
          %v3185 = vpop.f32.mrb[0].mxu0
          %v3186 = vadd.f32 0.0, %v3185
          %v3187 = vpop.f32.mrb[0].mxu0
          %v3188 = vadd.f32 0.0, %v3187
          %v3189 = vpop.f32.mrb[0].mxu0
          %v3190 = vadd.f32 0.0, %v3189
          %v3191 = vpop.f32.mrb[0].mxu0
          %v3192 = vadd.f32 0.0, %v3191
          %3193 = vmatprep.mubr.bf16.mxu0 %v2937
          %3194 = vmatmul.mubr.bf16.gmra.mrb[0].mxu0 %v2936
          %v3195 = vpop.f32.mrb[0].mxu0
          %v3196 = vadd.f32 0.0, %v3195
          %v3197 = vpop.f32.mrb[0].mxu0
          %v3198 = vadd.f32 0.0, %v3197
          %v3199 = vpop.f32.mrb[0].mxu0
          %v3200 = vadd.f32 0.0, %v3199
          %v3201 = vpop.f32.mrb[0].mxu0
          %v3202 = vadd.f32 0.0, %v3201
          %3203 = vdwg.mxu0
          %v3204 = vadd.f32 %v2592, %v3166
          %v3205 = vadd.f32 %v2593, %v3168
          %v3206 = vadd.f32 %v2594, %v3170
          %v3207 = vadd.f32 %v2595, %v3172
          %v3208 = vadd.f32 %v2596, %v3176
          %v3209 = vadd.f32 %v2597, %v3178
          %v3210 = vadd.f32 %v2598, %v3180
          %v3211 = vadd.f32 %v2599, %v3182
          %v3212 = vadd.f32 %v2600, %v3186
          %v3213 = vadd.f32 %v2601, %v3188
          %v3214 = vadd.f32 %v2602, %v3190
          %v3215 = vadd.f32 %v2603, %v3192
          %v3216 = vadd.f32 %v2604, %v3196
          %v3217 = vadd.f32 %v2605, %v3198
          %v3218 = vadd.f32 %v2606, %v3200
          %v3219 = vadd.f32 %v2607, %v3202
          %v3220 = vld [vmem:[#allocation4 + $0x80] sm:$0xff]
          %v3221 = vld [vmem:[#allocation4 + $0x88] sm:$0xff]
          %v3222 = vld [vmem:[#allocation4 + $0x90] sm:$0xff]
          %v3223 = vld [vmem:[#allocation4 + $0x98] sm:$0xff]
          %v3224 = vld [vmem:[#allocation4 + $0xa0] sm:$0xff]
          %v3225 = vld [vmem:[#allocation4 + $0xa8] sm:$0xff]
          %v3226 = vld [vmem:[#allocation4 + $0xb0] sm:$0xff]
          %v3227 = vld [vmem:[#allocation4 + $0xb8] sm:$0xff]
          %v3228 = vld [vmem:[#allocation4 + $0xc0] sm:$0xff]
          %v3229 = vld [vmem:[#allocation4 + $0xc8] sm:$0xff]
          %v3230 = vld [vmem:[#allocation4 + $0xd0] sm:$0xff]
          %v3231 = vld [vmem:[#allocation4 + $0xd8] sm:$0xff]
          %v3232 = vld [vmem:[#allocation4 + $0xe0] sm:$0xff]
          %v3233 = vld [vmem:[#allocation4 + $0xe8] sm:$0xff]
          %v3234 = vld [vmem:[#allocation4 + $0xf0] sm:$0xff]
          %v3235 = vld [vmem:[#allocation4 + $0xf8] sm:$0xff]
          %v3236 = vpack.c.bf16 %v3222, %v3220
          %v3237 = vpack.c.bf16 %v3223, %v3221
          %v3238 = vpack.c.bf16 %v3226, %v3224
          %v3239 = vpack.c.bf16 %v3227, %v3225
          %v3240 = vpack.c.bf16 %v3230, %v3228
          %v3241 = vpack.c.bf16 %v3231, %v3229
          %v3242 = vpack.c.bf16 %v3234, %v3232
          %v3243 = vpack.c.bf16 %v3235, %v3233
          %s3244 = scalar_lea.vmem [#allocation12], 2048
          %v3245 = vld [vmem:[%s3244] sm:$0xff]
          %v3246 = vld [vmem:[%s3244 + $0x8] sm:$0xff]
          %v3247 = vld [vmem:[%s3244 + $0x10] sm:$0xff]
          %v3248 = vld [vmem:[%s3244 + $0x18] sm:$0xff]
          %v3249 = vld [vmem:[%s3244 + $0x20] sm:$0xff]
          %v3250 = vld [vmem:[%s3244 + $0x28] sm:$0xff]
          %v3251 = vld [vmem:[%s3244 + $0x30] sm:$0xff]
          %v3252 = vld [vmem:[%s3244 + $0x38] sm:$0xff]
          %v3253 = vld [vmem:[%s3244 + $0x40] sm:$0xff]
          %v3254 = vld [vmem:[%s3244 + $0x48] sm:$0xff]
          %v3255 = vld [vmem:[%s3244 + $0x50] sm:$0xff]
          %v3256 = vld [vmem:[%s3244 + $0x58] sm:$0xff]
          %v3257 = vld [vmem:[%s3244 + $0x60] sm:$0xff]
          %v3258 = vld [vmem:[%s3244 + $0x68] sm:$0xff]
          %v3259 = vld [vmem:[%s3244 + $0x70] sm:$0xff]
          %v3260 = vld [vmem:[%s3244 + $0x78] sm:$0xff]
          %v3261 = vld [vmem:[%s3244 + $0x80] sm:$0xff]
          %v3262 = vld [vmem:[%s3244 + $0x88] sm:$0xff]
          %v3263 = vld [vmem:[%s3244 + $0x90] sm:$0xff]
          %v3264 = vld [vmem:[%s3244 + $0x98] sm:$0xff]
          %v3265 = vld [vmem:[%s3244 + $0xa0] sm:$0xff]
          %v3266 = vld [vmem:[%s3244 + $0xa8] sm:$0xff]
          %v3267 = vld [vmem:[%s3244 + $0xb0] sm:$0xff]
          %v3268 = vld [vmem:[%s3244 + $0xb8] sm:$0xff]
          %v3269 = vld [vmem:[%s3244 + $0xc0] sm:$0xff]
          %v3270 = vld [vmem:[%s3244 + $0xc8] sm:$0xff]
          %v3271 = vld [vmem:[%s3244 + $0xd0] sm:$0xff]
          %v3272 = vld [vmem:[%s3244 + $0xd8] sm:$0xff]
          %v3273 = vld [vmem:[%s3244 + $0xe0] sm:$0xff]
          %v3274 = vld [vmem:[%s3244 + $0xe8] sm:$0xff]
          %v3275 = vld [vmem:[%s3244 + $0xf0] sm:$0xff]
          %v3276 = vld [vmem:[%s3244 + $0xf8] sm:$0xff]
          %v3309 = vunpack.c.l.b16 %v3245
          %v3310 = vunpack.c.h.b16 %v3245
          %v3311 = vunpack.c.l.b16 %v3246
          %v3312 = vunpack.c.h.b16 %v3246
          %v3313 = vunpack.c.l.b16 %v3247
          %v3314 = vunpack.c.h.b16 %v3247
          %v3315 = vunpack.c.l.b16 %v3248
          %v3316 = vunpack.c.h.b16 %v3248
          %v3317 = vunpack.c.l.b16 %v3249
          %v3318 = vunpack.c.h.b16 %v3249
          %v3319 = vunpack.c.l.b16 %v3250
          %v3320 = vunpack.c.h.b16 %v3250
          %v3321 = vunpack.c.l.b16 %v3251
          %v3322 = vunpack.c.h.b16 %v3251
          %v3323 = vunpack.c.l.b16 %v3252
          %v3324 = vunpack.c.h.b16 %v3252
          %v3325 = vunpack.c.l.b16 %v3253
          %v3326 = vunpack.c.h.b16 %v3253
          %v3327 = vunpack.c.l.b16 %v3254
          %v3328 = vunpack.c.h.b16 %v3254
          %v3329 = vunpack.c.l.b16 %v3255
          %v3330 = vunpack.c.h.b16 %v3255
          %v3331 = vunpack.c.l.b16 %v3256
          %v3332 = vunpack.c.h.b16 %v3256
          %v3333 = vunpack.c.l.b16 %v3257
          %v3334 = vunpack.c.h.b16 %v3257
          %v3335 = vunpack.c.l.b16 %v3258
          %v3336 = vunpack.c.h.b16 %v3258
          %v3337 = vunpack.c.l.b16 %v3259
          %v3338 = vunpack.c.h.b16 %v3259
          %v3339 = vunpack.c.l.b16 %v3260
          %v3340 = vunpack.c.h.b16 %v3260
          %v3341 = vunpack.c.l.b16 %v3261
          %v3342 = vunpack.c.h.b16 %v3261
          %v3343 = vunpack.c.l.b16 %v3262
          %v3344 = vunpack.c.h.b16 %v3262
          %v3345 = vunpack.c.l.b16 %v3263
          %v3346 = vunpack.c.h.b16 %v3263
          %v3347 = vunpack.c.l.b16 %v3264
          %v3348 = vunpack.c.h.b16 %v3264
          %v3349 = vunpack.c.l.b16 %v3265
          %v3350 = vunpack.c.h.b16 %v3265
          %v3351 = vunpack.c.l.b16 %v3266
          %v3352 = vunpack.c.h.b16 %v3266
          %v3353 = vunpack.c.l.b16 %v3267
          %v3354 = vunpack.c.h.b16 %v3267
          %v3355 = vunpack.c.l.b16 %v3268
          %v3356 = vunpack.c.h.b16 %v3268
          %v3357 = vunpack.c.l.b16 %v3269
          %v3358 = vunpack.c.h.b16 %v3269
          %v3359 = vunpack.c.l.b16 %v3270
          %v3360 = vunpack.c.h.b16 %v3270
          %v3361 = vunpack.c.l.b16 %v3271
          %v3362 = vunpack.c.h.b16 %v3271
          %v3363 = vunpack.c.l.b16 %v3272
          %v3364 = vunpack.c.h.b16 %v3272
          %v3365 = vunpack.c.l.b16 %v3273
          %v3366 = vunpack.c.h.b16 %v3273
          %v3367 = vunpack.c.l.b16 %v3274
          %v3368 = vunpack.c.h.b16 %v3274
          %v3369 = vunpack.c.l.b16 %v3275
          %v3370 = vunpack.c.h.b16 %v3275
          %v3371 = vunpack.c.l.b16 %v3276
          %v3372 = vunpack.c.h.b16 %v3276
          %v3373 = vpack.c.b16 %v3311, %v3309
          %v3374 = vpack.c.b16 %v3312, %v3310
          %v3375 = vpack.c.b16 %v3315, %v3313
          %v3376 = vpack.c.b16 %v3316, %v3314
          %v3377 = vpack.c.b16 %v3319, %v3317
          %v3378 = vpack.c.b16 %v3320, %v3318
          %v3379 = vpack.c.b16 %v3323, %v3321
          %v3380 = vpack.c.b16 %v3324, %v3322
          %v3381 = vpack.c.b16 %v3327, %v3325
          %v3382 = vpack.c.b16 %v3328, %v3326
          %v3383 = vpack.c.b16 %v3331, %v3329
          %v3384 = vpack.c.b16 %v3332, %v3330
          %v3385 = vpack.c.b16 %v3335, %v3333
          %v3386 = vpack.c.b16 %v3336, %v3334
          %v3387 = vpack.c.b16 %v3339, %v3337
          %v3388 = vpack.c.b16 %v3340, %v3338
          %v3389 = vpack.c.b16 %v3343, %v3341
          %v3390 = vpack.c.b16 %v3344, %v3342
          %v3391 = vpack.c.b16 %v3347, %v3345
          %v3392 = vpack.c.b16 %v3348, %v3346
          %v3393 = vpack.c.b16 %v3351, %v3349
          %v3394 = vpack.c.b16 %v3352, %v3350
          %v3395 = vpack.c.b16 %v3355, %v3353
          %v3396 = vpack.c.b16 %v3356, %v3354
          %v3397 = vpack.c.b16 %v3359, %v3357
          %v3398 = vpack.c.b16 %v3360, %v3358
          %v3399 = vpack.c.b16 %v3363, %v3361
          %v3400 = vpack.c.b16 %v3364, %v3362
          %v3401 = vpack.c.b16 %v3367, %v3365
          %v3402 = vpack.c.b16 %v3368, %v3366
          %v3403 = vpack.c.b16 %v3371, %v3369
          %v3404 = vpack.c.b16 %v3372, %v3370
          %3437 = vmatprep.subr.bf16.mxu0 %v3374
          %3438 = vmatpush1.bf16.msra.mxu0 %v3373
          %3439 = vmatprep.subr.bf16.mxu0 %v3376
          %3440 = vmatpush1.bf16.msra.mxu0 %v3375
          %3441 = vmatprep.subr.bf16.mxu0 %v3378
          %3442 = vmatpush1.bf16.msra.mxu0 %v3377
          %3443 = vmatprep.subr.bf16.mxu0 %v3380
          %3444 = vmatpush1.bf16.msra.mxu0 %v3379
          %3445 = vmatprep.subr.bf16.mxu0 %v3382
          %3446 = vmatpush1.bf16.msra.mxu0 %v3381
          %3447 = vmatprep.subr.bf16.mxu0 %v3384
          %3448 = vmatpush1.bf16.msra.mxu0 %v3383
          %3449 = vmatprep.subr.bf16.mxu0 %v3386
          %3450 = vmatpush1.bf16.msra.mxu0 %v3385
          %3451 = vmatprep.subr.bf16.mxu0 %v3388
          %3452 = vmatpush1.bf16.msra.mxu0 %v3387
          %3453 = vmatprep.subr.bf16.mxu0 %v3390
          %3454 = vmatpush1.bf16.msra.mxu0 %v3389
          %3455 = vmatprep.subr.bf16.mxu0 %v3392
          %3456 = vmatpush1.bf16.msra.mxu0 %v3391
          %3457 = vmatprep.subr.bf16.mxu0 %v3394
          %3458 = vmatpush1.bf16.msra.mxu0 %v3393
          %3459 = vmatprep.subr.bf16.mxu0 %v3396
          %3460 = vmatpush1.bf16.msra.mxu0 %v3395
          %3461 = vmatprep.subr.bf16.mxu0 %v3398
          %3462 = vmatpush1.bf16.msra.mxu0 %v3397
          %3463 = vmatprep.subr.bf16.mxu0 %v3400
          %3464 = vmatpush1.bf16.msra.mxu0 %v3399
          %3465 = vmatprep.subr.bf16.mxu0 %v3402
          %3466 = vmatpush1.bf16.msra.mxu0 %v3401
          %3467 = vmatprep.subr.bf16.mxu0 %v3404
          %3468 = vmatpush1.bf16.msra.mxu0 %v3403
          %3469 = vmatprep.mubr.bf16.mxu0 %v3237
          %3470 = vmatmul.mubr.bf16.gmra.mrb[0].mxu0 %v3236
          %v3471 = vpop.f32.mrb[0].mxu0
          %v3472 = vadd.f32 0.0, %v3471
          %v3473 = vpop.f32.mrb[0].mxu0
          %v3474 = vadd.f32 0.0, %v3473
          %v3475 = vpop.f32.mrb[0].mxu0
          %v3476 = vadd.f32 0.0, %v3475
          %v3477 = vpop.f32.mrb[0].mxu0
          %v3478 = vadd.f32 0.0, %v3477
          %3479 = vmatprep.mubr.bf16.mxu0 %v3239
          %3480 = vmatmul.mubr.bf16.gmra.mrb[0].mxu0 %v3238
          %v3481 = vpop.f32.mrb[0].mxu0
          %v3482 = vadd.f32 0.0, %v3481
          %v3483 = vpop.f32.mrb[0].mxu0
          %v3484 = vadd.f32 0.0, %v3483
          %v3485 = vpop.f32.mrb[0].mxu0
          %v3486 = vadd.f32 0.0, %v3485
          %v3487 = vpop.f32.mrb[0].mxu0
          %v3488 = vadd.f32 0.0, %v3487
          %3489 = vmatprep.mubr.bf16.mxu0 %v3241
          %3490 = vmatmul.mubr.bf16.gmra.mrb[0].mxu0 %v3240
          %v3491 = vpop.f32.mrb[0].mxu0
          %v3492 = vadd.f32 0.0, %v3491
          %v3493 = vpop.f32.mrb[0].mxu0
          %v3494 = vadd.f32 0.0, %v3493
          %v3495 = vpop.f32.mrb[0].mxu0
          %v3496 = vadd.f32 0.0, %v3495
          %v3497 = vpop.f32.mrb[0].mxu0
          %v3498 = vadd.f32 0.0, %v3497
          %3499 = vmatprep.mubr.bf16.mxu0 %v3243
          %3500 = vmatmul.mubr.bf16.gmra.mrb[0].mxu0 %v3242
          %v3501 = vpop.f32.mrb[0].mxu0
          %v3502 = vadd.f32 0.0, %v3501
          %v3503 = vpop.f32.mrb[0].mxu0
          %v3504 = vadd.f32 0.0, %v3503
          %v3505 = vpop.f32.mrb[0].mxu0
          %v3506 = vadd.f32 0.0, %v3505
          %v3507 = vpop.f32.mrb[0].mxu0
          %v3508 = vadd.f32 0.0, %v3507
          %3509 = vdwg.mxu0
          %v3510 = vadd.f32 %v2898, %v3472
          %v3511 = vadd.f32 %v2899, %v3474
          %v3512 = vadd.f32 %v2900, %v3476
          %v3513 = vadd.f32 %v2901, %v3478
          %v3514 = vadd.f32 %v2902, %v3482
          %v3515 = vadd.f32 %v2903, %v3484
          %v3516 = vadd.f32 %v2904, %v3486
          %v3517 = vadd.f32 %v2905, %v3488
          %v3518 = vadd.f32 %v2906, %v3492
          %v3519 = vadd.f32 %v2907, %v3494
          %v3520 = vadd.f32 %v2908, %v3496
          %v3521 = vadd.f32 %v2909, %v3498
          %v3522 = vadd.f32 %v2910, %v3502
          %v3523 = vadd.f32 %v2911, %v3504
          %v3524 = vadd.f32 %v2912, %v3506
          %v3525 = vadd.f32 %v2913, %v3508
          %v3526 = vadd.f32 %v3510, %v3204
          %v3527 = vadd.f32 %v3511, %v3205
          %v3528 = vadd.f32 %v3512, %v3206
          %v3529 = vadd.f32 %v3513, %v3207
          %v3530 = vadd.f32 %v3514, %v3208
          %v3531 = vadd.f32 %v3515, %v3209
          %v3532 = vadd.f32 %v3516, %v3210
          %v3533 = vadd.f32 %v3517, %v3211
          %v3534 = vadd.f32 %v3518, %v3212
          %v3535 = vadd.f32 %v3519, %v3213
          %v3536 = vadd.f32 %v3520, %v3214
          %v3537 = vadd.f32 %v3521, %v3215
          %v3538 = vadd.f32 %v3522, %v3216
          %v3539 = vadd.f32 %v3523, %v3217
          %v3540 = vadd.f32 %v3524, %v3218
          %v3541 = vadd.f32 %v3525, %v3219
          %v3542 = vld [vmem:[#allocation14] sm:$0x3]
          %v3544 = vlaneseq
          %v3545 = vshrl.u32 %v3544, 7
          %v3546 = vsub.s32 0, %v3545
          %v3547 = vrot.slane %v3542, %v3546
          %v3548 = vlaneseq
          %v3549 = vshrl.u32 %v3548, 7
          %v3550 = vsub.s32 1, %v3549
          %v3551 = vrot.slane %v3542, %v3550
          %v3554 = vadd.f32 %v3526, %v3547
          %v3555 = vadd.f32 %v3527, %v3551
          %v3556 = vadd.f32 %v3528, %v3547
          %v3557 = vadd.f32 %v3529, %v3551
          %v3558 = vadd.f32 %v3530, %v3547
          %v3559 = vadd.f32 %v3531, %v3551
          %v3560 = vadd.f32 %v3532, %v3547
          %v3561 = vadd.f32 %v3533, %v3551
          %v3562 = vadd.f32 %v3534, %v3547
          %v3563 = vadd.f32 %v3535, %v3551
          %v3564 = vadd.f32 %v3536, %v3547
          %v3565 = vadd.f32 %v3537, %v3551
          %v3566 = vadd.f32 %v3538, %v3547
          %v3567 = vadd.f32 %v3539, %v3551
          %v3568 = vadd.f32 %v3540, %v3547
          %v3569 = vadd.f32 %v3541, %v3551
          %3570 = vst [vmem:[#allocation2] sm:$0xff] %v3554
          %3571 = vst [vmem:[#allocation2 + $0x8] sm:$0xff] %v3555
          %3572 = vst [vmem:[#allocation2 + $0x10] sm:$0xff] %v3556
          %3573 = vst [vmem:[#allocation2 + $0x18] sm:$0xff] %v3557
          %3574 = vst [vmem:[#allocation2 + $0x20] sm:$0xff] %v3558
          %3575 = vst [vmem:[#allocation2 + $0x28] sm:$0xff] %v3559
          %3576 = vst [vmem:[#allocation2 + $0x30] sm:$0xff] %v3560
          %3577 = vst [vmem:[#allocation2 + $0x38] sm:$0xff] %v3561
          %3578 = vst [vmem:[#allocation2 + $0x40] sm:$0xff] %v3562
          %3579 = vst [vmem:[#allocation2 + $0x48] sm:$0xff] %v3563
          %3580 = vst [vmem:[#allocation2 + $0x50] sm:$0xff] %v3564
          %3581 = vst [vmem:[#allocation2 + $0x58] sm:$0xff] %v3565
          %3582 = vst [vmem:[#allocation2 + $0x60] sm:$0xff] %v3566
          %3583 = vst [vmem:[#allocation2 + $0x68] sm:$0xff] %v3567
          %3584 = vst [vmem:[#allocation2 + $0x70] sm:$0xff] %v3568
          %3585 = vst [vmem:[#allocation2 + $0x78] sm:$0xff] %v3569
        $region136: #{forward.1} parent=75 // pred_fallthru
          _
        %v3586 = vld [vmem:[#allocation2] sm:$0xff]
        %v3587 = vld [vmem:[#allocation2 + $0x8] sm:$0xff]
        %v3588 = vld [vmem:[#allocation2 + $0x10] sm:$0xff]
        %v3589 = vld [vmem:[#allocation2 + $0x18] sm:$0xff]
        %v3590 = vld [vmem:[#allocation2 + $0x20] sm:$0xff]
        %v3591 = vld [vmem:[#allocation2 + $0x28] sm:$0xff]
        %v3592 = vld [vmem:[#allocation2 + $0x30] sm:$0xff]
        %v3593 = vld [vmem:[#allocation2 + $0x38] sm:$0xff]
        %v3594 = vld [vmem:[#allocation2 + $0x40] sm:$0xff]
        %v3595 = vld [vmem:[#allocation2 + $0x48] sm:$0xff]
        %v3596 = vld [vmem:[#allocation2 + $0x50] sm:$0xff]
        %v3597 = vld [vmem:[#allocation2 + $0x58] sm:$0xff]
        %v3598 = vld [vmem:[#allocation2 + $0x60] sm:$0xff]
        %v3599 = vld [vmem:[#allocation2 + $0x68] sm:$0xff]
        %v3600 = vld [vmem:[#allocation2 + $0x70] sm:$0xff]
        %v3601 = vld [vmem:[#allocation2 + $0x78] sm:$0xff]
        %v3602 = vpack.c.bf16 %v3588, %v3586
        %v3603 = vpack.c.bf16 %v3589, %v3587
        %v3604 = vpack.c.bf16 %v3592, %v3590
        %v3605 = vpack.c.bf16 %v3593, %v3591
        %v3606 = vpack.c.bf16 %v3596, %v3594
        %v3607 = vpack.c.bf16 %v3597, %v3595
        %v3608 = vpack.c.bf16 %v3600, %v3598
        %v3609 = vpack.c.bf16 %v3601, %v3599
        %v3610 = vld [vmem:[%s575] sm:$0xff]
        %v3611 = vld [vmem:[%s575 + $0x8] sm:$0xff]
        %v3612 = vld [vmem:[%s575 + $0x10] sm:$0xff]
        %v3613 = vld [vmem:[%s575 + $0x18] sm:$0xff]
        %v3614 = vld [vmem:[%s575 + $0x20] sm:$0xff]
        %v3615 = vld [vmem:[%s575 + $0x28] sm:$0xff]
        %v3616 = vld [vmem:[%s575 + $0x30] sm:$0xff]
        %v3617 = vld [vmem:[%s575 + $0x38] sm:$0xff]
        %v3618 = vld [vmem:[%s575 + $0x40] sm:$0xff]
        %v3619 = vld [vmem:[%s575 + $0x48] sm:$0xff]
        %v3620 = vld [vmem:[%s575 + $0x50] sm:$0xff]
        %v3621 = vld [vmem:[%s575 + $0x58] sm:$0xff]
        %v3622 = vld [vmem:[%s575 + $0x60] sm:$0xff]
        %v3623 = vld [vmem:[%s575 + $0x68] sm:$0xff]
        %v3624 = vld [vmem:[%s575 + $0x70] sm:$0xff]
        %v3625 = vld [vmem:[%s575 + $0x78] sm:$0xff]
        %v3626 = vld [vmem:[%s575 + $0x80] sm:$0xff]
        %v3627 = vld [vmem:[%s575 + $0x88] sm:$0xff]
        %v3628 = vld [vmem:[%s575 + $0x90] sm:$0xff]
        %v3629 = vld [vmem:[%s575 + $0x98] sm:$0xff]
        %v3630 = vld [vmem:[%s575 + $0xa0] sm:$0xff]
        %v3631 = vld [vmem:[%s575 + $0xa8] sm:$0xff]
        %v3632 = vld [vmem:[%s575 + $0xb0] sm:$0xff]
        %v3633 = vld [vmem:[%s575 + $0xb8] sm:$0xff]
        %v3634 = vld [vmem:[%s575 + $0xc0] sm:$0xff]
        %v3635 = vld [vmem:[%s575 + $0xc8] sm:$0xff]
        %v3636 = vld [vmem:[%s575 + $0xd0] sm:$0xff]
        %v3637 = vld [vmem:[%s575 + $0xd8] sm:$0xff]
        %v3638 = vld [vmem:[%s575 + $0xe0] sm:$0xff]
        %v3639 = vld [vmem:[%s575 + $0xe8] sm:$0xff]
        %v3640 = vld [vmem:[%s575 + $0xf0] sm:$0xff]
        %v3641 = vld [vmem:[%s575 + $0xf8] sm:$0xff]
        %v3642 = vld [vmem:[%s575 + $0x100] sm:$0xff]
        %v3643 = vld [vmem:[%s575 + $0x108] sm:$0xff]
        %v3644 = vld [vmem:[%s575 + $0x110] sm:$0xff]
        %v3645 = vld [vmem:[%s575 + $0x118] sm:$0xff]
        %v3646 = vld [vmem:[%s575 + $0x120] sm:$0xff]
        %v3647 = vld [vmem:[%s575 + $0x128] sm:$0xff]
        %v3648 = vld [vmem:[%s575 + $0x130] sm:$0xff]
        %v3649 = vld [vmem:[%s575 + $0x138] sm:$0xff]
        %v3650 = vld [vmem:[%s575 + $0x140] sm:$0xff]
        %v3651 = vld [vmem:[%s575 + $0x148] sm:$0xff]
        %v3652 = vld [vmem:[%s575 + $0x150] sm:$0xff]
        %v3653 = vld [vmem:[%s575 + $0x158] sm:$0xff]
        %v3654 = vld [vmem:[%s575 + $0x160] sm:$0xff]
        %v3655 = vld [vmem:[%s575 + $0x168] sm:$0xff]
        %v3656 = vld [vmem:[%s575 + $0x170] sm:$0xff]
        %v3657 = vld [vmem:[%s575 + $0x178] sm:$0xff]
        %v3658 = vld [vmem:[%s575 + $0x180] sm:$0xff]
        %v3659 = vld [vmem:[%s575 + $0x188] sm:$0xff]
        %v3660 = vld [vmem:[%s575 + $0x190] sm:$0xff]
        %v3661 = vld [vmem:[%s575 + $0x198] sm:$0xff]
        %v3662 = vld [vmem:[%s575 + $0x1a0] sm:$0xff]
        %v3663 = vld [vmem:[%s575 + $0x1a8] sm:$0xff]
        %v3664 = vld [vmem:[%s575 + $0x1b0] sm:$0xff]
        %v3665 = vld [vmem:[%s575 + $0x1b8] sm:$0xff]
        %v3666 = vld [vmem:[%s575 + $0x1c0] sm:$0xff]
        %v3667 = vld [vmem:[%s575 + $0x1c8] sm:$0xff]
        %v3668 = vld [vmem:[%s575 + $0x1d0] sm:$0xff]
        %v3669 = vld [vmem:[%s575 + $0x1d8] sm:$0xff]
        %v3670 = vld [vmem:[%s575 + $0x1e0] sm:$0xff]
        %v3671 = vld [vmem:[%s575 + $0x1e8] sm:$0xff]
        %v3672 = vld [vmem:[%s575 + $0x1f0] sm:$0xff]
        %v3673 = vld [vmem:[%s575 + $0x1f8] sm:$0xff]
        %v3674 = vld [vmem:[%s575 + $0x200] sm:$0xff]
        %v3675 = vld [vmem:[%s575 + $0x208] sm:$0xff]
        %v3676 = vld [vmem:[%s575 + $0x210] sm:$0xff]
        %v3677 = vld [vmem:[%s575 + $0x218] sm:$0xff]
        %v3678 = vld [vmem:[%s575 + $0x220] sm:$0xff]
        %v3679 = vld [vmem:[%s575 + $0x228] sm:$0xff]
        %v3680 = vld [vmem:[%s575 + $0x230] sm:$0xff]
        %v3681 = vld [vmem:[%s575 + $0x238] sm:$0xff]
        %v3682 = vld [vmem:[%s575 + $0x240] sm:$0xff]
        %v3683 = vld [vmem:[%s575 + $0x248] sm:$0xff]
        %v3684 = vld [vmem:[%s575 + $0x250] sm:$0xff]
        %v3685 = vld [vmem:[%s575 + $0x258] sm:$0xff]
        %v3686 = vld [vmem:[%s575 + $0x260] sm:$0xff]
        %v3687 = vld [vmem:[%s575 + $0x268] sm:$0xff]
        %v3688 = vld [vmem:[%s575 + $0x270] sm:$0xff]
        %v3689 = vld [vmem:[%s575 + $0x278] sm:$0xff]
        %v3690 = vld [vmem:[%s575 + $0x280] sm:$0xff]
        %v3691 = vld [vmem:[%s575 + $0x288] sm:$0xff]
        %v3692 = vld [vmem:[%s575 + $0x290] sm:$0xff]
        %v3693 = vld [vmem:[%s575 + $0x298] sm:$0xff]
        %v3694 = vld [vmem:[%s575 + $0x2a0] sm:$0xff]
        %v3695 = vld [vmem:[%s575 + $0x2a8] sm:$0xff]
        %v3696 = vld [vmem:[%s575 + $0x2b0] sm:$0xff]
        %v3697 = vld [vmem:[%s575 + $0x2b8] sm:$0xff]
        %v3698 = vld [vmem:[%s575 + $0x2c0] sm:$0xff]
        %v3699 = vld [vmem:[%s575 + $0x2c8] sm:$0xff]
        %v3700 = vld [vmem:[%s575 + $0x2d0] sm:$0xff]
        %v3701 = vld [vmem:[%s575 + $0x2d8] sm:$0xff]
        %v3702 = vld [vmem:[%s575 + $0x2e0] sm:$0xff]
        %v3703 = vld [vmem:[%s575 + $0x2e8] sm:$0xff]
        %v3704 = vld [vmem:[%s575 + $0x2f0] sm:$0xff]
        %v3705 = vld [vmem:[%s575 + $0x2f8] sm:$0xff]
        %v3706 = vld [vmem:[%s575 + $0x300] sm:$0xff]
        %v3707 = vld [vmem:[%s575 + $0x308] sm:$0xff]
        %v3708 = vld [vmem:[%s575 + $0x310] sm:$0xff]
        %v3709 = vld [vmem:[%s575 + $0x318] sm:$0xff]
        %v3710 = vld [vmem:[%s575 + $0x320] sm:$0xff]
        %v3711 = vld [vmem:[%s575 + $0x328] sm:$0xff]
        %v3712 = vld [vmem:[%s575 + $0x330] sm:$0xff]
        %v3713 = vld [vmem:[%s575 + $0x338] sm:$0xff]
        %v3714 = vld [vmem:[%s575 + $0x340] sm:$0xff]
        %v3715 = vld [vmem:[%s575 + $0x348] sm:$0xff]
        %v3716 = vld [vmem:[%s575 + $0x350] sm:$0xff]
        %v3717 = vld [vmem:[%s575 + $0x358] sm:$0xff]
        %v3718 = vld [vmem:[%s575 + $0x360] sm:$0xff]
        %v3719 = vld [vmem:[%s575 + $0x368] sm:$0xff]
        %v3720 = vld [vmem:[%s575 + $0x370] sm:$0xff]
        %v3721 = vld [vmem:[%s575 + $0x378] sm:$0xff]
        %v3722 = vld [vmem:[%s575 + $0x380] sm:$0xff]
        %v3723 = vld [vmem:[%s575 + $0x388] sm:$0xff]
        %v3724 = vld [vmem:[%s575 + $0x390] sm:$0xff]
        %v3725 = vld [vmem:[%s575 + $0x398] sm:$0xff]
        %v3726 = vld [vmem:[%s575 + $0x3a0] sm:$0xff]
        %v3727 = vld [vmem:[%s575 + $0x3a8] sm:$0xff]
        %v3728 = vld [vmem:[%s575 + $0x3b0] sm:$0xff]
        %v3729 = vld [vmem:[%s575 + $0x3b8] sm:$0xff]
        %v3730 = vld [vmem:[%s575 + $0x3c0] sm:$0xff]
        %v3731 = vld [vmem:[%s575 + $0x3c8] sm:$0xff]
        %v3732 = vld [vmem:[%s575 + $0x3d0] sm:$0xff]
        %v3733 = vld [vmem:[%s575 + $0x3d8] sm:$0xff]
        %v3734 = vld [vmem:[%s575 + $0x3e0] sm:$0xff]
        %v3735 = vld [vmem:[%s575 + $0x3e8] sm:$0xff]
        %v3736 = vld [vmem:[%s575 + $0x3f0] sm:$0xff]
        %v3737 = vld [vmem:[%s575 + $0x3f8] sm:$0xff]
        %v3738 = vld [vmem:[%s593] sm:$0xff]
        %v3740 = vlaneseq
        %v3741 = vshrl.u32 %v3740, 7
        %v3742 = vsub.s32 0, %v3741
        %v3743 = vrot.slane %v3738, %v3742
        %v3744 = vlaneseq
        %v3745 = vshrl.u32 %v3744, 7
        %v3746 = vsub.s32 1, %v3745
        %v3747 = vrot.slane %v3738, %v3746
        %v3748 = vlaneseq
        %v3749 = vshrl.u32 %v3748, 7
        %v3750 = vsub.s32 2, %v3749
        %v3751 = vrot.slane %v3738, %v3750
        %v3752 = vlaneseq
        %v3753 = vshrl.u32 %v3752, 7
        %v3754 = vsub.s32 3, %v3753
        %v3755 = vrot.slane %v3738, %v3754
        %v3756 = vlaneseq
        %v3757 = vshrl.u32 %v3756, 7
        %v3758 = vsub.s32 4, %v3757
        %v3759 = vrot.slane %v3738, %v3758
        %v3760 = vlaneseq
        %v3761 = vshrl.u32 %v3760, 7
        %v3762 = vsub.s32 5, %v3761
        %v3763 = vrot.slane %v3738, %v3762
        %v3764 = vlaneseq
        %v3765 = vshrl.u32 %v3764, 7
        %v3766 = vsub.s32 6, %v3765
        %v3767 = vrot.slane %v3738, %v3766
        %v3768 = vlaneseq
        %v3769 = vshrl.u32 %v3768, 7
        %v3770 = vsub.s32 7, %v3769
        %v3771 = vrot.slane %v3738, %v3770
        %v3908 = vunpack.c.l.b16 %v3610
        %v3909 = vunpack.c.h.b16 %v3610
        %v3910 = vunpack.c.l.b16 %v3611
        %v3911 = vunpack.c.h.b16 %v3611
        %v3912 = vunpack.c.l.b16 %v3612
        %v3913 = vunpack.c.h.b16 %v3612
        %v3914 = vunpack.c.l.b16 %v3613
        %v3915 = vunpack.c.h.b16 %v3613
        %v3916 = vunpack.c.l.b16 %v3614
        %v3917 = vunpack.c.h.b16 %v3614
        %v3918 = vunpack.c.l.b16 %v3615
        %v3919 = vunpack.c.h.b16 %v3615
        %v3920 = vunpack.c.l.b16 %v3616
        %v3921 = vunpack.c.h.b16 %v3616
        %v3922 = vunpack.c.l.b16 %v3617
        %v3923 = vunpack.c.h.b16 %v3617
        %v3924 = vunpack.c.l.b16 %v3618
        %v3925 = vunpack.c.h.b16 %v3618
        %v3926 = vunpack.c.l.b16 %v3619
        %v3927 = vunpack.c.h.b16 %v3619
        %v3928 = vunpack.c.l.b16 %v3620
        %v3929 = vunpack.c.h.b16 %v3620
        %v3930 = vunpack.c.l.b16 %v3621
        %v3931 = vunpack.c.h.b16 %v3621
        %v3932 = vunpack.c.l.b16 %v3622
        %v3933 = vunpack.c.h.b16 %v3622
        %v3934 = vunpack.c.l.b16 %v3623
        %v3935 = vunpack.c.h.b16 %v3623
        %v3936 = vunpack.c.l.b16 %v3624
        %v3937 = vunpack.c.h.b16 %v3624
        %v3938 = vunpack.c.l.b16 %v3625
        %v3939 = vunpack.c.h.b16 %v3625
        %v3940 = vunpack.c.l.b16 %v3626
        %v3941 = vunpack.c.h.b16 %v3626
        %v3942 = vunpack.c.l.b16 %v3627
        %v3943 = vunpack.c.h.b16 %v3627
        %v3944 = vunpack.c.l.b16 %v3628
        %v3945 = vunpack.c.h.b16 %v3628
        %v3946 = vunpack.c.l.b16 %v3629
        %v3947 = vunpack.c.h.b16 %v3629
        %v3948 = vunpack.c.l.b16 %v3630
        %v3949 = vunpack.c.h.b16 %v3630
        %v3950 = vunpack.c.l.b16 %v3631
        %v3951 = vunpack.c.h.b16 %v3631
        %v3952 = vunpack.c.l.b16 %v3632
        %v3953 = vunpack.c.h.b16 %v3632
        %v3954 = vunpack.c.l.b16 %v3633
        %v3955 = vunpack.c.h.b16 %v3633
        %v3956 = vunpack.c.l.b16 %v3634
        %v3957 = vunpack.c.h.b16 %v3634
        %v3958 = vunpack.c.l.b16 %v3635
        %v3959 = vunpack.c.h.b16 %v3635
        %v3960 = vunpack.c.l.b16 %v3636
        %v3961 = vunpack.c.h.b16 %v3636
        %v3962 = vunpack.c.l.b16 %v3637
        %v3963 = vunpack.c.h.b16 %v3637
        %v3964 = vunpack.c.l.b16 %v3638
        %v3965 = vunpack.c.h.b16 %v3638
        %v3966 = vunpack.c.l.b16 %v3639
        %v3967 = vunpack.c.h.b16 %v3639
        %v3968 = vunpack.c.l.b16 %v3640
        %v3969 = vunpack.c.h.b16 %v3640
        %v3970 = vunpack.c.l.b16 %v3641
        %v3971 = vunpack.c.h.b16 %v3641
        %v3972 = vunpack.c.l.b16 %v3642
        %v3973 = vunpack.c.h.b16 %v3642
        %v3974 = vunpack.c.l.b16 %v3643
        %v3975 = vunpack.c.h.b16 %v3643
        %v3976 = vunpack.c.l.b16 %v3644
        %v3977 = vunpack.c.h.b16 %v3644
        %v3978 = vunpack.c.l.b16 %v3645
        %v3979 = vunpack.c.h.b16 %v3645
        %v3980 = vunpack.c.l.b16 %v3646
        %v3981 = vunpack.c.h.b16 %v3646
        %v3982 = vunpack.c.l.b16 %v3647
        %v3983 = vunpack.c.h.b16 %v3647
        %v3984 = vunpack.c.l.b16 %v3648
        %v3985 = vunpack.c.h.b16 %v3648
        %v3986 = vunpack.c.l.b16 %v3649
        %v3987 = vunpack.c.h.b16 %v3649
        %v3988 = vunpack.c.l.b16 %v3650
        %v3989 = vunpack.c.h.b16 %v3650
        %v3990 = vunpack.c.l.b16 %v3651
        %v3991 = vunpack.c.h.b16 %v3651
        %v3992 = vunpack.c.l.b16 %v3652
        %v3993 = vunpack.c.h.b16 %v3652
        %v3994 = vunpack.c.l.b16 %v3653
        %v3995 = vunpack.c.h.b16 %v3653
        %v3996 = vunpack.c.l.b16 %v3654
        %v3997 = vunpack.c.h.b16 %v3654
        %v3998 = vunpack.c.l.b16 %v3655
        %v3999 = vunpack.c.h.b16 %v3655
        %v4000 = vunpack.c.l.b16 %v3656
        %v4001 = vunpack.c.h.b16 %v3656
        %v4002 = vunpack.c.l.b16 %v3657
        %v4003 = vunpack.c.h.b16 %v3657
        %v4004 = vunpack.c.l.b16 %v3658
        %v4005 = vunpack.c.h.b16 %v3658
        %v4006 = vunpack.c.l.b16 %v3659
        %v4007 = vunpack.c.h.b16 %v3659
        %v4008 = vunpack.c.l.b16 %v3660
        %v4009 = vunpack.c.h.b16 %v3660
        %v4010 = vunpack.c.l.b16 %v3661
        %v4011 = vunpack.c.h.b16 %v3661
        %v4012 = vunpack.c.l.b16 %v3662
        %v4013 = vunpack.c.h.b16 %v3662
        %v4014 = vunpack.c.l.b16 %v3663
        %v4015 = vunpack.c.h.b16 %v3663
        %v4016 = vunpack.c.l.b16 %v3664
        %v4017 = vunpack.c.h.b16 %v3664
        %v4018 = vunpack.c.l.b16 %v3665
        %v4019 = vunpack.c.h.b16 %v3665
        %v4020 = vunpack.c.l.b16 %v3666
        %v4021 = vunpack.c.h.b16 %v3666
        %v4022 = vunpack.c.l.b16 %v3667
        %v4023 = vunpack.c.h.b16 %v3667
        %v4024 = vunpack.c.l.b16 %v3668
        %v4025 = vunpack.c.h.b16 %v3668
        %v4026 = vunpack.c.l.b16 %v3669
        %v4027 = vunpack.c.h.b16 %v3669
        %v4028 = vunpack.c.l.b16 %v3670
        %v4029 = vunpack.c.h.b16 %v3670
        %v4030 = vunpack.c.l.b16 %v3671
        %v4031 = vunpack.c.h.b16 %v3671
        %v4032 = vunpack.c.l.b16 %v3672
        %v4033 = vunpack.c.h.b16 %v3672
        %v4034 = vunpack.c.l.b16 %v3673
        %v4035 = vunpack.c.h.b16 %v3673
        %v4036 = vunpack.c.l.b16 %v3674
        %v4037 = vunpack.c.h.b16 %v3674
        %v4038 = vunpack.c.l.b16 %v3675
        %v4039 = vunpack.c.h.b16 %v3675
        %v4040 = vunpack.c.l.b16 %v3676
        %v4041 = vunpack.c.h.b16 %v3676
        %v4042 = vunpack.c.l.b16 %v3677
        %v4043 = vunpack.c.h.b16 %v3677
        %v4044 = vunpack.c.l.b16 %v3678
        %v4045 = vunpack.c.h.b16 %v3678
        %v4046 = vunpack.c.l.b16 %v3679
        %v4047 = vunpack.c.h.b16 %v3679
        %v4048 = vunpack.c.l.b16 %v3680
        %v4049 = vunpack.c.h.b16 %v3680
        %v4050 = vunpack.c.l.b16 %v3681
        %v4051 = vunpack.c.h.b16 %v3681
        %v4052 = vunpack.c.l.b16 %v3682
        %v4053 = vunpack.c.h.b16 %v3682
        %v4054 = vunpack.c.l.b16 %v3683
        %v4055 = vunpack.c.h.b16 %v3683
        %v4056 = vunpack.c.l.b16 %v3684
        %v4057 = vunpack.c.h.b16 %v3684
        %v4058 = vunpack.c.l.b16 %v3685
        %v4059 = vunpack.c.h.b16 %v3685
        %v4060 = vunpack.c.l.b16 %v3686
        %v4061 = vunpack.c.h.b16 %v3686
        %v4062 = vunpack.c.l.b16 %v3687
        %v4063 = vunpack.c.h.b16 %v3687
        %v4064 = vunpack.c.l.b16 %v3688
        %v4065 = vunpack.c.h.b16 %v3688
        %v4066 = vunpack.c.l.b16 %v3689
        %v4067 = vunpack.c.h.b16 %v3689
        %v4068 = vunpack.c.l.b16 %v3690
        %v4069 = vunpack.c.h.b16 %v3690
        %v4070 = vunpack.c.l.b16 %v3691
        %v4071 = vunpack.c.h.b16 %v3691
        %v4072 = vunpack.c.l.b16 %v3692
        %v4073 = vunpack.c.h.b16 %v3692
        %v4074 = vunpack.c.l.b16 %v3693
        %v4075 = vunpack.c.h.b16 %v3693
        %v4076 = vunpack.c.l.b16 %v3694
        %v4077 = vunpack.c.h.b16 %v3694
        %v4078 = vunpack.c.l.b16 %v3695
        %v4079 = vunpack.c.h.b16 %v3695
        %v4080 = vunpack.c.l.b16 %v3696
        %v4081 = vunpack.c.h.b16 %v3696
        %v4082 = vunpack.c.l.b16 %v3697
        %v4083 = vunpack.c.h.b16 %v3697
        %v4084 = vunpack.c.l.b16 %v3698
        %v4085 = vunpack.c.h.b16 %v3698
        %v4086 = vunpack.c.l.b16 %v3699
        %v4087 = vunpack.c.h.b16 %v3699
        %v4088 = vunpack.c.l.b16 %v3700
        %v4089 = vunpack.c.h.b16 %v3700
        %v4090 = vunpack.c.l.b16 %v3701
        %v4091 = vunpack.c.h.b16 %v3701
        %v4092 = vunpack.c.l.b16 %v3702
        %v4093 = vunpack.c.h.b16 %v3702
        %v4094 = vunpack.c.l.b16 %v3703
        %v4095 = vunpack.c.h.b16 %v3703
        %v4096 = vunpack.c.l.b16 %v3704
        %v4097 = vunpack.c.h.b16 %v3704
        %v4098 = vunpack.c.l.b16 %v3705
        %v4099 = vunpack.c.h.b16 %v3705
        %v4100 = vunpack.c.l.b16 %v3706
        %v4101 = vunpack.c.h.b16 %v3706
        %v4102 = vunpack.c.l.b16 %v3707
        %v4103 = vunpack.c.h.b16 %v3707
        %v4104 = vunpack.c.l.b16 %v3708
        %v4105 = vunpack.c.h.b16 %v3708
        %v4106 = vunpack.c.l.b16 %v3709
        %v4107 = vunpack.c.h.b16 %v3709
        %v4108 = vunpack.c.l.b16 %v3710
        %v4109 = vunpack.c.h.b16 %v3710
        %v4110 = vunpack.c.l.b16 %v3711
        %v4111 = vunpack.c.h.b16 %v3711
        %v4112 = vunpack.c.l.b16 %v3712
        %v4113 = vunpack.c.h.b16 %v3712
        %v4114 = vunpack.c.l.b16 %v3713
        %v4115 = vunpack.c.h.b16 %v3713
        %v4116 = vunpack.c.l.b16 %v3714
        %v4117 = vunpack.c.h.b16 %v3714
        %v4118 = vunpack.c.l.b16 %v3715
        %v4119 = vunpack.c.h.b16 %v3715
        %v4120 = vunpack.c.l.b16 %v3716
        %v4121 = vunpack.c.h.b16 %v3716
        %v4122 = vunpack.c.l.b16 %v3717
        %v4123 = vunpack.c.h.b16 %v3717
        %v4124 = vunpack.c.l.b16 %v3718
        %v4125 = vunpack.c.h.b16 %v3718
        %v4126 = vunpack.c.l.b16 %v3719
        %v4127 = vunpack.c.h.b16 %v3719
        %v4128 = vunpack.c.l.b16 %v3720
        %v4129 = vunpack.c.h.b16 %v3720
        %v4130 = vunpack.c.l.b16 %v3721
        %v4131 = vunpack.c.h.b16 %v3721
        %v4132 = vunpack.c.l.b16 %v3722
        %v4133 = vunpack.c.h.b16 %v3722
        %v4134 = vunpack.c.l.b16 %v3723
        %v4135 = vunpack.c.h.b16 %v3723
        %v4136 = vunpack.c.l.b16 %v3724
        %v4137 = vunpack.c.h.b16 %v3724
        %v4138 = vunpack.c.l.b16 %v3725
        %v4139 = vunpack.c.h.b16 %v3725
        %v4140 = vunpack.c.l.b16 %v3726
        %v4141 = vunpack.c.h.b16 %v3726
        %v4142 = vunpack.c.l.b16 %v3727
        %v4143 = vunpack.c.h.b16 %v3727
        %v4144 = vunpack.c.l.b16 %v3728
        %v4145 = vunpack.c.h.b16 %v3728
        %v4146 = vunpack.c.l.b16 %v3729
        %v4147 = vunpack.c.h.b16 %v3729
        %v4148 = vunpack.c.l.b16 %v3730
        %v4149 = vunpack.c.h.b16 %v3730
        %v4150 = vunpack.c.l.b16 %v3731
        %v4151 = vunpack.c.h.b16 %v3731
        %v4152 = vunpack.c.l.b16 %v3732
        %v4153 = vunpack.c.h.b16 %v3732
        %v4154 = vunpack.c.l.b16 %v3733
        %v4155 = vunpack.c.h.b16 %v3733
        %v4156 = vunpack.c.l.b16 %v3734
        %v4157 = vunpack.c.h.b16 %v3734
        %v4158 = vunpack.c.l.b16 %v3735
        %v4159 = vunpack.c.h.b16 %v3735
        %v4160 = vunpack.c.l.b16 %v3736
        %v4161 = vunpack.c.h.b16 %v3736
        %v4162 = vunpack.c.l.b16 %v3737
        %v4163 = vunpack.c.h.b16 %v3737
        %v4164 = vpack.c.b16 %v3916, %v3908
        %v4165 = vpack.c.b16 %v3917, %v3909
        %v4166 = vpack.c.b16 %v3918, %v3910
        %v4167 = vpack.c.b16 %v3919, %v3911
        %v4168 = vpack.c.b16 %v3920, %v3912
        %v4169 = vpack.c.b16 %v3921, %v3913
        %v4170 = vpack.c.b16 %v3922, %v3914
        %v4171 = vpack.c.b16 %v3923, %v3915
        %v4172 = vpack.c.b16 %v3932, %v3924
        %v4173 = vpack.c.b16 %v3933, %v3925
        %v4174 = vpack.c.b16 %v3934, %v3926
        %v4175 = vpack.c.b16 %v3935, %v3927
        %v4176 = vpack.c.b16 %v3936, %v3928
        %v4177 = vpack.c.b16 %v3937, %v3929
        %v4178 = vpack.c.b16 %v3938, %v3930
        %v4179 = vpack.c.b16 %v3939, %v3931
        %v4180 = vpack.c.b16 %v3948, %v3940
        %v4181 = vpack.c.b16 %v3949, %v3941
        %v4182 = vpack.c.b16 %v3950, %v3942
        %v4183 = vpack.c.b16 %v3951, %v3943
        %v4184 = vpack.c.b16 %v3952, %v3944
        %v4185 = vpack.c.b16 %v3953, %v3945
        %v4186 = vpack.c.b16 %v3954, %v3946
        %v4187 = vpack.c.b16 %v3955, %v3947
        %v4188 = vpack.c.b16 %v3964, %v3956
        %v4189 = vpack.c.b16 %v3965, %v3957
        %v4190 = vpack.c.b16 %v3966, %v3958
        %v4191 = vpack.c.b16 %v3967, %v3959
        %v4192 = vpack.c.b16 %v3968, %v3960
        %v4193 = vpack.c.b16 %v3969, %v3961
        %v4194 = vpack.c.b16 %v3970, %v3962
        %v4195 = vpack.c.b16 %v3971, %v3963
        %v4196 = vpack.c.b16 %v3980, %v3972
        %v4197 = vpack.c.b16 %v3981, %v3973
        %v4198 = vpack.c.b16 %v3982, %v3974
        %v4199 = vpack.c.b16 %v3983, %v3975
        %v4200 = vpack.c.b16 %v3984, %v3976
        %v4201 = vpack.c.b16 %v3985, %v3977
        %v4202 = vpack.c.b16 %v3986, %v3978
        %v4203 = vpack.c.b16 %v3987, %v3979
        %v4204 = vpack.c.b16 %v3996, %v3988
        %v4205 = vpack.c.b16 %v3997, %v3989
        %v4206 = vpack.c.b16 %v3998, %v3990
        %v4207 = vpack.c.b16 %v3999, %v3991
        %v4208 = vpack.c.b16 %v4000, %v3992
        %v4209 = vpack.c.b16 %v4001, %v3993
        %v4210 = vpack.c.b16 %v4002, %v3994
        %v4211 = vpack.c.b16 %v4003, %v3995
        %v4212 = vpack.c.b16 %v4012, %v4004
        %v4213 = vpack.c.b16 %v4013, %v4005
        %v4214 = vpack.c.b16 %v4014, %v4006
        %v4215 = vpack.c.b16 %v4015, %v4007
        %v4216 = vpack.c.b16 %v4016, %v4008
        %v4217 = vpack.c.b16 %v4017, %v4009
        %v4218 = vpack.c.b16 %v4018, %v4010
        %v4219 = vpack.c.b16 %v4019, %v4011
        %v4220 = vpack.c.b16 %v4028, %v4020
        %v4221 = vpack.c.b16 %v4029, %v4021
        %v4222 = vpack.c.b16 %v4030, %v4022
        %v4223 = vpack.c.b16 %v4031, %v4023
        %v4224 = vpack.c.b16 %v4032, %v4024
        %v4225 = vpack.c.b16 %v4033, %v4025
        %v4226 = vpack.c.b16 %v4034, %v4026
        %v4227 = vpack.c.b16 %v4035, %v4027
        %v4228 = vpack.c.b16 %v4044, %v4036
        %v4229 = vpack.c.b16 %v4045, %v4037
        %v4230 = vpack.c.b16 %v4046, %v4038
        %v4231 = vpack.c.b16 %v4047, %v4039
        %v4232 = vpack.c.b16 %v4048, %v4040
        %v4233 = vpack.c.b16 %v4049, %v4041
        %v4234 = vpack.c.b16 %v4050, %v4042
        %v4235 = vpack.c.b16 %v4051, %v4043
        %v4236 = vpack.c.b16 %v4060, %v4052
        %v4237 = vpack.c.b16 %v4061, %v4053
        %v4238 = vpack.c.b16 %v4062, %v4054
        %v4239 = vpack.c.b16 %v4063, %v4055
        %v4240 = vpack.c.b16 %v4064, %v4056
        %v4241 = vpack.c.b16 %v4065, %v4057
        %v4242 = vpack.c.b16 %v4066, %v4058
        %v4243 = vpack.c.b16 %v4067, %v4059
        %v4244 = vpack.c.b16 %v4076, %v4068
        %v4245 = vpack.c.b16 %v4077, %v4069
        %v4246 = vpack.c.b16 %v4078, %v4070
        %v4247 = vpack.c.b16 %v4079, %v4071
        %v4248 = vpack.c.b16 %v4080, %v4072
        %v4249 = vpack.c.b16 %v4081, %v4073
        %v4250 = vpack.c.b16 %v4082, %v4074
        %v4251 = vpack.c.b16 %v4083, %v4075
        %v4252 = vpack.c.b16 %v4092, %v4084
        %v4253 = vpack.c.b16 %v4093, %v4085
        %v4254 = vpack.c.b16 %v4094, %v4086
        %v4255 = vpack.c.b16 %v4095, %v4087
        %v4256 = vpack.c.b16 %v4096, %v4088
        %v4257 = vpack.c.b16 %v4097, %v4089
        %v4258 = vpack.c.b16 %v4098, %v4090
        %v4259 = vpack.c.b16 %v4099, %v4091
        %v4260 = vpack.c.b16 %v4108, %v4100
        %v4261 = vpack.c.b16 %v4109, %v4101
        %v4262 = vpack.c.b16 %v4110, %v4102
        %v4263 = vpack.c.b16 %v4111, %v4103
        %v4264 = vpack.c.b16 %v4112, %v4104
        %v4265 = vpack.c.b16 %v4113, %v4105
        %v4266 = vpack.c.b16 %v4114, %v4106
        %v4267 = vpack.c.b16 %v4115, %v4107
        %v4268 = vpack.c.b16 %v4124, %v4116
        %v4269 = vpack.c.b16 %v4125, %v4117
        %v4270 = vpack.c.b16 %v4126, %v4118
        %v4271 = vpack.c.b16 %v4127, %v4119
        %v4272 = vpack.c.b16 %v4128, %v4120
        %v4273 = vpack.c.b16 %v4129, %v4121
        %v4274 = vpack.c.b16 %v4130, %v4122
        %v4275 = vpack.c.b16 %v4131, %v4123
        %v4276 = vpack.c.b16 %v4140, %v4132
        %v4277 = vpack.c.b16 %v4141, %v4133
        %v4278 = vpack.c.b16 %v4142, %v4134
        %v4279 = vpack.c.b16 %v4143, %v4135
        %v4280 = vpack.c.b16 %v4144, %v4136
        %v4281 = vpack.c.b16 %v4145, %v4137
        %v4282 = vpack.c.b16 %v4146, %v4138
        %v4283 = vpack.c.b16 %v4147, %v4139
        %v4284 = vpack.c.b16 %v4156, %v4148
        %v4285 = vpack.c.b16 %v4157, %v4149
        %v4286 = vpack.c.b16 %v4158, %v4150
        %v4287 = vpack.c.b16 %v4159, %v4151
        %v4288 = vpack.c.b16 %v4160, %v4152
        %v4289 = vpack.c.b16 %v4161, %v4153
        %v4290 = vpack.c.b16 %v4162, %v4154
        %v4291 = vpack.c.b16 %v4163, %v4155
        %4420 = vmatprep.subr.bf16.mxu0 %v4165
        %4421 = vmatpush1.bf16.msra.mxu0 %v4164
        %4422 = vmatprep.subr.bf16.mxu0 %v4173
        %4423 = vmatpush1.bf16.msra.mxu0 %v4172
        %4424 = vmatprep.subr.bf16.mxu0 %v4181
        %4425 = vmatpush1.bf16.msra.mxu0 %v4180
        %4426 = vmatprep.subr.bf16.mxu0 %v4189
        %4427 = vmatpush1.bf16.msra.mxu0 %v4188
        %4428 = vmatprep.subr.bf16.mxu0 %v4197
        %4429 = vmatpush1.bf16.msra.mxu0 %v4196
        %4430 = vmatprep.subr.bf16.mxu0 %v4205
        %4431 = vmatpush1.bf16.msra.mxu0 %v4204
        %4432 = vmatprep.subr.bf16.mxu0 %v4213
        %4433 = vmatpush1.bf16.msra.mxu0 %v4212
        %4434 = vmatprep.subr.bf16.mxu0 %v4221
        %4435 = vmatpush1.bf16.msra.mxu0 %v4220
        %4436 = vmatprep.subr.bf16.mxu0 %v4229
        %4437 = vmatpush1.bf16.msra.mxu0 %v4228
        %4438 = vmatprep.subr.bf16.mxu0 %v4237
        %4439 = vmatpush1.bf16.msra.mxu0 %v4236
        %4440 = vmatprep.subr.bf16.mxu0 %v4245
        %4441 = vmatpush1.bf16.msra.mxu0 %v4244
        %4442 = vmatprep.subr.bf16.mxu0 %v4253
        %4443 = vmatpush1.bf16.msra.mxu0 %v4252
        %4444 = vmatprep.subr.bf16.mxu0 %v4261
        %4445 = vmatpush1.bf16.msra.mxu0 %v4260
        %4446 = vmatprep.subr.bf16.mxu0 %v4269
        %4447 = vmatpush1.bf16.msra.mxu0 %v4268
        %4448 = vmatprep.subr.bf16.mxu0 %v4277
        %4449 = vmatpush1.bf16.msra.mxu0 %v4276
        %4450 = vmatprep.subr.bf16.mxu0 %v4285
        %4451 = vmatpush1.bf16.msra.mxu0 %v4284
        %4452 = vmatprep.mubr.bf16.mxu0 %v3603
        %4453 = vmatmul.mubr.bf16.gmra.mrb[0].mxu0 %v3602
        %v4454 = vpop.f32.mrb[0].mxu0
        %v4455 = vadd.f32 %v3743, %v4454
        %v4456 = vpop.f32.mrb[0].mxu0
        %v4457 = vadd.f32 %v3747, %v4456
        %v4458 = vpop.f32.mrb[0].mxu0
        %v4459 = vadd.f32 %v3743, %v4458
        %v4460 = vpop.f32.mrb[0].mxu0
        %v4461 = vadd.f32 %v3747, %v4460
        %4462 = vmatprep.mubr.bf16.mxu0 %v3605
        %4463 = vmatmul.mubr.bf16.gmra.mrb[0].mxu0 %v3604
        %v4464 = vpop.f32.mrb[0].mxu0
        %v4465 = vadd.f32 %v3743, %v4464
        %v4466 = vpop.f32.mrb[0].mxu0
        %v4467 = vadd.f32 %v3747, %v4466
        %v4468 = vpop.f32.mrb[0].mxu0
        %v4469 = vadd.f32 %v3743, %v4468
        %v4470 = vpop.f32.mrb[0].mxu0
        %v4471 = vadd.f32 %v3747, %v4470
        %4472 = vmatprep.mubr.bf16.mxu0 %v3607
        %4473 = vmatmul.mubr.bf16.gmra.mrb[0].mxu0 %v3606
        %v4474 = vpop.f32.mrb[0].mxu0
        %v4475 = vadd.f32 %v3743, %v4474
        %v4476 = vpop.f32.mrb[0].mxu0
        %v4477 = vadd.f32 %v3747, %v4476
        %v4478 = vpop.f32.mrb[0].mxu0
        %v4479 = vadd.f32 %v3743, %v4478
        %v4480 = vpop.f32.mrb[0].mxu0
        %v4481 = vadd.f32 %v3747, %v4480
        %4482 = vmatprep.mubr.bf16.mxu0 %v3609
        %4483 = vmatmul.mubr.bf16.gmra.mrb[0].mxu0 %v3608
        %v4484 = vpop.f32.mrb[0].mxu0
        %v4485 = vadd.f32 %v3743, %v4484
        %v4486 = vpop.f32.mrb[0].mxu0
        %v4487 = vadd.f32 %v3747, %v4486
        %v4488 = vpop.f32.mrb[0].mxu0
        %v4489 = vadd.f32 %v3743, %v4488
        %v4490 = vpop.f32.mrb[0].mxu0
        %v4491 = vadd.f32 %v3747, %v4490
        %4492 = vdwg.mxu0
        %4493 = vmatprep.subr.bf16.mxu0 %v4167
        %4494 = vmatpush1.bf16.msra.mxu0 %v4166
        %4495 = vmatprep.subr.bf16.mxu0 %v4175
        %4496 = vmatpush1.bf16.msra.mxu0 %v4174
        %4497 = vmatprep.subr.bf16.mxu0 %v4183
        %4498 = vmatpush1.bf16.msra.mxu0 %v4182
        %4499 = vmatprep.subr.bf16.mxu0 %v4191
        %4500 = vmatpush1.bf16.msra.mxu0 %v4190
        %4501 = vmatprep.subr.bf16.mxu0 %v4199
        %4502 = vmatpush1.bf16.msra.mxu0 %v4198
        %4503 = vmatprep.subr.bf16.mxu0 %v4207
        %4504 = vmatpush1.bf16.msra.mxu0 %v4206
        %4505 = vmatprep.subr.bf16.mxu0 %v4215
        %4506 = vmatpush1.bf16.msra.mxu0 %v4214
        %4507 = vmatprep.subr.bf16.mxu0 %v4223
        %4508 = vmatpush1.bf16.msra.mxu0 %v4222
        %4509 = vmatprep.subr.bf16.mxu0 %v4231
        %4510 = vmatpush1.bf16.msra.mxu0 %v4230
        %4511 = vmatprep.subr.bf16.mxu0 %v4239
        %4512 = vmatpush1.bf16.msra.mxu0 %v4238
        %4513 = vmatprep.subr.bf16.mxu0 %v4247
        %4514 = vmatpush1.bf16.msra.mxu0 %v4246
        %4515 = vmatprep.subr.bf16.mxu0 %v4255
        %4516 = vmatpush1.bf16.msra.mxu0 %v4254
        %4517 = vmatprep.subr.bf16.mxu0 %v4263
        %4518 = vmatpush1.bf16.msra.mxu0 %v4262
        %4519 = vmatprep.subr.bf16.mxu0 %v4271
        %4520 = vmatpush1.bf16.msra.mxu0 %v4270
        %4521 = vmatprep.subr.bf16.mxu0 %v4279
        %4522 = vmatpush1.bf16.msra.mxu0 %v4278
        %4523 = vmatprep.subr.bf16.mxu0 %v4287
        %4524 = vmatpush1.bf16.msra.mxu0 %v4286
        %4525 = vmatprep.mubr.bf16.mxu0 %v3603
        %4526 = vmatmul.mubr.bf16.gmra.mrb[0].mxu0 %v3602
        %v4527 = vpop.f32.mrb[0].mxu0
        %v4528 = vadd.f32 %v3751, %v4527
        %v4529 = vpop.f32.mrb[0].mxu0
        %v4530 = vadd.f32 %v3755, %v4529
        %v4531 = vpop.f32.mrb[0].mxu0
        %v4532 = vadd.f32 %v3751, %v4531
        %v4533 = vpop.f32.mrb[0].mxu0
        %v4534 = vadd.f32 %v3755, %v4533
        %4535 = vmatprep.mubr.bf16.mxu0 %v3605
        %4536 = vmatmul.mubr.bf16.gmra.mrb[0].mxu0 %v3604
        %v4537 = vpop.f32.mrb[0].mxu0
        %v4538 = vadd.f32 %v3751, %v4537
        %v4539 = vpop.f32.mrb[0].mxu0
        %v4540 = vadd.f32 %v3755, %v4539
        %v4541 = vpop.f32.mrb[0].mxu0
        %v4542 = vadd.f32 %v3751, %v4541
        %v4543 = vpop.f32.mrb[0].mxu0
        %v4544 = vadd.f32 %v3755, %v4543
        %4545 = vmatprep.mubr.bf16.mxu0 %v3607
        %4546 = vmatmul.mubr.bf16.gmra.mrb[0].mxu0 %v3606
        %v4547 = vpop.f32.mrb[0].mxu0
        %v4548 = vadd.f32 %v3751, %v4547
        %v4549 = vpop.f32.mrb[0].mxu0
        %v4550 = vadd.f32 %v3755, %v4549
        %v4551 = vpop.f32.mrb[0].mxu0
        %v4552 = vadd.f32 %v3751, %v4551
        %v4553 = vpop.f32.mrb[0].mxu0
        %v4554 = vadd.f32 %v3755, %v4553
        %4555 = vmatprep.mubr.bf16.mxu0 %v3609
        %4556 = vmatmul.mubr.bf16.gmra.mrb[0].mxu0 %v3608
        %v4557 = vpop.f32.mrb[0].mxu0
        %v4558 = vadd.f32 %v3751, %v4557
        %v4559 = vpop.f32.mrb[0].mxu0
        %v4560 = vadd.f32 %v3755, %v4559
        %v4561 = vpop.f32.mrb[0].mxu0
        %v4562 = vadd.f32 %v3751, %v4561
        %v4563 = vpop.f32.mrb[0].mxu0
        %v4564 = vadd.f32 %v3755, %v4563
        %4565 = vdwg.mxu0
        %4566 = vmatprep.subr.bf16.mxu0 %v4169
        %4567 = vmatpush1.bf16.msra.mxu0 %v4168
        %4568 = vmatprep.subr.bf16.mxu0 %v4177
        %4569 = vmatpush1.bf16.msra.mxu0 %v4176
        %4570 = vmatprep.subr.bf16.mxu0 %v4185
        %4571 = vmatpush1.bf16.msra.mxu0 %v4184
        %4572 = vmatprep.subr.bf16.mxu0 %v4193
        %4573 = vmatpush1.bf16.msra.mxu0 %v4192
        %4574 = vmatprep.subr.bf16.mxu0 %v4201
        %4575 = vmatpush1.bf16.msra.mxu0 %v4200
        %4576 = vmatprep.subr.bf16.mxu0 %v4209
        %4577 = vmatpush1.bf16.msra.mxu0 %v4208
        %4578 = vmatprep.subr.bf16.mxu0 %v4217
        %4579 = vmatpush1.bf16.msra.mxu0 %v4216
        %4580 = vmatprep.subr.bf16.mxu0 %v4225
        %4581 = vmatpush1.bf16.msra.mxu0 %v4224
        %4582 = vmatprep.subr.bf16.mxu0 %v4233
        %4583 = vmatpush1.bf16.msra.mxu0 %v4232
        %4584 = vmatprep.subr.bf16.mxu0 %v4241
        %4585 = vmatpush1.bf16.msra.mxu0 %v4240
        %4586 = vmatprep.subr.bf16.mxu0 %v4249
        %4587 = vmatpush1.bf16.msra.mxu0 %v4248
        %4588 = vmatprep.subr.bf16.mxu0 %v4257
        %4589 = vmatpush1.bf16.msra.mxu0 %v4256
        %4590 = vmatprep.subr.bf16.mxu0 %v4265
        %4591 = vmatpush1.bf16.msra.mxu0 %v4264
        %4592 = vmatprep.subr.bf16.mxu0 %v4273
        %4593 = vmatpush1.bf16.msra.mxu0 %v4272
        %4594 = vmatprep.subr.bf16.mxu0 %v4281
        %4595 = vmatpush1.bf16.msra.mxu0 %v4280
        %4596 = vmatprep.subr.bf16.mxu0 %v4289
        %4597 = vmatpush1.bf16.msra.mxu0 %v4288
        %4598 = vmatprep.mubr.bf16.mxu0 %v3603
        %4599 = vmatmul.mubr.bf16.gmra.mrb[0].mxu0 %v3602
        %v4600 = vpop.f32.mrb[0].mxu0
        %v4601 = vadd.f32 %v3759, %v4600
        %v4602 = vpop.f32.mrb[0].mxu0
        %v4603 = vadd.f32 %v3763, %v4602
        %v4604 = vpop.f32.mrb[0].mxu0
        %v4605 = vadd.f32 %v3759, %v4604
        %v4606 = vpop.f32.mrb[0].mxu0
        %v4607 = vadd.f32 %v3763, %v4606
        %4608 = vmatprep.mubr.bf16.mxu0 %v3605
        %4609 = vmatmul.mubr.bf16.gmra.mrb[0].mxu0 %v3604
        %v4610 = vpop.f32.mrb[0].mxu0
        %v4611 = vadd.f32 %v3759, %v4610
        %v4612 = vpop.f32.mrb[0].mxu0
        %v4613 = vadd.f32 %v3763, %v4612
        %v4614 = vpop.f32.mrb[0].mxu0
        %v4615 = vadd.f32 %v3759, %v4614
        %v4616 = vpop.f32.mrb[0].mxu0
        %v4617 = vadd.f32 %v3763, %v4616
        %4618 = vmatprep.mubr.bf16.mxu0 %v3607
        %4619 = vmatmul.mubr.bf16.gmra.mrb[0].mxu0 %v3606
        %v4620 = vpop.f32.mrb[0].mxu0
        %v4621 = vadd.f32 %v3759, %v4620
        %v4622 = vpop.f32.mrb[0].mxu0
        %v4623 = vadd.f32 %v3763, %v4622
        %v4624 = vpop.f32.mrb[0].mxu0
        %v4625 = vadd.f32 %v3759, %v4624
        %v4626 = vpop.f32.mrb[0].mxu0
        %v4627 = vadd.f32 %v3763, %v4626
        %4628 = vmatprep.mubr.bf16.mxu0 %v3609
        %4629 = vmatmul.mubr.bf16.gmra.mrb[0].mxu0 %v3608
        %v4630 = vpop.f32.mrb[0].mxu0
        %v4631 = vadd.f32 %v3759, %v4630
        %v4632 = vpop.f32.mrb[0].mxu0
        %v4633 = vadd.f32 %v3763, %v4632
        %v4634 = vpop.f32.mrb[0].mxu0
        %v4635 = vadd.f32 %v3759, %v4634
        %v4636 = vpop.f32.mrb[0].mxu0
        %v4637 = vadd.f32 %v3763, %v4636
        %4638 = vdwg.mxu0
        %4639 = vmatprep.subr.bf16.mxu0 %v4171
        %4640 = vmatpush1.bf16.msra.mxu0 %v4170
        %4641 = vmatprep.subr.bf16.mxu0 %v4179
        %4642 = vmatpush1.bf16.msra.mxu0 %v4178
        %4643 = vmatprep.subr.bf16.mxu0 %v4187
        %4644 = vmatpush1.bf16.msra.mxu0 %v4186
        %4645 = vmatprep.subr.bf16.mxu0 %v4195
        %4646 = vmatpush1.bf16.msra.mxu0 %v4194
        %4647 = vmatprep.subr.bf16.mxu0 %v4203
        %4648 = vmatpush1.bf16.msra.mxu0 %v4202
        %4649 = vmatprep.subr.bf16.mxu0 %v4211
        %4650 = vmatpush1.bf16.msra.mxu0 %v4210
        %4651 = vmatprep.subr.bf16.mxu0 %v4219
        %4652 = vmatpush1.bf16.msra.mxu0 %v4218
        %4653 = vmatprep.subr.bf16.mxu0 %v4227
        %4654 = vmatpush1.bf16.msra.mxu0 %v4226
        %4655 = vmatprep.subr.bf16.mxu0 %v4235
        %4656 = vmatpush1.bf16.msra.mxu0 %v4234
        %4657 = vmatprep.subr.bf16.mxu0 %v4243
        %4658 = vmatpush1.bf16.msra.mxu0 %v4242
        %4659 = vmatprep.subr.bf16.mxu0 %v4251
        %4660 = vmatpush1.bf16.msra.mxu0 %v4250
        %4661 = vmatprep.subr.bf16.mxu0 %v4259
        %4662 = vmatpush1.bf16.msra.mxu0 %v4258
        %4663 = vmatprep.subr.bf16.mxu0 %v4267
        %4664 = vmatpush1.bf16.msra.mxu0 %v4266
        %4665 = vmatprep.subr.bf16.mxu0 %v4275
        %4666 = vmatpush1.bf16.msra.mxu0 %v4274
        %4667 = vmatprep.subr.bf16.mxu0 %v4283
        %4668 = vmatpush1.bf16.msra.mxu0 %v4282
        %4669 = vmatprep.subr.bf16.mxu0 %v4291
        %4670 = vmatpush1.bf16.msra.mxu0 %v4290
        %4671 = vmatprep.mubr.bf16.mxu0 %v3603
        %4672 = vmatmul.mubr.bf16.gmra.mrb[0].mxu0 %v3602
        %v4673 = vpop.f32.mrb[0].mxu0
        %v4674 = vadd.f32 %v3767, %v4673
        %v4675 = vpop.f32.mrb[0].mxu0
        %v4676 = vadd.f32 %v3771, %v4675
        %v4677 = vpop.f32.mrb[0].mxu0
        %v4678 = vadd.f32 %v3767, %v4677
        %v4679 = vpop.f32.mrb[0].mxu0
        %v4680 = vadd.f32 %v3771, %v4679
        %4681 = vmatprep.mubr.bf16.mxu0 %v3605
        %4682 = vmatmul.mubr.bf16.gmra.mrb[0].mxu0 %v3604
        %v4683 = vpop.f32.mrb[0].mxu0
        %v4684 = vadd.f32 %v3767, %v4683
        %v4685 = vpop.f32.mrb[0].mxu0
        %v4686 = vadd.f32 %v3771, %v4685
        %v4687 = vpop.f32.mrb[0].mxu0
        %v4688 = vadd.f32 %v3767, %v4687
        %v4689 = vpop.f32.mrb[0].mxu0
        %v4690 = vadd.f32 %v3771, %v4689
        %4691 = vmatprep.mubr.bf16.mxu0 %v3607
        %4692 = vmatmul.mubr.bf16.gmra.mrb[0].mxu0 %v3606
        %v4693 = vpop.f32.mrb[0].mxu0
        %v4694 = vadd.f32 %v3767, %v4693
        %v4695 = vpop.f32.mrb[0].mxu0
        %v4696 = vadd.f32 %v3771, %v4695
        %v4697 = vpop.f32.mrb[0].mxu0
        %v4698 = vadd.f32 %v3767, %v4697
        %v4699 = vpop.f32.mrb[0].mxu0
        %v4700 = vadd.f32 %v3771, %v4699
        %4701 = vmatprep.mubr.bf16.mxu0 %v3609
        %4702 = vmatmul.mubr.bf16.gmra.mrb[0].mxu0 %v3608
        %v4703 = vpop.f32.mrb[0].mxu0
        %v4704 = vadd.f32 %v3767, %v4703
        %v4705 = vpop.f32.mrb[0].mxu0
        %v4706 = vadd.f32 %v3771, %v4705
        %v4707 = vpop.f32.mrb[0].mxu0
        %v4708 = vadd.f32 %v3767, %v4707
        %v4709 = vpop.f32.mrb[0].mxu0
        %v4710 = vadd.f32 %v3771, %v4709
        %4711 = vdwg.mxu0
        %4712 = vst [vmem:[#allocation3] sm:$0xff] %v4455
        %4713 = vst [vmem:[#allocation3 + $0x8] sm:$0xff] %v4457
        %4714 = vst [vmem:[#allocation3 + $0x10] sm:$0xff] %v4528
        %4715 = vst [vmem:[#allocation3 + $0x18] sm:$0xff] %v4530
        %4716 = vst [vmem:[#allocation3 + $0x20] sm:$0xff] %v4601
        %4717 = vst [vmem:[#allocation3 + $0x28] sm:$0xff] %v4603
        %4718 = vst [vmem:[#allocation3 + $0x30] sm:$0xff] %v4674
        %4719 = vst [vmem:[#allocation3 + $0x38] sm:$0xff] %v4676
        %4720 = vst [vmem:[#allocation3 + $0x40] sm:$0xff] %v4459
        %4721 = vst [vmem:[#allocation3 + $0x48] sm:$0xff] %v4461
        %4722 = vst [vmem:[#allocation3 + $0x50] sm:$0xff] %v4532
        %4723 = vst [vmem:[#allocation3 + $0x58] sm:$0xff] %v4534
        %4724 = vst [vmem:[#allocation3 + $0x60] sm:$0xff] %v4605
        %4725 = vst [vmem:[#allocation3 + $0x68] sm:$0xff] %v4607
        %4726 = vst [vmem:[#allocation3 + $0x70] sm:$0xff] %v4678
        %4727 = vst [vmem:[#allocation3 + $0x78] sm:$0xff] %v4680
        %4728 = vst [vmem:[#allocation3 + $0x80] sm:$0xff] %v4465
        %4729 = vst [vmem:[#allocation3 + $0x88] sm:$0xff] %v4467
        %4730 = vst [vmem:[#allocation3 + $0x90] sm:$0xff] %v4538
        %4731 = vst [vmem:[#allocation3 + $0x98] sm:$0xff] %v4540
        %4732 = vst [vmem:[#allocation3 + $0xa0] sm:$0xff] %v4611
        %4733 = vst [vmem:[#allocation3 + $0xa8] sm:$0xff] %v4613
        %4734 = vst [vmem:[#allocation3 + $0xb0] sm:$0xff] %v4684
        %4735 = vst [vmem:[#allocation3 + $0xb8] sm:$0xff] %v4686
        %4736 = vst [vmem:[#allocation3 + $0xc0] sm:$0xff] %v4469
        %4737 = vst [vmem:[#allocation3 + $0xc8] sm:$0xff] %v4471
        %4738 = vst [vmem:[#allocation3 + $0xd0] sm:$0xff] %v4542
        %4739 = vst [vmem:[#allocation3 + $0xd8] sm:$0xff] %v4544
        %4740 = vst [vmem:[#allocation3 + $0xe0] sm:$0xff] %v4615
        %4741 = vst [vmem:[#allocation3 + $0xe8] sm:$0xff] %v4617
        %4742 = vst [vmem:[#allocation3 + $0xf0] sm:$0xff] %v4688
        %4743 = vst [vmem:[#allocation3 + $0xf8] sm:$0xff] %v4690
        %4744 = vst [vmem:[#allocation3 + $0x100] sm:$0xff] %v4475
        %4745 = vst [vmem:[#allocation3 + $0x108] sm:$0xff] %v4477
        %4746 = vst [vmem:[#allocation3 + $0x110] sm:$0xff] %v4548
        %4747 = vst [vmem:[#allocation3 + $0x118] sm:$0xff] %v4550
        %4748 = vst [vmem:[#allocation3 + $0x120] sm:$0xff] %v4621
        %4749 = vst [vmem:[#allocation3 + $0x128] sm:$0xff] %v4623
        %4750 = vst [vmem:[#allocation3 + $0x130] sm:$0xff] %v4694
        %4751 = vst [vmem:[#allocation3 + $0x138] sm:$0xff] %v4696
        %4752 = vst [vmem:[#allocation3 + $0x140] sm:$0xff] %v4479
        %4753 = vst [vmem:[#allocation3 + $0x148] sm:$0xff] %v4481
        %4754 = vst [vmem:[#allocation3 + $0x150] sm:$0xff] %v4552
        %4755 = vst [vmem:[#allocation3 + $0x158] sm:$0xff] %v4554
        %4756 = vst [vmem:[#allocation3 + $0x160] sm:$0xff] %v4625
        %4757 = vst [vmem:[#allocation3 + $0x168] sm:$0xff] %v4627
        %4758 = vst [vmem:[#allocation3 + $0x170] sm:$0xff] %v4698
        %4759 = vst [vmem:[#allocation3 + $0x178] sm:$0xff] %v4700
        %4760 = vst [vmem:[#allocation3 + $0x180] sm:$0xff] %v4485
        %4761 = vst [vmem:[#allocation3 + $0x188] sm:$0xff] %v4487
        %4762 = vst [vmem:[#allocation3 + $0x190] sm:$0xff] %v4558
        %4763 = vst [vmem:[#allocation3 + $0x198] sm:$0xff] %v4560
        %4764 = vst [vmem:[#allocation3 + $0x1a0] sm:$0xff] %v4631
        %4765 = vst [vmem:[#allocation3 + $0x1a8] sm:$0xff] %v4633
        %4766 = vst [vmem:[#allocation3 + $0x1b0] sm:$0xff] %v4704
        %4767 = vst [vmem:[#allocation3 + $0x1b8] sm:$0xff] %v4706
        %4768 = vst [vmem:[#allocation3 + $0x1c0] sm:$0xff] %v4489
        %4769 = vst [vmem:[#allocation3 + $0x1c8] sm:$0xff] %v4491
        %4770 = vst [vmem:[#allocation3 + $0x1d0] sm:$0xff] %v4562
        %4771 = vst [vmem:[#allocation3 + $0x1d8] sm:$0xff] %v4564
        %4772 = vst [vmem:[#allocation3 + $0x1e0] sm:$0xff] %v4635
        %4773 = vst [vmem:[#allocation3 + $0x1e8] sm:$0xff] %v4637
        %4774 = vst [vmem:[#allocation3 + $0x1f0] sm:$0xff] %v4708
        %4775 = vst [vmem:[#allocation3 + $0x1f8] sm:$0xff] %v4710
        %p4776 = scmp.ge.s32.totalorder %s36, 15
        %s4777 = ssub.s32 %s36, 15
        %s4778 = scalar_select %p4776, %s4777, %s36
        %s4779 = smul.u32 %s4778, 8
        %s4780 = sshra.s32 %s4779, 3
        %s4781 = sand.u32 %s4779, 7
        %s4782 = smul.u32 %s4780, 2
        %s4783 = smul.addr %s4782, 8
        %s4784 = scalar_lea.vmem [#allocation5], %s4783
        %v4785 = vld [vmem:[%s4784] sm:$0xff]
        %v4786 = vld [vmem:[%s4784 + $0x8] sm:$0xff]
        %s4787 = smul.addr %s4782, 8
        %s4788 = scalar_lea.vmem [#allocation6], %s4787
        %v4789 = vld [vmem:[%s4788] sm:$0xff]
        %v4790 = vld [vmem:[%s4788 + $0x8] sm:$0xff]
        %v4791 = vld [vmem:[%s584] sm:$0xff]
        %v4792 = vld [vmem:[%s584 + $0x8] sm:$0xff]
        %v4793 = vld [vmem:[%s584 + $0x10] sm:$0xff]
        %v4794 = vld [vmem:[%s584 + $0x18] sm:$0xff]
        %v4795 = vld [vmem:[%s584 + $0x20] sm:$0xff]
        %v4796 = vld [vmem:[%s584 + $0x28] sm:$0xff]
        %v4797 = vld [vmem:[%s584 + $0x30] sm:$0xff]
        %v4798 = vld [vmem:[%s584 + $0x38] sm:$0xff]
        %v4799 = vld [vmem:[%s584 + $0x40] sm:$0xff]
        %v4800 = vld [vmem:[%s584 + $0x48] sm:$0xff]
        %v4801 = vld [vmem:[%s584 + $0x50] sm:$0xff]
        %v4802 = vld [vmem:[%s584 + $0x58] sm:$0xff]
        %v4803 = vld [vmem:[%s584 + $0x60] sm:$0xff]
        %v4804 = vld [vmem:[%s584 + $0x68] sm:$0xff]
        %v4805 = vld [vmem:[%s584 + $0x70] sm:$0xff]
        %v4806 = vld [vmem:[%s584 + $0x78] sm:$0xff]
        %v4807 = vld [vmem:[%s584 + $0x80] sm:$0xff]
        %v4808 = vld [vmem:[%s584 + $0x88] sm:$0xff]
        %v4809 = vld [vmem:[%s584 + $0x90] sm:$0xff]
        %v4810 = vld [vmem:[%s584 + $0x98] sm:$0xff]
        %v4811 = vld [vmem:[%s584 + $0xa0] sm:$0xff]
        %v4812 = vld [vmem:[%s584 + $0xa8] sm:$0xff]
        %v4813 = vld [vmem:[%s584 + $0xb0] sm:$0xff]
        %v4814 = vld [vmem:[%s584 + $0xb8] sm:$0xff]
        %v4815 = vld [vmem:[%s584 + $0xc0] sm:$0xff]
        %v4816 = vld [vmem:[%s584 + $0xc8] sm:$0xff]
        %v4817 = vld [vmem:[%s584 + $0xd0] sm:$0xff]
        %v4818 = vld [vmem:[%s584 + $0xd8] sm:$0xff]
        %v4819 = vld [vmem:[%s584 + $0xe0] sm:$0xff]
        %v4820 = vld [vmem:[%s584 + $0xe8] sm:$0xff]
        %v4821 = vld [vmem:[%s584 + $0xf0] sm:$0xff]
        %v4822 = vld [vmem:[%s584 + $0xf8] sm:$0xff]
        %v4823 = vld [vmem:[%s584 + $0x100] sm:$0xff]
        %v4824 = vld [vmem:[%s584 + $0x108] sm:$0xff]
        %v4825 = vld [vmem:[%s584 + $0x110] sm:$0xff]
        %v4826 = vld [vmem:[%s584 + $0x118] sm:$0xff]
        %v4827 = vld [vmem:[%s584 + $0x120] sm:$0xff]
        %v4828 = vld [vmem:[%s584 + $0x128] sm:$0xff]
        %v4829 = vld [vmem:[%s584 + $0x130] sm:$0xff]
        %v4830 = vld [vmem:[%s584 + $0x138] sm:$0xff]
        %v4831 = vld [vmem:[%s584 + $0x140] sm:$0xff]
        %v4832 = vld [vmem:[%s584 + $0x148] sm:$0xff]
        %v4833 = vld [vmem:[%s584 + $0x150] sm:$0xff]
        %v4834 = vld [vmem:[%s584 + $0x158] sm:$0xff]
        %v4835 = vld [vmem:[%s584 + $0x160] sm:$0xff]
        %v4836 = vld [vmem:[%s584 + $0x168] sm:$0xff]
        %v4837 = vld [vmem:[%s584 + $0x170] sm:$0xff]
        %v4838 = vld [vmem:[%s584 + $0x178] sm:$0xff]
        %v4839 = vld [vmem:[%s584 + $0x180] sm:$0xff]
        %v4840 = vld [vmem:[%s584 + $0x188] sm:$0xff]
        %v4841 = vld [vmem:[%s584 + $0x190] sm:$0xff]
        %v4842 = vld [vmem:[%s584 + $0x198] sm:$0xff]
        %v4843 = vld [vmem:[%s584 + $0x1a0] sm:$0xff]
        %v4844 = vld [vmem:[%s584 + $0x1a8] sm:$0xff]
        %v4845 = vld [vmem:[%s584 + $0x1b0] sm:$0xff]
        %v4846 = vld [vmem:[%s584 + $0x1b8] sm:$0xff]
        %v4847 = vld [vmem:[%s584 + $0x1c0] sm:$0xff]
        %v4848 = vld [vmem:[%s584 + $0x1c8] sm:$0xff]
        %v4849 = vld [vmem:[%s584 + $0x1d0] sm:$0xff]
        %v4850 = vld [vmem:[%s584 + $0x1d8] sm:$0xff]
        %v4851 = vld [vmem:[%s584 + $0x1e0] sm:$0xff]
        %v4852 = vld [vmem:[%s584 + $0x1e8] sm:$0xff]
        %v4853 = vld [vmem:[%s584 + $0x1f0] sm:$0xff]
        %v4854 = vld [vmem:[%s584 + $0x1f8] sm:$0xff]
        %v4855 = vld [vmem:[%s584 + $0x200] sm:$0xff]
        %v4856 = vld [vmem:[%s584 + $0x208] sm:$0xff]
        %v4857 = vld [vmem:[%s584 + $0x210] sm:$0xff]
        %v4858 = vld [vmem:[%s584 + $0x218] sm:$0xff]
        %v4859 = vld [vmem:[%s584 + $0x220] sm:$0xff]
        %v4860 = vld [vmem:[%s584 + $0x228] sm:$0xff]
        %v4861 = vld [vmem:[%s584 + $0x230] sm:$0xff]
        %v4862 = vld [vmem:[%s584 + $0x238] sm:$0xff]
        %v4863 = vld [vmem:[%s584 + $0x240] sm:$0xff]
        %v4864 = vld [vmem:[%s584 + $0x248] sm:$0xff]
        %v4865 = vld [vmem:[%s584 + $0x250] sm:$0xff]
        %v4866 = vld [vmem:[%s584 + $0x258] sm:$0xff]
        %v4867 = vld [vmem:[%s584 + $0x260] sm:$0xff]
        %v4868 = vld [vmem:[%s584 + $0x268] sm:$0xff]
        %v4869 = vld [vmem:[%s584 + $0x270] sm:$0xff]
        %v4870 = vld [vmem:[%s584 + $0x278] sm:$0xff]
        %v4871 = vld [vmem:[%s584 + $0x280] sm:$0xff]
        %v4872 = vld [vmem:[%s584 + $0x288] sm:$0xff]
        %v4873 = vld [vmem:[%s584 + $0x290] sm:$0xff]
        %v4874 = vld [vmem:[%s584 + $0x298] sm:$0xff]
        %v4875 = vld [vmem:[%s584 + $0x2a0] sm:$0xff]
        %v4876 = vld [vmem:[%s584 + $0x2a8] sm:$0xff]
        %v4877 = vld [vmem:[%s584 + $0x2b0] sm:$0xff]
        %v4878 = vld [vmem:[%s584 + $0x2b8] sm:$0xff]
        %v4879 = vld [vmem:[%s584 + $0x2c0] sm:$0xff]
        %v4880 = vld [vmem:[%s584 + $0x2c8] sm:$0xff]
        %v4881 = vld [vmem:[%s584 + $0x2d0] sm:$0xff]
        %v4882 = vld [vmem:[%s584 + $0x2d8] sm:$0xff]
        %v4883 = vld [vmem:[%s584 + $0x2e0] sm:$0xff]
        %v4884 = vld [vmem:[%s584 + $0x2e8] sm:$0xff]
        %v4885 = vld [vmem:[%s584 + $0x2f0] sm:$0xff]
        %v4886 = vld [vmem:[%s584 + $0x2f8] sm:$0xff]
        %v4887 = vld [vmem:[%s584 + $0x300] sm:$0xff]
        %v4888 = vld [vmem:[%s584 + $0x308] sm:$0xff]
        %v4889 = vld [vmem:[%s584 + $0x310] sm:$0xff]
        %v4890 = vld [vmem:[%s584 + $0x318] sm:$0xff]
        %v4891 = vld [vmem:[%s584 + $0x320] sm:$0xff]
        %v4892 = vld [vmem:[%s584 + $0x328] sm:$0xff]
        %v4893 = vld [vmem:[%s584 + $0x330] sm:$0xff]
        %v4894 = vld [vmem:[%s584 + $0x338] sm:$0xff]
        %v4895 = vld [vmem:[%s584 + $0x340] sm:$0xff]
        %v4896 = vld [vmem:[%s584 + $0x348] sm:$0xff]
        %v4897 = vld [vmem:[%s584 + $0x350] sm:$0xff]
        %v4898 = vld [vmem:[%s584 + $0x358] sm:$0xff]
        %v4899 = vld [vmem:[%s584 + $0x360] sm:$0xff]
        %v4900 = vld [vmem:[%s584 + $0x368] sm:$0xff]
        %v4901 = vld [vmem:[%s584 + $0x370] sm:$0xff]
        %v4902 = vld [vmem:[%s584 + $0x378] sm:$0xff]
        %v4903 = vld [vmem:[%s584 + $0x380] sm:$0xff]
        %v4904 = vld [vmem:[%s584 + $0x388] sm:$0xff]
        %v4905 = vld [vmem:[%s584 + $0x390] sm:$0xff]
        %v4906 = vld [vmem:[%s584 + $0x398] sm:$0xff]
        %v4907 = vld [vmem:[%s584 + $0x3a0] sm:$0xff]
        %v4908 = vld [vmem:[%s584 + $0x3a8] sm:$0xff]
        %v4909 = vld [vmem:[%s584 + $0x3b0] sm:$0xff]
        %v4910 = vld [vmem:[%s584 + $0x3b8] sm:$0xff]
        %v4911 = vld [vmem:[%s584 + $0x3c0] sm:$0xff]
        %v4912 = vld [vmem:[%s584 + $0x3c8] sm:$0xff]
        %v4913 = vld [vmem:[%s584 + $0x3d0] sm:$0xff]
        %v4914 = vld [vmem:[%s584 + $0x3d8] sm:$0xff]
        %v4915 = vld [vmem:[%s584 + $0x3e0] sm:$0xff]
        %v4916 = vld [vmem:[%s584 + $0x3e8] sm:$0xff]
        %v4917 = vld [vmem:[%s584 + $0x3f0] sm:$0xff]
        %v4918 = vld [vmem:[%s584 + $0x3f8] sm:$0xff]
        %v4919 = vld [vmem:[#allocation3] sm:$0xff]
        %v4920 = vld [vmem:[#allocation3 + $0x8] sm:$0xff]
        %v4921 = vld [vmem:[#allocation3 + $0x10] sm:$0xff]
        %v4922 = vld [vmem:[#allocation3 + $0x18] sm:$0xff]
        %v4923 = vld [vmem:[#allocation3 + $0x20] sm:$0xff]
        %v4924 = vld [vmem:[#allocation3 + $0x28] sm:$0xff]
        %v4925 = vld [vmem:[#allocation3 + $0x30] sm:$0xff]
        %v4926 = vld [vmem:[#allocation3 + $0x38] sm:$0xff]
        %v4927 = vpack.c.bf16 %v4785, %v4785
        %v4928 = vpack.c.bf16 %v4786, %v4786
        %v5057 = vunpack.c.l.b16 %v4791
        %v5058 = vunpack.c.h.b16 %v4791
        %v5059 = vunpack.c.l.b16 %v4792
        %v5060 = vunpack.c.h.b16 %v4792
        %v5061 = vunpack.c.l.b16 %v4793
        %v5062 = vunpack.c.h.b16 %v4793
        %v5063 = vunpack.c.l.b16 %v4794
        %v5064 = vunpack.c.h.b16 %v4794
        %v5065 = vunpack.c.l.b16 %v4795
        %v5066 = vunpack.c.h.b16 %v4795
        %v5067 = vunpack.c.l.b16 %v4796
        %v5068 = vunpack.c.h.b16 %v4796
        %v5069 = vunpack.c.l.b16 %v4797
        %v5070 = vunpack.c.h.b16 %v4797
        %v5071 = vunpack.c.l.b16 %v4798
        %v5072 = vunpack.c.h.b16 %v4798
        %v5073 = vunpack.c.l.b16 %v4799
        %v5074 = vunpack.c.h.b16 %v4799
        %v5075 = vunpack.c.l.b16 %v4800
        %v5076 = vunpack.c.h.b16 %v4800
        %v5077 = vunpack.c.l.b16 %v4801
        %v5078 = vunpack.c.h.b16 %v4801
        %v5079 = vunpack.c.l.b16 %v4802
        %v5080 = vunpack.c.h.b16 %v4802
        %v5081 = vunpack.c.l.b16 %v4803
        %v5082 = vunpack.c.h.b16 %v4803
        %v5083 = vunpack.c.l.b16 %v4804
        %v5084 = vunpack.c.h.b16 %v4804
        %v5085 = vunpack.c.l.b16 %v4805
        %v5086 = vunpack.c.h.b16 %v4805
        %v5087 = vunpack.c.l.b16 %v4806
        %v5088 = vunpack.c.h.b16 %v4806
        %v5089 = vunpack.c.l.b16 %v4807
        %v5090 = vunpack.c.h.b16 %v4807
        %v5091 = vunpack.c.l.b16 %v4808
        %v5092 = vunpack.c.h.b16 %v4808
        %v5093 = vunpack.c.l.b16 %v4809
        %v5094 = vunpack.c.h.b16 %v4809
        %v5095 = vunpack.c.l.b16 %v4810
        %v5096 = vunpack.c.h.b16 %v4810
        %v5097 = vunpack.c.l.b16 %v4811
        %v5098 = vunpack.c.h.b16 %v4811
        %v5099 = vunpack.c.l.b16 %v4812
        %v5100 = vunpack.c.h.b16 %v4812
        %v5101 = vunpack.c.l.b16 %v4813
        %v5102 = vunpack.c.h.b16 %v4813
        %v5103 = vunpack.c.l.b16 %v4814
        %v5104 = vunpack.c.h.b16 %v4814
        %v5105 = vunpack.c.l.b16 %v4815
        %v5106 = vunpack.c.h.b16 %v4815
        %v5107 = vunpack.c.l.b16 %v4816
        %v5108 = vunpack.c.h.b16 %v4816
        %v5109 = vunpack.c.l.b16 %v4817
        %v5110 = vunpack.c.h.b16 %v4817
        %v5111 = vunpack.c.l.b16 %v4818
        %v5112 = vunpack.c.h.b16 %v4818
        %v5113 = vunpack.c.l.b16 %v4819
        %v5114 = vunpack.c.h.b16 %v4819
        %v5115 = vunpack.c.l.b16 %v4820
        %v5116 = vunpack.c.h.b16 %v4820
        %v5117 = vunpack.c.l.b16 %v4821
        %v5118 = vunpack.c.h.b16 %v4821
        %v5119 = vunpack.c.l.b16 %v4822
        %v5120 = vunpack.c.h.b16 %v4822
        %v5121 = vunpack.c.l.b16 %v4823
        %v5122 = vunpack.c.h.b16 %v4823
        %v5123 = vunpack.c.l.b16 %v4824
        %v5124 = vunpack.c.h.b16 %v4824
        %v5125 = vunpack.c.l.b16 %v4825
        %v5126 = vunpack.c.h.b16 %v4825
        %v5127 = vunpack.c.l.b16 %v4826
        %v5128 = vunpack.c.h.b16 %v4826
        %v5129 = vunpack.c.l.b16 %v4827
        %v5130 = vunpack.c.h.b16 %v4827
        %v5131 = vunpack.c.l.b16 %v4828
        %v5132 = vunpack.c.h.b16 %v4828
        %v5133 = vunpack.c.l.b16 %v4829
        %v5134 = vunpack.c.h.b16 %v4829
        %v5135 = vunpack.c.l.b16 %v4830
        %v5136 = vunpack.c.h.b16 %v4830
        %v5137 = vunpack.c.l.b16 %v4831
        %v5138 = vunpack.c.h.b16 %v4831
        %v5139 = vunpack.c.l.b16 %v4832
        %v5140 = vunpack.c.h.b16 %v4832
        %v5141 = vunpack.c.l.b16 %v4833
        %v5142 = vunpack.c.h.b16 %v4833
        %v5143 = vunpack.c.l.b16 %v4834
        %v5144 = vunpack.c.h.b16 %v4834
        %v5145 = vunpack.c.l.b16 %v4835
        %v5146 = vunpack.c.h.b16 %v4835
        %v5147 = vunpack.c.l.b16 %v4836
        %v5148 = vunpack.c.h.b16 %v4836
        %v5149 = vunpack.c.l.b16 %v4837
        %v5150 = vunpack.c.h.b16 %v4837
        %v5151 = vunpack.c.l.b16 %v4838
        %v5152 = vunpack.c.h.b16 %v4838
        %v5153 = vunpack.c.l.b16 %v4839
        %v5154 = vunpack.c.h.b16 %v4839
        %v5155 = vunpack.c.l.b16 %v4840
        %v5156 = vunpack.c.h.b16 %v4840
        %v5157 = vunpack.c.l.b16 %v4841
        %v5158 = vunpack.c.h.b16 %v4841
        %v5159 = vunpack.c.l.b16 %v4842
        %v5160 = vunpack.c.h.b16 %v4842
        %v5161 = vunpack.c.l.b16 %v4843
        %v5162 = vunpack.c.h.b16 %v4843
        %v5163 = vunpack.c.l.b16 %v4844
        %v5164 = vunpack.c.h.b16 %v4844
        %v5165 = vunpack.c.l.b16 %v4845
        %v5166 = vunpack.c.h.b16 %v4845
        %v5167 = vunpack.c.l.b16 %v4846
        %v5168 = vunpack.c.h.b16 %v4846
        %v5169 = vunpack.c.l.b16 %v4847
        %v5170 = vunpack.c.h.b16 %v4847
        %v5171 = vunpack.c.l.b16 %v4848
        %v5172 = vunpack.c.h.b16 %v4848
        %v5173 = vunpack.c.l.b16 %v4849
        %v5174 = vunpack.c.h.b16 %v4849
        %v5175 = vunpack.c.l.b16 %v4850
        %v5176 = vunpack.c.h.b16 %v4850
        %v5177 = vunpack.c.l.b16 %v4851
        %v5178 = vunpack.c.h.b16 %v4851
        %v5179 = vunpack.c.l.b16 %v4852
        %v5180 = vunpack.c.h.b16 %v4852
        %v5181 = vunpack.c.l.b16 %v4853
        %v5182 = vunpack.c.h.b16 %v4853
        %v5183 = vunpack.c.l.b16 %v4854
        %v5184 = vunpack.c.h.b16 %v4854
        %v5185 = vunpack.c.l.b16 %v4855
        %v5186 = vunpack.c.h.b16 %v4855
        %v5187 = vunpack.c.l.b16 %v4856
        %v5188 = vunpack.c.h.b16 %v4856
        %v5189 = vunpack.c.l.b16 %v4857
        %v5190 = vunpack.c.h.b16 %v4857
        %v5191 = vunpack.c.l.b16 %v4858
        %v5192 = vunpack.c.h.b16 %v4858
        %v5193 = vunpack.c.l.b16 %v4859
        %v5194 = vunpack.c.h.b16 %v4859
        %v5195 = vunpack.c.l.b16 %v4860
        %v5196 = vunpack.c.h.b16 %v4860
        %v5197 = vunpack.c.l.b16 %v4861
        %v5198 = vunpack.c.h.b16 %v4861
        %v5199 = vunpack.c.l.b16 %v4862
        %v5200 = vunpack.c.h.b16 %v4862
        %v5201 = vunpack.c.l.b16 %v4863
        %v5202 = vunpack.c.h.b16 %v4863
        %v5203 = vunpack.c.l.b16 %v4864
        %v5204 = vunpack.c.h.b16 %v4864
        %v5205 = vunpack.c.l.b16 %v4865
        %v5206 = vunpack.c.h.b16 %v4865
        %v5207 = vunpack.c.l.b16 %v4866
        %v5208 = vunpack.c.h.b16 %v4866
        %v5209 = vunpack.c.l.b16 %v4867
        %v5210 = vunpack.c.h.b16 %v4867
        %v5211 = vunpack.c.l.b16 %v4868
        %v5212 = vunpack.c.h.b16 %v4868
        %v5213 = vunpack.c.l.b16 %v4869
        %v5214 = vunpack.c.h.b16 %v4869
        %v5215 = vunpack.c.l.b16 %v4870
        %v5216 = vunpack.c.h.b16 %v4870
        %v5217 = vunpack.c.l.b16 %v4871
        %v5218 = vunpack.c.h.b16 %v4871
        %v5219 = vunpack.c.l.b16 %v4872
        %v5220 = vunpack.c.h.b16 %v4872
        %v5221 = vunpack.c.l.b16 %v4873
        %v5222 = vunpack.c.h.b16 %v4873
        %v5223 = vunpack.c.l.b16 %v4874
        %v5224 = vunpack.c.h.b16 %v4874
        %v5225 = vunpack.c.l.b16 %v4875
        %v5226 = vunpack.c.h.b16 %v4875
        %v5227 = vunpack.c.l.b16 %v4876
        %v5228 = vunpack.c.h.b16 %v4876
        %v5229 = vunpack.c.l.b16 %v4877
        %v5230 = vunpack.c.h.b16 %v4877
        %v5231 = vunpack.c.l.b16 %v4878
        %v5232 = vunpack.c.h.b16 %v4878
        %v5233 = vunpack.c.l.b16 %v4879
        %v5234 = vunpack.c.h.b16 %v4879
        %v5235 = vunpack.c.l.b16 %v4880
        %v5236 = vunpack.c.h.b16 %v4880
        %v5237 = vunpack.c.l.b16 %v4881
        %v5238 = vunpack.c.h.b16 %v4881
        %v5239 = vunpack.c.l.b16 %v4882
        %v5240 = vunpack.c.h.b16 %v4882
        %v5241 = vunpack.c.l.b16 %v4883
        %v5242 = vunpack.c.h.b16 %v4883
        %v5243 = vunpack.c.l.b16 %v4884
        %v5244 = vunpack.c.h.b16 %v4884
        %v5245 = vunpack.c.l.b16 %v4885
        %v5246 = vunpack.c.h.b16 %v4885
        %v5247 = vunpack.c.l.b16 %v4886
        %v5248 = vunpack.c.h.b16 %v4886
        %v5249 = vunpack.c.l.b16 %v4887
        %v5250 = vunpack.c.h.b16 %v4887
        %v5251 = vunpack.c.l.b16 %v4888
        %v5252 = vunpack.c.h.b16 %v4888
        %v5253 = vunpack.c.l.b16 %v4889
        %v5254 = vunpack.c.h.b16 %v4889
        %v5255 = vunpack.c.l.b16 %v4890
        %v5256 = vunpack.c.h.b16 %v4890
        %v5257 = vunpack.c.l.b16 %v4891
        %v5258 = vunpack.c.h.b16 %v4891
        %v5259 = vunpack.c.l.b16 %v4892
        %v5260 = vunpack.c.h.b16 %v4892
        %v5261 = vunpack.c.l.b16 %v4893
        %v5262 = vunpack.c.h.b16 %v4893
        %v5263 = vunpack.c.l.b16 %v4894
        %v5264 = vunpack.c.h.b16 %v4894
        %v5265 = vunpack.c.l.b16 %v4895
        %v5266 = vunpack.c.h.b16 %v4895
        %v5267 = vunpack.c.l.b16 %v4896
        %v5268 = vunpack.c.h.b16 %v4896
        %v5269 = vunpack.c.l.b16 %v4897
        %v5270 = vunpack.c.h.b16 %v4897
        %v5271 = vunpack.c.l.b16 %v4898
        %v5272 = vunpack.c.h.b16 %v4898
        %v5273 = vunpack.c.l.b16 %v4899
        %v5274 = vunpack.c.h.b16 %v4899
        %v5275 = vunpack.c.l.b16 %v4900
        %v5276 = vunpack.c.h.b16 %v4900
        %v5277 = vunpack.c.l.b16 %v4901
        %v5278 = vunpack.c.h.b16 %v4901
        %v5279 = vunpack.c.l.b16 %v4902
        %v5280 = vunpack.c.h.b16 %v4902
        %v5281 = vunpack.c.l.b16 %v4903
        %v5282 = vunpack.c.h.b16 %v4903
        %v5283 = vunpack.c.l.b16 %v4904
        %v5284 = vunpack.c.h.b16 %v4904
        %v5285 = vunpack.c.l.b16 %v4905
        %v5286 = vunpack.c.h.b16 %v4905
        %v5287 = vunpack.c.l.b16 %v4906
        %v5288 = vunpack.c.h.b16 %v4906
        %v5289 = vunpack.c.l.b16 %v4907
        %v5290 = vunpack.c.h.b16 %v4907
        %v5291 = vunpack.c.l.b16 %v4908
        %v5292 = vunpack.c.h.b16 %v4908
        %v5293 = vunpack.c.l.b16 %v4909
        %v5294 = vunpack.c.h.b16 %v4909
        %v5295 = vunpack.c.l.b16 %v4910
        %v5296 = vunpack.c.h.b16 %v4910
        %v5297 = vunpack.c.l.b16 %v4911
        %v5298 = vunpack.c.h.b16 %v4911
        %v5299 = vunpack.c.l.b16 %v4912
        %v5300 = vunpack.c.h.b16 %v4912
        %v5301 = vunpack.c.l.b16 %v4913
        %v5302 = vunpack.c.h.b16 %v4913
        %v5303 = vunpack.c.l.b16 %v4914
        %v5304 = vunpack.c.h.b16 %v4914
        %v5305 = vunpack.c.l.b16 %v4915
        %v5306 = vunpack.c.h.b16 %v4915
        %v5307 = vunpack.c.l.b16 %v4916
        %v5308 = vunpack.c.h.b16 %v4916
        %v5309 = vunpack.c.l.b16 %v4917
        %v5310 = vunpack.c.h.b16 %v4917
        %v5311 = vunpack.c.l.b16 %v4918
        %v5312 = vunpack.c.h.b16 %v4918
        %v5313 = vpack.c.b16 %v5065, %v5057
        %v5314 = vpack.c.b16 %v5066, %v5058
        %v5315 = vpack.c.b16 %v5067, %v5059
        %v5316 = vpack.c.b16 %v5068, %v5060
        %v5317 = vpack.c.b16 %v5069, %v5061
        %v5318 = vpack.c.b16 %v5070, %v5062
        %v5319 = vpack.c.b16 %v5071, %v5063
        %v5320 = vpack.c.b16 %v5072, %v5064
        %v5321 = vpack.c.b16 %v5081, %v5073
        %v5322 = vpack.c.b16 %v5082, %v5074
        %v5323 = vpack.c.b16 %v5083, %v5075
        %v5324 = vpack.c.b16 %v5084, %v5076
        %v5325 = vpack.c.b16 %v5085, %v5077
        %v5326 = vpack.c.b16 %v5086, %v5078
        %v5327 = vpack.c.b16 %v5087, %v5079
        %v5328 = vpack.c.b16 %v5088, %v5080
        %v5329 = vpack.c.b16 %v5097, %v5089
        %v5330 = vpack.c.b16 %v5098, %v5090
        %v5331 = vpack.c.b16 %v5099, %v5091
        %v5332 = vpack.c.b16 %v5100, %v5092
        %v5333 = vpack.c.b16 %v5101, %v5093
        %v5334 = vpack.c.b16 %v5102, %v5094
        %v5335 = vpack.c.b16 %v5103, %v5095
        %v5336 = vpack.c.b16 %v5104, %v5096
        %v5337 = vpack.c.b16 %v5113, %v5105
        %v5338 = vpack.c.b16 %v5114, %v5106
        %v5339 = vpack.c.b16 %v5115, %v5107
        %v5340 = vpack.c.b16 %v5116, %v5108
        %v5341 = vpack.c.b16 %v5117, %v5109
        %v5342 = vpack.c.b16 %v5118, %v5110
        %v5343 = vpack.c.b16 %v5119, %v5111
        %v5344 = vpack.c.b16 %v5120, %v5112
        %v5345 = vpack.c.b16 %v5129, %v5121
        %v5346 = vpack.c.b16 %v5130, %v5122
        %v5347 = vpack.c.b16 %v5131, %v5123
        %v5348 = vpack.c.b16 %v5132, %v5124
        %v5349 = vpack.c.b16 %v5133, %v5125
        %v5350 = vpack.c.b16 %v5134, %v5126
        %v5351 = vpack.c.b16 %v5135, %v5127
        %v5352 = vpack.c.b16 %v5136, %v5128
        %v5353 = vpack.c.b16 %v5145, %v5137
        %v5354 = vpack.c.b16 %v5146, %v5138
        %v5355 = vpack.c.b16 %v5147, %v5139
        %v5356 = vpack.c.b16 %v5148, %v5140
        %v5357 = vpack.c.b16 %v5149, %v5141
        %v5358 = vpack.c.b16 %v5150, %v5142
        %v5359 = vpack.c.b16 %v5151, %v5143
        %v5360 = vpack.c.b16 %v5152, %v5144
        %v5361 = vpack.c.b16 %v5161, %v5153
        %v5362 = vpack.c.b16 %v5162, %v5154
        %v5363 = vpack.c.b16 %v5163, %v5155
        %v5364 = vpack.c.b16 %v5164, %v5156
        %v5365 = vpack.c.b16 %v5165, %v5157
        %v5366 = vpack.c.b16 %v5166, %v5158
        %v5367 = vpack.c.b16 %v5167, %v5159
        %v5368 = vpack.c.b16 %v5168, %v5160
        %v5369 = vpack.c.b16 %v5177, %v5169
        %v5370 = vpack.c.b16 %v5178, %v5170
        %v5371 = vpack.c.b16 %v5179, %v5171
        %v5372 = vpack.c.b16 %v5180, %v5172
        %v5373 = vpack.c.b16 %v5181, %v5173
        %v5374 = vpack.c.b16 %v5182, %v5174
        %v5375 = vpack.c.b16 %v5183, %v5175
        %v5376 = vpack.c.b16 %v5184, %v5176
        %v5377 = vpack.c.b16 %v5193, %v5185
        %v5378 = vpack.c.b16 %v5194, %v5186
        %v5379 = vpack.c.b16 %v5195, %v5187
        %v5380 = vpack.c.b16 %v5196, %v5188
        %v5381 = vpack.c.b16 %v5197, %v5189
        %v5382 = vpack.c.b16 %v5198, %v5190
        %v5383 = vpack.c.b16 %v5199, %v5191
        %v5384 = vpack.c.b16 %v5200, %v5192
        %v5385 = vpack.c.b16 %v5209, %v5201
        %v5386 = vpack.c.b16 %v5210, %v5202
        %v5387 = vpack.c.b16 %v5211, %v5203
        %v5388 = vpack.c.b16 %v5212, %v5204
        %v5389 = vpack.c.b16 %v5213, %v5205
        %v5390 = vpack.c.b16 %v5214, %v5206
        %v5391 = vpack.c.b16 %v5215, %v5207
        %v5392 = vpack.c.b16 %v5216, %v5208
        %v5393 = vpack.c.b16 %v5225, %v5217
        %v5394 = vpack.c.b16 %v5226, %v5218
        %v5395 = vpack.c.b16 %v5227, %v5219
        %v5396 = vpack.c.b16 %v5228, %v5220
        %v5397 = vpack.c.b16 %v5229, %v5221
        %v5398 = vpack.c.b16 %v5230, %v5222
        %v5399 = vpack.c.b16 %v5231, %v5223
        %v5400 = vpack.c.b16 %v5232, %v5224
        %v5401 = vpack.c.b16 %v5241, %v5233
        %v5402 = vpack.c.b16 %v5242, %v5234
        %v5403 = vpack.c.b16 %v5243, %v5235
        %v5404 = vpack.c.b16 %v5244, %v5236
        %v5405 = vpack.c.b16 %v5245, %v5237
        %v5406 = vpack.c.b16 %v5246, %v5238
        %v5407 = vpack.c.b16 %v5247, %v5239
        %v5408 = vpack.c.b16 %v5248, %v5240
        %v5409 = vpack.c.b16 %v5257, %v5249
        %v5410 = vpack.c.b16 %v5258, %v5250
        %v5411 = vpack.c.b16 %v5259, %v5251
        %v5412 = vpack.c.b16 %v5260, %v5252
        %v5413 = vpack.c.b16 %v5261, %v5253
        %v5414 = vpack.c.b16 %v5262, %v5254
        %v5415 = vpack.c.b16 %v5263, %v5255
        %v5416 = vpack.c.b16 %v5264, %v5256
        %v5417 = vpack.c.b16 %v5273, %v5265
        %v5418 = vpack.c.b16 %v5274, %v5266
        %v5419 = vpack.c.b16 %v5275, %v5267
        %v5420 = vpack.c.b16 %v5276, %v5268
        %v5421 = vpack.c.b16 %v5277, %v5269
        %v5422 = vpack.c.b16 %v5278, %v5270
        %v5423 = vpack.c.b16 %v5279, %v5271
        %v5424 = vpack.c.b16 %v5280, %v5272
        %v5425 = vpack.c.b16 %v5289, %v5281
        %v5426 = vpack.c.b16 %v5290, %v5282
        %v5427 = vpack.c.b16 %v5291, %v5283
        %v5428 = vpack.c.b16 %v5292, %v5284
        %v5429 = vpack.c.b16 %v5293, %v5285
        %v5430 = vpack.c.b16 %v5294, %v5286
        %v5431 = vpack.c.b16 %v5295, %v5287
        %v5432 = vpack.c.b16 %v5296, %v5288
        %v5433 = vpack.c.b16 %v5305, %v5297
        %v5434 = vpack.c.b16 %v5306, %v5298
        %v5435 = vpack.c.b16 %v5307, %v5299
        %v5436 = vpack.c.b16 %v5308, %v5300
        %v5437 = vpack.c.b16 %v5309, %v5301
        %v5438 = vpack.c.b16 %v5310, %v5302
        %v5439 = vpack.c.b16 %v5311, %v5303
        %v5440 = vpack.c.b16 %v5312, %v5304
        %5569 = vmatprep.subr.bf16.mxu0 %v5314
        %5570 = vmatpush1.bf16.msra.mxu0 %v5313
        %5571 = vmatprep.subr.bf16.mxu0 %v5322
        %5572 = vmatpush1.bf16.msra.mxu0 %v5321
        %5573 = vmatprep.subr.bf16.mxu0 %v5330
        %5574 = vmatpush1.bf16.msra.mxu0 %v5329
        %5575 = vmatprep.subr.bf16.mxu0 %v5338
        %5576 = vmatpush1.bf16.msra.mxu0 %v5337
        %5577 = vmatprep.subr.bf16.mxu0 %v5346
        %5578 = vmatpush1.bf16.msra.mxu0 %v5345
        %5579 = vmatprep.subr.bf16.mxu0 %v5354
        %5580 = vmatpush1.bf16.msra.mxu0 %v5353
        %5581 = vmatprep.subr.bf16.mxu0 %v5362
        %5582 = vmatpush1.bf16.msra.mxu0 %v5361
        %5583 = vmatprep.subr.bf16.mxu0 %v5370
        %5584 = vmatpush1.bf16.msra.mxu0 %v5369
        %5585 = vmatprep.subr.bf16.mxu0 %v5378
        %5586 = vmatpush1.bf16.msra.mxu0 %v5377
        %5587 = vmatprep.subr.bf16.mxu0 %v5386
        %5588 = vmatpush1.bf16.msra.mxu0 %v5385
        %5589 = vmatprep.subr.bf16.mxu0 %v5394
        %5590 = vmatpush1.bf16.msra.mxu0 %v5393
        %5591 = vmatprep.subr.bf16.mxu0 %v5402
        %5592 = vmatpush1.bf16.msra.mxu0 %v5401
        %5593 = vmatprep.subr.bf16.mxu0 %v5410
        %5594 = vmatpush1.bf16.msra.mxu0 %v5409
        %5595 = vmatprep.subr.bf16.mxu0 %v5418
        %5596 = vmatpush1.bf16.msra.mxu0 %v5417
        %5597 = vmatprep.subr.bf16.mxu0 %v5426
        %5598 = vmatpush1.bf16.msra.mxu0 %v5425
        %5599 = vmatprep.subr.bf16.mxu0 %v5434
        %5600 = vmatpush1.bf16.msra.mxu0 %v5433
        %5601 = vmatprep.mubr.bf16.mxu0 %v4928
        %5602 = vmatmul.mubr.bf16.gmra.mrb[0].mxu0 %v4927
        %v5603 = vpop.f32.mrb[0].mxu0
        %v5604 = vadd.f32 0.0, %v5603
        %v5605 = vpop.f32.mrb[0].mxu0
        %v5606 = vadd.f32 0.0, %v5605
        %v5607 = vpop.f32.mrb[0].mxu0
        %v5608 = vpop.f32.mrb[0].mxu0
        %5609 = vdwg.mxu0
        %5610 = vmatprep.subr.bf16.mxu0 %v5316
        %5611 = vmatpush1.bf16.msra.mxu0 %v5315
        %5612 = vmatprep.subr.bf16.mxu0 %v5324
        %5613 = vmatpush1.bf16.msra.mxu0 %v5323
        %5614 = vmatprep.subr.bf16.mxu0 %v5332
        %5615 = vmatpush1.bf16.msra.mxu0 %v5331
        %5616 = vmatprep.subr.bf16.mxu0 %v5340
        %5617 = vmatpush1.bf16.msra.mxu0 %v5339
        %5618 = vmatprep.subr.bf16.mxu0 %v5348
        %5619 = vmatpush1.bf16.msra.mxu0 %v5347
        %5620 = vmatprep.subr.bf16.mxu0 %v5356
        %5621 = vmatpush1.bf16.msra.mxu0 %v5355
        %5622 = vmatprep.subr.bf16.mxu0 %v5364
        %5623 = vmatpush1.bf16.msra.mxu0 %v5363
        %5624 = vmatprep.subr.bf16.mxu0 %v5372
        %5625 = vmatpush1.bf16.msra.mxu0 %v5371
        %5626 = vmatprep.subr.bf16.mxu0 %v5380
        %5627 = vmatpush1.bf16.msra.mxu0 %v5379
        %5628 = vmatprep.subr.bf16.mxu0 %v5388
        %5629 = vmatpush1.bf16.msra.mxu0 %v5387
        %5630 = vmatprep.subr.bf16.mxu0 %v5396
        %5631 = vmatpush1.bf16.msra.mxu0 %v5395
        %5632 = vmatprep.subr.bf16.mxu0 %v5404
        %5633 = vmatpush1.bf16.msra.mxu0 %v5403
        %5634 = vmatprep.subr.bf16.mxu0 %v5412
        %5635 = vmatpush1.bf16.msra.mxu0 %v5411
        %5636 = vmatprep.subr.bf16.mxu0 %v5420
        %5637 = vmatpush1.bf16.msra.mxu0 %v5419
        %5638 = vmatprep.subr.bf16.mxu0 %v5428
        %5639 = vmatpush1.bf16.msra.mxu0 %v5427
        %5640 = vmatprep.subr.bf16.mxu0 %v5436
        %5641 = vmatpush1.bf16.msra.mxu0 %v5435
        %5642 = vmatprep.mubr.bf16.mxu0 %v4928
        %5643 = vmatmul.mubr.bf16.gmra.mrb[0].mxu0 %v4927
        %v5644 = vpop.f32.mrb[0].mxu0
        %v5645 = vadd.f32 0.0, %v5644
        %v5646 = vpop.f32.mrb[0].mxu0
        %v5647 = vadd.f32 0.0, %v5646
        %v5648 = vpop.f32.mrb[0].mxu0
        %v5649 = vpop.f32.mrb[0].mxu0
        %5650 = vdwg.mxu0
        %5651 = vmatprep.subr.bf16.mxu0 %v5318
        %5652 = vmatpush1.bf16.msra.mxu0 %v5317
        %5653 = vmatprep.subr.bf16.mxu0 %v5326
        %5654 = vmatpush1.bf16.msra.mxu0 %v5325
        %5655 = vmatprep.subr.bf16.mxu0 %v5334
        %5656 = vmatpush1.bf16.msra.mxu0 %v5333
        %5657 = vmatprep.subr.bf16.mxu0 %v5342
        %5658 = vmatpush1.bf16.msra.mxu0 %v5341
        %5659 = vmatprep.subr.bf16.mxu0 %v5350
        %5660 = vmatpush1.bf16.msra.mxu0 %v5349
        %5661 = vmatprep.subr.bf16.mxu0 %v5358
        %5662 = vmatpush1.bf16.msra.mxu0 %v5357
        %5663 = vmatprep.subr.bf16.mxu0 %v5366
        %5664 = vmatpush1.bf16.msra.mxu0 %v5365
        %5665 = vmatprep.subr.bf16.mxu0 %v5374
        %5666 = vmatpush1.bf16.msra.mxu0 %v5373
        %5667 = vmatprep.subr.bf16.mxu0 %v5382
        %5668 = vmatpush1.bf16.msra.mxu0 %v5381
        %5669 = vmatprep.subr.bf16.mxu0 %v5390
        %5670 = vmatpush1.bf16.msra.mxu0 %v5389
        %5671 = vmatprep.subr.bf16.mxu0 %v5398
        %5672 = vmatpush1.bf16.msra.mxu0 %v5397
        %5673 = vmatprep.subr.bf16.mxu0 %v5406
        %5674 = vmatpush1.bf16.msra.mxu0 %v5405
        %5675 = vmatprep.subr.bf16.mxu0 %v5414
        %5676 = vmatpush1.bf16.msra.mxu0 %v5413
        %5677 = vmatprep.subr.bf16.mxu0 %v5422
        %5678 = vmatpush1.bf16.msra.mxu0 %v5421
        %5679 = vmatprep.subr.bf16.mxu0 %v5430
        %5680 = vmatpush1.bf16.msra.mxu0 %v5429
        %5681 = vmatprep.subr.bf16.mxu0 %v5438
        %5682 = vmatpush1.bf16.msra.mxu0 %v5437
        %5683 = vmatprep.mubr.bf16.mxu0 %v4928
        %5684 = vmatmul.mubr.bf16.gmra.mrb[0].mxu0 %v4927
        %v5685 = vpop.f32.mrb[0].mxu0
        %v5686 = vadd.f32 0.0, %v5685
        %v5687 = vpop.f32.mrb[0].mxu0
        %v5688 = vadd.f32 0.0, %v5687
        %v5689 = vpop.f32.mrb[0].mxu0
        %v5690 = vpop.f32.mrb[0].mxu0
        %5691 = vdwg.mxu0
        %5692 = vmatprep.subr.bf16.mxu0 %v5320
        %5693 = vmatpush1.bf16.msra.mxu0 %v5319
        %5694 = vmatprep.subr.bf16.mxu0 %v5328
        %5695 = vmatpush1.bf16.msra.mxu0 %v5327
        %5696 = vmatprep.subr.bf16.mxu0 %v5336
        %5697 = vmatpush1.bf16.msra.mxu0 %v5335
        %5698 = vmatprep.subr.bf16.mxu0 %v5344
        %5699 = vmatpush1.bf16.msra.mxu0 %v5343
        %5700 = vmatprep.subr.bf16.mxu0 %v5352
        %5701 = vmatpush1.bf16.msra.mxu0 %v5351
        %5702 = vmatprep.subr.bf16.mxu0 %v5360
        %5703 = vmatpush1.bf16.msra.mxu0 %v5359
        %5704 = vmatprep.subr.bf16.mxu0 %v5368
        %5705 = vmatpush1.bf16.msra.mxu0 %v5367
        %5706 = vmatprep.subr.bf16.mxu0 %v5376
        %5707 = vmatpush1.bf16.msra.mxu0 %v5375
        %5708 = vmatprep.subr.bf16.mxu0 %v5384
        %5709 = vmatpush1.bf16.msra.mxu0 %v5383
        %5710 = vmatprep.subr.bf16.mxu0 %v5392
        %5711 = vmatpush1.bf16.msra.mxu0 %v5391
        %5712 = vmatprep.subr.bf16.mxu0 %v5400
        %5713 = vmatpush1.bf16.msra.mxu0 %v5399
        %5714 = vmatprep.subr.bf16.mxu0 %v5408
        %5715 = vmatpush1.bf16.msra.mxu0 %v5407
        %5716 = vmatprep.subr.bf16.mxu0 %v5416
        %5717 = vmatpush1.bf16.msra.mxu0 %v5415
        %5718 = vmatprep.subr.bf16.mxu0 %v5424
        %5719 = vmatpush1.bf16.msra.mxu0 %v5423
        %5720 = vmatprep.subr.bf16.mxu0 %v5432
        %5721 = vmatpush1.bf16.msra.mxu0 %v5431
        %5722 = vmatprep.subr.bf16.mxu0 %v5440
        %5723 = vmatpush1.bf16.msra.mxu0 %v5439
        %5724 = vmatprep.mubr.bf16.mxu0 %v4928
        %5725 = vmatmul.mubr.bf16.gmra.mrb[0].mxu0 %v4927
        %v5726 = vpop.f32.mrb[0].mxu0
        %v5727 = vadd.f32 0.0, %v5726
        %v5728 = vpop.f32.mrb[0].mxu0
        %v5729 = vadd.f32 0.0, %v5728
        %v5730 = vpop.f32.mrb[0].mxu0
        %v5731 = vpop.f32.mrb[0].mxu0
        %5732 = vdwg.mxu0
        %v5733 = vadd.f32 %v4919, %v5604
        %v5734 = vadd.f32 %v4920, %v5606
        %v5735 = vadd.f32 %v4921, %v5645
        %v5736 = vadd.f32 %v4922, %v5647
        %v5737 = vadd.f32 %v4923, %v5686
        %v5738 = vadd.f32 %v4924, %v5688
        %v5739 = vadd.f32 %v4925, %v5727
        %v5740 = vadd.f32 %v4926, %v5729
        %v5741 = vxor.u32 %v5733, 2147483648
        %v5742 = vxor.u32 %v5734, 2147483648
        %v5743 = vmul.f32 %v5741, 1.442695
        %v5744 = vpow.pop %v5743
        %v5745 = vmul.f32 %v5742, 1.442695
        %v5746 = vpow.pop %v5745
        %v5747 = vadd.f32 %v5744, 1.0
        %v5748 = vadd.f32 %v5746, 1.0
        %v5749 = vrcp.pop %v5747
        %v5750 = vmul.f32 1.0, %v5749
        %v5751 = vrcp.pop %v5748
        %v5752 = vmul.f32 1.0, %v5751
        %v5753 = vxor.u32 %v5735, 2147483648
        %v5754 = vxor.u32 %v5736, 2147483648
        %v5755 = vmul.f32 %v5753, 1.442695
        %v5756 = vpow.pop %v5755
        %v5757 = vmul.f32 %v5754, 1.442695
        %v5758 = vpow.pop %v5757
        %v5759 = vadd.f32 %v5756, 1.0
        %v5760 = vadd.f32 %v5758, 1.0
        %v5761 = vrcp.pop %v5759
        %v5762 = vmul.f32 1.0, %v5761
        %v5763 = vrcp.pop %v5760
        %v5764 = vmul.f32 1.0, %v5763
        %v5765 = vtanh.pop %v5737
        %v5766 = vtanh.pop %v5738
        %v5767 = vxor.u32 %v5739, 2147483648
        %v5768 = vxor.u32 %v5740, 2147483648
        %v5769 = vmul.f32 %v5767, 1.442695
        %v5770 = vpow.pop %v5769
        %v5771 = vmul.f32 %v5768, 1.442695
        %v5772 = vpow.pop %v5771
        %v5773 = vadd.f32 %v5770, 1.0
        %v5774 = vadd.f32 %v5772, 1.0
        %v5775 = vrcp.pop %v5773
        %v5776 = vmul.f32 1.0, %v5775
        %v5777 = vrcp.pop %v5774
        %v5778 = vmul.f32 1.0, %v5777
        %v5779 = vmul.f32 %v5762, %v4789
        %v5780 = vmul.f32 %v5764, %v4790
        %v5781 = vmul.f32 %v5750, %v5765
        %v5782 = vmul.f32 %v5752, %v5766
        %v5783 = vadd.f32 %v5779, %v5781
        %v5784 = vadd.f32 %v5780, %v5782
        %v5785 = vtanh.pop %v5783
        %v5786 = vtanh.pop %v5784
        %v5787 = vmul.f32 %v5776, %v5785
        %v5788 = vmul.f32 %v5778, %v5786
        %5789 = vst [vmem:[#allocation2] sm:$0xff] %v5787
        %5790 = vst [vmem:[#allocation2 + $0x8] sm:$0xff] %v5788
        %v5791 = vld [vmem:[#allocation3 + $0x40] sm:$0xff]
        %v5792 = vld [vmem:[#allocation3 + $0x48] sm:$0xff]
        %v5793 = vld [vmem:[#allocation3 + $0x50] sm:$0xff]
        %v5794 = vld [vmem:[#allocation3 + $0x58] sm:$0xff]
        %v5795 = vld [vmem:[#allocation3 + $0x60] sm:$0xff]
        %v5796 = vld [vmem:[#allocation3 + $0x68] sm:$0xff]
        %v5797 = vld [vmem:[#allocation3 + $0x70] sm:$0xff]
        %v5798 = vld [vmem:[#allocation3 + $0x78] sm:$0xff]
        %v5799 = vpack.c.bf16 %v5787, %v5787
        %v5800 = vpack.c.bf16 %v5788, %v5788
        %5801 = vmatprep.subr.bf16.mxu0 %v5314
        %5802 = vmatpush1.bf16.msra.mxu0 %v5313
        %5803 = vmatprep.subr.bf16.mxu0 %v5322
        %5804 = vmatpush1.bf16.msra.mxu0 %v5321
        %5805 = vmatprep.subr.bf16.mxu0 %v5330
        %5806 = vmatpush1.bf16.msra.mxu0 %v5329
        %5807 = vmatprep.subr.bf16.mxu0 %v5338
        %5808 = vmatpush1.bf16.msra.mxu0 %v5337
        %5809 = vmatprep.subr.bf16.mxu0 %v5346
        %5810 = vmatpush1.bf16.msra.mxu0 %v5345
        %5811 = vmatprep.subr.bf16.mxu0 %v5354
        %5812 = vmatpush1.bf16.msra.mxu0 %v5353
        %5813 = vmatprep.subr.bf16.mxu0 %v5362
        %5814 = vmatpush1.bf16.msra.mxu0 %v5361
        %5815 = vmatprep.subr.bf16.mxu0 %v5370
        %5816 = vmatpush1.bf16.msra.mxu0 %v5369
        %5817 = vmatprep.subr.bf16.mxu0 %v5378
        %5818 = vmatpush1.bf16.msra.mxu0 %v5377
        %5819 = vmatprep.subr.bf16.mxu0 %v5386
        %5820 = vmatpush1.bf16.msra.mxu0 %v5385
        %5821 = vmatprep.subr.bf16.mxu0 %v5394
        %5822 = vmatpush1.bf16.msra.mxu0 %v5393
        %5823 = vmatprep.subr.bf16.mxu0 %v5402
        %5824 = vmatpush1.bf16.msra.mxu0 %v5401
        %5825 = vmatprep.subr.bf16.mxu0 %v5410
        %5826 = vmatpush1.bf16.msra.mxu0 %v5409
        %5827 = vmatprep.subr.bf16.mxu0 %v5418
        %5828 = vmatpush1.bf16.msra.mxu0 %v5417
        %5829 = vmatprep.subr.bf16.mxu0 %v5426
        %5830 = vmatpush1.bf16.msra.mxu0 %v5425
        %5831 = vmatprep.subr.bf16.mxu0 %v5434
        %5832 = vmatpush1.bf16.msra.mxu0 %v5433
        %5833 = vmatprep.mubr.bf16.mxu0 %v5800
        %5834 = vmatmul.mubr.bf16.gmra.mrb[0].mxu0 %v5799
        %v5835 = vpop.f32.mrb[0].mxu0
        %v5836 = vadd.f32 0.0, %v5835
        %v5837 = vpop.f32.mrb[0].mxu0
        %v5838 = vadd.f32 0.0, %v5837
        %v5839 = vpop.f32.mrb[0].mxu0
        %v5840 = vpop.f32.mrb[0].mxu0
        %5841 = vdwg.mxu0
        %5842 = vmatprep.subr.bf16.mxu0 %v5316
        %5843 = vmatpush1.bf16.msra.mxu0 %v5315
        %5844 = vmatprep.subr.bf16.mxu0 %v5324
        %5845 = vmatpush1.bf16.msra.mxu0 %v5323
        %5846 = vmatprep.subr.bf16.mxu0 %v5332
        %5847 = vmatpush1.bf16.msra.mxu0 %v5331
        %5848 = vmatprep.subr.bf16.mxu0 %v5340
        %5849 = vmatpush1.bf16.msra.mxu0 %v5339
        %5850 = vmatprep.subr.bf16.mxu0 %v5348
        %5851 = vmatpush1.bf16.msra.mxu0 %v5347
        %5852 = vmatprep.subr.bf16.mxu0 %v5356
        %5853 = vmatpush1.bf16.msra.mxu0 %v5355
        %5854 = vmatprep.subr.bf16.mxu0 %v5364
        %5855 = vmatpush1.bf16.msra.mxu0 %v5363
        %5856 = vmatprep.subr.bf16.mxu0 %v5372
        %5857 = vmatpush1.bf16.msra.mxu0 %v5371
        %5858 = vmatprep.subr.bf16.mxu0 %v5380
        %5859 = vmatpush1.bf16.msra.mxu0 %v5379
        %5860 = vmatprep.subr.bf16.mxu0 %v5388
        %5861 = vmatpush1.bf16.msra.mxu0 %v5387
        %5862 = vmatprep.subr.bf16.mxu0 %v5396
        %5863 = vmatpush1.bf16.msra.mxu0 %v5395
        %5864 = vmatprep.subr.bf16.mxu0 %v5404
        %5865 = vmatpush1.bf16.msra.mxu0 %v5403
        %5866 = vmatprep.subr.bf16.mxu0 %v5412
        %5867 = vmatpush1.bf16.msra.mxu0 %v5411
        %5868 = vmatprep.subr.bf16.mxu0 %v5420
        %5869 = vmatpush1.bf16.msra.mxu0 %v5419
        %5870 = vmatprep.subr.bf16.mxu0 %v5428
        %5871 = vmatpush1.bf16.msra.mxu0 %v5427
        %5872 = vmatprep.subr.bf16.mxu0 %v5436
        %5873 = vmatpush1.bf16.msra.mxu0 %v5435
        %5874 = vmatprep.mubr.bf16.mxu0 %v5800
        %5875 = vmatmul.mubr.bf16.gmra.mrb[0].mxu0 %v5799
        %v5876 = vpop.f32.mrb[0].mxu0
        %v5877 = vadd.f32 0.0, %v5876
        %v5878 = vpop.f32.mrb[0].mxu0
        %v5879 = vadd.f32 0.0, %v5878
        %v5880 = vpop.f32.mrb[0].mxu0
        %v5881 = vpop.f32.mrb[0].mxu0
        %5882 = vdwg.mxu0
        %5883 = vmatprep.subr.bf16.mxu0 %v5318
        %5884 = vmatpush1.bf16.msra.mxu0 %v5317
        %5885 = vmatprep.subr.bf16.mxu0 %v5326
        %5886 = vmatpush1.bf16.msra.mxu0 %v5325
        %5887 = vmatprep.subr.bf16.mxu0 %v5334
        %5888 = vmatpush1.bf16.msra.mxu0 %v5333
        %5889 = vmatprep.subr.bf16.mxu0 %v5342
        %5890 = vmatpush1.bf16.msra.mxu0 %v5341
        %5891 = vmatprep.subr.bf16.mxu0 %v5350
        %5892 = vmatpush1.bf16.msra.mxu0 %v5349
        %5893 = vmatprep.subr.bf16.mxu0 %v5358
        %5894 = vmatpush1.bf16.msra.mxu0 %v5357
        %5895 = vmatprep.subr.bf16.mxu0 %v5366
        %5896 = vmatpush1.bf16.msra.mxu0 %v5365
        %5897 = vmatprep.subr.bf16.mxu0 %v5374
        %5898 = vmatpush1.bf16.msra.mxu0 %v5373
        %5899 = vmatprep.subr.bf16.mxu0 %v5382
        %5900 = vmatpush1.bf16.msra.mxu0 %v5381
        %5901 = vmatprep.subr.bf16.mxu0 %v5390
        %5902 = vmatpush1.bf16.msra.mxu0 %v5389
        %5903 = vmatprep.subr.bf16.mxu0 %v5398
        %5904 = vmatpush1.bf16.msra.mxu0 %v5397
        %5905 = vmatprep.subr.bf16.mxu0 %v5406
        %5906 = vmatpush1.bf16.msra.mxu0 %v5405
        %5907 = vmatprep.subr.bf16.mxu0 %v5414
        %5908 = vmatpush1.bf16.msra.mxu0 %v5413
        %5909 = vmatprep.subr.bf16.mxu0 %v5422
        %5910 = vmatpush1.bf16.msra.mxu0 %v5421
        %5911 = vmatprep.subr.bf16.mxu0 %v5430
        %5912 = vmatpush1.bf16.msra.mxu0 %v5429
        %5913 = vmatprep.subr.bf16.mxu0 %v5438
        %5914 = vmatpush1.bf16.msra.mxu0 %v5437
        %5915 = vmatprep.mubr.bf16.mxu0 %v5800
        %5916 = vmatmul.mubr.bf16.gmra.mrb[0].mxu0 %v5799
        %v5917 = vpop.f32.mrb[0].mxu0
        %v5918 = vadd.f32 0.0, %v5917
        %v5919 = vpop.f32.mrb[0].mxu0
        %v5920 = vadd.f32 0.0, %v5919
        %v5921 = vpop.f32.mrb[0].mxu0
        %v5922 = vpop.f32.mrb[0].mxu0
        %5923 = vdwg.mxu0
        %5924 = vmatprep.subr.bf16.mxu0 %v5320
        %5925 = vmatpush1.bf16.msra.mxu0 %v5319
        %5926 = vmatprep.subr.bf16.mxu0 %v5328
        %5927 = vmatpush1.bf16.msra.mxu0 %v5327
        %5928 = vmatprep.subr.bf16.mxu0 %v5336
        %5929 = vmatpush1.bf16.msra.mxu0 %v5335
        %5930 = vmatprep.subr.bf16.mxu0 %v5344
        %5931 = vmatpush1.bf16.msra.mxu0 %v5343
        %5932 = vmatprep.subr.bf16.mxu0 %v5352
        %5933 = vmatpush1.bf16.msra.mxu0 %v5351
        %5934 = vmatprep.subr.bf16.mxu0 %v5360
        %5935 = vmatpush1.bf16.msra.mxu0 %v5359
        %5936 = vmatprep.subr.bf16.mxu0 %v5368
        %5937 = vmatpush1.bf16.msra.mxu0 %v5367
        %5938 = vmatprep.subr.bf16.mxu0 %v5376
        %5939 = vmatpush1.bf16.msra.mxu0 %v5375
        %5940 = vmatprep.subr.bf16.mxu0 %v5384
        %5941 = vmatpush1.bf16.msra.mxu0 %v5383
        %5942 = vmatprep.subr.bf16.mxu0 %v5392
        %5943 = vmatpush1.bf16.msra.mxu0 %v5391
        %5944 = vmatprep.subr.bf16.mxu0 %v5400
        %5945 = vmatpush1.bf16.msra.mxu0 %v5399
        %5946 = vmatprep.subr.bf16.mxu0 %v5408
        %5947 = vmatpush1.bf16.msra.mxu0 %v5407
        %5948 = vmatprep.subr.bf16.mxu0 %v5416
        %5949 = vmatpush1.bf16.msra.mxu0 %v5415
        %5950 = vmatprep.subr.bf16.mxu0 %v5424
        %5951 = vmatpush1.bf16.msra.mxu0 %v5423
        %5952 = vmatprep.subr.bf16.mxu0 %v5432
        %5953 = vmatpush1.bf16.msra.mxu0 %v5431
        %5954 = vmatprep.subr.bf16.mxu0 %v5440
        %5955 = vmatpush1.bf16.msra.mxu0 %v5439
        %5956 = vmatprep.mubr.bf16.mxu0 %v5800
        %5957 = vmatmul.mubr.bf16.gmra.mrb[0].mxu0 %v5799
        %v5958 = vpop.f32.mrb[0].mxu0
        %v5959 = vadd.f32 0.0, %v5958
        %v5960 = vpop.f32.mrb[0].mxu0
        %v5961 = vadd.f32 0.0, %v5960
        %v5962 = vpop.f32.mrb[0].mxu0
        %v5963 = vpop.f32.mrb[0].mxu0
        %5964 = vdwg.mxu0
        %v5965 = vadd.f32 %v5791, %v5836
        %v5966 = vadd.f32 %v5792, %v5838
        %v5967 = vadd.f32 %v5793, %v5877
        %v5968 = vadd.f32 %v5794, %v5879
        %v5969 = vadd.f32 %v5795, %v5918
        %v5970 = vadd.f32 %v5796, %v5920
        %v5971 = vadd.f32 %v5797, %v5959
        %v5972 = vadd.f32 %v5798, %v5961
        %v5973 = vxor.u32 %v5965, 2147483648
        %v5974 = vxor.u32 %v5966, 2147483648
        %v5975 = vmul.f32 %v5973, 1.442695
        %v5976 = vpow.pop %v5975
        %v5977 = vmul.f32 %v5974, 1.442695
        %v5978 = vpow.pop %v5977
        %v5979 = vadd.f32 %v5976, 1.0
        %v5980 = vadd.f32 %v5978, 1.0
        %v5981 = vrcp.pop %v5979
        %v5982 = vmul.f32 1.0, %v5981
        %v5983 = vrcp.pop %v5980
        %v5984 = vmul.f32 1.0, %v5983
        %v5985 = vxor.u32 %v5967, 2147483648
        %v5986 = vxor.u32 %v5968, 2147483648
        %v5987 = vmul.f32 %v5985, 1.442695
        %v5988 = vpow.pop %v5987
        %v5989 = vmul.f32 %v5986, 1.442695
        %v5990 = vpow.pop %v5989
        %v5991 = vadd.f32 %v5988, 1.0
        %v5992 = vadd.f32 %v5990, 1.0
        %v5993 = vrcp.pop %v5991
        %v5994 = vmul.f32 1.0, %v5993
        %v5995 = vrcp.pop %v5992
        %v5996 = vmul.f32 1.0, %v5995
        %v5997 = vtanh.pop %v5969
        %v5998 = vtanh.pop %v5970
        %v5999 = vxor.u32 %v5971, 2147483648
        %v6000 = vxor.u32 %v5972, 2147483648
        %v6001 = vmul.f32 %v5999, 1.442695
        %v6002 = vpow.pop %v6001
        %v6003 = vmul.f32 %v6000, 1.442695
        %v6004 = vpow.pop %v6003
        %v6005 = vadd.f32 %v6002, 1.0
        %v6006 = vadd.f32 %v6004, 1.0
        %v6007 = vrcp.pop %v6005
        %v6008 = vmul.f32 1.0, %v6007
        %v6009 = vrcp.pop %v6006
        %v6010 = vmul.f32 1.0, %v6009
        %v6011 = vmul.f32 %v5994, %v5783
        %v6012 = vmul.f32 %v5996, %v5784
        %v6013 = vmul.f32 %v5982, %v5997
        %v6014 = vmul.f32 %v5984, %v5998
        %v6015 = vadd.f32 %v6011, %v6013
        %v6016 = vadd.f32 %v6012, %v6014
        %v6017 = vtanh.pop %v6015
        %v6018 = vtanh.pop %v6016
        %v6019 = vmul.f32 %v6008, %v6017
        %v6020 = vmul.f32 %v6010, %v6018
        %6021 = vst [vmem:[#allocation2 + $0x10] sm:$0xff] %v6019
        %6022 = vst [vmem:[#allocation2 + $0x18] sm:$0xff] %v6020
        %v6023 = vld [vmem:[#allocation3 + $0x80] sm:$0xff]
        %v6024 = vld [vmem:[#allocation3 + $0x88] sm:$0xff]
        %v6025 = vld [vmem:[#allocation3 + $0x90] sm:$0xff]
        %v6026 = vld [vmem:[#allocation3 + $0x98] sm:$0xff]
        %v6027 = vld [vmem:[#allocation3 + $0xa0] sm:$0xff]
        %v6028 = vld [vmem:[#allocation3 + $0xa8] sm:$0xff]
        %v6029 = vld [vmem:[#allocation3 + $0xb0] sm:$0xff]
        %v6030 = vld [vmem:[#allocation3 + $0xb8] sm:$0xff]
        %v6031 = vpack.c.bf16 %v6019, %v6019
        %v6032 = vpack.c.bf16 %v6020, %v6020
        %6033 = vmatprep.subr.bf16.mxu0 %v5314
        %6034 = vmatpush1.bf16.msra.mxu0 %v5313
        %6035 = vmatprep.subr.bf16.mxu0 %v5322
        %6036 = vmatpush1.bf16.msra.mxu0 %v5321
        %6037 = vmatprep.subr.bf16.mxu0 %v5330
        %6038 = vmatpush1.bf16.msra.mxu0 %v5329
        %6039 = vmatprep.subr.bf16.mxu0 %v5338
        %6040 = vmatpush1.bf16.msra.mxu0 %v5337
        %6041 = vmatprep.subr.bf16.mxu0 %v5346
        %6042 = vmatpush1.bf16.msra.mxu0 %v5345
        %6043 = vmatprep.subr.bf16.mxu0 %v5354
        %6044 = vmatpush1.bf16.msra.mxu0 %v5353
        %6045 = vmatprep.subr.bf16.mxu0 %v5362
        %6046 = vmatpush1.bf16.msra.mxu0 %v5361
        %6047 = vmatprep.subr.bf16.mxu0 %v5370
        %6048 = vmatpush1.bf16.msra.mxu0 %v5369
        %6049 = vmatprep.subr.bf16.mxu0 %v5378
        %6050 = vmatpush1.bf16.msra.mxu0 %v5377
        %6051 = vmatprep.subr.bf16.mxu0 %v5386
        %6052 = vmatpush1.bf16.msra.mxu0 %v5385
        %6053 = vmatprep.subr.bf16.mxu0 %v5394
        %6054 = vmatpush1.bf16.msra.mxu0 %v5393
        %6055 = vmatprep.subr.bf16.mxu0 %v5402
        %6056 = vmatpush1.bf16.msra.mxu0 %v5401
        %6057 = vmatprep.subr.bf16.mxu0 %v5410
        %6058 = vmatpush1.bf16.msra.mxu0 %v5409
        %6059 = vmatprep.subr.bf16.mxu0 %v5418
        %6060 = vmatpush1.bf16.msra.mxu0 %v5417
        %6061 = vmatprep.subr.bf16.mxu0 %v5426
        %6062 = vmatpush1.bf16.msra.mxu0 %v5425
        %6063 = vmatprep.subr.bf16.mxu0 %v5434
        %6064 = vmatpush1.bf16.msra.mxu0 %v5433
        %6065 = vmatprep.mubr.bf16.mxu0 %v6032
        %6066 = vmatmul.mubr.bf16.gmra.mrb[0].mxu0 %v6031
        %v6067 = vpop.f32.mrb[0].mxu0
        %v6068 = vadd.f32 0.0, %v6067
        %v6069 = vpop.f32.mrb[0].mxu0
        %v6070 = vadd.f32 0.0, %v6069
        %v6071 = vpop.f32.mrb[0].mxu0
        %v6072 = vpop.f32.mrb[0].mxu0
        %6073 = vdwg.mxu0
        %6074 = vmatprep.subr.bf16.mxu0 %v5316
        %6075 = vmatpush1.bf16.msra.mxu0 %v5315
        %6076 = vmatprep.subr.bf16.mxu0 %v5324
        %6077 = vmatpush1.bf16.msra.mxu0 %v5323
        %6078 = vmatprep.subr.bf16.mxu0 %v5332
        %6079 = vmatpush1.bf16.msra.mxu0 %v5331
        %6080 = vmatprep.subr.bf16.mxu0 %v5340
        %6081 = vmatpush1.bf16.msra.mxu0 %v5339
        %6082 = vmatprep.subr.bf16.mxu0 %v5348
        %6083 = vmatpush1.bf16.msra.mxu0 %v5347
        %6084 = vmatprep.subr.bf16.mxu0 %v5356
        %6085 = vmatpush1.bf16.msra.mxu0 %v5355
        %6086 = vmatprep.subr.bf16.mxu0 %v5364
        %6087 = vmatpush1.bf16.msra.mxu0 %v5363
        %6088 = vmatprep.subr.bf16.mxu0 %v5372
        %6089 = vmatpush1.bf16.msra.mxu0 %v5371
        %6090 = vmatprep.subr.bf16.mxu0 %v5380
        %6091 = vmatpush1.bf16.msra.mxu0 %v5379
        %6092 = vmatprep.subr.bf16.mxu0 %v5388
        %6093 = vmatpush1.bf16.msra.mxu0 %v5387
        %6094 = vmatprep.subr.bf16.mxu0 %v5396
        %6095 = vmatpush1.bf16.msra.mxu0 %v5395
        %6096 = vmatprep.subr.bf16.mxu0 %v5404
        %6097 = vmatpush1.bf16.msra.mxu0 %v5403
        %6098 = vmatprep.subr.bf16.mxu0 %v5412
        %6099 = vmatpush1.bf16.msra.mxu0 %v5411
        %6100 = vmatprep.subr.bf16.mxu0 %v5420
        %6101 = vmatpush1.bf16.msra.mxu0 %v5419
        %6102 = vmatprep.subr.bf16.mxu0 %v5428
        %6103 = vmatpush1.bf16.msra.mxu0 %v5427
        %6104 = vmatprep.subr.bf16.mxu0 %v5436
        %6105 = vmatpush1.bf16.msra.mxu0 %v5435
        %6106 = vmatprep.mubr.bf16.mxu0 %v6032
        %6107 = vmatmul.mubr.bf16.gmra.mrb[0].mxu0 %v6031
        %v6108 = vpop.f32.mrb[0].mxu0
        %v6109 = vadd.f32 0.0, %v6108
        %v6110 = vpop.f32.mrb[0].mxu0
        %v6111 = vadd.f32 0.0, %v6110
        %v6112 = vpop.f32.mrb[0].mxu0
        %v6113 = vpop.f32.mrb[0].mxu0
        %6114 = vdwg.mxu0
        %6115 = vmatprep.subr.bf16.mxu0 %v5318
        %6116 = vmatpush1.bf16.msra.mxu0 %v5317
        %6117 = vmatprep.subr.bf16.mxu0 %v5326
        %6118 = vmatpush1.bf16.msra.mxu0 %v5325
        %6119 = vmatprep.subr.bf16.mxu0 %v5334
        %6120 = vmatpush1.bf16.msra.mxu0 %v5333
        %6121 = vmatprep.subr.bf16.mxu0 %v5342
        %6122 = vmatpush1.bf16.msra.mxu0 %v5341
        %6123 = vmatprep.subr.bf16.mxu0 %v5350
        %6124 = vmatpush1.bf16.msra.mxu0 %v5349
        %6125 = vmatprep.subr.bf16.mxu0 %v5358
        %6126 = vmatpush1.bf16.msra.mxu0 %v5357
        %6127 = vmatprep.subr.bf16.mxu0 %v5366
        %6128 = vmatpush1.bf16.msra.mxu0 %v5365
        %6129 = vmatprep.subr.bf16.mxu0 %v5374
        %6130 = vmatpush1.bf16.msra.mxu0 %v5373
        %6131 = vmatprep.subr.bf16.mxu0 %v5382
        %6132 = vmatpush1.bf16.msra.mxu0 %v5381
        %6133 = vmatprep.subr.bf16.mxu0 %v5390
        %6134 = vmatpush1.bf16.msra.mxu0 %v5389
        %6135 = vmatprep.subr.bf16.mxu0 %v5398
        %6136 = vmatpush1.bf16.msra.mxu0 %v5397
        %6137 = vmatprep.subr.bf16.mxu0 %v5406
        %6138 = vmatpush1.bf16.msra.mxu0 %v5405
        %6139 = vmatprep.subr.bf16.mxu0 %v5414
        %6140 = vmatpush1.bf16.msra.mxu0 %v5413
        %6141 = vmatprep.subr.bf16.mxu0 %v5422
        %6142 = vmatpush1.bf16.msra.mxu0 %v5421
        %6143 = vmatprep.subr.bf16.mxu0 %v5430
        %6144 = vmatpush1.bf16.msra.mxu0 %v5429
        %6145 = vmatprep.subr.bf16.mxu0 %v5438
        %6146 = vmatpush1.bf16.msra.mxu0 %v5437
        %6147 = vmatprep.mubr.bf16.mxu0 %v6032
        %6148 = vmatmul.mubr.bf16.gmra.mrb[0].mxu0 %v6031
        %v6149 = vpop.f32.mrb[0].mxu0
        %v6150 = vadd.f32 0.0, %v6149
        %v6151 = vpop.f32.mrb[0].mxu0
        %v6152 = vadd.f32 0.0, %v6151
        %v6153 = vpop.f32.mrb[0].mxu0
        %v6154 = vpop.f32.mrb[0].mxu0
        %6155 = vdwg.mxu0
        %6156 = vmatprep.subr.bf16.mxu0 %v5320
        %6157 = vmatpush1.bf16.msra.mxu0 %v5319
        %6158 = vmatprep.subr.bf16.mxu0 %v5328
        %6159 = vmatpush1.bf16.msra.mxu0 %v5327
        %6160 = vmatprep.subr.bf16.mxu0 %v5336
        %6161 = vmatpush1.bf16.msra.mxu0 %v5335
        %6162 = vmatprep.subr.bf16.mxu0 %v5344
        %6163 = vmatpush1.bf16.msra.mxu0 %v5343
        %6164 = vmatprep.subr.bf16.mxu0 %v5352
        %6165 = vmatpush1.bf16.msra.mxu0 %v5351
        %6166 = vmatprep.subr.bf16.mxu0 %v5360
        %6167 = vmatpush1.bf16.msra.mxu0 %v5359
        %6168 = vmatprep.subr.bf16.mxu0 %v5368
        %6169 = vmatpush1.bf16.msra.mxu0 %v5367
        %6170 = vmatprep.subr.bf16.mxu0 %v5376
        %6171 = vmatpush1.bf16.msra.mxu0 %v5375
        %6172 = vmatprep.subr.bf16.mxu0 %v5384
        %6173 = vmatpush1.bf16.msra.mxu0 %v5383
        %6174 = vmatprep.subr.bf16.mxu0 %v5392
        %6175 = vmatpush1.bf16.msra.mxu0 %v5391
        %6176 = vmatprep.subr.bf16.mxu0 %v5400
        %6177 = vmatpush1.bf16.msra.mxu0 %v5399
        %6178 = vmatprep.subr.bf16.mxu0 %v5408
        %6179 = vmatpush1.bf16.msra.mxu0 %v5407
        %6180 = vmatprep.subr.bf16.mxu0 %v5416
        %6181 = vmatpush1.bf16.msra.mxu0 %v5415
        %6182 = vmatprep.subr.bf16.mxu0 %v5424
        %6183 = vmatpush1.bf16.msra.mxu0 %v5423
        %6184 = vmatprep.subr.bf16.mxu0 %v5432
        %6185 = vmatpush1.bf16.msra.mxu0 %v5431
        %6186 = vmatprep.subr.bf16.mxu0 %v5440
        %6187 = vmatpush1.bf16.msra.mxu0 %v5439
        %6188 = vmatprep.mubr.bf16.mxu0 %v6032
        %6189 = vmatmul.mubr.bf16.gmra.mrb[0].mxu0 %v6031
        %v6190 = vpop.f32.mrb[0].mxu0
        %v6191 = vadd.f32 0.0, %v6190
        %v6192 = vpop.f32.mrb[0].mxu0
        %v6193 = vadd.f32 0.0, %v6192
        %v6194 = vpop.f32.mrb[0].mxu0
        %v6195 = vpop.f32.mrb[0].mxu0
        %6196 = vdwg.mxu0
        %v6197 = vadd.f32 %v6023, %v6068
        %v6198 = vadd.f32 %v6024, %v6070
        %v6199 = vadd.f32 %v6025, %v6109
        %v6200 = vadd.f32 %v6026, %v6111
        %v6201 = vadd.f32 %v6027, %v6150
        %v6202 = vadd.f32 %v6028, %v6152
        %v6203 = vadd.f32 %v6029, %v6191
        %v6204 = vadd.f32 %v6030, %v6193
        %v6205 = vxor.u32 %v6197, 2147483648
        %v6206 = vxor.u32 %v6198, 2147483648
        %v6207 = vmul.f32 %v6205, 1.442695
        %v6208 = vpow.pop %v6207
        %v6209 = vmul.f32 %v6206, 1.442695
        %v6210 = vpow.pop %v6209
        %v6211 = vadd.f32 %v6208, 1.0
        %v6212 = vadd.f32 %v6210, 1.0
        %v6213 = vrcp.pop %v6211
        %v6214 = vmul.f32 1.0, %v6213
        %v6215 = vrcp.pop %v6212
        %v6216 = vmul.f32 1.0, %v6215
        %v6217 = vxor.u32 %v6199, 2147483648
        %v6218 = vxor.u32 %v6200, 2147483648
        %v6219 = vmul.f32 %v6217, 1.442695
        %v6220 = vpow.pop %v6219
        %v6221 = vmul.f32 %v6218, 1.442695
        %v6222 = vpow.pop %v6221
        %v6223 = vadd.f32 %v6220, 1.0
        %v6224 = vadd.f32 %v6222, 1.0
        %v6225 = vrcp.pop %v6223
        %v6226 = vmul.f32 1.0, %v6225
        %v6227 = vrcp.pop %v6224
        %v6228 = vmul.f32 1.0, %v6227
        %v6229 = vtanh.pop %v6201
        %v6230 = vtanh.pop %v6202
        %v6231 = vxor.u32 %v6203, 2147483648
        %v6232 = vxor.u32 %v6204, 2147483648
        %v6233 = vmul.f32 %v6231, 1.442695
        %v6234 = vpow.pop %v6233
        %v6235 = vmul.f32 %v6232, 1.442695
        %v6236 = vpow.pop %v6235
        %v6237 = vadd.f32 %v6234, 1.0
        %v6238 = vadd.f32 %v6236, 1.0
        %v6239 = vrcp.pop %v6237
        %v6240 = vmul.f32 1.0, %v6239
        %v6241 = vrcp.pop %v6238
        %v6242 = vmul.f32 1.0, %v6241
        %v6243 = vmul.f32 %v6226, %v6015
        %v6244 = vmul.f32 %v6228, %v6016
        %v6245 = vmul.f32 %v6214, %v6229
        %v6246 = vmul.f32 %v6216, %v6230
        %v6247 = vadd.f32 %v6243, %v6245
        %v6248 = vadd.f32 %v6244, %v6246
        %v6249 = vtanh.pop %v6247
        %v6250 = vtanh.pop %v6248
        %v6251 = vmul.f32 %v6240, %v6249
        %v6252 = vmul.f32 %v6242, %v6250
        %6253 = vst [vmem:[#allocation2 + $0x20] sm:$0xff] %v6251
        %6254 = vst [vmem:[#allocation2 + $0x28] sm:$0xff] %v6252
        %v6255 = vld [vmem:[#allocation3 + $0xc0] sm:$0xff]
        %v6256 = vld [vmem:[#allocation3 + $0xc8] sm:$0xff]
        %v6257 = vld [vmem:[#allocation3 + $0xd0] sm:$0xff]
        %v6258 = vld [vmem:[#allocation3 + $0xd8] sm:$0xff]
        %v6259 = vld [vmem:[#allocation3 + $0xe0] sm:$0xff]
        %v6260 = vld [vmem:[#allocation3 + $0xe8] sm:$0xff]
        %v6261 = vld [vmem:[#allocation3 + $0xf0] sm:$0xff]
        %v6262 = vld [vmem:[#allocation3 + $0xf8] sm:$0xff]
        %v6263 = vpack.c.bf16 %v6251, %v6251
        %v6264 = vpack.c.bf16 %v6252, %v6252
        %6265 = vmatprep.subr.bf16.mxu0 %v5314
        %6266 = vmatpush1.bf16.msra.mxu0 %v5313
        %6267 = vmatprep.subr.bf16.mxu0 %v5322
        %6268 = vmatpush1.bf16.msra.mxu0 %v5321
        %6269 = vmatprep.subr.bf16.mxu0 %v5330
        %6270 = vmatpush1.bf16.msra.mxu0 %v5329
        %6271 = vmatprep.subr.bf16.mxu0 %v5338
        %6272 = vmatpush1.bf16.msra.mxu0 %v5337
        %6273 = vmatprep.subr.bf16.mxu0 %v5346
        %6274 = vmatpush1.bf16.msra.mxu0 %v5345
        %6275 = vmatprep.subr.bf16.mxu0 %v5354
        %6276 = vmatpush1.bf16.msra.mxu0 %v5353
        %6277 = vmatprep.subr.bf16.mxu0 %v5362
        %6278 = vmatpush1.bf16.msra.mxu0 %v5361
        %6279 = vmatprep.subr.bf16.mxu0 %v5370
        %6280 = vmatpush1.bf16.msra.mxu0 %v5369
        %6281 = vmatprep.subr.bf16.mxu0 %v5378
        %6282 = vmatpush1.bf16.msra.mxu0 %v5377
        %6283 = vmatprep.subr.bf16.mxu0 %v5386
        %6284 = vmatpush1.bf16.msra.mxu0 %v5385
        %6285 = vmatprep.subr.bf16.mxu0 %v5394
        %6286 = vmatpush1.bf16.msra.mxu0 %v5393
        %6287 = vmatprep.subr.bf16.mxu0 %v5402
        %6288 = vmatpush1.bf16.msra.mxu0 %v5401
        %6289 = vmatprep.subr.bf16.mxu0 %v5410
        %6290 = vmatpush1.bf16.msra.mxu0 %v5409
        %6291 = vmatprep.subr.bf16.mxu0 %v5418
        %6292 = vmatpush1.bf16.msra.mxu0 %v5417
        %6293 = vmatprep.subr.bf16.mxu0 %v5426
        %6294 = vmatpush1.bf16.msra.mxu0 %v5425
        %6295 = vmatprep.subr.bf16.mxu0 %v5434
        %6296 = vmatpush1.bf16.msra.mxu0 %v5433
        %6297 = vmatprep.mubr.bf16.mxu0 %v6264
        %6298 = vmatmul.mubr.bf16.gmra.mrb[0].mxu0 %v6263
        %v6299 = vpop.f32.mrb[0].mxu0
        %v6300 = vadd.f32 0.0, %v6299
        %v6301 = vpop.f32.mrb[0].mxu0
        %v6302 = vadd.f32 0.0, %v6301
        %v6303 = vpop.f32.mrb[0].mxu0
        %v6304 = vpop.f32.mrb[0].mxu0
        %6305 = vdwg.mxu0
        %6306 = vmatprep.subr.bf16.mxu0 %v5316
        %6307 = vmatpush1.bf16.msra.mxu0 %v5315
        %6308 = vmatprep.subr.bf16.mxu0 %v5324
        %6309 = vmatpush1.bf16.msra.mxu0 %v5323
        %6310 = vmatprep.subr.bf16.mxu0 %v5332
        %6311 = vmatpush1.bf16.msra.mxu0 %v5331
        %6312 = vmatprep.subr.bf16.mxu0 %v5340
        %6313 = vmatpush1.bf16.msra.mxu0 %v5339
        %6314 = vmatprep.subr.bf16.mxu0 %v5348
        %6315 = vmatpush1.bf16.msra.mxu0 %v5347
        %6316 = vmatprep.subr.bf16.mxu0 %v5356
        %6317 = vmatpush1.bf16.msra.mxu0 %v5355
        %6318 = vmatprep.subr.bf16.mxu0 %v5364
        %6319 = vmatpush1.bf16.msra.mxu0 %v5363
        %6320 = vmatprep.subr.bf16.mxu0 %v5372
        %6321 = vmatpush1.bf16.msra.mxu0 %v5371
        %6322 = vmatprep.subr.bf16.mxu0 %v5380
        %6323 = vmatpush1.bf16.msra.mxu0 %v5379
        %6324 = vmatprep.subr.bf16.mxu0 %v5388
        %6325 = vmatpush1.bf16.msra.mxu0 %v5387
        %6326 = vmatprep.subr.bf16.mxu0 %v5396
        %6327 = vmatpush1.bf16.msra.mxu0 %v5395
        %6328 = vmatprep.subr.bf16.mxu0 %v5404
        %6329 = vmatpush1.bf16.msra.mxu0 %v5403
        %6330 = vmatprep.subr.bf16.mxu0 %v5412
        %6331 = vmatpush1.bf16.msra.mxu0 %v5411
        %6332 = vmatprep.subr.bf16.mxu0 %v5420
        %6333 = vmatpush1.bf16.msra.mxu0 %v5419
        %6334 = vmatprep.subr.bf16.mxu0 %v5428
        %6335 = vmatpush1.bf16.msra.mxu0 %v5427
        %6336 = vmatprep.subr.bf16.mxu0 %v5436
        %6337 = vmatpush1.bf16.msra.mxu0 %v5435
        %6338 = vmatprep.mubr.bf16.mxu0 %v6264
        %6339 = vmatmul.mubr.bf16.gmra.mrb[0].mxu0 %v6263
        %v6340 = vpop.f32.mrb[0].mxu0
        %v6341 = vadd.f32 0.0, %v6340
        %v6342 = vpop.f32.mrb[0].mxu0
        %v6343 = vadd.f32 0.0, %v6342
        %v6344 = vpop.f32.mrb[0].mxu0
        %v6345 = vpop.f32.mrb[0].mxu0
        %6346 = vdwg.mxu0
        %6347 = vmatprep.subr.bf16.mxu0 %v5318
        %6348 = vmatpush1.bf16.msra.mxu0 %v5317
        %6349 = vmatprep.subr.bf16.mxu0 %v5326
        %6350 = vmatpush1.bf16.msra.mxu0 %v5325
        %6351 = vmatprep.subr.bf16.mxu0 %v5334
        %6352 = vmatpush1.bf16.msra.mxu0 %v5333
        %6353 = vmatprep.subr.bf16.mxu0 %v5342
        %6354 = vmatpush1.bf16.msra.mxu0 %v5341
        %6355 = vmatprep.subr.bf16.mxu0 %v5350
        %6356 = vmatpush1.bf16.msra.mxu0 %v5349
        %6357 = vmatprep.subr.bf16.mxu0 %v5358
        %6358 = vmatpush1.bf16.msra.mxu0 %v5357
        %6359 = vmatprep.subr.bf16.mxu0 %v5366
        %6360 = vmatpush1.bf16.msra.mxu0 %v5365
        %6361 = vmatprep.subr.bf16.mxu0 %v5374
        %6362 = vmatpush1.bf16.msra.mxu0 %v5373
        %6363 = vmatprep.subr.bf16.mxu0 %v5382
        %6364 = vmatpush1.bf16.msra.mxu0 %v5381
        %6365 = vmatprep.subr.bf16.mxu0 %v5390
        %6366 = vmatpush1.bf16.msra.mxu0 %v5389
        %6367 = vmatprep.subr.bf16.mxu0 %v5398
        %6368 = vmatpush1.bf16.msra.mxu0 %v5397
        %6369 = vmatprep.subr.bf16.mxu0 %v5406
        %6370 = vmatpush1.bf16.msra.mxu0 %v5405
        %6371 = vmatprep.subr.bf16.mxu0 %v5414
        %6372 = vmatpush1.bf16.msra.mxu0 %v5413
        %6373 = vmatprep.subr.bf16.mxu0 %v5422
        %6374 = vmatpush1.bf16.msra.mxu0 %v5421
        %6375 = vmatprep.subr.bf16.mxu0 %v5430
        %6376 = vmatpush1.bf16.msra.mxu0 %v5429
        %6377 = vmatprep.subr.bf16.mxu0 %v5438
        %6378 = vmatpush1.bf16.msra.mxu0 %v5437
        %6379 = vmatprep.mubr.bf16.mxu0 %v6264
        %6380 = vmatmul.mubr.bf16.gmra.mrb[0].mxu0 %v6263
        %v6381 = vpop.f32.mrb[0].mxu0
        %v6382 = vadd.f32 0.0, %v6381
        %v6383 = vpop.f32.mrb[0].mxu0
        %v6384 = vadd.f32 0.0, %v6383
        %v6385 = vpop.f32.mrb[0].mxu0
        %v6386 = vpop.f32.mrb[0].mxu0
        %6387 = vdwg.mxu0
        %6388 = vmatprep.subr.bf16.mxu0 %v5320
        %6389 = vmatpush1.bf16.msra.mxu0 %v5319
        %6390 = vmatprep.subr.bf16.mxu0 %v5328
        %6391 = vmatpush1.bf16.msra.mxu0 %v5327
        %6392 = vmatprep.subr.bf16.mxu0 %v5336
        %6393 = vmatpush1.bf16.msra.mxu0 %v5335
        %6394 = vmatprep.subr.bf16.mxu0 %v5344
        %6395 = vmatpush1.bf16.msra.mxu0 %v5343
        %6396 = vmatprep.subr.bf16.mxu0 %v5352
        %6397 = vmatpush1.bf16.msra.mxu0 %v5351
        %6398 = vmatprep.subr.bf16.mxu0 %v5360
        %6399 = vmatpush1.bf16.msra.mxu0 %v5359
        %6400 = vmatprep.subr.bf16.mxu0 %v5368
        %6401 = vmatpush1.bf16.msra.mxu0 %v5367
        %6402 = vmatprep.subr.bf16.mxu0 %v5376
        %6403 = vmatpush1.bf16.msra.mxu0 %v5375
        %6404 = vmatprep.subr.bf16.mxu0 %v5384
        %6405 = vmatpush1.bf16.msra.mxu0 %v5383
        %6406 = vmatprep.subr.bf16.mxu0 %v5392
        %6407 = vmatpush1.bf16.msra.mxu0 %v5391
        %6408 = vmatprep.subr.bf16.mxu0 %v5400
        %6409 = vmatpush1.bf16.msra.mxu0 %v5399
        %6410 = vmatprep.subr.bf16.mxu0 %v5408
        %6411 = vmatpush1.bf16.msra.mxu0 %v5407
        %6412 = vmatprep.subr.bf16.mxu0 %v5416
        %6413 = vmatpush1.bf16.msra.mxu0 %v5415
        %6414 = vmatprep.subr.bf16.mxu0 %v5424
        %6415 = vmatpush1.bf16.msra.mxu0 %v5423
        %6416 = vmatprep.subr.bf16.mxu0 %v5432
        %6417 = vmatpush1.bf16.msra.mxu0 %v5431
        %6418 = vmatprep.subr.bf16.mxu0 %v5440
        %6419 = vmatpush1.bf16.msra.mxu0 %v5439
        %6420 = vmatprep.mubr.bf16.mxu0 %v6264
        %6421 = vmatmul.mubr.bf16.gmra.mrb[0].mxu0 %v6263
        %v6422 = vpop.f32.mrb[0].mxu0
        %v6423 = vadd.f32 0.0, %v6422
        %v6424 = vpop.f32.mrb[0].mxu0
        %v6425 = vadd.f32 0.0, %v6424
        %v6426 = vpop.f32.mrb[0].mxu0
        %v6427 = vpop.f32.mrb[0].mxu0
        %6428 = vdwg.mxu0
        %v6429 = vadd.f32 %v6255, %v6300
        %v6430 = vadd.f32 %v6256, %v6302
        %v6431 = vadd.f32 %v6257, %v6341
        %v6432 = vadd.f32 %v6258, %v6343
        %v6433 = vadd.f32 %v6259, %v6382
        %v6434 = vadd.f32 %v6260, %v6384
        %v6435 = vadd.f32 %v6261, %v6423
        %v6436 = vadd.f32 %v6262, %v6425
        %v6437 = vxor.u32 %v6429, 2147483648
        %v6438 = vxor.u32 %v6430, 2147483648
        %v6439 = vmul.f32 %v6437, 1.442695
        %v6440 = vpow.pop %v6439
        %v6441 = vmul.f32 %v6438, 1.442695
        %v6442 = vpow.pop %v6441
        %v6443 = vadd.f32 %v6440, 1.0
        %v6444 = vadd.f32 %v6442, 1.0
        %v6445 = vrcp.pop %v6443
        %v6446 = vmul.f32 1.0, %v6445
        %v6447 = vrcp.pop %v6444
        %v6448 = vmul.f32 1.0, %v6447
        %v6449 = vxor.u32 %v6431, 2147483648
        %v6450 = vxor.u32 %v6432, 2147483648
        %v6451 = vmul.f32 %v6449, 1.442695
        %v6452 = vpow.pop %v6451
        %v6453 = vmul.f32 %v6450, 1.442695
        %v6454 = vpow.pop %v6453
        %v6455 = vadd.f32 %v6452, 1.0
        %v6456 = vadd.f32 %v6454, 1.0
        %v6457 = vrcp.pop %v6455
        %v6458 = vmul.f32 1.0, %v6457
        %v6459 = vrcp.pop %v6456
        %v6460 = vmul.f32 1.0, %v6459
        %v6461 = vtanh.pop %v6433
        %v6462 = vtanh.pop %v6434
        %v6463 = vxor.u32 %v6435, 2147483648
        %v6464 = vxor.u32 %v6436, 2147483648
        %v6465 = vmul.f32 %v6463, 1.442695
        %v6466 = vpow.pop %v6465
        %v6467 = vmul.f32 %v6464, 1.442695
        %v6468 = vpow.pop %v6467
        %v6469 = vadd.f32 %v6466, 1.0
        %v6470 = vadd.f32 %v6468, 1.0
        %v6471 = vrcp.pop %v6469
        %v6472 = vmul.f32 1.0, %v6471
        %v6473 = vrcp.pop %v6470
        %v6474 = vmul.f32 1.0, %v6473
        %v6475 = vmul.f32 %v6458, %v6247
        %v6476 = vmul.f32 %v6460, %v6248
        %v6477 = vmul.f32 %v6446, %v6461
        %v6478 = vmul.f32 %v6448, %v6462
        %v6479 = vadd.f32 %v6475, %v6477
        %v6480 = vadd.f32 %v6476, %v6478
        %v6481 = vtanh.pop %v6479
        %v6482 = vtanh.pop %v6480
        %v6483 = vmul.f32 %v6472, %v6481
        %v6484 = vmul.f32 %v6474, %v6482
        %6485 = vst [vmem:[#allocation2 + $0x30] sm:$0xff] %v6483
        %6486 = vst [vmem:[#allocation2 + $0x38] sm:$0xff] %v6484
        %v6487 = vld [vmem:[#allocation3 + $0x100] sm:$0xff]
        %v6488 = vld [vmem:[#allocation3 + $0x108] sm:$0xff]
        %v6489 = vld [vmem:[#allocation3 + $0x110] sm:$0xff]
        %v6490 = vld [vmem:[#allocation3 + $0x118] sm:$0xff]
        %v6491 = vld [vmem:[#allocation3 + $0x120] sm:$0xff]
        %v6492 = vld [vmem:[#allocation3 + $0x128] sm:$0xff]
        %v6493 = vld [vmem:[#allocation3 + $0x130] sm:$0xff]
        %v6494 = vld [vmem:[#allocation3 + $0x138] sm:$0xff]
        %v6495 = vpack.c.bf16 %v6483, %v6483
        %v6496 = vpack.c.bf16 %v6484, %v6484
        %6497 = vmatprep.subr.bf16.mxu0 %v5314
        %6498 = vmatpush1.bf16.msra.mxu0 %v5313
        %6499 = vmatprep.subr.bf16.mxu0 %v5322
        %6500 = vmatpush1.bf16.msra.mxu0 %v5321
        %6501 = vmatprep.subr.bf16.mxu0 %v5330
        %6502 = vmatpush1.bf16.msra.mxu0 %v5329
        %6503 = vmatprep.subr.bf16.mxu0 %v5338
        %6504 = vmatpush1.bf16.msra.mxu0 %v5337
        %6505 = vmatprep.subr.bf16.mxu0 %v5346
        %6506 = vmatpush1.bf16.msra.mxu0 %v5345
        %6507 = vmatprep.subr.bf16.mxu0 %v5354
        %6508 = vmatpush1.bf16.msra.mxu0 %v5353
        %6509 = vmatprep.subr.bf16.mxu0 %v5362
        %6510 = vmatpush1.bf16.msra.mxu0 %v5361
        %6511 = vmatprep.subr.bf16.mxu0 %v5370
        %6512 = vmatpush1.bf16.msra.mxu0 %v5369
        %6513 = vmatprep.subr.bf16.mxu0 %v5378
        %6514 = vmatpush1.bf16.msra.mxu0 %v5377
        %6515 = vmatprep.subr.bf16.mxu0 %v5386
        %6516 = vmatpush1.bf16.msra.mxu0 %v5385
        %6517 = vmatprep.subr.bf16.mxu0 %v5394
        %6518 = vmatpush1.bf16.msra.mxu0 %v5393
        %6519 = vmatprep.subr.bf16.mxu0 %v5402
        %6520 = vmatpush1.bf16.msra.mxu0 %v5401
        %6521 = vmatprep.subr.bf16.mxu0 %v5410
        %6522 = vmatpush1.bf16.msra.mxu0 %v5409
        %6523 = vmatprep.subr.bf16.mxu0 %v5418
        %6524 = vmatpush1.bf16.msra.mxu0 %v5417
        %6525 = vmatprep.subr.bf16.mxu0 %v5426
        %6526 = vmatpush1.bf16.msra.mxu0 %v5425
        %6527 = vmatprep.subr.bf16.mxu0 %v5434
        %6528 = vmatpush1.bf16.msra.mxu0 %v5433
        %6529 = vmatprep.mubr.bf16.mxu0 %v6496
        %6530 = vmatmul.mubr.bf16.gmra.mrb[0].mxu0 %v6495
        %v6531 = vpop.f32.mrb[0].mxu0
        %v6532 = vadd.f32 0.0, %v6531
        %v6533 = vpop.f32.mrb[0].mxu0
        %v6534 = vadd.f32 0.0, %v6533
        %v6535 = vpop.f32.mrb[0].mxu0
        %v6536 = vpop.f32.mrb[0].mxu0
        %6537 = vdwg.mxu0
        %6538 = vmatprep.subr.bf16.mxu0 %v5316
        %6539 = vmatpush1.bf16.msra.mxu0 %v5315
        %6540 = vmatprep.subr.bf16.mxu0 %v5324
        %6541 = vmatpush1.bf16.msra.mxu0 %v5323
        %6542 = vmatprep.subr.bf16.mxu0 %v5332
        %6543 = vmatpush1.bf16.msra.mxu0 %v5331
        %6544 = vmatprep.subr.bf16.mxu0 %v5340
        %6545 = vmatpush1.bf16.msra.mxu0 %v5339
        %6546 = vmatprep.subr.bf16.mxu0 %v5348
        %6547 = vmatpush1.bf16.msra.mxu0 %v5347
        %6548 = vmatprep.subr.bf16.mxu0 %v5356
        %6549 = vmatpush1.bf16.msra.mxu0 %v5355
        %6550 = vmatprep.subr.bf16.mxu0 %v5364
        %6551 = vmatpush1.bf16.msra.mxu0 %v5363
        %6552 = vmatprep.subr.bf16.mxu0 %v5372
        %6553 = vmatpush1.bf16.msra.mxu0 %v5371
        %6554 = vmatprep.subr.bf16.mxu0 %v5380
        %6555 = vmatpush1.bf16.msra.mxu0 %v5379
        %6556 = vmatprep.subr.bf16.mxu0 %v5388
        %6557 = vmatpush1.bf16.msra.mxu0 %v5387
        %6558 = vmatprep.subr.bf16.mxu0 %v5396
        %6559 = vmatpush1.bf16.msra.mxu0 %v5395
        %6560 = vmatprep.subr.bf16.mxu0 %v5404
        %6561 = vmatpush1.bf16.msra.mxu0 %v5403
        %6562 = vmatprep.subr.bf16.mxu0 %v5412
        %6563 = vmatpush1.bf16.msra.mxu0 %v5411
        %6564 = vmatprep.subr.bf16.mxu0 %v5420
        %6565 = vmatpush1.bf16.msra.mxu0 %v5419
        %6566 = vmatprep.subr.bf16.mxu0 %v5428
        %6567 = vmatpush1.bf16.msra.mxu0 %v5427
        %6568 = vmatprep.subr.bf16.mxu0 %v5436
        %6569 = vmatpush1.bf16.msra.mxu0 %v5435
        %6570 = vmatprep.mubr.bf16.mxu0 %v6496
        %6571 = vmatmul.mubr.bf16.gmra.mrb[0].mxu0 %v6495
        %v6572 = vpop.f32.mrb[0].mxu0
        %v6573 = vadd.f32 0.0, %v6572
        %v6574 = vpop.f32.mrb[0].mxu0
        %v6575 = vadd.f32 0.0, %v6574
        %v6576 = vpop.f32.mrb[0].mxu0
        %v6577 = vpop.f32.mrb[0].mxu0
        %6578 = vdwg.mxu0
        %6579 = vmatprep.subr.bf16.mxu0 %v5318
        %6580 = vmatpush1.bf16.msra.mxu0 %v5317
        %6581 = vmatprep.subr.bf16.mxu0 %v5326
        %6582 = vmatpush1.bf16.msra.mxu0 %v5325
        %6583 = vmatprep.subr.bf16.mxu0 %v5334
        %6584 = vmatpush1.bf16.msra.mxu0 %v5333
        %6585 = vmatprep.subr.bf16.mxu0 %v5342
        %6586 = vmatpush1.bf16.msra.mxu0 %v5341
        %6587 = vmatprep.subr.bf16.mxu0 %v5350
        %6588 = vmatpush1.bf16.msra.mxu0 %v5349
        %6589 = vmatprep.subr.bf16.mxu0 %v5358
        %6590 = vmatpush1.bf16.msra.mxu0 %v5357
        %6591 = vmatprep.subr.bf16.mxu0 %v5366
        %6592 = vmatpush1.bf16.msra.mxu0 %v5365
        %6593 = vmatprep.subr.bf16.mxu0 %v5374
        %6594 = vmatpush1.bf16.msra.mxu0 %v5373
        %6595 = vmatprep.subr.bf16.mxu0 %v5382
        %6596 = vmatpush1.bf16.msra.mxu0 %v5381
        %6597 = vmatprep.subr.bf16.mxu0 %v5390
        %6598 = vmatpush1.bf16.msra.mxu0 %v5389
        %6599 = vmatprep.subr.bf16.mxu0 %v5398
        %6600 = vmatpush1.bf16.msra.mxu0 %v5397
        %6601 = vmatprep.subr.bf16.mxu0 %v5406
        %6602 = vmatpush1.bf16.msra.mxu0 %v5405
        %6603 = vmatprep.subr.bf16.mxu0 %v5414
        %6604 = vmatpush1.bf16.msra.mxu0 %v5413
        %6605 = vmatprep.subr.bf16.mxu0 %v5422
        %6606 = vmatpush1.bf16.msra.mxu0 %v5421
        %6607 = vmatprep.subr.bf16.mxu0 %v5430
        %6608 = vmatpush1.bf16.msra.mxu0 %v5429
        %6609 = vmatprep.subr.bf16.mxu0 %v5438
        %6610 = vmatpush1.bf16.msra.mxu0 %v5437
        %6611 = vmatprep.mubr.bf16.mxu0 %v6496
        %6612 = vmatmul.mubr.bf16.gmra.mrb[0].mxu0 %v6495
        %v6613 = vpop.f32.mrb[0].mxu0
        %v6614 = vadd.f32 0.0, %v6613
        %v6615 = vpop.f32.mrb[0].mxu0
        %v6616 = vadd.f32 0.0, %v6615
        %v6617 = vpop.f32.mrb[0].mxu0
        %v6618 = vpop.f32.mrb[0].mxu0
        %6619 = vdwg.mxu0
        %6620 = vmatprep.subr.bf16.mxu0 %v5320
        %6621 = vmatpush1.bf16.msra.mxu0 %v5319
        %6622 = vmatprep.subr.bf16.mxu0 %v5328
        %6623 = vmatpush1.bf16.msra.mxu0 %v5327
        %6624 = vmatprep.subr.bf16.mxu0 %v5336
        %6625 = vmatpush1.bf16.msra.mxu0 %v5335
        %6626 = vmatprep.subr.bf16.mxu0 %v5344
        %6627 = vmatpush1.bf16.msra.mxu0 %v5343
        %6628 = vmatprep.subr.bf16.mxu0 %v5352
        %6629 = vmatpush1.bf16.msra.mxu0 %v5351
        %6630 = vmatprep.subr.bf16.mxu0 %v5360
        %6631 = vmatpush1.bf16.msra.mxu0 %v5359
        %6632 = vmatprep.subr.bf16.mxu0 %v5368
        %6633 = vmatpush1.bf16.msra.mxu0 %v5367
        %6634 = vmatprep.subr.bf16.mxu0 %v5376
        %6635 = vmatpush1.bf16.msra.mxu0 %v5375
        %6636 = vmatprep.subr.bf16.mxu0 %v5384
        %6637 = vmatpush1.bf16.msra.mxu0 %v5383
        %6638 = vmatprep.subr.bf16.mxu0 %v5392
        %6639 = vmatpush1.bf16.msra.mxu0 %v5391
        %6640 = vmatprep.subr.bf16.mxu0 %v5400
        %6641 = vmatpush1.bf16.msra.mxu0 %v5399
        %6642 = vmatprep.subr.bf16.mxu0 %v5408
        %6643 = vmatpush1.bf16.msra.mxu0 %v5407
        %6644 = vmatprep.subr.bf16.mxu0 %v5416
        %6645 = vmatpush1.bf16.msra.mxu0 %v5415
        %6646 = vmatprep.subr.bf16.mxu0 %v5424
        %6647 = vmatpush1.bf16.msra.mxu0 %v5423
        %6648 = vmatprep.subr.bf16.mxu0 %v5432
        %6649 = vmatpush1.bf16.msra.mxu0 %v5431
        %6650 = vmatprep.subr.bf16.mxu0 %v5440
        %6651 = vmatpush1.bf16.msra.mxu0 %v5439
        %6652 = vmatprep.mubr.bf16.mxu0 %v6496
        %6653 = vmatmul.mubr.bf16.gmra.mrb[0].mxu0 %v6495
        %v6654 = vpop.f32.mrb[0].mxu0
        %v6655 = vadd.f32 0.0, %v6654
        %v6656 = vpop.f32.mrb[0].mxu0
        %v6657 = vadd.f32 0.0, %v6656
        %v6658 = vpop.f32.mrb[0].mxu0
        %v6659 = vpop.f32.mrb[0].mxu0
        %6660 = vdwg.mxu0
        %v6661 = vadd.f32 %v6487, %v6532
        %v6662 = vadd.f32 %v6488, %v6534
        %v6663 = vadd.f32 %v6489, %v6573
        %v6664 = vadd.f32 %v6490, %v6575
        %v6665 = vadd.f32 %v6491, %v6614
        %v6666 = vadd.f32 %v6492, %v6616
        %v6667 = vadd.f32 %v6493, %v6655
        %v6668 = vadd.f32 %v6494, %v6657
        %v6669 = vxor.u32 %v6661, 2147483648
        %v6670 = vxor.u32 %v6662, 2147483648
        %v6671 = vmul.f32 %v6669, 1.442695
        %v6672 = vpow.pop %v6671
        %v6673 = vmul.f32 %v6670, 1.442695
        %v6674 = vpow.pop %v6673
        %v6675 = vadd.f32 %v6672, 1.0
        %v6676 = vadd.f32 %v6674, 1.0
        %v6677 = vrcp.pop %v6675
        %v6678 = vmul.f32 1.0, %v6677
        %v6679 = vrcp.pop %v6676
        %v6680 = vmul.f32 1.0, %v6679
        %v6681 = vxor.u32 %v6663, 2147483648
        %v6682 = vxor.u32 %v6664, 2147483648
        %v6683 = vmul.f32 %v6681, 1.442695
        %v6684 = vpow.pop %v6683
        %v6685 = vmul.f32 %v6682, 1.442695
        %v6686 = vpow.pop %v6685
        %v6687 = vadd.f32 %v6684, 1.0
        %v6688 = vadd.f32 %v6686, 1.0
        %v6689 = vrcp.pop %v6687
        %v6690 = vmul.f32 1.0, %v6689
        %v6691 = vrcp.pop %v6688
        %v6692 = vmul.f32 1.0, %v6691
        %v6693 = vtanh.pop %v6665
        %v6694 = vtanh.pop %v6666
        %v6695 = vxor.u32 %v6667, 2147483648
        %v6696 = vxor.u32 %v6668, 2147483648
        %v6697 = vmul.f32 %v6695, 1.442695
        %v6698 = vpow.pop %v6697
        %v6699 = vmul.f32 %v6696, 1.442695
        %v6700 = vpow.pop %v6699
        %v6701 = vadd.f32 %v6698, 1.0
        %v6702 = vadd.f32 %v6700, 1.0
        %v6703 = vrcp.pop %v6701
        %v6704 = vmul.f32 1.0, %v6703
        %v6705 = vrcp.pop %v6702
        %v6706 = vmul.f32 1.0, %v6705
        %v6707 = vmul.f32 %v6690, %v6479
        %v6708 = vmul.f32 %v6692, %v6480
        %v6709 = vmul.f32 %v6678, %v6693
        %v6710 = vmul.f32 %v6680, %v6694
        %v6711 = vadd.f32 %v6707, %v6709
        %v6712 = vadd.f32 %v6708, %v6710
        %v6713 = vtanh.pop %v6711
        %v6714 = vtanh.pop %v6712
        %v6715 = vmul.f32 %v6704, %v6713
        %v6716 = vmul.f32 %v6706, %v6714
        %6717 = vst [vmem:[#allocation2 + $0x40] sm:$0xff] %v6715
        %6718 = vst [vmem:[#allocation2 + $0x48] sm:$0xff] %v6716
        %v6719 = vld [vmem:[#allocation3 + $0x140] sm:$0xff]
        %v6720 = vld [vmem:[#allocation3 + $0x148] sm:$0xff]
        %v6721 = vld [vmem:[#allocation3 + $0x150] sm:$0xff]
        %v6722 = vld [vmem:[#allocation3 + $0x158] sm:$0xff]
        %v6723 = vld [vmem:[#allocation3 + $0x160] sm:$0xff]
        %v6724 = vld [vmem:[#allocation3 + $0x168] sm:$0xff]
        %v6725 = vld [vmem:[#allocation3 + $0x170] sm:$0xff]
        %v6726 = vld [vmem:[#allocation3 + $0x178] sm:$0xff]
        %v6727 = vpack.c.bf16 %v6715, %v6715
        %v6728 = vpack.c.bf16 %v6716, %v6716
        %6729 = vmatprep.subr.bf16.mxu0 %v5314
        %6730 = vmatpush1.bf16.msra.mxu0 %v5313
        %6731 = vmatprep.subr.bf16.mxu0 %v5322
        %6732 = vmatpush1.bf16.msra.mxu0 %v5321
        %6733 = vmatprep.subr.bf16.mxu0 %v5330
        %6734 = vmatpush1.bf16.msra.mxu0 %v5329
        %6735 = vmatprep.subr.bf16.mxu0 %v5338
        %6736 = vmatpush1.bf16.msra.mxu0 %v5337
        %6737 = vmatprep.subr.bf16.mxu0 %v5346
        %6738 = vmatpush1.bf16.msra.mxu0 %v5345
        %6739 = vmatprep.subr.bf16.mxu0 %v5354
        %6740 = vmatpush1.bf16.msra.mxu0 %v5353
        %6741 = vmatprep.subr.bf16.mxu0 %v5362
        %6742 = vmatpush1.bf16.msra.mxu0 %v5361
        %6743 = vmatprep.subr.bf16.mxu0 %v5370
        %6744 = vmatpush1.bf16.msra.mxu0 %v5369
        %6745 = vmatprep.subr.bf16.mxu0 %v5378
        %6746 = vmatpush1.bf16.msra.mxu0 %v5377
        %6747 = vmatprep.subr.bf16.mxu0 %v5386
        %6748 = vmatpush1.bf16.msra.mxu0 %v5385
        %6749 = vmatprep.subr.bf16.mxu0 %v5394
        %6750 = vmatpush1.bf16.msra.mxu0 %v5393
        %6751 = vmatprep.subr.bf16.mxu0 %v5402
        %6752 = vmatpush1.bf16.msra.mxu0 %v5401
        %6753 = vmatprep.subr.bf16.mxu0 %v5410
        %6754 = vmatpush1.bf16.msra.mxu0 %v5409
        %6755 = vmatprep.subr.bf16.mxu0 %v5418
        %6756 = vmatpush1.bf16.msra.mxu0 %v5417
        %6757 = vmatprep.subr.bf16.mxu0 %v5426
        %6758 = vmatpush1.bf16.msra.mxu0 %v5425
        %6759 = vmatprep.subr.bf16.mxu0 %v5434
        %6760 = vmatpush1.bf16.msra.mxu0 %v5433
        %6761 = vmatprep.mubr.bf16.mxu0 %v6728
        %6762 = vmatmul.mubr.bf16.gmra.mrb[0].mxu0 %v6727
        %v6763 = vpop.f32.mrb[0].mxu0
        %v6764 = vadd.f32 0.0, %v6763
        %v6765 = vpop.f32.mrb[0].mxu0
        %v6766 = vadd.f32 0.0, %v6765
        %v6767 = vpop.f32.mrb[0].mxu0
        %v6768 = vpop.f32.mrb[0].mxu0
        %6769 = vdwg.mxu0
        %6770 = vmatprep.subr.bf16.mxu0 %v5316
        %6771 = vmatpush1.bf16.msra.mxu0 %v5315
        %6772 = vmatprep.subr.bf16.mxu0 %v5324
        %6773 = vmatpush1.bf16.msra.mxu0 %v5323
        %6774 = vmatprep.subr.bf16.mxu0 %v5332
        %6775 = vmatpush1.bf16.msra.mxu0 %v5331
        %6776 = vmatprep.subr.bf16.mxu0 %v5340
        %6777 = vmatpush1.bf16.msra.mxu0 %v5339
        %6778 = vmatprep.subr.bf16.mxu0 %v5348
        %6779 = vmatpush1.bf16.msra.mxu0 %v5347
        %6780 = vmatprep.subr.bf16.mxu0 %v5356
        %6781 = vmatpush1.bf16.msra.mxu0 %v5355
        %6782 = vmatprep.subr.bf16.mxu0 %v5364
        %6783 = vmatpush1.bf16.msra.mxu0 %v5363
        %6784 = vmatprep.subr.bf16.mxu0 %v5372
        %6785 = vmatpush1.bf16.msra.mxu0 %v5371
        %6786 = vmatprep.subr.bf16.mxu0 %v5380
        %6787 = vmatpush1.bf16.msra.mxu0 %v5379
        %6788 = vmatprep.subr.bf16.mxu0 %v5388
        %6789 = vmatpush1.bf16.msra.mxu0 %v5387
        %6790 = vmatprep.subr.bf16.mxu0 %v5396
        %6791 = vmatpush1.bf16.msra.mxu0 %v5395
        %6792 = vmatprep.subr.bf16.mxu0 %v5404
        %6793 = vmatpush1.bf16.msra.mxu0 %v5403
        %6794 = vmatprep.subr.bf16.mxu0 %v5412
        %6795 = vmatpush1.bf16.msra.mxu0 %v5411
        %6796 = vmatprep.subr.bf16.mxu0 %v5420
        %6797 = vmatpush1.bf16.msra.mxu0 %v5419
        %6798 = vmatprep.subr.bf16.mxu0 %v5428
        %6799 = vmatpush1.bf16.msra.mxu0 %v5427
        %6800 = vmatprep.subr.bf16.mxu0 %v5436
        %6801 = vmatpush1.bf16.msra.mxu0 %v5435
        %6802 = vmatprep.mubr.bf16.mxu0 %v6728
        %6803 = vmatmul.mubr.bf16.gmra.mrb[0].mxu0 %v6727
        %v6804 = vpop.f32.mrb[0].mxu0
        %v6805 = vadd.f32 0.0, %v6804
        %v6806 = vpop.f32.mrb[0].mxu0
        %v6807 = vadd.f32 0.0, %v6806
        %v6808 = vpop.f32.mrb[0].mxu0
        %v6809 = vpop.f32.mrb[0].mxu0
        %6810 = vdwg.mxu0
        %6811 = vmatprep.subr.bf16.mxu0 %v5318
        %6812 = vmatpush1.bf16.msra.mxu0 %v5317
        %6813 = vmatprep.subr.bf16.mxu0 %v5326
        %6814 = vmatpush1.bf16.msra.mxu0 %v5325
        %6815 = vmatprep.subr.bf16.mxu0 %v5334
        %6816 = vmatpush1.bf16.msra.mxu0 %v5333
        %6817 = vmatprep.subr.bf16.mxu0 %v5342
        %6818 = vmatpush1.bf16.msra.mxu0 %v5341
        %6819 = vmatprep.subr.bf16.mxu0 %v5350
        %6820 = vmatpush1.bf16.msra.mxu0 %v5349
        %6821 = vmatprep.subr.bf16.mxu0 %v5358
        %6822 = vmatpush1.bf16.msra.mxu0 %v5357
        %6823 = vmatprep.subr.bf16.mxu0 %v5366
        %6824 = vmatpush1.bf16.msra.mxu0 %v5365
        %6825 = vmatprep.subr.bf16.mxu0 %v5374
        %6826 = vmatpush1.bf16.msra.mxu0 %v5373
        %6827 = vmatprep.subr.bf16.mxu0 %v5382
        %6828 = vmatpush1.bf16.msra.mxu0 %v5381
        %6829 = vmatprep.subr.bf16.mxu0 %v5390
        %6830 = vmatpush1.bf16.msra.mxu0 %v5389
        %6831 = vmatprep.subr.bf16.mxu0 %v5398
        %6832 = vmatpush1.bf16.msra.mxu0 %v5397
        %6833 = vmatprep.subr.bf16.mxu0 %v5406
        %6834 = vmatpush1.bf16.msra.mxu0 %v5405
        %6835 = vmatprep.subr.bf16.mxu0 %v5414
        %6836 = vmatpush1.bf16.msra.mxu0 %v5413
        %6837 = vmatprep.subr.bf16.mxu0 %v5422
        %6838 = vmatpush1.bf16.msra.mxu0 %v5421
        %6839 = vmatprep.subr.bf16.mxu0 %v5430
        %6840 = vmatpush1.bf16.msra.mxu0 %v5429
        %6841 = vmatprep.subr.bf16.mxu0 %v5438
        %6842 = vmatpush1.bf16.msra.mxu0 %v5437
        %6843 = vmatprep.mubr.bf16.mxu0 %v6728
        %6844 = vmatmul.mubr.bf16.gmra.mrb[0].mxu0 %v6727
        %v6845 = vpop.f32.mrb[0].mxu0
        %v6846 = vadd.f32 0.0, %v6845
        %v6847 = vpop.f32.mrb[0].mxu0
        %v6848 = vadd.f32 0.0, %v6847
        %v6849 = vpop.f32.mrb[0].mxu0
        %v6850 = vpop.f32.mrb[0].mxu0
        %6851 = vdwg.mxu0
        %6852 = vmatprep.subr.bf16.mxu0 %v5320
        %6853 = vmatpush1.bf16.msra.mxu0 %v5319
        %6854 = vmatprep.subr.bf16.mxu0 %v5328
        %6855 = vmatpush1.bf16.msra.mxu0 %v5327
        %6856 = vmatprep.subr.bf16.mxu0 %v5336
        %6857 = vmatpush1.bf16.msra.mxu0 %v5335
        %6858 = vmatprep.subr.bf16.mxu0 %v5344
        %6859 = vmatpush1.bf16.msra.mxu0 %v5343
        %6860 = vmatprep.subr.bf16.mxu0 %v5352
        %6861 = vmatpush1.bf16.msra.mxu0 %v5351
        %6862 = vmatprep.subr.bf16.mxu0 %v5360
        %6863 = vmatpush1.bf16.msra.mxu0 %v5359
        %6864 = vmatprep.subr.bf16.mxu0 %v5368
        %6865 = vmatpush1.bf16.msra.mxu0 %v5367
        %6866 = vmatprep.subr.bf16.mxu0 %v5376
        %6867 = vmatpush1.bf16.msra.mxu0 %v5375
        %6868 = vmatprep.subr.bf16.mxu0 %v5384
        %6869 = vmatpush1.bf16.msra.mxu0 %v5383
        %6870 = vmatprep.subr.bf16.mxu0 %v5392
        %6871 = vmatpush1.bf16.msra.mxu0 %v5391
        %6872 = vmatprep.subr.bf16.mxu0 %v5400
        %6873 = vmatpush1.bf16.msra.mxu0 %v5399
        %6874 = vmatprep.subr.bf16.mxu0 %v5408
        %6875 = vmatpush1.bf16.msra.mxu0 %v5407
        %6876 = vmatprep.subr.bf16.mxu0 %v5416
        %6877 = vmatpush1.bf16.msra.mxu0 %v5415
        %6878 = vmatprep.subr.bf16.mxu0 %v5424
        %6879 = vmatpush1.bf16.msra.mxu0 %v5423
        %6880 = vmatprep.subr.bf16.mxu0 %v5432
        %6881 = vmatpush1.bf16.msra.mxu0 %v5431
        %6882 = vmatprep.subr.bf16.mxu0 %v5440
        %6883 = vmatpush1.bf16.msra.mxu0 %v5439
        %6884 = vmatprep.mubr.bf16.mxu0 %v6728
        %6885 = vmatmul.mubr.bf16.gmra.mrb[0].mxu0 %v6727
        %v6886 = vpop.f32.mrb[0].mxu0
        %v6887 = vadd.f32 0.0, %v6886
        %v6888 = vpop.f32.mrb[0].mxu0
        %v6889 = vadd.f32 0.0, %v6888
        %v6890 = vpop.f32.mrb[0].mxu0
        %v6891 = vpop.f32.mrb[0].mxu0
        %6892 = vdwg.mxu0
        %v6893 = vadd.f32 %v6719, %v6764
        %v6894 = vadd.f32 %v6720, %v6766
        %v6895 = vadd.f32 %v6721, %v6805
        %v6896 = vadd.f32 %v6722, %v6807
        %v6897 = vadd.f32 %v6723, %v6846
        %v6898 = vadd.f32 %v6724, %v6848
        %v6899 = vadd.f32 %v6725, %v6887
        %v6900 = vadd.f32 %v6726, %v6889
        %v6901 = vxor.u32 %v6893, 2147483648
        %v6902 = vxor.u32 %v6894, 2147483648
        %v6903 = vmul.f32 %v6901, 1.442695
        %v6904 = vpow.pop %v6903
        %v6905 = vmul.f32 %v6902, 1.442695
        %v6906 = vpow.pop %v6905
        %v6907 = vadd.f32 %v6904, 1.0
        %v6908 = vadd.f32 %v6906, 1.0
        %v6909 = vrcp.pop %v6907
        %v6910 = vmul.f32 1.0, %v6909
        %v6911 = vrcp.pop %v6908
        %v6912 = vmul.f32 1.0, %v6911
        %v6913 = vxor.u32 %v6895, 2147483648
        %v6914 = vxor.u32 %v6896, 2147483648
        %v6915 = vmul.f32 %v6913, 1.442695
        %v6916 = vpow.pop %v6915
        %v6917 = vmul.f32 %v6914, 1.442695
        %v6918 = vpow.pop %v6917
        %v6919 = vadd.f32 %v6916, 1.0
        %v6920 = vadd.f32 %v6918, 1.0
        %v6921 = vrcp.pop %v6919
        %v6922 = vmul.f32 1.0, %v6921
        %v6923 = vrcp.pop %v6920
        %v6924 = vmul.f32 1.0, %v6923
        %v6925 = vtanh.pop %v6897
        %v6926 = vtanh.pop %v6898
        %v6927 = vxor.u32 %v6899, 2147483648
        %v6928 = vxor.u32 %v6900, 2147483648
        %v6929 = vmul.f32 %v6927, 1.442695
        %v6930 = vpow.pop %v6929
        %v6931 = vmul.f32 %v6928, 1.442695
        %v6932 = vpow.pop %v6931
        %v6933 = vadd.f32 %v6930, 1.0
        %v6934 = vadd.f32 %v6932, 1.0
        %v6935 = vrcp.pop %v6933
        %v6936 = vmul.f32 1.0, %v6935
        %v6937 = vrcp.pop %v6934
        %v6938 = vmul.f32 1.0, %v6937
        %v6939 = vmul.f32 %v6922, %v6711
        %v6940 = vmul.f32 %v6924, %v6712
        %v6941 = vmul.f32 %v6910, %v6925
        %v6942 = vmul.f32 %v6912, %v6926
        %v6943 = vadd.f32 %v6939, %v6941
        %v6944 = vadd.f32 %v6940, %v6942
        %v6945 = vtanh.pop %v6943
        %v6946 = vtanh.pop %v6944
        %v6947 = vmul.f32 %v6936, %v6945
        %v6948 = vmul.f32 %v6938, %v6946
        %6949 = vst [vmem:[#allocation2 + $0x50] sm:$0xff] %v6947
        %6950 = vst [vmem:[#allocation2 + $0x58] sm:$0xff] %v6948
        %v6951 = vld [vmem:[#allocation3 + $0x180] sm:$0xff]
        %v6952 = vld [vmem:[#allocation3 + $0x188] sm:$0xff]
        %v6953 = vld [vmem:[#allocation3 + $0x190] sm:$0xff]
        %v6954 = vld [vmem:[#allocation3 + $0x198] sm:$0xff]
        %v6955 = vld [vmem:[#allocation3 + $0x1a0] sm:$0xff]
        %v6956 = vld [vmem:[#allocation3 + $0x1a8] sm:$0xff]
        %v6957 = vld [vmem:[#allocation3 + $0x1b0] sm:$0xff]
        %v6958 = vld [vmem:[#allocation3 + $0x1b8] sm:$0xff]
        %v6959 = vpack.c.bf16 %v6947, %v6947
        %v6960 = vpack.c.bf16 %v6948, %v6948
        %6961 = vmatprep.subr.bf16.mxu0 %v5314
        %6962 = vmatpush1.bf16.msra.mxu0 %v5313
        %6963 = vmatprep.subr.bf16.mxu0 %v5322
        %6964 = vmatpush1.bf16.msra.mxu0 %v5321
        %6965 = vmatprep.subr.bf16.mxu0 %v5330
        %6966 = vmatpush1.bf16.msra.mxu0 %v5329
        %6967 = vmatprep.subr.bf16.mxu0 %v5338
        %6968 = vmatpush1.bf16.msra.mxu0 %v5337
        %6969 = vmatprep.subr.bf16.mxu0 %v5346
        %6970 = vmatpush1.bf16.msra.mxu0 %v5345
        %6971 = vmatprep.subr.bf16.mxu0 %v5354
        %6972 = vmatpush1.bf16.msra.mxu0 %v5353
        %6973 = vmatprep.subr.bf16.mxu0 %v5362
        %6974 = vmatpush1.bf16.msra.mxu0 %v5361
        %6975 = vmatprep.subr.bf16.mxu0 %v5370
        %6976 = vmatpush1.bf16.msra.mxu0 %v5369
        %6977 = vmatprep.subr.bf16.mxu0 %v5378
        %6978 = vmatpush1.bf16.msra.mxu0 %v5377
        %6979 = vmatprep.subr.bf16.mxu0 %v5386
        %6980 = vmatpush1.bf16.msra.mxu0 %v5385
        %6981 = vmatprep.subr.bf16.mxu0 %v5394
        %6982 = vmatpush1.bf16.msra.mxu0 %v5393
        %6983 = vmatprep.subr.bf16.mxu0 %v5402
        %6984 = vmatpush1.bf16.msra.mxu0 %v5401
        %6985 = vmatprep.subr.bf16.mxu0 %v5410
        %6986 = vmatpush1.bf16.msra.mxu0 %v5409
        %6987 = vmatprep.subr.bf16.mxu0 %v5418
        %6988 = vmatpush1.bf16.msra.mxu0 %v5417
        %6989 = vmatprep.subr.bf16.mxu0 %v5426
        %6990 = vmatpush1.bf16.msra.mxu0 %v5425
        %6991 = vmatprep.subr.bf16.mxu0 %v5434
        %6992 = vmatpush1.bf16.msra.mxu0 %v5433
        %6993 = vmatprep.mubr.bf16.mxu0 %v6960
        %6994 = vmatmul.mubr.bf16.gmra.mrb[0].mxu0 %v6959
        %v6995 = vpop.f32.mrb[0].mxu0
        %v6996 = vadd.f32 0.0, %v6995
        %v6997 = vpop.f32.mrb[0].mxu0
        %v6998 = vadd.f32 0.0, %v6997
        %v6999 = vpop.f32.mrb[0].mxu0
        %v7000 = vpop.f32.mrb[0].mxu0
        %7001 = vdwg.mxu0
        %7002 = vmatprep.subr.bf16.mxu0 %v5316
        %7003 = vmatpush1.bf16.msra.mxu0 %v5315
        %7004 = vmatprep.subr.bf16.mxu0 %v5324
        %7005 = vmatpush1.bf16.msra.mxu0 %v5323
        %7006 = vmatprep.subr.bf16.mxu0 %v5332
        %7007 = vmatpush1.bf16.msra.mxu0 %v5331
        %7008 = vmatprep.subr.bf16.mxu0 %v5340
        %7009 = vmatpush1.bf16.msra.mxu0 %v5339
        %7010 = vmatprep.subr.bf16.mxu0 %v5348
        %7011 = vmatpush1.bf16.msra.mxu0 %v5347
        %7012 = vmatprep.subr.bf16.mxu0 %v5356
        %7013 = vmatpush1.bf16.msra.mxu0 %v5355
        %7014 = vmatprep.subr.bf16.mxu0 %v5364
        %7015 = vmatpush1.bf16.msra.mxu0 %v5363
        %7016 = vmatprep.subr.bf16.mxu0 %v5372
        %7017 = vmatpush1.bf16.msra.mxu0 %v5371
        %7018 = vmatprep.subr.bf16.mxu0 %v5380
        %7019 = vmatpush1.bf16.msra.mxu0 %v5379
        %7020 = vmatprep.subr.bf16.mxu0 %v5388
        %7021 = vmatpush1.bf16.msra.mxu0 %v5387
        %7022 = vmatprep.subr.bf16.mxu0 %v5396
        %7023 = vmatpush1.bf16.msra.mxu0 %v5395
        %7024 = vmatprep.subr.bf16.mxu0 %v5404
        %7025 = vmatpush1.bf16.msra.mxu0 %v5403
        %7026 = vmatprep.subr.bf16.mxu0 %v5412
        %7027 = vmatpush1.bf16.msra.mxu0 %v5411
        %7028 = vmatprep.subr.bf16.mxu0 %v5420
        %7029 = vmatpush1.bf16.msra.mxu0 %v5419
        %7030 = vmatprep.subr.bf16.mxu0 %v5428
        %7031 = vmatpush1.bf16.msra.mxu0 %v5427
        %7032 = vmatprep.subr.bf16.mxu0 %v5436
        %7033 = vmatpush1.bf16.msra.mxu0 %v5435
        %7034 = vmatprep.mubr.bf16.mxu0 %v6960
        %7035 = vmatmul.mubr.bf16.gmra.mrb[0].mxu0 %v6959
        %v7036 = vpop.f32.mrb[0].mxu0
        %v7037 = vadd.f32 0.0, %v7036
        %v7038 = vpop.f32.mrb[0].mxu0
        %v7039 = vadd.f32 0.0, %v7038
        %v7040 = vpop.f32.mrb[0].mxu0
        %v7041 = vpop.f32.mrb[0].mxu0
        %7042 = vdwg.mxu0
        %7043 = vmatprep.subr.bf16.mxu0 %v5318
        %7044 = vmatpush1.bf16.msra.mxu0 %v5317
        %7045 = vmatprep.subr.bf16.mxu0 %v5326
        %7046 = vmatpush1.bf16.msra.mxu0 %v5325
        %7047 = vmatprep.subr.bf16.mxu0 %v5334
        %7048 = vmatpush1.bf16.msra.mxu0 %v5333
        %7049 = vmatprep.subr.bf16.mxu0 %v5342
        %7050 = vmatpush1.bf16.msra.mxu0 %v5341
        %7051 = vmatprep.subr.bf16.mxu0 %v5350
        %7052 = vmatpush1.bf16.msra.mxu0 %v5349
        %7053 = vmatprep.subr.bf16.mxu0 %v5358
        %7054 = vmatpush1.bf16.msra.mxu0 %v5357
        %7055 = vmatprep.subr.bf16.mxu0 %v5366
        %7056 = vmatpush1.bf16.msra.mxu0 %v5365
        %7057 = vmatprep.subr.bf16.mxu0 %v5374
        %7058 = vmatpush1.bf16.msra.mxu0 %v5373
        %7059 = vmatprep.subr.bf16.mxu0 %v5382
        %7060 = vmatpush1.bf16.msra.mxu0 %v5381
        %7061 = vmatprep.subr.bf16.mxu0 %v5390
        %7062 = vmatpush1.bf16.msra.mxu0 %v5389
        %7063 = vmatprep.subr.bf16.mxu0 %v5398
        %7064 = vmatpush1.bf16.msra.mxu0 %v5397
        %7065 = vmatprep.subr.bf16.mxu0 %v5406
        %7066 = vmatpush1.bf16.msra.mxu0 %v5405
        %7067 = vmatprep.subr.bf16.mxu0 %v5414
        %7068 = vmatpush1.bf16.msra.mxu0 %v5413
        %7069 = vmatprep.subr.bf16.mxu0 %v5422
        %7070 = vmatpush1.bf16.msra.mxu0 %v5421
        %7071 = vmatprep.subr.bf16.mxu0 %v5430
        %7072 = vmatpush1.bf16.msra.mxu0 %v5429
        %7073 = vmatprep.subr.bf16.mxu0 %v5438
        %7074 = vmatpush1.bf16.msra.mxu0 %v5437
        %7075 = vmatprep.mubr.bf16.mxu0 %v6960
        %7076 = vmatmul.mubr.bf16.gmra.mrb[0].mxu0 %v6959
        %v7077 = vpop.f32.mrb[0].mxu0
        %v7078 = vadd.f32 0.0, %v7077
        %v7079 = vpop.f32.mrb[0].mxu0
        %v7080 = vadd.f32 0.0, %v7079
        %v7081 = vpop.f32.mrb[0].mxu0
        %v7082 = vpop.f32.mrb[0].mxu0
        %7083 = vdwg.mxu0
        %7084 = vmatprep.subr.bf16.mxu0 %v5320
        %7085 = vmatpush1.bf16.msra.mxu0 %v5319
        %7086 = vmatprep.subr.bf16.mxu0 %v5328
        %7087 = vmatpush1.bf16.msra.mxu0 %v5327
        %7088 = vmatprep.subr.bf16.mxu0 %v5336
        %7089 = vmatpush1.bf16.msra.mxu0 %v5335
        %7090 = vmatprep.subr.bf16.mxu0 %v5344
        %7091 = vmatpush1.bf16.msra.mxu0 %v5343
        %7092 = vmatprep.subr.bf16.mxu0 %v5352
        %7093 = vmatpush1.bf16.msra.mxu0 %v5351
        %7094 = vmatprep.subr.bf16.mxu0 %v5360
        %7095 = vmatpush1.bf16.msra.mxu0 %v5359
        %7096 = vmatprep.subr.bf16.mxu0 %v5368
        %7097 = vmatpush1.bf16.msra.mxu0 %v5367
        %7098 = vmatprep.subr.bf16.mxu0 %v5376
        %7099 = vmatpush1.bf16.msra.mxu0 %v5375
        %7100 = vmatprep.subr.bf16.mxu0 %v5384
        %7101 = vmatpush1.bf16.msra.mxu0 %v5383
        %7102 = vmatprep.subr.bf16.mxu0 %v5392
        %7103 = vmatpush1.bf16.msra.mxu0 %v5391
        %7104 = vmatprep.subr.bf16.mxu0 %v5400
        %7105 = vmatpush1.bf16.msra.mxu0 %v5399
        %7106 = vmatprep.subr.bf16.mxu0 %v5408
        %7107 = vmatpush1.bf16.msra.mxu0 %v5407
        %7108 = vmatprep.subr.bf16.mxu0 %v5416
        %7109 = vmatpush1.bf16.msra.mxu0 %v5415
        %7110 = vmatprep.subr.bf16.mxu0 %v5424
        %7111 = vmatpush1.bf16.msra.mxu0 %v5423
        %7112 = vmatprep.subr.bf16.mxu0 %v5432
        %7113 = vmatpush1.bf16.msra.mxu0 %v5431
        %7114 = vmatprep.subr.bf16.mxu0 %v5440
        %7115 = vmatpush1.bf16.msra.mxu0 %v5439
        %7116 = vmatprep.mubr.bf16.mxu0 %v6960
        %7117 = vmatmul.mubr.bf16.gmra.mrb[0].mxu0 %v6959
        %v7118 = vpop.f32.mrb[0].mxu0
        %v7119 = vadd.f32 0.0, %v7118
        %v7120 = vpop.f32.mrb[0].mxu0
        %v7121 = vadd.f32 0.0, %v7120
        %v7122 = vpop.f32.mrb[0].mxu0
        %v7123 = vpop.f32.mrb[0].mxu0
        %7124 = vdwg.mxu0
        %v7125 = vadd.f32 %v6951, %v6996
        %v7126 = vadd.f32 %v6952, %v6998
        %v7127 = vadd.f32 %v6953, %v7037
        %v7128 = vadd.f32 %v6954, %v7039
        %v7129 = vadd.f32 %v6955, %v7078
        %v7130 = vadd.f32 %v6956, %v7080
        %v7131 = vadd.f32 %v6957, %v7119
        %v7132 = vadd.f32 %v6958, %v7121
        %v7133 = vxor.u32 %v7125, 2147483648
        %v7134 = vxor.u32 %v7126, 2147483648
        %v7135 = vmul.f32 %v7133, 1.442695
        %v7136 = vpow.pop %v7135
        %v7137 = vmul.f32 %v7134, 1.442695
        %v7138 = vpow.pop %v7137
        %v7139 = vadd.f32 %v7136, 1.0
        %v7140 = vadd.f32 %v7138, 1.0
        %v7141 = vrcp.pop %v7139
        %v7142 = vmul.f32 1.0, %v7141
        %v7143 = vrcp.pop %v7140
        %v7144 = vmul.f32 1.0, %v7143
        %v7145 = vxor.u32 %v7127, 2147483648
        %v7146 = vxor.u32 %v7128, 2147483648
        %v7147 = vmul.f32 %v7145, 1.442695
        %v7148 = vpow.pop %v7147
        %v7149 = vmul.f32 %v7146, 1.442695
        %v7150 = vpow.pop %v7149
        %v7151 = vadd.f32 %v7148, 1.0
        %v7152 = vadd.f32 %v7150, 1.0
        %v7153 = vrcp.pop %v7151
        %v7154 = vmul.f32 1.0, %v7153
        %v7155 = vrcp.pop %v7152
        %v7156 = vmul.f32 1.0, %v7155
        %v7157 = vtanh.pop %v7129
        %v7158 = vtanh.pop %v7130
        %v7159 = vxor.u32 %v7131, 2147483648
        %v7160 = vxor.u32 %v7132, 2147483648
        %v7161 = vmul.f32 %v7159, 1.442695
        %v7162 = vpow.pop %v7161
        %v7163 = vmul.f32 %v7160, 1.442695
        %v7164 = vpow.pop %v7163
        %v7165 = vadd.f32 %v7162, 1.0
        %v7166 = vadd.f32 %v7164, 1.0
        %v7167 = vrcp.pop %v7165
        %v7168 = vmul.f32 1.0, %v7167
        %v7169 = vrcp.pop %v7166
        %v7170 = vmul.f32 1.0, %v7169
        %v7171 = vmul.f32 %v7154, %v6943
        %v7172 = vmul.f32 %v7156, %v6944
        %v7173 = vmul.f32 %v7142, %v7157
        %v7174 = vmul.f32 %v7144, %v7158
        %v7175 = vadd.f32 %v7171, %v7173
        %v7176 = vadd.f32 %v7172, %v7174
        %v7177 = vtanh.pop %v7175
        %v7178 = vtanh.pop %v7176
        %v7179 = vmul.f32 %v7168, %v7177
        %v7180 = vmul.f32 %v7170, %v7178
        %7181 = vst [vmem:[#allocation2 + $0x60] sm:$0xff] %v7179
        %7182 = vst [vmem:[#allocation2 + $0x68] sm:$0xff] %v7180
        %v7183 = vld [vmem:[#allocation3 + $0x1c0] sm:$0xff]
        %v7184 = vld [vmem:[#allocation3 + $0x1c8] sm:$0xff]
        %v7185 = vld [vmem:[#allocation3 + $0x1d0] sm:$0xff]
        %v7186 = vld [vmem:[#allocation3 + $0x1d8] sm:$0xff]
        %v7187 = vld [vmem:[#allocation3 + $0x1e0] sm:$0xff]
        %v7188 = vld [vmem:[#allocation3 + $0x1e8] sm:$0xff]
        %v7189 = vld [vmem:[#allocation3 + $0x1f0] sm:$0xff]
        %v7190 = vld [vmem:[#allocation3 + $0x1f8] sm:$0xff]
        %v7191 = vpack.c.bf16 %v7179, %v7179
        %v7192 = vpack.c.bf16 %v7180, %v7180
        %7193 = vmatprep.subr.bf16.mxu0 %v5314
        %7194 = vmatpush1.bf16.msra.mxu0 %v5313
        %7195 = vmatprep.subr.bf16.mxu0 %v5322
        %7196 = vmatpush1.bf16.msra.mxu0 %v5321
        %7197 = vmatprep.subr.bf16.mxu0 %v5330
        %7198 = vmatpush1.bf16.msra.mxu0 %v5329
        %7199 = vmatprep.subr.bf16.mxu0 %v5338
        %7200 = vmatpush1.bf16.msra.mxu0 %v5337
        %7201 = vmatprep.subr.bf16.mxu0 %v5346
        %7202 = vmatpush1.bf16.msra.mxu0 %v5345
        %7203 = vmatprep.subr.bf16.mxu0 %v5354
        %7204 = vmatpush1.bf16.msra.mxu0 %v5353
        %7205 = vmatprep.subr.bf16.mxu0 %v5362
        %7206 = vmatpush1.bf16.msra.mxu0 %v5361
        %7207 = vmatprep.subr.bf16.mxu0 %v5370
        %7208 = vmatpush1.bf16.msra.mxu0 %v5369
        %7209 = vmatprep.subr.bf16.mxu0 %v5378
        %7210 = vmatpush1.bf16.msra.mxu0 %v5377
        %7211 = vmatprep.subr.bf16.mxu0 %v5386
        %7212 = vmatpush1.bf16.msra.mxu0 %v5385
        %7213 = vmatprep.subr.bf16.mxu0 %v5394
        %7214 = vmatpush1.bf16.msra.mxu0 %v5393
        %7215 = vmatprep.subr.bf16.mxu0 %v5402
        %7216 = vmatpush1.bf16.msra.mxu0 %v5401
        %7217 = vmatprep.subr.bf16.mxu0 %v5410
        %7218 = vmatpush1.bf16.msra.mxu0 %v5409
        %7219 = vmatprep.subr.bf16.mxu0 %v5418
        %7220 = vmatpush1.bf16.msra.mxu0 %v5417
        %7221 = vmatprep.subr.bf16.mxu0 %v5426
        %7222 = vmatpush1.bf16.msra.mxu0 %v5425
        %7223 = vmatprep.subr.bf16.mxu0 %v5434
        %7224 = vmatpush1.bf16.msra.mxu0 %v5433
        %7225 = vmatprep.mubr.bf16.mxu0 %v7192
        %7226 = vmatmul.mubr.bf16.gmra.mrb[0].mxu0 %v7191
        %v7227 = vpop.f32.mrb[0].mxu0
        %v7228 = vadd.f32 0.0, %v7227
        %v7229 = vpop.f32.mrb[0].mxu0
        %v7230 = vadd.f32 0.0, %v7229
        %v7231 = vpop.f32.mrb[0].mxu0
        %v7232 = vpop.f32.mrb[0].mxu0
        %7233 = vdwg.mxu0
        %7234 = vmatprep.subr.bf16.mxu0 %v5316
        %7235 = vmatpush1.bf16.msra.mxu0 %v5315
        %7236 = vmatprep.subr.bf16.mxu0 %v5324
        %7237 = vmatpush1.bf16.msra.mxu0 %v5323
        %7238 = vmatprep.subr.bf16.mxu0 %v5332
        %7239 = vmatpush1.bf16.msra.mxu0 %v5331
        %7240 = vmatprep.subr.bf16.mxu0 %v5340
        %7241 = vmatpush1.bf16.msra.mxu0 %v5339
        %7242 = vmatprep.subr.bf16.mxu0 %v5348
        %7243 = vmatpush1.bf16.msra.mxu0 %v5347
        %7244 = vmatprep.subr.bf16.mxu0 %v5356
        %7245 = vmatpush1.bf16.msra.mxu0 %v5355
        %7246 = vmatprep.subr.bf16.mxu0 %v5364
        %7247 = vmatpush1.bf16.msra.mxu0 %v5363
        %7248 = vmatprep.subr.bf16.mxu0 %v5372
        %7249 = vmatpush1.bf16.msra.mxu0 %v5371
        %7250 = vmatprep.subr.bf16.mxu0 %v5380
        %7251 = vmatpush1.bf16.msra.mxu0 %v5379
        %7252 = vmatprep.subr.bf16.mxu0 %v5388
        %7253 = vmatpush1.bf16.msra.mxu0 %v5387
        %7254 = vmatprep.subr.bf16.mxu0 %v5396
        %7255 = vmatpush1.bf16.msra.mxu0 %v5395
        %7256 = vmatprep.subr.bf16.mxu0 %v5404
        %7257 = vmatpush1.bf16.msra.mxu0 %v5403
        %7258 = vmatprep.subr.bf16.mxu0 %v5412
        %7259 = vmatpush1.bf16.msra.mxu0 %v5411
        %7260 = vmatprep.subr.bf16.mxu0 %v5420
        %7261 = vmatpush1.bf16.msra.mxu0 %v5419
        %7262 = vmatprep.subr.bf16.mxu0 %v5428
        %7263 = vmatpush1.bf16.msra.mxu0 %v5427
        %7264 = vmatprep.subr.bf16.mxu0 %v5436
        %7265 = vmatpush1.bf16.msra.mxu0 %v5435
        %7266 = vmatprep.mubr.bf16.mxu0 %v7192
        %7267 = vmatmul.mubr.bf16.gmra.mrb[0].mxu0 %v7191
        %v7268 = vpop.f32.mrb[0].mxu0
        %v7269 = vadd.f32 0.0, %v7268
        %v7270 = vpop.f32.mrb[0].mxu0
        %v7271 = vadd.f32 0.0, %v7270
        %v7272 = vpop.f32.mrb[0].mxu0
        %v7273 = vpop.f32.mrb[0].mxu0
        %7274 = vdwg.mxu0
        %7275 = vmatprep.subr.bf16.mxu0 %v5318
        %7276 = vmatpush1.bf16.msra.mxu0 %v5317
        %7277 = vmatprep.subr.bf16.mxu0 %v5326
        %7278 = vmatpush1.bf16.msra.mxu0 %v5325
        %7279 = vmatprep.subr.bf16.mxu0 %v5334
        %7280 = vmatpush1.bf16.msra.mxu0 %v5333
        %7281 = vmatprep.subr.bf16.mxu0 %v5342
        %7282 = vmatpush1.bf16.msra.mxu0 %v5341
        %7283 = vmatprep.subr.bf16.mxu0 %v5350
        %7284 = vmatpush1.bf16.msra.mxu0 %v5349
        %7285 = vmatprep.subr.bf16.mxu0 %v5358
        %7286 = vmatpush1.bf16.msra.mxu0 %v5357
        %7287 = vmatprep.subr.bf16.mxu0 %v5366
        %7288 = vmatpush1.bf16.msra.mxu0 %v5365
        %7289 = vmatprep.subr.bf16.mxu0 %v5374
        %7290 = vmatpush1.bf16.msra.mxu0 %v5373
        %7291 = vmatprep.subr.bf16.mxu0 %v5382
        %7292 = vmatpush1.bf16.msra.mxu0 %v5381
        %7293 = vmatprep.subr.bf16.mxu0 %v5390
        %7294 = vmatpush1.bf16.msra.mxu0 %v5389
        %7295 = vmatprep.subr.bf16.mxu0 %v5398
        %7296 = vmatpush1.bf16.msra.mxu0 %v5397
        %7297 = vmatprep.subr.bf16.mxu0 %v5406
        %7298 = vmatpush1.bf16.msra.mxu0 %v5405
        %7299 = vmatprep.subr.bf16.mxu0 %v5414
        %7300 = vmatpush1.bf16.msra.mxu0 %v5413
        %7301 = vmatprep.subr.bf16.mxu0 %v5422
        %7302 = vmatpush1.bf16.msra.mxu0 %v5421
        %7303 = vmatprep.subr.bf16.mxu0 %v5430
        %7304 = vmatpush1.bf16.msra.mxu0 %v5429
        %7305 = vmatprep.subr.bf16.mxu0 %v5438
        %7306 = vmatpush1.bf16.msra.mxu0 %v5437
        %7307 = vmatprep.mubr.bf16.mxu0 %v7192
        %7308 = vmatmul.mubr.bf16.gmra.mrb[0].mxu0 %v7191
        %v7309 = vpop.f32.mrb[0].mxu0
        %v7310 = vadd.f32 0.0, %v7309
        %v7311 = vpop.f32.mrb[0].mxu0
        %v7312 = vadd.f32 0.0, %v7311
        %v7313 = vpop.f32.mrb[0].mxu0
        %v7314 = vpop.f32.mrb[0].mxu0
        %7315 = vdwg.mxu0
        %7316 = vmatprep.subr.bf16.mxu0 %v5320
        %7317 = vmatpush1.bf16.msra.mxu0 %v5319
        %7318 = vmatprep.subr.bf16.mxu0 %v5328
        %7319 = vmatpush1.bf16.msra.mxu0 %v5327
        %7320 = vmatprep.subr.bf16.mxu0 %v5336
        %7321 = vmatpush1.bf16.msra.mxu0 %v5335
        %7322 = vmatprep.subr.bf16.mxu0 %v5344
        %7323 = vmatpush1.bf16.msra.mxu0 %v5343
        %7324 = vmatprep.subr.bf16.mxu0 %v5352
        %7325 = vmatpush1.bf16.msra.mxu0 %v5351
        %7326 = vmatprep.subr.bf16.mxu0 %v5360
        %7327 = vmatpush1.bf16.msra.mxu0 %v5359
        %7328 = vmatprep.subr.bf16.mxu0 %v5368
        %7329 = vmatpush1.bf16.msra.mxu0 %v5367
        %7330 = vmatprep.subr.bf16.mxu0 %v5376
        %7331 = vmatpush1.bf16.msra.mxu0 %v5375
        %7332 = vmatprep.subr.bf16.mxu0 %v5384
        %7333 = vmatpush1.bf16.msra.mxu0 %v5383
        %7334 = vmatprep.subr.bf16.mxu0 %v5392
        %7335 = vmatpush1.bf16.msra.mxu0 %v5391
        %7336 = vmatprep.subr.bf16.mxu0 %v5400
        %7337 = vmatpush1.bf16.msra.mxu0 %v5399
        %7338 = vmatprep.subr.bf16.mxu0 %v5408
        %7339 = vmatpush1.bf16.msra.mxu0 %v5407
        %7340 = vmatprep.subr.bf16.mxu0 %v5416
        %7341 = vmatpush1.bf16.msra.mxu0 %v5415
        %7342 = vmatprep.subr.bf16.mxu0 %v5424
        %7343 = vmatpush1.bf16.msra.mxu0 %v5423
        %7344 = vmatprep.subr.bf16.mxu0 %v5432
        %7345 = vmatpush1.bf16.msra.mxu0 %v5431
        %7346 = vmatprep.subr.bf16.mxu0 %v5440
        %7347 = vmatpush1.bf16.msra.mxu0 %v5439
        %7348 = vmatprep.mubr.bf16.mxu0 %v7192
        %7349 = vmatmul.mubr.bf16.gmra.mrb[0].mxu0 %v7191
        %v7350 = vpop.f32.mrb[0].mxu0
        %v7351 = vadd.f32 0.0, %v7350
        %v7352 = vpop.f32.mrb[0].mxu0
        %v7353 = vadd.f32 0.0, %v7352
        %v7354 = vpop.f32.mrb[0].mxu0
        %v7355 = vpop.f32.mrb[0].mxu0
        %7356 = vdwg.mxu0
        %v7357 = vadd.f32 %v7183, %v7228
        %v7358 = vadd.f32 %v7184, %v7230
        %v7359 = vadd.f32 %v7185, %v7269
        %v7360 = vadd.f32 %v7186, %v7271
        %v7361 = vadd.f32 %v7187, %v7310
        %v7362 = vadd.f32 %v7188, %v7312
        %v7363 = vadd.f32 %v7189, %v7351
        %v7364 = vadd.f32 %v7190, %v7353
        %v7365 = vxor.u32 %v7357, 2147483648
        %v7366 = vxor.u32 %v7358, 2147483648
        %v7367 = vmul.f32 %v7365, 1.442695
        %v7368 = vpow.pop %v7367
        %v7369 = vmul.f32 %v7366, 1.442695
        %v7370 = vpow.pop %v7369
        %v7371 = vadd.f32 %v7368, 1.0
        %v7372 = vadd.f32 %v7370, 1.0
        %v7373 = vrcp.pop %v7371
        %v7374 = vmul.f32 1.0, %v7373
        %v7375 = vrcp.pop %v7372
        %v7376 = vmul.f32 1.0, %v7375
        %v7377 = vxor.u32 %v7359, 2147483648
        %v7378 = vxor.u32 %v7360, 2147483648
        %v7379 = vmul.f32 %v7377, 1.442695
        %v7380 = vpow.pop %v7379
        %v7381 = vmul.f32 %v7378, 1.442695
        %v7382 = vpow.pop %v7381
        %v7383 = vadd.f32 %v7380, 1.0
        %v7384 = vadd.f32 %v7382, 1.0
        %v7385 = vrcp.pop %v7383
        %v7386 = vmul.f32 1.0, %v7385
        %v7387 = vrcp.pop %v7384
        %v7388 = vmul.f32 1.0, %v7387
        %v7389 = vtanh.pop %v7361
        %v7390 = vtanh.pop %v7362
        %v7391 = vxor.u32 %v7363, 2147483648
        %v7392 = vxor.u32 %v7364, 2147483648
        %v7393 = vmul.f32 %v7391, 1.442695
        %v7394 = vpow.pop %v7393
        %v7395 = vmul.f32 %v7392, 1.442695
        %v7396 = vpow.pop %v7395
        %v7397 = vadd.f32 %v7394, 1.0
        %v7398 = vadd.f32 %v7396, 1.0
        %v7399 = vrcp.pop %v7397
        %v7400 = vmul.f32 1.0, %v7399
        %v7401 = vrcp.pop %v7398
        %v7402 = vmul.f32 1.0, %v7401
        %v7403 = vmul.f32 %v7386, %v7175
        %v7404 = vmul.f32 %v7388, %v7176
        %v7405 = vmul.f32 %v7374, %v7389
        %v7406 = vmul.f32 %v7376, %v7390
        %v7407 = vadd.f32 %v7403, %v7405
        %v7408 = vadd.f32 %v7404, %v7406
        %v7409 = vtanh.pop %v7407
        %v7410 = vtanh.pop %v7408
        %v7411 = vmul.f32 %v7400, %v7409
        %v7412 = vmul.f32 %v7402, %v7410
        %7413 = vst [vmem:[#allocation2 + $0x70] sm:$0xff] %v7411
        %7414 = vst [vmem:[#allocation2 + $0x78] sm:$0xff] %v7412
        %7415 = vst [vmem:[%s4784] sm:$0xff] %v7411
        %7416 = vst [vmem:[%s4784 + $0x8] sm:$0xff] %v7412
        %7417 = vst [vmem:[%s4788] sm:$0xff] %v7407
        %7418 = vst [vmem:[%s4788 + $0x8] sm:$0xff] %v7408
        %p7419 = scmp.eq.s32.totalorder %s36, 29
        // Predicated region
        $region137: #{forward.1} parent=75 // pred_check
          %p7420 = pneg %p7419
        $region138: #{forward.1} parent=75 // pred_check_branch
          %7422 = sbr.rel (%p7420) target = $region140
        $region139: #{forward.1} parent=75 // pred_region
          %7423 = vst [vmem:[#allocation4] sm:$0xff] 0.0
          %7424 = vst [vmem:[#allocation4 + $0x8] sm:$0xff] 0.0
          %7425 = vst [vmem:[#allocation4 + $0x10] sm:$0xff] 0.0
          %7426 = vst [vmem:[#allocation4 + $0x18] sm:$0xff] 0.0
          %7427 = vst [vmem:[#allocation4 + $0x20] sm:$0xff] 0.0
          %7428 = vst [vmem:[#allocation4 + $0x28] sm:$0xff] 0.0
          %7429 = vst [vmem:[#allocation4 + $0x30] sm:$0xff] 0.0
          %7430 = vst [vmem:[#allocation4 + $0x38] sm:$0xff] 0.0
          %7431 = vst [vmem:[#allocation4 + $0x40] sm:$0xff] 0.0
          %7432 = vst [vmem:[#allocation4 + $0x48] sm:$0xff] 0.0
          %7433 = vst [vmem:[#allocation4 + $0x50] sm:$0xff] 0.0
          %7434 = vst [vmem:[#allocation4 + $0x58] sm:$0xff] 0.0
          %7435 = vst [vmem:[#allocation4 + $0x60] sm:$0xff] 0.0
          %7436 = vst [vmem:[#allocation4 + $0x68] sm:$0xff] 0.0
          %7437 = vst [vmem:[#allocation4 + $0x70] sm:$0xff] 0.0
          %7438 = vst [vmem:[#allocation4 + $0x78] sm:$0xff] 0.0
          %7439 = vst [vmem:[#allocation4 + $0x80] sm:$0xff] 0.0
          %7440 = vst [vmem:[#allocation4 + $0x88] sm:$0xff] 0.0
          %7441 = vst [vmem:[#allocation4 + $0x90] sm:$0xff] 0.0
          %7442 = vst [vmem:[#allocation4 + $0x98] sm:$0xff] 0.0
          %7443 = vst [vmem:[#allocation4 + $0xa0] sm:$0xff] 0.0
          %7444 = vst [vmem:[#allocation4 + $0xa8] sm:$0xff] 0.0
          %7445 = vst [vmem:[#allocation4 + $0xb0] sm:$0xff] 0.0
          %7446 = vst [vmem:[#allocation4 + $0xb8] sm:$0xff] 0.0
          %7447 = vst [vmem:[#allocation4 + $0xc0] sm:$0xff] 0.0
          %7448 = vst [vmem:[#allocation4 + $0xc8] sm:$0xff] 0.0
          %7449 = vst [vmem:[#allocation4 + $0xd0] sm:$0xff] 0.0
          %7450 = vst [vmem:[#allocation4 + $0xd8] sm:$0xff] 0.0
          %7451 = vst [vmem:[#allocation4 + $0xe0] sm:$0xff] 0.0
          %7452 = vst [vmem:[#allocation4 + $0xe8] sm:$0xff] 0.0
          %7453 = vst [vmem:[#allocation4 + $0xf0] sm:$0xff] 0.0
          %7454 = vst [vmem:[#allocation4 + $0xf8] sm:$0xff] 0.0
          %v7455 = vld [vmem:[#allocation2] sm:$0xff]
          %v7456 = vld [vmem:[#allocation2 + $0x8] sm:$0xff]
          %v7457 = vld [vmem:[#allocation2 + $0x10] sm:$0xff]
          %v7458 = vld [vmem:[#allocation2 + $0x18] sm:$0xff]
          %v7459 = vld [vmem:[#allocation2 + $0x20] sm:$0xff]
          %v7460 = vld [vmem:[#allocation2 + $0x28] sm:$0xff]
          %v7461 = vld [vmem:[#allocation2 + $0x30] sm:$0xff]
          %v7462 = vld [vmem:[#allocation2 + $0x38] sm:$0xff]
          %v7463 = vld [vmem:[#allocation2 + $0x40] sm:$0xff]
          %v7464 = vld [vmem:[#allocation2 + $0x48] sm:$0xff]
          %v7465 = vld [vmem:[#allocation2 + $0x50] sm:$0xff]
          %v7466 = vld [vmem:[#allocation2 + $0x58] sm:$0xff]
          %v7467 = vld [vmem:[#allocation2 + $0x60] sm:$0xff]
          %v7468 = vld [vmem:[#allocation2 + $0x68] sm:$0xff]
          %v7469 = vld [vmem:[#allocation2 + $0x70] sm:$0xff]
          %v7470 = vld [vmem:[#allocation2 + $0x78] sm:$0xff]
          %v7471 = vmax.f32 %v7455, 0.0
          %v7472 = vmax.f32 %v7456, 0.0
          %v7473 = vmax.f32 %v7457, 0.0
          %v7474 = vmax.f32 %v7458, 0.0
          %v7475 = vmax.f32 %v7459, 0.0
          %v7476 = vmax.f32 %v7460, 0.0
          %v7477 = vmax.f32 %v7461, 0.0
          %v7478 = vmax.f32 %v7462, 0.0
          %v7479 = vmax.f32 %v7463, 0.0
          %v7480 = vmax.f32 %v7464, 0.0
          %v7481 = vmax.f32 %v7465, 0.0
          %v7482 = vmax.f32 %v7466, 0.0
          %v7483 = vmax.f32 %v7467, 0.0
          %v7484 = vmax.f32 %v7468, 0.0
          %v7485 = vmax.f32 %v7469, 0.0
          %v7486 = vmax.f32 %v7470, 0.0
          %7487 = vst [vmem:[#allocation4 + $0x20] sm:$0xff] %v7471
          %7488 = vst [vmem:[#allocation4 + $0x28] sm:$0xff] %v7472
          %7489 = vst [vmem:[#allocation4 + $0x30] sm:$0xff] %v7473
          %7490 = vst [vmem:[#allocation4 + $0x38] sm:$0xff] %v7474
          %7491 = vst [vmem:[#allocation4 + $0x40] sm:$0xff] %v7475
          %7492 = vst [vmem:[#allocation4 + $0x48] sm:$0xff] %v7476
          %7493 = vst [vmem:[#allocation4 + $0x50] sm:$0xff] %v7477
          %7494 = vst [vmem:[#allocation4 + $0x58] sm:$0xff] %v7478
          %7495 = vst [vmem:[#allocation4 + $0x60] sm:$0xff] %v7479
          %7496 = vst [vmem:[#allocation4 + $0x68] sm:$0xff] %v7480
          %7497 = vst [vmem:[#allocation4 + $0x70] sm:$0xff] %v7481
          %7498 = vst [vmem:[#allocation4 + $0x78] sm:$0xff] %v7482
          %7499 = vst [vmem:[#allocation4 + $0x80] sm:$0xff] %v7483
          %7500 = vst [vmem:[#allocation4 + $0x88] sm:$0xff] %v7484
          %7501 = vst [vmem:[#allocation4 + $0x90] sm:$0xff] %v7485
          %7502 = vst [vmem:[#allocation4 + $0x98] sm:$0xff] %v7486
          %v7503 = vld [vmem:[#allocation4] sm:$0xff]
          %v7504 = vld [vmem:[#allocation4 + $0x8] sm:$0xff]
          %v7505 = vld [vmem:[#allocation4 + $0x10] sm:$0xff]
          %v7506 = vld [vmem:[#allocation4 + $0x18] sm:$0xff]
          %v7507 = vld [vmem:[#allocation4 + $0x20] sm:$0xff]
          %v7508 = vld [vmem:[#allocation4 + $0x28] sm:$0xff]
          %v7509 = vld [vmem:[#allocation4 + $0x30] sm:$0xff]
          %v7510 = vld [vmem:[#allocation4 + $0x38] sm:$0xff]
          %v7511 = vld [vmem:[#allocation4 + $0x40] sm:$0xff]
          %v7512 = vld [vmem:[#allocation4 + $0x48] sm:$0xff]
          %v7513 = vld [vmem:[#allocation4 + $0x50] sm:$0xff]
          %v7514 = vld [vmem:[#allocation4 + $0x58] sm:$0xff]
          %v7515 = vld [vmem:[#allocation4 + $0x60] sm:$0xff]
          %v7516 = vld [vmem:[#allocation4 + $0x68] sm:$0xff]
          %v7517 = vld [vmem:[#allocation4 + $0x70] sm:$0xff]
          %v7518 = vld [vmem:[#allocation4 + $0x78] sm:$0xff]
          %v7519 = vpack.c.bf16 %v7505, %v7503
          %v7520 = vpack.c.bf16 %v7506, %v7504
          %v7521 = vpack.c.bf16 %v7509, %v7507
          %v7522 = vpack.c.bf16 %v7510, %v7508
          %v7523 = vpack.c.bf16 %v7513, %v7511
          %v7524 = vpack.c.bf16 %v7514, %v7512
          %v7525 = vpack.c.bf16 %v7517, %v7515
          %v7526 = vpack.c.bf16 %v7518, %v7516
          %v7527 = vld [vmem:[#allocation15] sm:$0xff]
          %v7528 = vld [vmem:[#allocation15 + $0x8] sm:$0xff]
          %v7529 = vld [vmem:[#allocation15 + $0x10] sm:$0xff]
          %v7530 = vld [vmem:[#allocation15 + $0x18] sm:$0xff]
          %v7531 = vld [vmem:[#allocation15 + $0x20] sm:$0xff]
          %v7532 = vld [vmem:[#allocation15 + $0x28] sm:$0xff]
          %v7533 = vld [vmem:[#allocation15 + $0x30] sm:$0xff]
          %v7534 = vld [vmem:[#allocation15 + $0x38] sm:$0xff]
          %v7535 = vld [vmem:[#allocation15 + $0x40] sm:$0xff]
          %v7536 = vld [vmem:[#allocation15 + $0x48] sm:$0xff]
          %v7537 = vld [vmem:[#allocation15 + $0x50] sm:$0xff]
          %v7538 = vld [vmem:[#allocation15 + $0x58] sm:$0xff]
          %v7539 = vld [vmem:[#allocation15 + $0x60] sm:$0xff]
          %v7540 = vld [vmem:[#allocation15 + $0x68] sm:$0xff]
          %v7541 = vld [vmem:[#allocation15 + $0x70] sm:$0xff]
          %v7542 = vld [vmem:[#allocation15 + $0x78] sm:$0xff]
          %v7543 = vld [vmem:[#allocation15 + $0x80] sm:$0xff]
          %v7544 = vld [vmem:[#allocation15 + $0x88] sm:$0xff]
          %v7545 = vld [vmem:[#allocation15 + $0x90] sm:$0xff]
          %v7546 = vld [vmem:[#allocation15 + $0x98] sm:$0xff]
          %v7547 = vld [vmem:[#allocation15 + $0xa0] sm:$0xff]
          %v7548 = vld [vmem:[#allocation15 + $0xa8] sm:$0xff]
          %v7549 = vld [vmem:[#allocation15 + $0xb0] sm:$0xff]
          %v7550 = vld [vmem:[#allocation15 + $0xb8] sm:$0xff]
          %v7551 = vld [vmem:[#allocation15 + $0xc0] sm:$0xff]
          %v7552 = vld [vmem:[#allocation15 + $0xc8] sm:$0xff]
          %v7553 = vld [vmem:[#allocation15 + $0xd0] sm:$0xff]
          %v7554 = vld [vmem:[#allocation15 + $0xd8] sm:$0xff]
          %v7555 = vld [vmem:[#allocation15 + $0xe0] sm:$0xff]
          %v7556 = vld [vmem:[#allocation15 + $0xe8] sm:$0xff]
          %v7557 = vld [vmem:[#allocation15 + $0xf0] sm:$0xff]
          %v7558 = vld [vmem:[#allocation15 + $0xf8] sm:$0xff]
          %v7559 = vld [vmem:[#allocation4 + $0x80] sm:$0xff]
          %v7560 = vld [vmem:[#allocation4 + $0x88] sm:$0xff]
          %v7561 = vpack.c.bf16 %v7507, %v7505
          %v7562 = vpack.c.bf16 %v7508, %v7506
          %v7563 = vpack.c.bf16 %v7511, %v7509
          %v7564 = vpack.c.bf16 %v7512, %v7510
          %v7565 = vpack.c.bf16 %v7515, %v7513
          %v7566 = vpack.c.bf16 %v7516, %v7514
          %v7567 = vpack.c.bf16 %v7559, %v7517
          %v7568 = vpack.c.bf16 %v7560, %v7518
          %s7569 = scalar_lea.vmem [#allocation15], 256
          %v7570 = vld [vmem:[%s7569] sm:$0xff]
          %v7571 = vld [vmem:[%s7569 + $0x8] sm:$0xff]
          %v7572 = vld [vmem:[%s7569 + $0x10] sm:$0xff]
          %v7573 = vld [vmem:[%s7569 + $0x18] sm:$0xff]
          %v7574 = vld [vmem:[%s7569 + $0x20] sm:$0xff]
          %v7575 = vld [vmem:[%s7569 + $0x28] sm:$0xff]
          %v7576 = vld [vmem:[%s7569 + $0x30] sm:$0xff]
          %v7577 = vld [vmem:[%s7569 + $0x38] sm:$0xff]
          %v7578 = vld [vmem:[%s7569 + $0x40] sm:$0xff]
          %v7579 = vld [vmem:[%s7569 + $0x48] sm:$0xff]
          %v7580 = vld [vmem:[%s7569 + $0x50] sm:$0xff]
          %v7581 = vld [vmem:[%s7569 + $0x58] sm:$0xff]
          %v7582 = vld [vmem:[%s7569 + $0x60] sm:$0xff]
          %v7583 = vld [vmem:[%s7569 + $0x68] sm:$0xff]
          %v7584 = vld [vmem:[%s7569 + $0x70] sm:$0xff]
          %v7585 = vld [vmem:[%s7569 + $0x78] sm:$0xff]
          %v7586 = vld [vmem:[%s7569 + $0x80] sm:$0xff]
          %v7587 = vld [vmem:[%s7569 + $0x88] sm:$0xff]
          %v7588 = vld [vmem:[%s7569 + $0x90] sm:$0xff]
          %v7589 = vld [vmem:[%s7569 + $0x98] sm:$0xff]
          %v7590 = vld [vmem:[%s7569 + $0xa0] sm:$0xff]
          %v7591 = vld [vmem:[%s7569 + $0xa8] sm:$0xff]
          %v7592 = vld [vmem:[%s7569 + $0xb0] sm:$0xff]
          %v7593 = vld [vmem:[%s7569 + $0xb8] sm:$0xff]
          %v7594 = vld [vmem:[%s7569 + $0xc0] sm:$0xff]
          %v7595 = vld [vmem:[%s7569 + $0xc8] sm:$0xff]
          %v7596 = vld [vmem:[%s7569 + $0xd0] sm:$0xff]
          %v7597 = vld [vmem:[%s7569 + $0xd8] sm:$0xff]
          %v7598 = vld [vmem:[%s7569 + $0xe0] sm:$0xff]
          %v7599 = vld [vmem:[%s7569 + $0xe8] sm:$0xff]
          %v7600 = vld [vmem:[%s7569 + $0xf0] sm:$0xff]
          %v7601 = vld [vmem:[%s7569 + $0xf8] sm:$0xff]
          %v7602 = vld [vmem:[#allocation4 + $0x90] sm:$0xff]
          %v7603 = vld [vmem:[#allocation4 + $0x98] sm:$0xff]
          %v7604 = vpack.c.bf16 %v7602, %v7559
          %v7605 = vpack.c.bf16 %v7603, %v7560
          %s7606 = scalar_lea.vmem [#allocation15], 512
          %v7607 = vld [vmem:[%s7606] sm:$0xff]
          %v7608 = vld [vmem:[%s7606 + $0x8] sm:$0xff]
          %v7609 = vld [vmem:[%s7606 + $0x10] sm:$0xff]
          %v7610 = vld [vmem:[%s7606 + $0x18] sm:$0xff]
          %v7611 = vld [vmem:[%s7606 + $0x20] sm:$0xff]
          %v7612 = vld [vmem:[%s7606 + $0x28] sm:$0xff]
          %v7613 = vld [vmem:[%s7606 + $0x30] sm:$0xff]
          %v7614 = vld [vmem:[%s7606 + $0x38] sm:$0xff]
          %v7615 = vld [vmem:[%s7606 + $0x40] sm:$0xff]
          %v7616 = vld [vmem:[%s7606 + $0x48] sm:$0xff]
          %v7617 = vld [vmem:[%s7606 + $0x50] sm:$0xff]
          %v7618 = vld [vmem:[%s7606 + $0x58] sm:$0xff]
          %v7619 = vld [vmem:[%s7606 + $0x60] sm:$0xff]
          %v7620 = vld [vmem:[%s7606 + $0x68] sm:$0xff]
          %v7621 = vld [vmem:[%s7606 + $0x70] sm:$0xff]
          %v7622 = vld [vmem:[%s7606 + $0x78] sm:$0xff]
          %v7623 = vld [vmem:[%s7606 + $0x80] sm:$0xff]
          %v7624 = vld [vmem:[%s7606 + $0x88] sm:$0xff]
          %v7625 = vld [vmem:[%s7606 + $0x90] sm:$0xff]
          %v7626 = vld [vmem:[%s7606 + $0x98] sm:$0xff]
          %v7627 = vld [vmem:[%s7606 + $0xa0] sm:$0xff]
          %v7628 = vld [vmem:[%s7606 + $0xa8] sm:$0xff]
          %v7629 = vld [vmem:[%s7606 + $0xb0] sm:$0xff]
          %v7630 = vld [vmem:[%s7606 + $0xb8] sm:$0xff]
          %v7631 = vld [vmem:[%s7606 + $0xc0] sm:$0xff]
          %v7632 = vld [vmem:[%s7606 + $0xc8] sm:$0xff]
          %v7633 = vld [vmem:[%s7606 + $0xd0] sm:$0xff]
          %v7634 = vld [vmem:[%s7606 + $0xd8] sm:$0xff]
          %v7635 = vld [vmem:[%s7606 + $0xe0] sm:$0xff]
          %v7636 = vld [vmem:[%s7606 + $0xe8] sm:$0xff]
          %v7637 = vld [vmem:[%s7606 + $0xf0] sm:$0xff]
          %v7638 = vld [vmem:[%s7606 + $0xf8] sm:$0xff]
          %v7671 = vunpack.c.l.b16 %v7607
          %v7672 = vunpack.c.h.b16 %v7607
          %v7673 = vunpack.c.l.b16 %v7608
          %v7674 = vunpack.c.h.b16 %v7608
          %v7675 = vunpack.c.l.b16 %v7609
          %v7676 = vunpack.c.h.b16 %v7609
          %v7677 = vunpack.c.l.b16 %v7610
          %v7678 = vunpack.c.h.b16 %v7610
          %v7679 = vunpack.c.l.b16 %v7611
          %v7680 = vunpack.c.h.b16 %v7611
          %v7681 = vunpack.c.l.b16 %v7612
          %v7682 = vunpack.c.h.b16 %v7612
          %v7683 = vunpack.c.l.b16 %v7613
          %v7684 = vunpack.c.h.b16 %v7613
          %v7685 = vunpack.c.l.b16 %v7614
          %v7686 = vunpack.c.h.b16 %v7614
          %v7687 = vunpack.c.l.b16 %v7615
          %v7688 = vunpack.c.h.b16 %v7615
          %v7689 = vunpack.c.l.b16 %v7616
          %v7690 = vunpack.c.h.b16 %v7616
          %v7691 = vunpack.c.l.b16 %v7617
          %v7692 = vunpack.c.h.b16 %v7617
          %v7693 = vunpack.c.l.b16 %v7618
          %v7694 = vunpack.c.h.b16 %v7618
          %v7695 = vunpack.c.l.b16 %v7619
          %v7696 = vunpack.c.h.b16 %v7619
          %v7697 = vunpack.c.l.b16 %v7620
          %v7698 = vunpack.c.h.b16 %v7620
          %v7699 = vunpack.c.l.b16 %v7621
          %v7700 = vunpack.c.h.b16 %v7621
          %v7701 = vunpack.c.l.b16 %v7622
          %v7702 = vunpack.c.h.b16 %v7622
          %v7703 = vunpack.c.l.b16 %v7623
          %v7704 = vunpack.c.h.b16 %v7623
          %v7705 = vunpack.c.l.b16 %v7624
          %v7706 = vunpack.c.h.b16 %v7624
          %v7707 = vunpack.c.l.b16 %v7625
          %v7708 = vunpack.c.h.b16 %v7625
          %v7709 = vunpack.c.l.b16 %v7626
          %v7710 = vunpack.c.h.b16 %v7626
          %v7711 = vunpack.c.l.b16 %v7627
          %v7712 = vunpack.c.h.b16 %v7627
          %v7713 = vunpack.c.l.b16 %v7628
          %v7714 = vunpack.c.h.b16 %v7628
          %v7715 = vunpack.c.l.b16 %v7629
          %v7716 = vunpack.c.h.b16 %v7629
          %v7717 = vunpack.c.l.b16 %v7630
          %v7718 = vunpack.c.h.b16 %v7630
          %v7719 = vunpack.c.l.b16 %v7631
          %v7720 = vunpack.c.h.b16 %v7631
          %v7721 = vunpack.c.l.b16 %v7632
          %v7722 = vunpack.c.h.b16 %v7632
          %v7723 = vunpack.c.l.b16 %v7633
          %v7724 = vunpack.c.h.b16 %v7633
          %v7725 = vunpack.c.l.b16 %v7634
          %v7726 = vunpack.c.h.b16 %v7634
          %v7727 = vunpack.c.l.b16 %v7635
          %v7728 = vunpack.c.h.b16 %v7635
          %v7729 = vunpack.c.l.b16 %v7636
          %v7730 = vunpack.c.h.b16 %v7636
          %v7731 = vunpack.c.l.b16 %v7637
          %v7732 = vunpack.c.h.b16 %v7637
          %v7733 = vunpack.c.l.b16 %v7638
          %v7734 = vunpack.c.h.b16 %v7638
          %v7735 = vpack.c.b16 %v7673, %v7671
          %v7736 = vpack.c.b16 %v7674, %v7672
          %v7737 = vpack.c.b16 %v7677, %v7675
          %v7738 = vpack.c.b16 %v7678, %v7676
          %v7739 = vpack.c.b16 %v7681, %v7679
          %v7740 = vpack.c.b16 %v7682, %v7680
          %v7741 = vpack.c.b16 %v7685, %v7683
          %v7742 = vpack.c.b16 %v7686, %v7684
          %v7743 = vpack.c.b16 %v7689, %v7687
          %v7744 = vpack.c.b16 %v7690, %v7688
          %v7745 = vpack.c.b16 %v7693, %v7691
          %v7746 = vpack.c.b16 %v7694, %v7692
          %v7747 = vpack.c.b16 %v7697, %v7695
          %v7748 = vpack.c.b16 %v7698, %v7696
          %v7749 = vpack.c.b16 %v7701, %v7699
          %v7750 = vpack.c.b16 %v7702, %v7700
          %v7751 = vpack.c.b16 %v7705, %v7703
          %v7752 = vpack.c.b16 %v7706, %v7704
          %v7753 = vpack.c.b16 %v7709, %v7707
          %v7754 = vpack.c.b16 %v7710, %v7708
          %v7755 = vpack.c.b16 %v7713, %v7711
          %v7756 = vpack.c.b16 %v7714, %v7712
          %v7757 = vpack.c.b16 %v7717, %v7715
          %v7758 = vpack.c.b16 %v7718, %v7716
          %v7759 = vpack.c.b16 %v7721, %v7719
          %v7760 = vpack.c.b16 %v7722, %v7720
          %v7761 = vpack.c.b16 %v7725, %v7723
          %v7762 = vpack.c.b16 %v7726, %v7724
          %v7763 = vpack.c.b16 %v7729, %v7727
          %v7764 = vpack.c.b16 %v7730, %v7728
          %v7765 = vpack.c.b16 %v7733, %v7731
          %v7766 = vpack.c.b16 %v7734, %v7732
          %7799 = vmatprep.subr.bf16.mxu0 %v7736
          %7800 = vmatpush1.bf16.msra.mxu0 %v7735
          %7801 = vmatprep.subr.bf16.mxu0 %v7738
          %7802 = vmatpush1.bf16.msra.mxu0 %v7737
          %7803 = vmatprep.subr.bf16.mxu0 %v7740
          %7804 = vmatpush1.bf16.msra.mxu0 %v7739
          %7805 = vmatprep.subr.bf16.mxu0 %v7742
          %7806 = vmatpush1.bf16.msra.mxu0 %v7741
          %7807 = vmatprep.subr.bf16.mxu0 %v7744
          %7808 = vmatpush1.bf16.msra.mxu0 %v7743
          %7809 = vmatprep.subr.bf16.mxu0 %v7746
          %7810 = vmatpush1.bf16.msra.mxu0 %v7745
          %7811 = vmatprep.subr.bf16.mxu0 %v7748
          %7812 = vmatpush1.bf16.msra.mxu0 %v7747
          %7813 = vmatprep.subr.bf16.mxu0 %v7750
          %7814 = vmatpush1.bf16.msra.mxu0 %v7749
          %7815 = vmatprep.subr.bf16.mxu0 %v7752
          %7816 = vmatpush1.bf16.msra.mxu0 %v7751
          %7817 = vmatprep.subr.bf16.mxu0 %v7754
          %7818 = vmatpush1.bf16.msra.mxu0 %v7753
          %7819 = vmatprep.subr.bf16.mxu0 %v7756
          %7820 = vmatpush1.bf16.msra.mxu0 %v7755
          %7821 = vmatprep.subr.bf16.mxu0 %v7758
          %7822 = vmatpush1.bf16.msra.mxu0 %v7757
          %7823 = vmatprep.subr.bf16.mxu0 %v7760
          %7824 = vmatpush1.bf16.msra.mxu0 %v7759
          %7825 = vmatprep.subr.bf16.mxu0 %v7762
          %7826 = vmatpush1.bf16.msra.mxu0 %v7761
          %7827 = vmatprep.subr.bf16.mxu0 %v7764
          %7828 = vmatpush1.bf16.msra.mxu0 %v7763
          %7829 = vmatprep.subr.bf16.mxu0 %v7766
          %7830 = vmatpush1.bf16.msra.mxu0 %v7765
          %7831 = vmatprep.mubr.bf16.mxu0 %v7522
          %7832 = vmatmul.mubr.bf16.gmra.mrb[0].mxu0 %v7521
          %v7833 = vpop.f32.mrb[0].mxu0
          %v7834 = vadd.f32 0.0, %v7833
          %v7835 = vpop.f32.mrb[0].mxu0
          %v7836 = vadd.f32 0.0, %v7835
          %v7837 = vpop.f32.mrb[0].mxu0
          %v7838 = vadd.f32 0.0, %v7837
          %v7839 = vpop.f32.mrb[0].mxu0
          %v7840 = vadd.f32 0.0, %v7839
          %7841 = vmatprep.mubr.bf16.mxu0 %v7524
          %7842 = vmatmul.mubr.bf16.gmra.mrb[0].mxu0 %v7523
          %v7843 = vpop.f32.mrb[0].mxu0
          %v7844 = vadd.f32 0.0, %v7843
          %v7845 = vpop.f32.mrb[0].mxu0
          %v7846 = vadd.f32 0.0, %v7845
          %v7847 = vpop.f32.mrb[0].mxu0
          %v7848 = vadd.f32 0.0, %v7847
          %v7849 = vpop.f32.mrb[0].mxu0
          %v7850 = vadd.f32 0.0, %v7849
          %7851 = vmatprep.mubr.bf16.mxu0 %v7526
          %7852 = vmatmul.mubr.bf16.gmra.mrb[0].mxu0 %v7525
          %v7853 = vpop.f32.mrb[0].mxu0
          %v7854 = vadd.f32 0.0, %v7853
          %v7855 = vpop.f32.mrb[0].mxu0
          %v7856 = vadd.f32 0.0, %v7855
          %v7857 = vpop.f32.mrb[0].mxu0
          %v7858 = vadd.f32 0.0, %v7857
          %v7859 = vpop.f32.mrb[0].mxu0
          %v7860 = vadd.f32 0.0, %v7859
          %7861 = vmatprep.mubr.bf16.mxu0 %v7605
          %7862 = vmatmul.mubr.bf16.gmra.mrb[0].mxu0 %v7604
          %v7863 = vpop.f32.mrb[0].mxu0
          %v7864 = vadd.f32 0.0, %v7863
          %v7865 = vpop.f32.mrb[0].mxu0
          %v7866 = vadd.f32 0.0, %v7865
          %v7867 = vpop.f32.mrb[0].mxu0
          %v7868 = vadd.f32 0.0, %v7867
          %v7869 = vpop.f32.mrb[0].mxu0
          %v7870 = vadd.f32 0.0, %v7869
          %7871 = vdwg.mxu0
          %v7904 = vunpack.c.l.b16 %v7527
          %v7905 = vunpack.c.h.b16 %v7527
          %v7906 = vunpack.c.l.b16 %v7528
          %v7907 = vunpack.c.h.b16 %v7528
          %v7908 = vunpack.c.l.b16 %v7529
          %v7909 = vunpack.c.h.b16 %v7529
          %v7910 = vunpack.c.l.b16 %v7530
          %v7911 = vunpack.c.h.b16 %v7530
          %v7912 = vunpack.c.l.b16 %v7531
          %v7913 = vunpack.c.h.b16 %v7531
          %v7914 = vunpack.c.l.b16 %v7532
          %v7915 = vunpack.c.h.b16 %v7532
          %v7916 = vunpack.c.l.b16 %v7533
          %v7917 = vunpack.c.h.b16 %v7533
          %v7918 = vunpack.c.l.b16 %v7534
          %v7919 = vunpack.c.h.b16 %v7534
          %v7920 = vunpack.c.l.b16 %v7535
          %v7921 = vunpack.c.h.b16 %v7535
          %v7922 = vunpack.c.l.b16 %v7536
          %v7923 = vunpack.c.h.b16 %v7536
          %v7924 = vunpack.c.l.b16 %v7537
          %v7925 = vunpack.c.h.b16 %v7537
          %v7926 = vunpack.c.l.b16 %v7538
          %v7927 = vunpack.c.h.b16 %v7538
          %v7928 = vunpack.c.l.b16 %v7539
          %v7929 = vunpack.c.h.b16 %v7539
          %v7930 = vunpack.c.l.b16 %v7540
          %v7931 = vunpack.c.h.b16 %v7540
          %v7932 = vunpack.c.l.b16 %v7541
          %v7933 = vunpack.c.h.b16 %v7541
          %v7934 = vunpack.c.l.b16 %v7542
          %v7935 = vunpack.c.h.b16 %v7542
          %v7936 = vunpack.c.l.b16 %v7543
          %v7937 = vunpack.c.h.b16 %v7543
          %v7938 = vunpack.c.l.b16 %v7544
          %v7939 = vunpack.c.h.b16 %v7544
          %v7940 = vunpack.c.l.b16 %v7545
          %v7941 = vunpack.c.h.b16 %v7545
          %v7942 = vunpack.c.l.b16 %v7546
          %v7943 = vunpack.c.h.b16 %v7546
          %v7944 = vunpack.c.l.b16 %v7547
          %v7945 = vunpack.c.h.b16 %v7547
          %v7946 = vunpack.c.l.b16 %v7548
          %v7947 = vunpack.c.h.b16 %v7548
          %v7948 = vunpack.c.l.b16 %v7549
          %v7949 = vunpack.c.h.b16 %v7549
          %v7950 = vunpack.c.l.b16 %v7550
          %v7951 = vunpack.c.h.b16 %v7550
          %v7952 = vunpack.c.l.b16 %v7551
          %v7953 = vunpack.c.h.b16 %v7551
          %v7954 = vunpack.c.l.b16 %v7552
          %v7955 = vunpack.c.h.b16 %v7552
          %v7956 = vunpack.c.l.b16 %v7553
          %v7957 = vunpack.c.h.b16 %v7553
          %v7958 = vunpack.c.l.b16 %v7554
          %v7959 = vunpack.c.h.b16 %v7554
          %v7960 = vunpack.c.l.b16 %v7555
          %v7961 = vunpack.c.h.b16 %v7555
          %v7962 = vunpack.c.l.b16 %v7556
          %v7963 = vunpack.c.h.b16 %v7556
          %v7964 = vunpack.c.l.b16 %v7557
          %v7965 = vunpack.c.h.b16 %v7557
          %v7966 = vunpack.c.l.b16 %v7558
          %v7967 = vunpack.c.h.b16 %v7558
          %v7968 = vpack.c.b16 %v7906, %v7904
          %v7969 = vpack.c.b16 %v7907, %v7905
          %v7970 = vpack.c.b16 %v7910, %v7908
          %v7971 = vpack.c.b16 %v7911, %v7909
          %v7972 = vpack.c.b16 %v7914, %v7912
          %v7973 = vpack.c.b16 %v7915, %v7913
          %v7974 = vpack.c.b16 %v7918, %v7916
          %v7975 = vpack.c.b16 %v7919, %v7917
          %v7976 = vpack.c.b16 %v7922, %v7920
          %v7977 = vpack.c.b16 %v7923, %v7921
          %v7978 = vpack.c.b16 %v7926, %v7924
          %v7979 = vpack.c.b16 %v7927, %v7925
          %v7980 = vpack.c.b16 %v7930, %v7928
          %v7981 = vpack.c.b16 %v7931, %v7929
          %v7982 = vpack.c.b16 %v7934, %v7932
          %v7983 = vpack.c.b16 %v7935, %v7933
          %v7984 = vpack.c.b16 %v7938, %v7936
          %v7985 = vpack.c.b16 %v7939, %v7937
          %v7986 = vpack.c.b16 %v7942, %v7940
          %v7987 = vpack.c.b16 %v7943, %v7941
          %v7988 = vpack.c.b16 %v7946, %v7944
          %v7989 = vpack.c.b16 %v7947, %v7945
          %v7990 = vpack.c.b16 %v7950, %v7948
          %v7991 = vpack.c.b16 %v7951, %v7949
          %v7992 = vpack.c.b16 %v7954, %v7952
          %v7993 = vpack.c.b16 %v7955, %v7953
          %v7994 = vpack.c.b16 %v7958, %v7956
          %v7995 = vpack.c.b16 %v7959, %v7957
          %v7996 = vpack.c.b16 %v7962, %v7960
          %v7997 = vpack.c.b16 %v7963, %v7961
          %v7998 = vpack.c.b16 %v7966, %v7964
          %v7999 = vpack.c.b16 %v7967, %v7965
          %8032 = vmatprep.subr.bf16.mxu0 %v7969
          %8033 = vmatpush1.bf16.msra.mxu0 %v7968
          %8034 = vmatprep.subr.bf16.mxu0 %v7971
          %8035 = vmatpush1.bf16.msra.mxu0 %v7970
          %8036 = vmatprep.subr.bf16.mxu0 %v7973
          %8037 = vmatpush1.bf16.msra.mxu0 %v7972
          %8038 = vmatprep.subr.bf16.mxu0 %v7975
          %8039 = vmatpush1.bf16.msra.mxu0 %v7974
          %8040 = vmatprep.subr.bf16.mxu0 %v7977
          %8041 = vmatpush1.bf16.msra.mxu0 %v7976
          %8042 = vmatprep.subr.bf16.mxu0 %v7979
          %8043 = vmatpush1.bf16.msra.mxu0 %v7978
          %8044 = vmatprep.subr.bf16.mxu0 %v7981
          %8045 = vmatpush1.bf16.msra.mxu0 %v7980
          %8046 = vmatprep.subr.bf16.mxu0 %v7983
          %8047 = vmatpush1.bf16.msra.mxu0 %v7982
          %8048 = vmatprep.subr.bf16.mxu0 %v7985
          %8049 = vmatpush1.bf16.msra.mxu0 %v7984
          %8050 = vmatprep.subr.bf16.mxu0 %v7987
          %8051 = vmatpush1.bf16.msra.mxu0 %v7986
          %8052 = vmatprep.subr.bf16.mxu0 %v7989
          %8053 = vmatpush1.bf16.msra.mxu0 %v7988
          %8054 = vmatprep.subr.bf16.mxu0 %v7991
          %8055 = vmatpush1.bf16.msra.mxu0 %v7990
          %8056 = vmatprep.subr.bf16.mxu0 %v7993
          %8057 = vmatpush1.bf16.msra.mxu0 %v7992
          %8058 = vmatprep.subr.bf16.mxu0 %v7995
          %8059 = vmatpush1.bf16.msra.mxu0 %v7994
          %8060 = vmatprep.subr.bf16.mxu0 %v7997
          %8061 = vmatpush1.bf16.msra.mxu0 %v7996
          %8062 = vmatprep.subr.bf16.mxu0 %v7999
          %8063 = vmatpush1.bf16.msra.mxu0 %v7998
          %8064 = vmatprep.mubr.bf16.mxu0 %v7520
          %8065 = vmatmul.mubr.bf16.gmra.mrb[0].mxu0 %v7519
          %v8066 = vpop.f32.mrb[0].mxu0
          %v8067 = vadd.f32 %v7834, %v8066
          %v8068 = vpop.f32.mrb[0].mxu0
          %v8069 = vadd.f32 %v7836, %v8068
          %v8070 = vpop.f32.mrb[0].mxu0
          %v8071 = vadd.f32 %v7838, %v8070
          %v8072 = vpop.f32.mrb[0].mxu0
          %v8073 = vadd.f32 %v7840, %v8072
          %8074 = vmatprep.mubr.bf16.mxu0 %v7522
          %8075 = vmatmul.mubr.bf16.gmra.mrb[0].mxu0 %v7521
          %v8076 = vpop.f32.mrb[0].mxu0
          %v8077 = vadd.f32 %v7844, %v8076
          %v8078 = vpop.f32.mrb[0].mxu0
          %v8079 = vadd.f32 %v7846, %v8078
          %v8080 = vpop.f32.mrb[0].mxu0
          %v8081 = vadd.f32 %v7848, %v8080
          %v8082 = vpop.f32.mrb[0].mxu0
          %v8083 = vadd.f32 %v7850, %v8082
          %8084 = vmatprep.mubr.bf16.mxu0 %v7524
          %8085 = vmatmul.mubr.bf16.gmra.mrb[0].mxu0 %v7523
          %v8086 = vpop.f32.mrb[0].mxu0
          %v8087 = vadd.f32 %v7854, %v8086
          %v8088 = vpop.f32.mrb[0].mxu0
          %v8089 = vadd.f32 %v7856, %v8088
          %v8090 = vpop.f32.mrb[0].mxu0
          %v8091 = vadd.f32 %v7858, %v8090
          %v8092 = vpop.f32.mrb[0].mxu0
          %v8093 = vadd.f32 %v7860, %v8092
          %8094 = vmatprep.mubr.bf16.mxu0 %v7526
          %8095 = vmatmul.mubr.bf16.gmra.mrb[0].mxu0 %v7525
          %v8096 = vpop.f32.mrb[0].mxu0
          %v8097 = vadd.f32 %v7864, %v8096
          %v8098 = vpop.f32.mrb[0].mxu0
          %v8099 = vadd.f32 %v7866, %v8098
          %v8100 = vpop.f32.mrb[0].mxu0
          %v8101 = vadd.f32 %v7868, %v8100
          %v8102 = vpop.f32.mrb[0].mxu0
          %v8103 = vadd.f32 %v7870, %v8102
          %8104 = vdwg.mxu0
          %v8105 = vld [vmem:[#allocation4 + $0x30] sm:$0xff]
          %v8106 = vld [vmem:[#allocation4 + $0x38] sm:$0xff]
          %v8107 = vld [vmem:[#allocation4 + $0x40] sm:$0xff]
          %v8108 = vld [vmem:[#allocation4 + $0x48] sm:$0xff]
          %v8109 = vld [vmem:[#allocation4 + $0x50] sm:$0xff]
          %v8110 = vld [vmem:[#allocation4 + $0x58] sm:$0xff]
          %v8111 = vld [vmem:[#allocation4 + $0x60] sm:$0xff]
          %v8112 = vld [vmem:[#allocation4 + $0x68] sm:$0xff]
          %v8113 = vld [vmem:[#allocation4 + $0x70] sm:$0xff]
          %v8114 = vld [vmem:[#allocation4 + $0x78] sm:$0xff]
          %v8115 = vld [vmem:[#allocation4 + $0x80] sm:$0xff]
          %v8116 = vld [vmem:[#allocation4 + $0x88] sm:$0xff]
          %v8117 = vld [vmem:[#allocation4 + $0x90] sm:$0xff]
          %v8118 = vld [vmem:[#allocation4 + $0x98] sm:$0xff]
          %v8119 = vld [vmem:[#allocation4 + $0xa0] sm:$0xff]
          %v8120 = vld [vmem:[#allocation4 + $0xa8] sm:$0xff]
          %v8121 = vpack.c.bf16 %v8107, %v8105
          %v8122 = vpack.c.bf16 %v8108, %v8106
          %v8123 = vpack.c.bf16 %v8111, %v8109
          %v8124 = vpack.c.bf16 %v8112, %v8110
          %v8125 = vpack.c.bf16 %v8115, %v8113
          %v8126 = vpack.c.bf16 %v8116, %v8114
          %v8127 = vpack.c.bf16 %v8119, %v8117
          %v8128 = vpack.c.bf16 %v8120, %v8118
          %s8129 = scalar_lea.vmem [#allocation15], 768
          %v8130 = vld [vmem:[%s8129] sm:$0xff]
          %v8131 = vld [vmem:[%s8129 + $0x8] sm:$0xff]
          %v8132 = vld [vmem:[%s8129 + $0x10] sm:$0xff]
          %v8133 = vld [vmem:[%s8129 + $0x18] sm:$0xff]
          %v8134 = vld [vmem:[%s8129 + $0x20] sm:$0xff]
          %v8135 = vld [vmem:[%s8129 + $0x28] sm:$0xff]
          %v8136 = vld [vmem:[%s8129 + $0x30] sm:$0xff]
          %v8137 = vld [vmem:[%s8129 + $0x38] sm:$0xff]
          %v8138 = vld [vmem:[%s8129 + $0x40] sm:$0xff]
          %v8139 = vld [vmem:[%s8129 + $0x48] sm:$0xff]
          %v8140 = vld [vmem:[%s8129 + $0x50] sm:$0xff]
          %v8141 = vld [vmem:[%s8129 + $0x58] sm:$0xff]
          %v8142 = vld [vmem:[%s8129 + $0x60] sm:$0xff]
          %v8143 = vld [vmem:[%s8129 + $0x68] sm:$0xff]
          %v8144 = vld [vmem:[%s8129 + $0x70] sm:$0xff]
          %v8145 = vld [vmem:[%s8129 + $0x78] sm:$0xff]
          %v8146 = vld [vmem:[%s8129 + $0x80] sm:$0xff]
          %v8147 = vld [vmem:[%s8129 + $0x88] sm:$0xff]
          %v8148 = vld [vmem:[%s8129 + $0x90] sm:$0xff]
          %v8149 = vld [vmem:[%s8129 + $0x98] sm:$0xff]
          %v8150 = vld [vmem:[%s8129 + $0xa0] sm:$0xff]
          %v8151 = vld [vmem:[%s8129 + $0xa8] sm:$0xff]
          %v8152 = vld [vmem:[%s8129 + $0xb0] sm:$0xff]
          %v8153 = vld [vmem:[%s8129 + $0xb8] sm:$0xff]
          %v8154 = vld [vmem:[%s8129 + $0xc0] sm:$0xff]
          %v8155 = vld [vmem:[%s8129 + $0xc8] sm:$0xff]
          %v8156 = vld [vmem:[%s8129 + $0xd0] sm:$0xff]
          %v8157 = vld [vmem:[%s8129 + $0xd8] sm:$0xff]
          %v8158 = vld [vmem:[%s8129 + $0xe0] sm:$0xff]
          %v8159 = vld [vmem:[%s8129 + $0xe8] sm:$0xff]
          %v8160 = vld [vmem:[%s8129 + $0xf0] sm:$0xff]
          %v8161 = vld [vmem:[%s8129 + $0xf8] sm:$0xff]
          %v8194 = vunpack.c.l.b16 %v8130
          %v8195 = vunpack.c.h.b16 %v8130
          %v8196 = vunpack.c.l.b16 %v8131
          %v8197 = vunpack.c.h.b16 %v8131
          %v8198 = vunpack.c.l.b16 %v8132
          %v8199 = vunpack.c.h.b16 %v8132
          %v8200 = vunpack.c.l.b16 %v8133
          %v8201 = vunpack.c.h.b16 %v8133
          %v8202 = vunpack.c.l.b16 %v8134
          %v8203 = vunpack.c.h.b16 %v8134
          %v8204 = vunpack.c.l.b16 %v8135
          %v8205 = vunpack.c.h.b16 %v8135
          %v8206 = vunpack.c.l.b16 %v8136
          %v8207 = vunpack.c.h.b16 %v8136
          %v8208 = vunpack.c.l.b16 %v8137
          %v8209 = vunpack.c.h.b16 %v8137
          %v8210 = vunpack.c.l.b16 %v8138
          %v8211 = vunpack.c.h.b16 %v8138
          %v8212 = vunpack.c.l.b16 %v8139
          %v8213 = vunpack.c.h.b16 %v8139
          %v8214 = vunpack.c.l.b16 %v8140
          %v8215 = vunpack.c.h.b16 %v8140
          %v8216 = vunpack.c.l.b16 %v8141
          %v8217 = vunpack.c.h.b16 %v8141
          %v8218 = vunpack.c.l.b16 %v8142
          %v8219 = vunpack.c.h.b16 %v8142
          %v8220 = vunpack.c.l.b16 %v8143
          %v8221 = vunpack.c.h.b16 %v8143
          %v8222 = vunpack.c.l.b16 %v8144
          %v8223 = vunpack.c.h.b16 %v8144
          %v8224 = vunpack.c.l.b16 %v8145
          %v8225 = vunpack.c.h.b16 %v8145
          %v8226 = vunpack.c.l.b16 %v8146
          %v8227 = vunpack.c.h.b16 %v8146
          %v8228 = vunpack.c.l.b16 %v8147
          %v8229 = vunpack.c.h.b16 %v8147
          %v8230 = vunpack.c.l.b16 %v8148
          %v8231 = vunpack.c.h.b16 %v8148
          %v8232 = vunpack.c.l.b16 %v8149
          %v8233 = vunpack.c.h.b16 %v8149
          %v8234 = vunpack.c.l.b16 %v8150
          %v8235 = vunpack.c.h.b16 %v8150
          %v8236 = vunpack.c.l.b16 %v8151
          %v8237 = vunpack.c.h.b16 %v8151
          %v8238 = vunpack.c.l.b16 %v8152
          %v8239 = vunpack.c.h.b16 %v8152
          %v8240 = vunpack.c.l.b16 %v8153
          %v8241 = vunpack.c.h.b16 %v8153
          %v8242 = vunpack.c.l.b16 %v8154
          %v8243 = vunpack.c.h.b16 %v8154
          %v8244 = vunpack.c.l.b16 %v8155
          %v8245 = vunpack.c.h.b16 %v8155
          %v8246 = vunpack.c.l.b16 %v8156
          %v8247 = vunpack.c.h.b16 %v8156
          %v8248 = vunpack.c.l.b16 %v8157
          %v8249 = vunpack.c.h.b16 %v8157
          %v8250 = vunpack.c.l.b16 %v8158
          %v8251 = vunpack.c.h.b16 %v8158
          %v8252 = vunpack.c.l.b16 %v8159
          %v8253 = vunpack.c.h.b16 %v8159
          %v8254 = vunpack.c.l.b16 %v8160
          %v8255 = vunpack.c.h.b16 %v8160
          %v8256 = vunpack.c.l.b16 %v8161
          %v8257 = vunpack.c.h.b16 %v8161
          %v8258 = vpack.c.b16 %v8196, %v8194
          %v8259 = vpack.c.b16 %v8197, %v8195
          %v8260 = vpack.c.b16 %v8200, %v8198
          %v8261 = vpack.c.b16 %v8201, %v8199
          %v8262 = vpack.c.b16 %v8204, %v8202
          %v8263 = vpack.c.b16 %v8205, %v8203
          %v8264 = vpack.c.b16 %v8208, %v8206
          %v8265 = vpack.c.b16 %v8209, %v8207
          %v8266 = vpack.c.b16 %v8212, %v8210
          %v8267 = vpack.c.b16 %v8213, %v8211
          %v8268 = vpack.c.b16 %v8216, %v8214
          %v8269 = vpack.c.b16 %v8217, %v8215
          %v8270 = vpack.c.b16 %v8220, %v8218
          %v8271 = vpack.c.b16 %v8221, %v8219
          %v8272 = vpack.c.b16 %v8224, %v8222
          %v8273 = vpack.c.b16 %v8225, %v8223
          %v8274 = vpack.c.b16 %v8228, %v8226
          %v8275 = vpack.c.b16 %v8229, %v8227
          %v8276 = vpack.c.b16 %v8232, %v8230
          %v8277 = vpack.c.b16 %v8233, %v8231
          %v8278 = vpack.c.b16 %v8236, %v8234
          %v8279 = vpack.c.b16 %v8237, %v8235
          %v8280 = vpack.c.b16 %v8240, %v8238
          %v8281 = vpack.c.b16 %v8241, %v8239
          %v8282 = vpack.c.b16 %v8244, %v8242
          %v8283 = vpack.c.b16 %v8245, %v8243
          %v8284 = vpack.c.b16 %v8248, %v8246
          %v8285 = vpack.c.b16 %v8249, %v8247
          %v8286 = vpack.c.b16 %v8252, %v8250
          %v8287 = vpack.c.b16 %v8253, %v8251
          %v8288 = vpack.c.b16 %v8256, %v8254
          %v8289 = vpack.c.b16 %v8257, %v8255
          %8322 = vmatprep.subr.bf16.mxu0 %v8259
          %8323 = vmatpush1.bf16.msra.mxu0 %v8258
          %8324 = vmatprep.subr.bf16.mxu0 %v8261
          %8325 = vmatpush1.bf16.msra.mxu0 %v8260
          %8326 = vmatprep.subr.bf16.mxu0 %v8263
          %8327 = vmatpush1.bf16.msra.mxu0 %v8262
          %8328 = vmatprep.subr.bf16.mxu0 %v8265
          %8329 = vmatpush1.bf16.msra.mxu0 %v8264
          %8330 = vmatprep.subr.bf16.mxu0 %v8267
          %8331 = vmatpush1.bf16.msra.mxu0 %v8266
          %8332 = vmatprep.subr.bf16.mxu0 %v8269
          %8333 = vmatpush1.bf16.msra.mxu0 %v8268
          %8334 = vmatprep.subr.bf16.mxu0 %v8271
          %8335 = vmatpush1.bf16.msra.mxu0 %v8270
          %8336 = vmatprep.subr.bf16.mxu0 %v8273
          %8337 = vmatpush1.bf16.msra.mxu0 %v8272
          %8338 = vmatprep.subr.bf16.mxu0 %v8275
          %8339 = vmatpush1.bf16.msra.mxu0 %v8274
          %8340 = vmatprep.subr.bf16.mxu0 %v8277
          %8341 = vmatpush1.bf16.msra.mxu0 %v8276
          %8342 = vmatprep.subr.bf16.mxu0 %v8279
          %8343 = vmatpush1.bf16.msra.mxu0 %v8278
          %8344 = vmatprep.subr.bf16.mxu0 %v8281
          %8345 = vmatpush1.bf16.msra.mxu0 %v8280
          %8346 = vmatprep.subr.bf16.mxu0 %v8283
          %8347 = vmatpush1.bf16.msra.mxu0 %v8282
          %8348 = vmatprep.subr.bf16.mxu0 %v8285
          %8349 = vmatpush1.bf16.msra.mxu0 %v8284
          %8350 = vmatprep.subr.bf16.mxu0 %v8287
          %8351 = vmatpush1.bf16.msra.mxu0 %v8286
          %8352 = vmatprep.subr.bf16.mxu0 %v8289
          %8353 = vmatpush1.bf16.msra.mxu0 %v8288
          %8354 = vmatprep.mubr.bf16.mxu0 %v8122
          %8355 = vmatmul.mubr.bf16.gmra.mrb[0].mxu0 %v8121
          %v8356 = vpop.f32.mrb[0].mxu0
          %v8357 = vadd.f32 0.0, %v8356
          %v8358 = vpop.f32.mrb[0].mxu0
          %v8359 = vadd.f32 0.0, %v8358
          %v8360 = vpop.f32.mrb[0].mxu0
          %v8361 = vadd.f32 0.0, %v8360
          %v8362 = vpop.f32.mrb[0].mxu0
          %v8363 = vadd.f32 0.0, %v8362
          %8364 = vmatprep.mubr.bf16.mxu0 %v8124
          %8365 = vmatmul.mubr.bf16.gmra.mrb[0].mxu0 %v8123
          %v8366 = vpop.f32.mrb[0].mxu0
          %v8367 = vadd.f32 0.0, %v8366
          %v8368 = vpop.f32.mrb[0].mxu0
          %v8369 = vadd.f32 0.0, %v8368
          %v8370 = vpop.f32.mrb[0].mxu0
          %v8371 = vadd.f32 0.0, %v8370
          %v8372 = vpop.f32.mrb[0].mxu0
          %v8373 = vadd.f32 0.0, %v8372
          %8374 = vmatprep.mubr.bf16.mxu0 %v8126
          %8375 = vmatmul.mubr.bf16.gmra.mrb[0].mxu0 %v8125
          %v8376 = vpop.f32.mrb[0].mxu0
          %v8377 = vadd.f32 0.0, %v8376
          %v8378 = vpop.f32.mrb[0].mxu0
          %v8379 = vadd.f32 0.0, %v8378
          %v8380 = vpop.f32.mrb[0].mxu0
          %v8381 = vadd.f32 0.0, %v8380
          %v8382 = vpop.f32.mrb[0].mxu0
          %v8383 = vadd.f32 0.0, %v8382
          %8384 = vmatprep.mubr.bf16.mxu0 %v8128
          %8385 = vmatmul.mubr.bf16.gmra.mrb[0].mxu0 %v8127
          %v8386 = vpop.f32.mrb[0].mxu0
          %v8387 = vadd.f32 0.0, %v8386
          %v8388 = vpop.f32.mrb[0].mxu0
          %v8389 = vadd.f32 0.0, %v8388
          %v8390 = vpop.f32.mrb[0].mxu0
          %v8391 = vadd.f32 0.0, %v8390
          %v8392 = vpop.f32.mrb[0].mxu0
          %v8393 = vadd.f32 0.0, %v8392
          %8394 = vdwg.mxu0
          %v8427 = vunpack.c.l.b16 %v7570
          %v8428 = vunpack.c.h.b16 %v7570
          %v8429 = vunpack.c.l.b16 %v7571
          %v8430 = vunpack.c.h.b16 %v7571
          %v8431 = vunpack.c.l.b16 %v7572
          %v8432 = vunpack.c.h.b16 %v7572
          %v8433 = vunpack.c.l.b16 %v7573
          %v8434 = vunpack.c.h.b16 %v7573
          %v8435 = vunpack.c.l.b16 %v7574
          %v8436 = vunpack.c.h.b16 %v7574
          %v8437 = vunpack.c.l.b16 %v7575
          %v8438 = vunpack.c.h.b16 %v7575
          %v8439 = vunpack.c.l.b16 %v7576
          %v8440 = vunpack.c.h.b16 %v7576
          %v8441 = vunpack.c.l.b16 %v7577
          %v8442 = vunpack.c.h.b16 %v7577
          %v8443 = vunpack.c.l.b16 %v7578
          %v8444 = vunpack.c.h.b16 %v7578
          %v8445 = vunpack.c.l.b16 %v7579
          %v8446 = vunpack.c.h.b16 %v7579
          %v8447 = vunpack.c.l.b16 %v7580
          %v8448 = vunpack.c.h.b16 %v7580
          %v8449 = vunpack.c.l.b16 %v7581
          %v8450 = vunpack.c.h.b16 %v7581
          %v8451 = vunpack.c.l.b16 %v7582
          %v8452 = vunpack.c.h.b16 %v7582
          %v8453 = vunpack.c.l.b16 %v7583
          %v8454 = vunpack.c.h.b16 %v7583
          %v8455 = vunpack.c.l.b16 %v7584
          %v8456 = vunpack.c.h.b16 %v7584
          %v8457 = vunpack.c.l.b16 %v7585
          %v8458 = vunpack.c.h.b16 %v7585
          %v8459 = vunpack.c.l.b16 %v7586
          %v8460 = vunpack.c.h.b16 %v7586
          %v8461 = vunpack.c.l.b16 %v7587
          %v8462 = vunpack.c.h.b16 %v7587
          %v8463 = vunpack.c.l.b16 %v7588
          %v8464 = vunpack.c.h.b16 %v7588
          %v8465 = vunpack.c.l.b16 %v7589
          %v8466 = vunpack.c.h.b16 %v7589
          %v8467 = vunpack.c.l.b16 %v7590
          %v8468 = vunpack.c.h.b16 %v7590
          %v8469 = vunpack.c.l.b16 %v7591
          %v8470 = vunpack.c.h.b16 %v7591
          %v8471 = vunpack.c.l.b16 %v7592
          %v8472 = vunpack.c.h.b16 %v7592
          %v8473 = vunpack.c.l.b16 %v7593
          %v8474 = vunpack.c.h.b16 %v7593
          %v8475 = vunpack.c.l.b16 %v7594
          %v8476 = vunpack.c.h.b16 %v7594
          %v8477 = vunpack.c.l.b16 %v7595
          %v8478 = vunpack.c.h.b16 %v7595
          %v8479 = vunpack.c.l.b16 %v7596
          %v8480 = vunpack.c.h.b16 %v7596
          %v8481 = vunpack.c.l.b16 %v7597
          %v8482 = vunpack.c.h.b16 %v7597
          %v8483 = vunpack.c.l.b16 %v7598
          %v8484 = vunpack.c.h.b16 %v7598
          %v8485 = vunpack.c.l.b16 %v7599
          %v8486 = vunpack.c.h.b16 %v7599
          %v8487 = vunpack.c.l.b16 %v7600
          %v8488 = vunpack.c.h.b16 %v7600
          %v8489 = vunpack.c.l.b16 %v7601
          %v8490 = vunpack.c.h.b16 %v7601
          %v8491 = vpack.c.b16 %v8429, %v8427
          %v8492 = vpack.c.b16 %v8430, %v8428
          %v8493 = vpack.c.b16 %v8433, %v8431
          %v8494 = vpack.c.b16 %v8434, %v8432
          %v8495 = vpack.c.b16 %v8437, %v8435
          %v8496 = vpack.c.b16 %v8438, %v8436
          %v8497 = vpack.c.b16 %v8441, %v8439
          %v8498 = vpack.c.b16 %v8442, %v8440
          %v8499 = vpack.c.b16 %v8445, %v8443
          %v8500 = vpack.c.b16 %v8446, %v8444
          %v8501 = vpack.c.b16 %v8449, %v8447
          %v8502 = vpack.c.b16 %v8450, %v8448
          %v8503 = vpack.c.b16 %v8453, %v8451
          %v8504 = vpack.c.b16 %v8454, %v8452
          %v8505 = vpack.c.b16 %v8457, %v8455
          %v8506 = vpack.c.b16 %v8458, %v8456
          %v8507 = vpack.c.b16 %v8461, %v8459
          %v8508 = vpack.c.b16 %v8462, %v8460
          %v8509 = vpack.c.b16 %v8465, %v8463
          %v8510 = vpack.c.b16 %v8466, %v8464
          %v8511 = vpack.c.b16 %v8469, %v8467
          %v8512 = vpack.c.b16 %v8470, %v8468
          %v8513 = vpack.c.b16 %v8473, %v8471
          %v8514 = vpack.c.b16 %v8474, %v8472
          %v8515 = vpack.c.b16 %v8477, %v8475
          %v8516 = vpack.c.b16 %v8478, %v8476
          %v8517 = vpack.c.b16 %v8481, %v8479
          %v8518 = vpack.c.b16 %v8482, %v8480
          %v8519 = vpack.c.b16 %v8485, %v8483
          %v8520 = vpack.c.b16 %v8486, %v8484
          %v8521 = vpack.c.b16 %v8489, %v8487
          %v8522 = vpack.c.b16 %v8490, %v8488
          %8555 = vmatprep.subr.bf16.mxu0 %v8492
          %8556 = vmatpush1.bf16.msra.mxu0 %v8491
          %8557 = vmatprep.subr.bf16.mxu0 %v8494
          %8558 = vmatpush1.bf16.msra.mxu0 %v8493
          %8559 = vmatprep.subr.bf16.mxu0 %v8496
          %8560 = vmatpush1.bf16.msra.mxu0 %v8495
          %8561 = vmatprep.subr.bf16.mxu0 %v8498
          %8562 = vmatpush1.bf16.msra.mxu0 %v8497
          %8563 = vmatprep.subr.bf16.mxu0 %v8500
          %8564 = vmatpush1.bf16.msra.mxu0 %v8499
          %8565 = vmatprep.subr.bf16.mxu0 %v8502
          %8566 = vmatpush1.bf16.msra.mxu0 %v8501
          %8567 = vmatprep.subr.bf16.mxu0 %v8504
          %8568 = vmatpush1.bf16.msra.mxu0 %v8503
          %8569 = vmatprep.subr.bf16.mxu0 %v8506
          %8570 = vmatpush1.bf16.msra.mxu0 %v8505
          %8571 = vmatprep.subr.bf16.mxu0 %v8508
          %8572 = vmatpush1.bf16.msra.mxu0 %v8507
          %8573 = vmatprep.subr.bf16.mxu0 %v8510
          %8574 = vmatpush1.bf16.msra.mxu0 %v8509
          %8575 = vmatprep.subr.bf16.mxu0 %v8512
          %8576 = vmatpush1.bf16.msra.mxu0 %v8511
          %8577 = vmatprep.subr.bf16.mxu0 %v8514
          %8578 = vmatpush1.bf16.msra.mxu0 %v8513
          %8579 = vmatprep.subr.bf16.mxu0 %v8516
          %8580 = vmatpush1.bf16.msra.mxu0 %v8515
          %8581 = vmatprep.subr.bf16.mxu0 %v8518
          %8582 = vmatpush1.bf16.msra.mxu0 %v8517
          %8583 = vmatprep.subr.bf16.mxu0 %v8520
          %8584 = vmatpush1.bf16.msra.mxu0 %v8519
          %8585 = vmatprep.subr.bf16.mxu0 %v8522
          %8586 = vmatpush1.bf16.msra.mxu0 %v8521
          %8587 = vmatprep.mubr.bf16.mxu0 %v7562
          %8588 = vmatmul.mubr.bf16.gmra.mrb[0].mxu0 %v7561
          %v8589 = vpop.f32.mrb[0].mxu0
          %v8590 = vadd.f32 %v8357, %v8589
          %v8591 = vpop.f32.mrb[0].mxu0
          %v8592 = vadd.f32 %v8359, %v8591
          %v8593 = vpop.f32.mrb[0].mxu0
          %v8594 = vadd.f32 %v8361, %v8593
          %v8595 = vpop.f32.mrb[0].mxu0
          %v8596 = vadd.f32 %v8363, %v8595
          %8597 = vmatprep.mubr.bf16.mxu0 %v7564
          %8598 = vmatmul.mubr.bf16.gmra.mrb[0].mxu0 %v7563
          %v8599 = vpop.f32.mrb[0].mxu0
          %v8600 = vadd.f32 %v8367, %v8599
          %v8601 = vpop.f32.mrb[0].mxu0
          %v8602 = vadd.f32 %v8369, %v8601
          %v8603 = vpop.f32.mrb[0].mxu0
          %v8604 = vadd.f32 %v8371, %v8603
          %v8605 = vpop.f32.mrb[0].mxu0
          %v8606 = vadd.f32 %v8373, %v8605
          %8607 = vmatprep.mubr.bf16.mxu0 %v7566
          %8608 = vmatmul.mubr.bf16.gmra.mrb[0].mxu0 %v7565
          %v8609 = vpop.f32.mrb[0].mxu0
          %v8610 = vadd.f32 %v8377, %v8609
          %v8611 = vpop.f32.mrb[0].mxu0
          %v8612 = vadd.f32 %v8379, %v8611
          %v8613 = vpop.f32.mrb[0].mxu0
          %v8614 = vadd.f32 %v8381, %v8613
          %v8615 = vpop.f32.mrb[0].mxu0
          %v8616 = vadd.f32 %v8383, %v8615
          %8617 = vmatprep.mubr.bf16.mxu0 %v7568
          %8618 = vmatmul.mubr.bf16.gmra.mrb[0].mxu0 %v7567
          %v8619 = vpop.f32.mrb[0].mxu0
          %v8620 = vadd.f32 %v8387, %v8619
          %v8621 = vpop.f32.mrb[0].mxu0
          %v8622 = vadd.f32 %v8389, %v8621
          %v8623 = vpop.f32.mrb[0].mxu0
          %v8624 = vadd.f32 %v8391, %v8623
          %v8625 = vpop.f32.mrb[0].mxu0
          %v8626 = vadd.f32 %v8393, %v8625
          %8627 = vdwg.mxu0
          %v8628 = vld [vmem:[#allocation4 + $0x40] sm:$0xff]
          %v8629 = vld [vmem:[#allocation4 + $0x48] sm:$0xff]
          %v8630 = vld [vmem:[#allocation4 + $0x50] sm:$0xff]
          %v8631 = vld [vmem:[#allocation4 + $0x58] sm:$0xff]
          %v8632 = vld [vmem:[#allocation4 + $0x60] sm:$0xff]
          %v8633 = vld [vmem:[#allocation4 + $0x68] sm:$0xff]
          %v8634 = vld [vmem:[#allocation4 + $0x70] sm:$0xff]
          %v8635 = vld [vmem:[#allocation4 + $0x78] sm:$0xff]
          %v8636 = vld [vmem:[#allocation4 + $0x80] sm:$0xff]
          %v8637 = vld [vmem:[#allocation4 + $0x88] sm:$0xff]
          %v8638 = vld [vmem:[#allocation4 + $0x90] sm:$0xff]
          %v8639 = vld [vmem:[#allocation4 + $0x98] sm:$0xff]
          %v8640 = vld [vmem:[#allocation4 + $0xa0] sm:$0xff]
          %v8641 = vld [vmem:[#allocation4 + $0xa8] sm:$0xff]
          %v8642 = vld [vmem:[#allocation4 + $0xb0] sm:$0xff]
          %v8643 = vld [vmem:[#allocation4 + $0xb8] sm:$0xff]
          %v8644 = vpack.c.bf16 %v8630, %v8628
          %v8645 = vpack.c.bf16 %v8631, %v8629
          %v8646 = vpack.c.bf16 %v8634, %v8632
          %v8647 = vpack.c.bf16 %v8635, %v8633
          %v8648 = vpack.c.bf16 %v8638, %v8636
          %v8649 = vpack.c.bf16 %v8639, %v8637
          %v8650 = vpack.c.bf16 %v8642, %v8640
          %v8651 = vpack.c.bf16 %v8643, %v8641
          %s8652 = scalar_lea.vmem [#allocation15], 1024
          %v8653 = vld [vmem:[%s8652] sm:$0xff]
          %v8654 = vld [vmem:[%s8652 + $0x8] sm:$0xff]
          %v8655 = vld [vmem:[%s8652 + $0x10] sm:$0xff]
          %v8656 = vld [vmem:[%s8652 + $0x18] sm:$0xff]
          %v8657 = vld [vmem:[%s8652 + $0x20] sm:$0xff]
          %v8658 = vld [vmem:[%s8652 + $0x28] sm:$0xff]
          %v8659 = vld [vmem:[%s8652 + $0x30] sm:$0xff]
          %v8660 = vld [vmem:[%s8652 + $0x38] sm:$0xff]
          %v8661 = vld [vmem:[%s8652 + $0x40] sm:$0xff]
          %v8662 = vld [vmem:[%s8652 + $0x48] sm:$0xff]
          %v8663 = vld [vmem:[%s8652 + $0x50] sm:$0xff]
          %v8664 = vld [vmem:[%s8652 + $0x58] sm:$0xff]
          %v8665 = vld [vmem:[%s8652 + $0x60] sm:$0xff]
          %v8666 = vld [vmem:[%s8652 + $0x68] sm:$0xff]
          %v8667 = vld [vmem:[%s8652 + $0x70] sm:$0xff]
          %v8668 = vld [vmem:[%s8652 + $0x78] sm:$0xff]
          %v8669 = vld [vmem:[%s8652 + $0x80] sm:$0xff]
          %v8670 = vld [vmem:[%s8652 + $0x88] sm:$0xff]
          %v8671 = vld [vmem:[%s8652 + $0x90] sm:$0xff]
          %v8672 = vld [vmem:[%s8652 + $0x98] sm:$0xff]
          %v8673 = vld [vmem:[%s8652 + $0xa0] sm:$0xff]
          %v8674 = vld [vmem:[%s8652 + $0xa8] sm:$0xff]
          %v8675 = vld [vmem:[%s8652 + $0xb0] sm:$0xff]
          %v8676 = vld [vmem:[%s8652 + $0xb8] sm:$0xff]
          %v8677 = vld [vmem:[%s8652 + $0xc0] sm:$0xff]
          %v8678 = vld [vmem:[%s8652 + $0xc8] sm:$0xff]
          %v8679 = vld [vmem:[%s8652 + $0xd0] sm:$0xff]
          %v8680 = vld [vmem:[%s8652 + $0xd8] sm:$0xff]
          %v8681 = vld [vmem:[%s8652 + $0xe0] sm:$0xff]
          %v8682 = vld [vmem:[%s8652 + $0xe8] sm:$0xff]
          %v8683 = vld [vmem:[%s8652 + $0xf0] sm:$0xff]
          %v8684 = vld [vmem:[%s8652 + $0xf8] sm:$0xff]
          %v8717 = vunpack.c.l.b16 %v8653
          %v8718 = vunpack.c.h.b16 %v8653
          %v8719 = vunpack.c.l.b16 %v8654
          %v8720 = vunpack.c.h.b16 %v8654
          %v8721 = vunpack.c.l.b16 %v8655
          %v8722 = vunpack.c.h.b16 %v8655
          %v8723 = vunpack.c.l.b16 %v8656
          %v8724 = vunpack.c.h.b16 %v8656
          %v8725 = vunpack.c.l.b16 %v8657
          %v8726 = vunpack.c.h.b16 %v8657
          %v8727 = vunpack.c.l.b16 %v8658
          %v8728 = vunpack.c.h.b16 %v8658
          %v8729 = vunpack.c.l.b16 %v8659
          %v8730 = vunpack.c.h.b16 %v8659
          %v8731 = vunpack.c.l.b16 %v8660
          %v8732 = vunpack.c.h.b16 %v8660
          %v8733 = vunpack.c.l.b16 %v8661
          %v8734 = vunpack.c.h.b16 %v8661
          %v8735 = vunpack.c.l.b16 %v8662
          %v8736 = vunpack.c.h.b16 %v8662
          %v8737 = vunpack.c.l.b16 %v8663
          %v8738 = vunpack.c.h.b16 %v8663
          %v8739 = vunpack.c.l.b16 %v8664
          %v8740 = vunpack.c.h.b16 %v8664
          %v8741 = vunpack.c.l.b16 %v8665
          %v8742 = vunpack.c.h.b16 %v8665
          %v8743 = vunpack.c.l.b16 %v8666
          %v8744 = vunpack.c.h.b16 %v8666
          %v8745 = vunpack.c.l.b16 %v8667
          %v8746 = vunpack.c.h.b16 %v8667
          %v8747 = vunpack.c.l.b16 %v8668
          %v8748 = vunpack.c.h.b16 %v8668
          %v8749 = vunpack.c.l.b16 %v8669
          %v8750 = vunpack.c.h.b16 %v8669
          %v8751 = vunpack.c.l.b16 %v8670
          %v8752 = vunpack.c.h.b16 %v8670
          %v8753 = vunpack.c.l.b16 %v8671
          %v8754 = vunpack.c.h.b16 %v8671
          %v8755 = vunpack.c.l.b16 %v8672
          %v8756 = vunpack.c.h.b16 %v8672
          %v8757 = vunpack.c.l.b16 %v8673
          %v8758 = vunpack.c.h.b16 %v8673
          %v8759 = vunpack.c.l.b16 %v8674
          %v8760 = vunpack.c.h.b16 %v8674
          %v8761 = vunpack.c.l.b16 %v8675
          %v8762 = vunpack.c.h.b16 %v8675
          %v8763 = vunpack.c.l.b16 %v8676
          %v8764 = vunpack.c.h.b16 %v8676
          %v8765 = vunpack.c.l.b16 %v8677
          %v8766 = vunpack.c.h.b16 %v8677
          %v8767 = vunpack.c.l.b16 %v8678
          %v8768 = vunpack.c.h.b16 %v8678
          %v8769 = vunpack.c.l.b16 %v8679
          %v8770 = vunpack.c.h.b16 %v8679
          %v8771 = vunpack.c.l.b16 %v8680
          %v8772 = vunpack.c.h.b16 %v8680
          %v8773 = vunpack.c.l.b16 %v8681
          %v8774 = vunpack.c.h.b16 %v8681
          %v8775 = vunpack.c.l.b16 %v8682
          %v8776 = vunpack.c.h.b16 %v8682
          %v8777 = vunpack.c.l.b16 %v8683
          %v8778 = vunpack.c.h.b16 %v8683
          %v8779 = vunpack.c.l.b16 %v8684
          %v8780 = vunpack.c.h.b16 %v8684
          %v8781 = vpack.c.b16 %v8719, %v8717
          %v8782 = vpack.c.b16 %v8720, %v8718
          %v8783 = vpack.c.b16 %v8723, %v8721
          %v8784 = vpack.c.b16 %v8724, %v8722
          %v8785 = vpack.c.b16 %v8727, %v8725
          %v8786 = vpack.c.b16 %v8728, %v8726
          %v8787 = vpack.c.b16 %v8731, %v8729
          %v8788 = vpack.c.b16 %v8732, %v8730
          %v8789 = vpack.c.b16 %v8735, %v8733
          %v8790 = vpack.c.b16 %v8736, %v8734
          %v8791 = vpack.c.b16 %v8739, %v8737
          %v8792 = vpack.c.b16 %v8740, %v8738
          %v8793 = vpack.c.b16 %v8743, %v8741
          %v8794 = vpack.c.b16 %v8744, %v8742
          %v8795 = vpack.c.b16 %v8747, %v8745
          %v8796 = vpack.c.b16 %v8748, %v8746
          %v8797 = vpack.c.b16 %v8751, %v8749
          %v8798 = vpack.c.b16 %v8752, %v8750
          %v8799 = vpack.c.b16 %v8755, %v8753
          %v8800 = vpack.c.b16 %v8756, %v8754
          %v8801 = vpack.c.b16 %v8759, %v8757
          %v8802 = vpack.c.b16 %v8760, %v8758
          %v8803 = vpack.c.b16 %v8763, %v8761
          %v8804 = vpack.c.b16 %v8764, %v8762
          %v8805 = vpack.c.b16 %v8767, %v8765
          %v8806 = vpack.c.b16 %v8768, %v8766
          %v8807 = vpack.c.b16 %v8771, %v8769
          %v8808 = vpack.c.b16 %v8772, %v8770
          %v8809 = vpack.c.b16 %v8775, %v8773
          %v8810 = vpack.c.b16 %v8776, %v8774
          %v8811 = vpack.c.b16 %v8779, %v8777
          %v8812 = vpack.c.b16 %v8780, %v8778
          %8845 = vmatprep.subr.bf16.mxu0 %v8782
          %8846 = vmatpush1.bf16.msra.mxu0 %v8781
          %8847 = vmatprep.subr.bf16.mxu0 %v8784
          %8848 = vmatpush1.bf16.msra.mxu0 %v8783
          %8849 = vmatprep.subr.bf16.mxu0 %v8786
          %8850 = vmatpush1.bf16.msra.mxu0 %v8785
          %8851 = vmatprep.subr.bf16.mxu0 %v8788
          %8852 = vmatpush1.bf16.msra.mxu0 %v8787
          %8853 = vmatprep.subr.bf16.mxu0 %v8790
          %8854 = vmatpush1.bf16.msra.mxu0 %v8789
          %8855 = vmatprep.subr.bf16.mxu0 %v8792
          %8856 = vmatpush1.bf16.msra.mxu0 %v8791
          %8857 = vmatprep.subr.bf16.mxu0 %v8794
          %8858 = vmatpush1.bf16.msra.mxu0 %v8793
          %8859 = vmatprep.subr.bf16.mxu0 %v8796
          %8860 = vmatpush1.bf16.msra.mxu0 %v8795
          %8861 = vmatprep.subr.bf16.mxu0 %v8798
          %8862 = vmatpush1.bf16.msra.mxu0 %v8797
          %8863 = vmatprep.subr.bf16.mxu0 %v8800
          %8864 = vmatpush1.bf16.msra.mxu0 %v8799
          %8865 = vmatprep.subr.bf16.mxu0 %v8802
          %8866 = vmatpush1.bf16.msra.mxu0 %v8801
          %8867 = vmatprep.subr.bf16.mxu0 %v8804
          %8868 = vmatpush1.bf16.msra.mxu0 %v8803
          %8869 = vmatprep.subr.bf16.mxu0 %v8806
          %8870 = vmatpush1.bf16.msra.mxu0 %v8805
          %8871 = vmatprep.subr.bf16.mxu0 %v8808
          %8872 = vmatpush1.bf16.msra.mxu0 %v8807
          %8873 = vmatprep.subr.bf16.mxu0 %v8810
          %8874 = vmatpush1.bf16.msra.mxu0 %v8809
          %8875 = vmatprep.subr.bf16.mxu0 %v8812
          %8876 = vmatpush1.bf16.msra.mxu0 %v8811
          %8877 = vmatprep.mubr.bf16.mxu0 %v8645
          %8878 = vmatmul.mubr.bf16.gmra.mrb[0].mxu0 %v8644
          %v8879 = vpop.f32.mrb[0].mxu0
          %v8880 = vadd.f32 0.0, %v8879
          %v8881 = vpop.f32.mrb[0].mxu0
          %v8882 = vadd.f32 0.0, %v8881
          %v8883 = vpop.f32.mrb[0].mxu0
          %v8884 = vadd.f32 0.0, %v8883
          %v8885 = vpop.f32.mrb[0].mxu0
          %v8886 = vadd.f32 0.0, %v8885
          %8887 = vmatprep.mubr.bf16.mxu0 %v8647
          %8888 = vmatmul.mubr.bf16.gmra.mrb[0].mxu0 %v8646
          %v8889 = vpop.f32.mrb[0].mxu0
          %v8890 = vadd.f32 0.0, %v8889
          %v8891 = vpop.f32.mrb[0].mxu0
          %v8892 = vadd.f32 0.0, %v8891
          %v8893 = vpop.f32.mrb[0].mxu0
          %v8894 = vadd.f32 0.0, %v8893
          %v8895 = vpop.f32.mrb[0].mxu0
          %v8896 = vadd.f32 0.0, %v8895
          %8897 = vmatprep.mubr.bf16.mxu0 %v8649
          %8898 = vmatmul.mubr.bf16.gmra.mrb[0].mxu0 %v8648
          %v8899 = vpop.f32.mrb[0].mxu0
          %v8900 = vadd.f32 0.0, %v8899
          %v8901 = vpop.f32.mrb[0].mxu0
          %v8902 = vadd.f32 0.0, %v8901
          %v8903 = vpop.f32.mrb[0].mxu0
          %v8904 = vadd.f32 0.0, %v8903
          %v8905 = vpop.f32.mrb[0].mxu0
          %v8906 = vadd.f32 0.0, %v8905
          %8907 = vmatprep.mubr.bf16.mxu0 %v8651
          %8908 = vmatmul.mubr.bf16.gmra.mrb[0].mxu0 %v8650
          %v8909 = vpop.f32.mrb[0].mxu0
          %v8910 = vadd.f32 0.0, %v8909
          %v8911 = vpop.f32.mrb[0].mxu0
          %v8912 = vadd.f32 0.0, %v8911
          %v8913 = vpop.f32.mrb[0].mxu0
          %v8914 = vadd.f32 0.0, %v8913
          %v8915 = vpop.f32.mrb[0].mxu0
          %v8916 = vadd.f32 0.0, %v8915
          %8917 = vdwg.mxu0
          %v8918 = vadd.f32 %v8067, %v8880
          %v8919 = vadd.f32 %v8069, %v8882
          %v8920 = vadd.f32 %v8071, %v8884
          %v8921 = vadd.f32 %v8073, %v8886
          %v8922 = vadd.f32 %v8077, %v8890
          %v8923 = vadd.f32 %v8079, %v8892
          %v8924 = vadd.f32 %v8081, %v8894
          %v8925 = vadd.f32 %v8083, %v8896
          %v8926 = vadd.f32 %v8087, %v8900
          %v8927 = vadd.f32 %v8089, %v8902
          %v8928 = vadd.f32 %v8091, %v8904
          %v8929 = vadd.f32 %v8093, %v8906
          %v8930 = vadd.f32 %v8097, %v8910
          %v8931 = vadd.f32 %v8099, %v8912
          %v8932 = vadd.f32 %v8101, %v8914
          %v8933 = vadd.f32 %v8103, %v8916
          %v8934 = vadd.f32 %v8918, %v8590
          %v8935 = vadd.f32 %v8919, %v8592
          %v8936 = vadd.f32 %v8920, %v8594
          %v8937 = vadd.f32 %v8921, %v8596
          %v8938 = vadd.f32 %v8922, %v8600
          %v8939 = vadd.f32 %v8923, %v8602
          %v8940 = vadd.f32 %v8924, %v8604
          %v8941 = vadd.f32 %v8925, %v8606
          %v8942 = vadd.f32 %v8926, %v8610
          %v8943 = vadd.f32 %v8927, %v8612
          %v8944 = vadd.f32 %v8928, %v8614
          %v8945 = vadd.f32 %v8929, %v8616
          %v8946 = vadd.f32 %v8930, %v8620
          %v8947 = vadd.f32 %v8931, %v8622
          %v8948 = vadd.f32 %v8932, %v8624
          %v8949 = vadd.f32 %v8933, %v8626
          %v8950 = vld [vmem:[#allocation17] sm:$0x3]
          %v8952 = vlaneseq
          %v8953 = vshrl.u32 %v8952, 7
          %v8954 = vsub.s32 0, %v8953
          %v8955 = vrot.slane %v8950, %v8954
          %v8956 = vlaneseq
          %v8957 = vshrl.u32 %v8956, 7
          %v8958 = vsub.s32 1, %v8957
          %v8959 = vrot.slane %v8950, %v8958
          %v8962 = vadd.f32 %v8934, %v8955
          %v8963 = vadd.f32 %v8935, %v8959
          %v8964 = vadd.f32 %v8936, %v8955
          %v8965 = vadd.f32 %v8937, %v8959
          %v8966 = vadd.f32 %v8938, %v8955
          %v8967 = vadd.f32 %v8939, %v8959
          %v8968 = vadd.f32 %v8940, %v8955
          %v8969 = vadd.f32 %v8941, %v8959
          %v8970 = vadd.f32 %v8942, %v8955
          %v8971 = vadd.f32 %v8943, %v8959
          %v8972 = vadd.f32 %v8944, %v8955
          %v8973 = vadd.f32 %v8945, %v8959
          %v8974 = vadd.f32 %v8946, %v8955
          %v8975 = vadd.f32 %v8947, %v8959
          %v8976 = vadd.f32 %v8948, %v8955
          %v8977 = vadd.f32 %v8949, %v8959
          %v8978 = vmax.f32 %v8962, 0.0
          %v8979 = vmax.f32 %v8963, 0.0
          %v8980 = vmax.f32 %v8964, 0.0
          %v8981 = vmax.f32 %v8965, 0.0
          %v8982 = vmax.f32 %v8966, 0.0
          %v8983 = vmax.f32 %v8967, 0.0
          %v8984 = vmax.f32 %v8968, 0.0
          %v8985 = vmax.f32 %v8969, 0.0
          %v8986 = vmax.f32 %v8970, 0.0
          %v8987 = vmax.f32 %v8971, 0.0
          %v8988 = vmax.f32 %v8972, 0.0
          %v8989 = vmax.f32 %v8973, 0.0
          %v8990 = vmax.f32 %v8974, 0.0
          %v8991 = vmax.f32 %v8975, 0.0
          %v8992 = vmax.f32 %v8976, 0.0
          %v8993 = vmax.f32 %v8977, 0.0
          %v8994 = vld [vmem:[#allocation18] sm:$0xff]
          %v8995 = vld [vmem:[#allocation18 + $0x8] sm:$0xff]
          %v8996 = vld [vmem:[#allocation18 + $0x10] sm:$0xff]
          %v8997 = vld [vmem:[#allocation18 + $0x18] sm:$0xff]
          %v8998 = vld [vmem:[#allocation18 + $0x20] sm:$0xff]
          %v8999 = vld [vmem:[#allocation18 + $0x28] sm:$0xff]
          %v9000 = vld [vmem:[#allocation18 + $0x30] sm:$0xff]
          %v9001 = vld [vmem:[#allocation18 + $0x38] sm:$0xff]
          %v9002 = vld [vmem:[#allocation18 + $0x40] sm:$0xff]
          %v9003 = vld [vmem:[#allocation18 + $0x48] sm:$0xff]
          %v9004 = vld [vmem:[#allocation18 + $0x50] sm:$0xff]
          %v9005 = vld [vmem:[#allocation18 + $0x58] sm:$0xff]
          %v9006 = vld [vmem:[#allocation18 + $0x60] sm:$0xff]
          %v9007 = vld [vmem:[#allocation18 + $0x68] sm:$0xff]
          %v9008 = vld [vmem:[#allocation18 + $0x70] sm:$0xff]
          %v9009 = vld [vmem:[#allocation18 + $0x78] sm:$0xff]
          %v9010 = vld [vmem:[#allocation18 + $0x80] sm:$0xff]
          %v9011 = vld [vmem:[#allocation18 + $0x88] sm:$0xff]
          %v9012 = vld [vmem:[#allocation18 + $0x90] sm:$0xff]
          %v9013 = vld [vmem:[#allocation18 + $0x98] sm:$0xff]
          %v9014 = vld [vmem:[#allocation18 + $0xa0] sm:$0xff]
          %v9015 = vld [vmem:[#allocation18 + $0xa8] sm:$0xff]
          %v9016 = vld [vmem:[#allocation18 + $0xb0] sm:$0xff]
          %v9017 = vld [vmem:[#allocation18 + $0xb8] sm:$0xff]
          %v9018 = vld [vmem:[#allocation18 + $0xc0] sm:$0xff]
          %v9019 = vld [vmem:[#allocation18 + $0xc8] sm:$0xff]
          %v9020 = vld [vmem:[#allocation18 + $0xd0] sm:$0xff]
          %v9021 = vld [vmem:[#allocation18 + $0xd8] sm:$0xff]
          %v9022 = vld [vmem:[#allocation18 + $0xe0] sm:$0xff]
          %v9023 = vld [vmem:[#allocation18 + $0xe8] sm:$0xff]
          %v9024 = vld [vmem:[#allocation18 + $0xf0] sm:$0xff]
          %v9025 = vld [vmem:[#allocation18 + $0xf8] sm:$0xff]
          %v9026 = vld [vmem:[#allocation20] sm:$0x1]
          %v9028 = vlaneseq
          %v9029 = vshrl.u32 %v9028, 7
          %v9030 = vsub.s32 0, %v9029
          %v9031 = vrot.slane %v9026, %v9030
          %9033 = vmatprep.subr.mxu0 0.0
          %9034 = vmatpush1.msra.mxu0 %v8994
          %9035 = vmatprep.subr.mxu0 0.0
          %9036 = vmatpush1.msra.mxu0 %v8995
          %9037 = vmatprep.subr.mxu0 0.0
          %9038 = vmatpush1.msra.mxu0 %v8996
          %9039 = vmatprep.subr.mxu0 0.0
          %9040 = vmatpush1.msra.mxu0 %v8997
          %9041 = vmatprep.subr.mxu0 0.0
          %9042 = vmatpush1.msra.mxu0 %v8998
          %9043 = vmatprep.subr.mxu0 0.0
          %9044 = vmatpush1.msra.mxu0 %v8999
          %9045 = vmatprep.subr.mxu0 0.0
          %9046 = vmatpush1.msra.mxu0 %v9000
          %9047 = vmatprep.subr.mxu0 0.0
          %9048 = vmatpush1.msra.mxu0 %v9001
          %9049 = vmatprep.subr.mxu0 0.0
          %9050 = vmatpush1.msra.mxu0 %v9002
          %9051 = vmatprep.subr.mxu0 0.0
          %9052 = vmatpush1.msra.mxu0 %v9003
          %9053 = vmatprep.subr.mxu0 0.0
          %9054 = vmatpush1.msra.mxu0 %v9004
          %9055 = vmatprep.subr.mxu0 0.0
          %9056 = vmatpush1.msra.mxu0 %v9005
          %9057 = vmatprep.subr.mxu0 0.0
          %9058 = vmatpush1.msra.mxu0 %v9006
          %9059 = vmatprep.subr.mxu0 0.0
          %9060 = vmatpush1.msra.mxu0 %v9007
          %9061 = vmatprep.subr.mxu0 0.0
          %9062 = vmatpush1.msra.mxu0 %v9008
          %9063 = vmatprep.subr.mxu0 0.0
          %9064 = vmatpush1.msra.mxu0 %v9009
          %9065 = vmatprep.subr.mxu0 0.0
          %9066 = vmatpush1.msra.mxu0 %v9010
          %9067 = vmatprep.subr.mxu0 0.0
          %9068 = vmatpush1.msra.mxu0 %v9011
          %9069 = vmatprep.subr.mxu0 0.0
          %9070 = vmatpush1.msra.mxu0 %v9012
          %9071 = vmatprep.subr.mxu0 0.0
          %9072 = vmatpush1.msra.mxu0 %v9013
          %9073 = vmatprep.subr.mxu0 0.0
          %9074 = vmatpush1.msra.mxu0 %v9014
          %9075 = vmatprep.subr.mxu0 0.0
          %9076 = vmatpush1.msra.mxu0 %v9015
          %9077 = vmatprep.subr.mxu0 0.0
          %9078 = vmatpush1.msra.mxu0 %v9016
          %9079 = vmatprep.subr.mxu0 0.0
          %9080 = vmatpush1.msra.mxu0 %v9017
          %9081 = vmatprep.subr.mxu0 0.0
          %9082 = vmatpush1.msra.mxu0 %v9018
          %9083 = vmatprep.subr.mxu0 0.0
          %9084 = vmatpush1.msra.mxu0 %v9019
          %9085 = vmatprep.subr.mxu0 0.0
          %9086 = vmatpush1.msra.mxu0 %v9020
          %9087 = vmatprep.subr.mxu0 0.0
          %9088 = vmatpush1.msra.mxu0 %v9021
          %9089 = vmatprep.subr.mxu0 0.0
          %9090 = vmatpush1.msra.mxu0 %v9022
          %9091 = vmatprep.subr.mxu0 0.0
          %9092 = vmatpush1.msra.mxu0 %v9023
          %9093 = vmatprep.subr.mxu0 0.0
          %9094 = vmatpush1.msra.mxu0 %v9024
          %9095 = vmatprep.subr.mxu0 0.0
          %9096 = vmatpush1.msra.mxu0 %v9025
          %9097 = vmatprep.mubr.f32.mxu0 %v8979
          %9098 = vmatmul.mubr.f32.gmra.mrb[0].mxu0 %v8978
          %v9099 = vpop.f32.mrb[0].mxu0
          %v9100 = vadd.f32 %v9031, %v9099
          %v9101 = vpop.f32.mrb[0].mxu0
          %9102 = vmatprep.mubr.f32.mxu0 %v8981
          %9103 = vmatmul.mubr.f32.gmra.mrb[0].mxu0 %v8980
          %v9104 = vpop.f32.mrb[0].mxu0
          %v9105 = vadd.f32 %v9031, %v9104
          %v9106 = vpop.f32.mrb[0].mxu0
          %9107 = vmatprep.mubr.f32.mxu0 %v8983
          %9108 = vmatmul.mubr.f32.gmra.mrb[0].mxu0 %v8982
          %v9109 = vpop.f32.mrb[0].mxu0
          %v9110 = vadd.f32 %v9031, %v9109
          %v9111 = vpop.f32.mrb[0].mxu0
          %9112 = vmatprep.mubr.f32.mxu0 %v8985
          %9113 = vmatmul.mubr.f32.gmra.mrb[0].mxu0 %v8984
          %v9114 = vpop.f32.mrb[0].mxu0
          %v9115 = vadd.f32 %v9031, %v9114
          %v9116 = vpop.f32.mrb[0].mxu0
          %9117 = vmatprep.mubr.f32.mxu0 %v8987
          %9118 = vmatmul.mubr.f32.gmra.mrb[0].mxu0 %v8986
          %v9119 = vpop.f32.mrb[0].mxu0
          %v9120 = vadd.f32 %v9031, %v9119
          %v9121 = vpop.f32.mrb[0].mxu0
          %9122 = vmatprep.mubr.f32.mxu0 %v8989
          %9123 = vmatmul.mubr.f32.gmra.mrb[0].mxu0 %v8988
          %v9124 = vpop.f32.mrb[0].mxu0
          %v9125 = vadd.f32 %v9031, %v9124
          %v9126 = vpop.f32.mrb[0].mxu0
          %9127 = vmatprep.mubr.f32.mxu0 %v8991
          %9128 = vmatmul.mubr.f32.gmra.mrb[0].mxu0 %v8990
          %v9129 = vpop.f32.mrb[0].mxu0
          %v9130 = vadd.f32 %v9031, %v9129
          %v9131 = vpop.f32.mrb[0].mxu0
          %9132 = vmatprep.mubr.f32.mxu0 %v8993
          %9133 = vmatmul.mubr.f32.gmra.mrb[0].mxu0 %v8992
          %v9134 = vpop.f32.mrb[0].mxu0
          %v9135 = vadd.f32 %v9031, %v9134
          %v9136 = vpop.f32.mrb[0].mxu0
          %9137 = vdwg.mxu0
          %v9138 = vmax.f32 %v9100, 0.0
          %v9139 = vmax.f32 %v9105, 0.0
          %v9140 = vmax.f32 %v9110, 0.0
          %v9141 = vmax.f32 %v9115, 0.0
          %v9142 = vmax.f32 %v9120, 0.0
          %v9143 = vmax.f32 %v9125, 0.0
          %v9144 = vmax.f32 %v9130, 0.0
          %v9145 = vmax.f32 %v9135, 0.0
          %v9146 = vld [vmem:[#allocation21] sm:$0xff]
          %v9147 = vld [vmem:[#allocation21 + $0x8] sm:$0xff]
          %v9148 = vld [vmem:[#allocation21 + $0x10] sm:$0xff]
          %v9149 = vld [vmem:[#allocation21 + $0x18] sm:$0xff]
          %v9150 = vld [vmem:[#allocation21 + $0x20] sm:$0xff]
          %v9151 = vld [vmem:[#allocation21 + $0x28] sm:$0xff]
          %v9152 = vld [vmem:[#allocation21 + $0x30] sm:$0xff]
          %v9153 = vld [vmem:[#allocation21 + $0x38] sm:$0xff]
          %v9154 = vld [vmem:[#allocation21 + $0x40] sm:$0xff]
          %v9155 = vld [vmem:[#allocation21 + $0x48] sm:$0xff]
          %v9156 = vld [vmem:[#allocation21 + $0x50] sm:$0xff]
          %v9157 = vld [vmem:[#allocation21 + $0x58] sm:$0xff]
          %v9158 = vld [vmem:[#allocation21 + $0x60] sm:$0xff]
          %v9159 = vld [vmem:[#allocation21 + $0x68] sm:$0xff]
          %v9160 = vld [vmem:[#allocation21 + $0x70] sm:$0xff]
          %v9161 = vld [vmem:[#allocation21 + $0x78] sm:$0xff]
          %v9162 = vld [vmem:[#allocation21 + $0x80] sm:$0xff]
          %v9163 = vld [vmem:[#allocation21 + $0x88] sm:$0xff]
          %v9164 = vld [vmem:[#allocation21 + $0x90] sm:$0xff]
          %v9165 = vld [vmem:[#allocation21 + $0x98] sm:$0xff]
          %v9166 = vld [vmem:[#allocation21 + $0xa0] sm:$0xff]
          %v9167 = vld [vmem:[#allocation21 + $0xa8] sm:$0xff]
          %v9168 = vld [vmem:[#allocation21 + $0xb0] sm:$0xff]
          %v9169 = vld [vmem:[#allocation21 + $0xb8] sm:$0xff]
          %v9170 = vld [vmem:[#allocation21 + $0xc0] sm:$0xff]
          %v9171 = vld [vmem:[#allocation21 + $0xc8] sm:$0xff]
          %v9172 = vld [vmem:[#allocation21 + $0xd0] sm:$0xff]
          %v9173 = vld [vmem:[#allocation21 + $0xd8] sm:$0xff]
          %v9174 = vld [vmem:[#allocation21 + $0xe0] sm:$0xff]
          %v9175 = vld [vmem:[#allocation21 + $0xe8] sm:$0xff]
          %v9176 = vld [vmem:[#allocation21 + $0xf0] sm:$0xff]
          %v9177 = vld [vmem:[#allocation21 + $0xf8] sm:$0xff]
          %v9178 = vld [vmem:[#allocation23] sm:$0x3]
          %v9180 = vlaneseq
          %v9181 = vshrl.u32 %v9180, 7
          %v9182 = vsub.s32 0, %v9181
          %v9183 = vrot.slane %v9178, %v9182
          %v9184 = vlaneseq
          %v9185 = vshrl.u32 %v9184, 7
          %v9186 = vsub.s32 1, %v9185
          %v9187 = vrot.slane %v9178, %v9186
          %9190 = vmatprep.subr.mxu0 %v9147
          %9191 = vmatpush1.msra.mxu0 %v9146
          %9192 = vmatprep.subr.mxu0 %v9149
          %9193 = vmatpush1.msra.mxu0 %v9148
          %9194 = vmatprep.subr.mxu0 %v9151
          %9195 = vmatpush1.msra.mxu0 %v9150
          %9196 = vmatprep.subr.mxu0 %v9153
          %9197 = vmatpush1.msra.mxu0 %v9152
          %9198 = vmatprep.subr.mxu0 %v9155
          %9199 = vmatpush1.msra.mxu0 %v9154
          %9200 = vmatprep.subr.mxu0 %v9157
          %9201 = vmatpush1.msra.mxu0 %v9156
          %9202 = vmatprep.subr.mxu0 %v9159
          %9203 = vmatpush1.msra.mxu0 %v9158
          %9204 = vmatprep.subr.mxu0 %v9161
          %9205 = vmatpush1.msra.mxu0 %v9160
          %9206 = vmatprep.subr.mxu0 %v9163
          %9207 = vmatpush1.msra.mxu0 %v9162
          %9208 = vmatprep.subr.mxu0 %v9165
          %9209 = vmatpush1.msra.mxu0 %v9164
          %9210 = vmatprep.subr.mxu0 %v9167
          %9211 = vmatpush1.msra.mxu0 %v9166
          %9212 = vmatprep.subr.mxu0 %v9169
          %9213 = vmatpush1.msra.mxu0 %v9168
          %9214 = vmatprep.subr.mxu0 %v9171
          %9215 = vmatpush1.msra.mxu0 %v9170
          %9216 = vmatprep.subr.mxu0 %v9173
          %9217 = vmatpush1.msra.mxu0 %v9172
          %9218 = vmatprep.subr.mxu0 %v9175
          %9219 = vmatpush1.msra.mxu0 %v9174
          %9220 = vmatprep.subr.mxu0 %v9177
          %9221 = vmatpush1.msra.mxu0 %v9176
          %9222 = vmatprep.subr.mxu0 0.0
          %9223 = vmatpush1.msra.mxu0 0.0
          %9224 = vmatprep.subr.mxu0 0.0
          %9225 = vmatpush1.msra.mxu0 0.0
          %9226 = vmatprep.subr.mxu0 0.0
          %9227 = vmatpush1.msra.mxu0 0.0
          %9228 = vmatprep.subr.mxu0 0.0
          %9229 = vmatpush1.msra.mxu0 0.0
          %9230 = vmatprep.subr.mxu0 0.0
          %9231 = vmatpush1.msra.mxu0 0.0
          %9232 = vmatprep.subr.mxu0 0.0
          %9233 = vmatpush1.msra.mxu0 0.0
          %9234 = vmatprep.subr.mxu0 0.0
          %9235 = vmatpush1.msra.mxu0 0.0
          %9236 = vmatprep.subr.mxu0 0.0
          %9237 = vmatpush1.msra.mxu0 0.0
          %9238 = vmatprep.subr.mxu0 0.0
          %9239 = vmatpush1.msra.mxu0 0.0
          %9240 = vmatprep.subr.mxu0 0.0
          %9241 = vmatpush1.msra.mxu0 0.0
          %9242 = vmatprep.subr.mxu0 0.0
          %9243 = vmatpush1.msra.mxu0 0.0
          %9244 = vmatprep.subr.mxu0 0.0
          %9245 = vmatpush1.msra.mxu0 0.0
          %9246 = vmatprep.subr.mxu0 0.0
          %9247 = vmatpush1.msra.mxu0 0.0
          %9248 = vmatprep.subr.mxu0 0.0
          %9249 = vmatpush1.msra.mxu0 0.0
          %9250 = vmatprep.subr.mxu0 0.0
          %9251 = vmatpush1.msra.mxu0 0.0
          %9252 = vmatprep.subr.mxu0 0.0
          %9253 = vmatpush1.msra.mxu0 0.0
          %9254 = vmatprep.mubr.f32.mxu0 0.0
          %9255 = vmatmul.mubr.f32.gmra.mrb[0].mxu0 %v9138
          %v9256 = vpop.f32.mrb[0].mxu0
          %v9257 = vadd.f32 %v9183, %v9256
          %v9258 = vpop.f32.mrb[0].mxu0
          %v9259 = vadd.f32 %v9187, %v9258
          %9260 = vmatprep.mubr.f32.mxu0 0.0
          %9261 = vmatmul.mubr.f32.gmra.mrb[0].mxu0 %v9139
          %v9262 = vpop.f32.mrb[0].mxu0
          %v9263 = vadd.f32 %v9183, %v9262
          %v9264 = vpop.f32.mrb[0].mxu0
          %v9265 = vadd.f32 %v9187, %v9264
          %9266 = vmatprep.mubr.f32.mxu0 0.0
          %9267 = vmatmul.mubr.f32.gmra.mrb[0].mxu0 %v9140
          %v9268 = vpop.f32.mrb[0].mxu0
          %v9269 = vadd.f32 %v9183, %v9268
          %v9270 = vpop.f32.mrb[0].mxu0
          %v9271 = vadd.f32 %v9187, %v9270
          %9272 = vmatprep.mubr.f32.mxu0 0.0
          %9273 = vmatmul.mubr.f32.gmra.mrb[0].mxu0 %v9141
          %v9274 = vpop.f32.mrb[0].mxu0
          %v9275 = vadd.f32 %v9183, %v9274
          %v9276 = vpop.f32.mrb[0].mxu0
          %v9277 = vadd.f32 %v9187, %v9276
          %9278 = vmatprep.mubr.f32.mxu0 0.0
          %9279 = vmatmul.mubr.f32.gmra.mrb[0].mxu0 %v9142
          %v9280 = vpop.f32.mrb[0].mxu0
          %v9281 = vadd.f32 %v9183, %v9280
          %v9282 = vpop.f32.mrb[0].mxu0
          %v9283 = vadd.f32 %v9187, %v9282
          %9284 = vmatprep.mubr.f32.mxu0 0.0
          %9285 = vmatmul.mubr.f32.gmra.mrb[0].mxu0 %v9143
          %v9286 = vpop.f32.mrb[0].mxu0
          %v9287 = vadd.f32 %v9183, %v9286
          %v9288 = vpop.f32.mrb[0].mxu0
          %v9289 = vadd.f32 %v9187, %v9288
          %9290 = vmatprep.mubr.f32.mxu0 0.0
          %9291 = vmatmul.mubr.f32.gmra.mrb[0].mxu0 %v9144
          %v9292 = vpop.f32.mrb[0].mxu0
          %v9293 = vadd.f32 %v9183, %v9292
          %v9294 = vpop.f32.mrb[0].mxu0
          %v9295 = vadd.f32 %v9187, %v9294
          %9296 = vmatprep.mubr.f32.mxu0 0.0
          %9297 = vmatmul.mubr.f32.gmra.mrb[0].mxu0 %v9145
          %v9298 = vpop.f32.mrb[0].mxu0
          %v9299 = vadd.f32 %v9183, %v9298
          %v9300 = vpop.f32.mrb[0].mxu0
          %v9301 = vadd.f32 %v9187, %v9300
          %9302 = vdwg.mxu0
          %v9303 = vmax.f32 %v9257, 0.0
          %v9304 = vmax.f32 %v9259, 0.0
          %v9305 = vmax.f32 %v9263, 0.0
          %v9306 = vmax.f32 %v9265, 0.0
          %v9307 = vmax.f32 %v9269, 0.0
          %v9308 = vmax.f32 %v9271, 0.0
          %v9309 = vmax.f32 %v9275, 0.0
          %v9310 = vmax.f32 %v9277, 0.0
          %v9311 = vmax.f32 %v9281, 0.0
          %v9312 = vmax.f32 %v9283, 0.0
          %v9313 = vmax.f32 %v9287, 0.0
          %v9314 = vmax.f32 %v9289, 0.0
          %v9315 = vmax.f32 %v9293, 0.0
          %v9316 = vmax.f32 %v9295, 0.0
          %v9317 = vmax.f32 %v9299, 0.0
          %v9318 = vmax.f32 %v9301, 0.0
          %v9319 = vld [vmem:[#allocation24] sm:$0xff]
          %v9320 = vld [vmem:[#allocation24 + $0x8] sm:$0xff]
          %v9321 = vld [vmem:[#allocation24 + $0x10] sm:$0xff]
          %v9322 = vld [vmem:[#allocation24 + $0x18] sm:$0xff]
          %v9323 = vld [vmem:[#allocation24 + $0x20] sm:$0xff]
          %v9324 = vld [vmem:[#allocation24 + $0x28] sm:$0xff]
          %v9325 = vld [vmem:[#allocation24 + $0x30] sm:$0xff]
          %v9326 = vld [vmem:[#allocation24 + $0x38] sm:$0xff]
          %v9327 = vld [vmem:[#allocation24 + $0x40] sm:$0xff]
          %v9328 = vld [vmem:[#allocation24 + $0x48] sm:$0xff]
          %v9329 = vld [vmem:[#allocation24 + $0x50] sm:$0xff]
          %v9330 = vld [vmem:[#allocation24 + $0x58] sm:$0xff]
          %v9331 = vld [vmem:[#allocation24 + $0x60] sm:$0xff]
          %v9332 = vld [vmem:[#allocation24 + $0x68] sm:$0xff]
          %v9333 = vld [vmem:[#allocation24 + $0x70] sm:$0xff]
          %v9334 = vld [vmem:[#allocation24 + $0x78] sm:$0xff]
          %v9335 = vld [vmem:[#allocation24 + $0x80] sm:$0xff]
          %v9336 = vld [vmem:[#allocation24 + $0x88] sm:$0xff]
          %v9337 = vld [vmem:[#allocation24 + $0x90] sm:$0xff]
          %v9338 = vld [vmem:[#allocation24 + $0x98] sm:$0xff]
          %v9339 = vld [vmem:[#allocation24 + $0xa0] sm:$0xff]
          %v9340 = vld [vmem:[#allocation24 + $0xa8] sm:$0xff]
          %v9341 = vld [vmem:[#allocation24 + $0xb0] sm:$0xff]
          %v9342 = vld [vmem:[#allocation24 + $0xb8] sm:$0xff]
          %v9343 = vld [vmem:[#allocation24 + $0xc0] sm:$0xff]
          %v9344 = vld [vmem:[#allocation24 + $0xc8] sm:$0xff]
          %v9345 = vld [vmem:[#allocation24 + $0xd0] sm:$0xff]
          %v9346 = vld [vmem:[#allocation24 + $0xd8] sm:$0xff]
          %v9347 = vld [vmem:[#allocation24 + $0xe0] sm:$0xff]
          %v9348 = vld [vmem:[#allocation24 + $0xe8] sm:$0xff]
          %v9349 = vld [vmem:[#allocation24 + $0xf0] sm:$0xff]
          %v9350 = vld [vmem:[#allocation24 + $0xf8] sm:$0xff]
          %v9351 = vld [vmem:[#allocation26] sm:$0x1]
          %v9353 = vlaneseq
          %v9354 = vshrl.u32 %v9353, 7
          %v9355 = vsub.s32 0, %v9354
          %v9356 = vrot.slane %v9351, %v9355
          %9358 = vmatprep.subr.mxu0 0.0
          %9359 = vmatpush1.msra.mxu0 %v9319
          %9360 = vmatprep.subr.mxu0 0.0
          %9361 = vmatpush1.msra.mxu0 %v9320
          %9362 = vmatprep.subr.mxu0 0.0
          %9363 = vmatpush1.msra.mxu0 %v9321
          %9364 = vmatprep.subr.mxu0 0.0
          %9365 = vmatpush1.msra.mxu0 %v9322
          %9366 = vmatprep.subr.mxu0 0.0
          %9367 = vmatpush1.msra.mxu0 %v9323
          %9368 = vmatprep.subr.mxu0 0.0
          %9369 = vmatpush1.msra.mxu0 %v9324
          %9370 = vmatprep.subr.mxu0 0.0
          %9371 = vmatpush1.msra.mxu0 %v9325
          %9372 = vmatprep.subr.mxu0 0.0
          %9373 = vmatpush1.msra.mxu0 %v9326
          %9374 = vmatprep.subr.mxu0 0.0
          %9375 = vmatpush1.msra.mxu0 %v9327
          %9376 = vmatprep.subr.mxu0 0.0
          %9377 = vmatpush1.msra.mxu0 %v9328
          %9378 = vmatprep.subr.mxu0 0.0
          %9379 = vmatpush1.msra.mxu0 %v9329
          %9380 = vmatprep.subr.mxu0 0.0
          %9381 = vmatpush1.msra.mxu0 %v9330
          %9382 = vmatprep.subr.mxu0 0.0
          %9383 = vmatpush1.msra.mxu0 %v9331
          %9384 = vmatprep.subr.mxu0 0.0
          %9385 = vmatpush1.msra.mxu0 %v9332
          %9386 = vmatprep.subr.mxu0 0.0
          %9387 = vmatpush1.msra.mxu0 %v9333
          %9388 = vmatprep.subr.mxu0 0.0
          %9389 = vmatpush1.msra.mxu0 %v9334
          %9390 = vmatprep.subr.mxu0 0.0
          %9391 = vmatpush1.msra.mxu0 %v9335
          %9392 = vmatprep.subr.mxu0 0.0
          %9393 = vmatpush1.msra.mxu0 %v9336
          %9394 = vmatprep.subr.mxu0 0.0
          %9395 = vmatpush1.msra.mxu0 %v9337
          %9396 = vmatprep.subr.mxu0 0.0
          %9397 = vmatpush1.msra.mxu0 %v9338
          %9398 = vmatprep.subr.mxu0 0.0
          %9399 = vmatpush1.msra.mxu0 %v9339
          %9400 = vmatprep.subr.mxu0 0.0
          %9401 = vmatpush1.msra.mxu0 %v9340
          %9402 = vmatprep.subr.mxu0 0.0
          %9403 = vmatpush1.msra.mxu0 %v9341
          %9404 = vmatprep.subr.mxu0 0.0
          %9405 = vmatpush1.msra.mxu0 %v9342
          %9406 = vmatprep.subr.mxu0 0.0
          %9407 = vmatpush1.msra.mxu0 %v9343
          %9408 = vmatprep.subr.mxu0 0.0
          %9409 = vmatpush1.msra.mxu0 %v9344
          %9410 = vmatprep.subr.mxu0 0.0
          %9411 = vmatpush1.msra.mxu0 %v9345
          %9412 = vmatprep.subr.mxu0 0.0
          %9413 = vmatpush1.msra.mxu0 %v9346
          %9414 = vmatprep.subr.mxu0 0.0
          %9415 = vmatpush1.msra.mxu0 %v9347
          %9416 = vmatprep.subr.mxu0 0.0
          %9417 = vmatpush1.msra.mxu0 %v9348
          %9418 = vmatprep.subr.mxu0 0.0
          %9419 = vmatpush1.msra.mxu0 %v9349
          %9420 = vmatprep.subr.mxu0 0.0
          %9421 = vmatpush1.msra.mxu0 %v9350
          %9422 = vmatprep.mubr.f32.mxu0 %v9304
          %9423 = vmatmul.mubr.f32.gmra.mrb[0].mxu0 %v9303
          %v9424 = vpop.f32.mrb[0].mxu0
          %v9425 = vadd.f32 %v9356, %v9424
          %v9426 = vpop.f32.mrb[0].mxu0
          %9427 = vmatprep.mubr.f32.mxu0 %v9306
          %9428 = vmatmul.mubr.f32.gmra.mrb[0].mxu0 %v9305
          %v9429 = vpop.f32.mrb[0].mxu0
          %v9430 = vadd.f32 %v9356, %v9429
          %v9431 = vpop.f32.mrb[0].mxu0
          %9432 = vmatprep.mubr.f32.mxu0 %v9308
          %9433 = vmatmul.mubr.f32.gmra.mrb[0].mxu0 %v9307
          %v9434 = vpop.f32.mrb[0].mxu0
          %v9435 = vadd.f32 %v9356, %v9434
          %v9436 = vpop.f32.mrb[0].mxu0
          %9437 = vmatprep.mubr.f32.mxu0 %v9310
          %9438 = vmatmul.mubr.f32.gmra.mrb[0].mxu0 %v9309
          %v9439 = vpop.f32.mrb[0].mxu0
          %v9440 = vadd.f32 %v9356, %v9439
          %v9441 = vpop.f32.mrb[0].mxu0
          %9442 = vmatprep.mubr.f32.mxu0 %v9312
          %9443 = vmatmul.mubr.f32.gmra.mrb[0].mxu0 %v9311
          %v9444 = vpop.f32.mrb[0].mxu0
          %v9445 = vadd.f32 %v9356, %v9444
          %v9446 = vpop.f32.mrb[0].mxu0
          %9447 = vmatprep.mubr.f32.mxu0 %v9314
          %9448 = vmatmul.mubr.f32.gmra.mrb[0].mxu0 %v9313
          %v9449 = vpop.f32.mrb[0].mxu0
          %v9450 = vadd.f32 %v9356, %v9449
          %v9451 = vpop.f32.mrb[0].mxu0
          %9452 = vmatprep.mubr.f32.mxu0 %v9316
          %9453 = vmatmul.mubr.f32.gmra.mrb[0].mxu0 %v9315
          %v9454 = vpop.f32.mrb[0].mxu0
          %v9455 = vadd.f32 %v9356, %v9454
          %v9456 = vpop.f32.mrb[0].mxu0
          %9457 = vmatprep.mubr.f32.mxu0 %v9318
          %9458 = vmatmul.mubr.f32.gmra.mrb[0].mxu0 %v9317
          %v9459 = vpop.f32.mrb[0].mxu0
          %v9460 = vadd.f32 %v9356, %v9459
          %v9461 = vpop.f32.mrb[0].mxu0
          %9462 = vdwg.mxu0
          %9463 = vst [vmem:[%s14] sm:$0xff] %v9425
          %9464 = vst [vmem:[%s14 + $0x8] sm:$0xff] %v9430
          %9465 = vst [vmem:[%s14 + $0x10] sm:$0xff] %v9435
          %9466 = vst [vmem:[%s14 + $0x18] sm:$0xff] %v9440
          %9467 = vst [vmem:[%s14 + $0x20] sm:$0xff] %v9445
          %9468 = vst [vmem:[%s14 + $0x28] sm:$0xff] %v9450
          %9469 = vst [vmem:[%s14 + $0x30] sm:$0xff] %v9455
          %9470 = vst [vmem:[%s14 + $0x38] sm:$0xff] %v9460
        $region140: #{forward.1} parent=75 // pred_fallthru
          _
        // Predicated region
        $region141: #{forward.1} parent=75 // pred_check
          %p9471 = pneg %p358
        $region142: #{forward.1} parent=75 // pred_check_branch
          %9473 = sbr.rel (%p9471) target = $region144
        $region143: #{forward.1} parent=75 // pred_region
          _
        $region144: #{forward.1} parent=75 // pred_fallthru
          _
        // Predicated region
        $region145: #{forward.1} parent=75 // pred_check
          %p9474 = pneg %p358
        $region146: #{forward.1} parent=75 // pred_check_branch
          %9476 = sbr.rel (%p9474) target = $region148
        $region147: #{forward.1} parent=75 // pred_region
          _
        $region148: #{forward.1} parent=75 // pred_fallthru
          _
      $region76: #{forward.1} parent=5 // pred_fallthru
        _
      %p9477 = scmp.le.s32.totalorder 2, %s31
      // Predicated region
      $region149: #{forward.1} parent=5 // pred_check
        %p9478 = pneg %p9477
      $region150: #{forward.1} parent=5 // pred_check_branch
        %9480 = sbr.rel (%p9478) target = $region152
      $region151: #{forward.1} parent=5 // pred_region
        %s9481 = ssub.s32 %s31, 2
      $region152: #{forward.1} parent=5 // pred_fallthru
        _
    $region6: #{forward.1} parent=1 // loop_footer
      %s35 = sadd.s32 1, %s31
    $region7: #{forward.1} parent=1 // loop_footer_branch
      %30 = sbr.rel target = $region3
    $region8: #{forward.1} parent=1 // loop_exit
      _
    %9482 = vsyncpa [#allocation8], 1
    %s9483 = scalar_lea.sflag [#allocation8], 1
    %9484 = vsyncpa %s9483, 1
    %9485 = vsyncpa [#allocation10], 1
    %s9486 = scalar_lea.sflag [#allocation10], 1
    %9487 = vsyncpa %s9486, 1
    %9488 = vsyncpa [#allocation13], 1
    %9489 = vsyncpa [#allocation16], 1
    %9490 = vsyncpa [#allocation19], 1
    %9491 = vsyncpa [#allocation22], 1
    %9492 = vsyncpa [#allocation25], 1

</llo_original>
